<compile_context>
chip_gen: v7x
topology: tpu7x:2x2x1
jax: 0.10.0
libtpu: 0.0.40
codegen_flags: <defaults>
</compile_context>

<pallas_src>
import numpy as np
import jax
import jax.numpy as jnp
from jax import lax
from jax.experimental import pallas as pl
from jax.experimental.pallas import tpu as pltpu

ALPHA = 0.1    # strength of the sin() nonlinearity in f
B_BLK = 128    # batch lanes per block (one full lane group)


def _build_ekf_kernel(F0n, H0n, Qn, Rn):
    """Build a kernel closure over the (numpy) system matrices."""
    m = F0n.shape[0]
    n = H0n.shape[0]
    assert n == 2, "in-kernel analytic inverse is specialized to n == 2"
    # TODO(synk): general n would need an in-kernel batched Gauss-Jordan solve.

    def lincomb(coeffs, vecs, extra=None):
        """sum_j coeffs[j]*vecs[j] (+ extra); zero coeffs dropped at trace time."""
        acc = extra
        for c, v in zip(coeffs, vecs):
            c = float(c)
            if c == 0.0:
                continue
            term = v if c == 1.0 else c * v
            acc = term if acc is None else acc + term
        if acc is None:
            acc = jnp.zeros_like(vecs[0])
        return acc

    def addc(v, c):
        c = float(c)
        return v + c if c != 0.0 else v

    def kernel(z_ref, x0_ref, P0_ref, xout_ref, xpost_ref, Ppost_ref):
        # grid = (batch_blocks [parallel], time_chunks [arbitrary])
        chunk = pl.program_id(1)

        @pl.when(chunk == 0)
        def _init():
            xpost_ref[...] = x0_ref[...]      # m1x_posterior carry  [m, B]
            Ppost_ref[...] = P0_ref[...]      # m2x_posterior carry  [m, m, B]

        tile_t = z_ref.shape[0]

        def step(t, carry):
            X, P = carry                      # X: [m, B]   P: [m, m, B]
            Z = z_ref[t]                      # [n, B]  observation at time t

            xp = [X[i] for i in range(m)]                       # each [B]
            Pp = [[P[i, j] for j in range(m)] for i in range(m)]
            zc = [Z[i] for i in range(n)]

            cg = [ALPHA * jnp.cos(xp[i]) for i in range(m)]     # diag(F - F0)

            # ---- Predict --------------------------------------------------
            # m1x_prior = f(x_post) = F0 @ x + ALPHA*sin(x)
            x_prior = [lincomb(F0n[i], xp, ALPHA * jnp.sin(xp[i]))
                       for i in range(m)]
            # FP = (F0 + diag(cg)) @ P_post   (row scaling, no explicit F)
            FP = [[lincomb(F0n[i], [Pp[j][k] for j in range(m)],
                           cg[i] * Pp[i][k])
                   for k in range(m)] for i in range(m)]
            # m2x_prior = FP @ F^T + Q  =  FP @ F0^T + FP * diag(cg) + Q
            P_prior = [[addc(lincomb(F0n[l], FP[i], FP[i][l] * cg[l]), Qn[i, l])
                        for l in range(m)] for i in range(m)]
            # m1y = h(x_prior) = H0 @ x_prior
            y_pred = [lincomb(H0n[i], x_prior) for i in range(n)]
            # HP = H0 @ m2x_prior
            HP = [[lincomb(H0n[i], [P_prior[j][k] for j in range(m)])
                   for k in range(m)] for i in range(n)]
            # m2y = HP @ H0^T + R
            S = [[addc(lincomb(H0n[l], HP[i]), Rn[i, l]) for l in range(n)]
                 for i in range(n)]

            # ---- KGain (analytic 2x2 inverse; reciprocal goes to EUP) ------
            det = S[0][0] * S[1][1] - S[0][1] * S[1][0]
            inv_det = pl.reciprocal(det, approx=False)
            Sinv = [[S[1][1] * inv_det, -S[0][1] * inv_det],
                    [-S[1][0] * inv_det, S[0][0] * inv_det]]
            # P12 = m2x_prior @ H0^T ;  KG = P12 @ Sinv
            P12 = [[lincomb(H0n[l], P_prior[i]) for l in range(n)]
                   for i in range(m)]
            KG = [[sum(P12[i][k] * Sinv[k][l] for k in range(n))
                   for l in range(n)] for i in range(m)]

            # ---- Innovation + Correct --------------------------------------
            dy = [zc[i] - y_pred[i] for i in range(n)]
            x_new = [x_prior[i] + sum(KG[i][k] * dy[k] for k in range(n))
                     for i in range(m)]
            P_new = [[P_prior[i][l] - sum(KG[i][k] * HP[k][l] for k in range(n))
                      for l in range(m)] for i in range(m)]

            Xn = jnp.stack(x_new, axis=0)                              # [m, B]
            Pn = jnp.stack([jnp.stack(r, axis=0) for r in P_new], 0)   # [m, m, B]
            xout_ref[t] = Xn
            return (Xn, Pn)

        Xf, Pf = lax.fori_loop(0, tile_t, step,
                               (xpost_ref[...], Ppost_ref[...]),
                               unroll=(tile_t <= 16))
        xpost_ref[...] = Xf
        Ppost_ref[...] = Pf

    return kernel


def ekf_forward(z, m1x_0b, m2x_0b, F0, H0, Q, R, *, tile_t=128):
    """PyTorch layout: z [B, T, n] -> x [B, T, m]."""
    B, T, n = z.shape
    m = F0.shape[0]

    # System matrices are compile-time constants of the kernel (set_ssmodel).
    F0n = np.asarray(F0, np.float32)
    H0n = np.asarray(H0, np.float32)
    Qn = np.asarray(Q, np.float32)
    Rn = np.asarray(R, np.float32)
    kernel = _build_ekf_kernel(F0n, H0n, Qn, Rn)

    tile_t = max(1, min(tile_t, T))
    n_chunks = pl.cdiv(T, tile_t)
    T_pad = n_chunks * tile_t
    nb = pl.cdiv(B, B_BLK)
    B_pad = nb * B_BLK

    # Time-major, batch-on-lanes layout.
    # TODO(synk): produce z in [T, n, B] upstream to drop these transposes for
    # large B*T (they are full HBM round-trips done by XLA).
    z_l = jnp.pad(jnp.transpose(z, (1, 2, 0)).astype(jnp.float32),
                  ((0, T_pad - T), (0, 0), (0, B_pad - B)))
    x0_l = jnp.pad(jnp.transpose(m1x_0b, (1, 0)).astype(jnp.float32),
                   ((0, 0), (0, B_pad - B)))
    P0_l = jnp.pad(jnp.transpose(m2x_0b, (1, 2, 0)).astype(jnp.float32),
                   ((0, 0), (0, 0), (0, B_pad - B)))

    x_l = pl.pallas_call(
        kernel,
        out_shape=jax.ShapeDtypeStruct((T_pad, m, B_pad), jnp.float32),
        grid_spec=pltpu.PrefetchScalarGridSpec(
            num_scalar_prefetch=0,
            grid=(nb, n_chunks),
            in_specs=[
                pl.BlockSpec((tile_t, n, B_BLK), lambda b, c: (c, 0, b)),  # z
                pl.BlockSpec((m, B_BLK), lambda b, c: (0, b)),             # m1x_0
                pl.BlockSpec((m, m, B_BLK), lambda b, c: (0, 0, b)),       # m2x_0
            ],
            out_specs=pl.BlockSpec((tile_t, m, B_BLK), lambda b, c: (c, 0, b)),
            scratch_shapes=[
                pltpu.VMEM((m, B_BLK), jnp.float32),      # m1x_posterior carry
                pltpu.VMEM((m, m, B_BLK), jnp.float32),   # m2x_posterior carry
            ],
        ),
        compiler_params=pltpu.CompilerParams(
            # batch blocks are independent (v7x megacore); T recursion is serial
            dimension_semantics=("parallel", "arbitrary")),
    )(z_l, x0_l, P0_l)

    return jnp.transpose(x_l[:T, :, :B], (2, 0, 1))   # back to [B, T, m]


def ekf_reference(z, m1x_0, m2x_0, F0, H0, Q, R):
    """Pure-JAX reference (lax.scan) with identical semantics."""
    m = F0.shape[0]
    eye_m = jnp.eye(m, dtype=jnp.float32)

    def step(carry, y):
        x_post, P_post = carry
        x_prior = x_post @ F0.T + ALPHA * jnp.sin(x_post)
        F = F0[None] + ALPHA * jnp.cos(x_post)[:, :, None] * eye_m[None]
        P_prior = F @ P_post @ jnp.swapaxes(F, -1, -2) + Q
        y_pred = x_prior @ H0.T
        HP = jnp.einsum('ij,bjk->bik', H0, P_prior)
        S = jnp.einsum('bij,kj->bik', HP, H0) + R
        P12 = jnp.einsum('bij,kj->bik', P_prior, H0)
        KG = P12 @ jnp.linalg.inv(S)
        dy = y - y_pred
        x_new = x_prior + jnp.einsum('bij,bj->bi', KG, dy)
        P_new = P_prior - KG @ HP
        return (x_new, P_new), x_new

    (_, _), xs = lax.scan(step, (m1x_0, m2x_0), jnp.transpose(z, (1, 0, 2)))
    return jnp.transpose(xs, (1, 0, 2))


if __name__ == "__main__":
    B, T, m, n = 2, 8, 4, 2
    dt = 0.1

    # Deterministic SystemModel parameters (constant-velocity-style).
    F0 = jnp.array([[1.0, 0.0, dt, 0.0],
                    [0.0, 1.0, 0.0, dt],
                    [0.0, 0.0, 1.0, 0.0],
                    [0.0, 0.0, 0.0, 1.0]], dtype=jnp.float32)
    H0 = jnp.array([[1.0, 0.0, 0.0, 0.0],
                    [0.0, 1.0, 0.0, 0.0]], dtype=jnp.float32)
    Q = 0.01 * jnp.eye(m, dtype=jnp.float32)
    R = 0.1 * jnp.eye(n, dtype=jnp.float32)
    m1x_0 = jnp.array([0.1, -0.2, 0.05, 0.0], dtype=jnp.float32)
    m2x_0 = jnp.eye(m, dtype=jnp.float32)

    # Batch-repeat of the initial moments (torch: m1x_0.repeat((B,1,1))).
    m1x0_b = jnp.broadcast_to(m1x_0, (B, m)).astype(jnp.float32)
    m2x0_b = jnp.broadcast_to(m2x_0, (B, m, m)).astype(jnp.float32)

    key = jax.random.PRNGKey(0)
    z = jax.random.normal(key, (B, T, n), dtype=jnp.float32)

    x = jax.block_until_ready(ekf_forward(z, m1x0_b, m2x0_b, F0, H0, Q, R))
    x_ref = ekf_reference(z, m1x0_b, m2x0_b, F0, H0, Q, R)

    assert x.shape == (B, T, m)
    assert jnp.allclose(x, x_ref, rtol=1e-4, atol=1e-4), "mismatch vs JAX reference"
    print("KERNEL_OK")
</pallas_src>

<mosaic_0001>
module attributes {stable_mosaic.version = 11 : i64} {
  func.func @kernel(%arg0: i32, %arg1: i32, %arg2: memref<8x2x128xf32, #tpu.memory_space<vmem>>, %arg3: memref<4x128xf32, #tpu.memory_space<vmem>>, %arg4: memref<4x4x128xf32, #tpu.memory_space<vmem>>, %arg5: memref<8x4x128xf32, #tpu.memory_space<vmem>>, %arg6: memref<4x128xf32, #tpu.memory_space<vmem>>, %arg7: memref<4x4x128xf32, #tpu.memory_space<vmem>>) attributes {dimension_semantics = [#tpu.dimension_semantics<parallel>, #tpu.dimension_semantics<arbitrary>], iteration_bounds = array<i64: 1, 1>, scalar_prefetch = 0 : i64, scratch_operands = 2 : i64, tpu.core_type = #tpu.core_type<tc>, window_params = [{transform_indices = @transform_0, window_bounds = array<i64: 8, 2, 128>}, {transform_indices = @transform_1, window_bounds = array<i64: 4, 128>}, {transform_indices = @transform_2, window_bounds = array<i64: 4, 4, 128>}, {transform_indices = @transform_3, window_bounds = array<i64: 8, 4, 128>}]} {
    %c0_i32 = arith.constant 0 : i32
    %0 = arith.cmpi eq, %arg1, %c0_i32 : i32
    %1 = arith.extui %0 : i1 to i32
    %c0_i32_0 = arith.constant 0 : i32
    %2 = arith.cmpi ne, %1, %c0_i32_0 : i32
    scf.if %2 {
      %c0_538 = arith.constant 0 : index
      %c0_539 = arith.constant 0 : index
      %3311 = vector.load %arg3[%c0_538, %c0_539] : memref<4x128xf32, #tpu.memory_space<vmem>>, vector<4x128xf32>
      %c0_540 = arith.constant 0 : index
      %c0_541 = arith.constant 0 : index
      %3312 = vector.load %arg6[%c0_540, %c0_541] : memref<4x128xf32, #tpu.memory_space<vmem>>, vector<4x128xf32>
      tpu.vector_store %arg6[%c0_540, %c0_541], %3311 {strides = array<i32>} : memref<4x128xf32, #tpu.memory_space<vmem>>, vector<4x128xf32>,
      %c0_542 = arith.constant 0 : index
      %c0_543 = arith.constant 0 : index
      %c0_544 = arith.constant 0 : index
      %3313 = vector.load %arg4[%c0_542, %c0_543, %c0_544] : memref<4x4x128xf32, #tpu.memory_space<vmem>>, vector<4x4x128xf32>
      %c0_545 = arith.constant 0 : index
      %c0_546 = arith.constant 0 : index
      %c0_547 = arith.constant 0 : index
      %3314 = vector.load %arg7[%c0_545, %c0_546, %c0_547] : memref<4x4x128xf32, #tpu.memory_space<vmem>>, vector<4x4x128xf32>
      tpu.vector_store %arg7[%c0_545, %c0_546, %c0_547], %3313 {strides = array<i32>} : memref<4x4x128xf32, #tpu.memory_space<vmem>>, vector<4x4x128xf32>,
    } else {
    }
    %c0 = arith.constant 0 : index
    %c0_1 = arith.constant 0 : index
    %3 = vector.load %arg6[%c0, %c0_1] : memref<4x128xf32, #tpu.memory_space<vmem>>, vector<4x128xf32>
    %c0_2 = arith.constant 0 : index
    %c0_3 = arith.constant 0 : index
    %c0_4 = arith.constant 0 : index
    %4 = vector.load %arg7[%c0_2, %c0_3, %c0_4] : memref<4x4x128xf32, #tpu.memory_space<vmem>>, vector<4x4x128xf32>
    %c0_i32_5 = arith.constant 0 : i32
    %5 = arith.index_cast %c0_i32_5 : i32 to index
    %c0_6 = arith.constant 0 : index
    %c0_7 = arith.constant 0 : index
    %6 = vector.load %arg2[%5, %c0_6, %c0_7] : memref<8x2x128xf32, #tpu.memory_space<vmem>>, vector<1x2x128xf32>
    %7 = vector.shape_cast %6 : vector<1x2x128xf32> to vector<2x128xf32>
    %8 = vector.extract_strided_slice %3 {offsets = [0, 0], sizes = [1, 128], strides = [1, 1]} : vector<4x128xf32> to vector<1x128xf32>
    %9 = vector.shape_cast %8 : vector<1x128xf32> to vector<128xf32>
    %10 = vector.extract_strided_slice %3 {offsets = [1, 0], sizes = [1, 128], strides = [1, 1]} : vector<4x128xf32> to vector<1x128xf32>
    %11 = vector.shape_cast %10 : vector<1x128xf32> to vector<128xf32>
    %12 = vector.extract_strided_slice %3 {offsets = [2, 0], sizes = [1, 128], strides = [1, 1]} : vector<4x128xf32> to vector<1x128xf32>
    %13 = vector.shape_cast %12 : vector<1x128xf32> to vector<128xf32>
    %14 = vector.extract_strided_slice %3 {offsets = [3, 0], sizes = [1, 128], strides = [1, 1]} : vector<4x128xf32> to vector<1x128xf32>
    %15 = vector.shape_cast %14 : vector<1x128xf32> to vector<128xf32>
    %16 = vector.extract_strided_slice %4 {offsets = [0, 0, 0], sizes = [1, 1, 128], strides = [1, 1, 1]} : vector<4x4x128xf32> to vector<1x1x128xf32>
    %17 = vector.shape_cast %16 : vector<1x1x128xf32> to vector<128xf32>
    %18 = vector.extract_strided_slice %4 {offsets = [0, 1, 0], sizes = [1, 1, 128], strides = [1, 1, 1]} : vector<4x4x128xf32> to vector<1x1x128xf32>
    %19 = vector.shape_cast %18 : vector<1x1x128xf32> to vector<128xf32>
    %20 = vector.extract_strided_slice %4 {offsets = [0, 2, 0], sizes = [1, 1, 128], strides = [1, 1, 1]} : vector<4x4x128xf32> to vector<1x1x128xf32>
    %21 = vector.shape_cast %20 : vector<1x1x128xf32> to vector<128xf32>
    %22 = vector.extract_strided_slice %4 {offsets = [0, 3, 0], sizes = [1, 1, 128], strides = [1, 1, 1]} : vector<4x4x128xf32> to vector<1x1x128xf32>
    %23 = vector.shape_cast %22 : vector<1x1x128xf32> to vector<128xf32>
    %24 = vector.extract_strided_slice %4 {offsets = [1, 0, 0], sizes = [1, 1, 128], strides = [1, 1, 1]} : vector<4x4x128xf32> to vector<1x1x128xf32>
    %25 = vector.shape_cast %24 : vector<1x1x128xf32> to vector<128xf32>
    %26 = vector.extract_strided_slice %4 {offsets = [1, 1, 0], sizes = [1, 1, 128], strides = [1, 1, 1]} : vector<4x4x128xf32> to vector<1x1x128xf32>
    %27 = vector.shape_cast %26 : vector<1x1x128xf32> to vector<128xf32>
    %28 = vector.extract_strided_slice %4 {offsets = [1, 2, 0], sizes = [1, 1, 128], strides = [1, 1, 1]} : vector<4x4x128xf32> to vector<1x1x128xf32>
    %29 = vector.shape_cast %28 : vector<1x1x128xf32> to vector<128xf32>
    %30 = vector.extract_strided_slice %4 {offsets = [1, 3, 0], sizes = [1, 1, 128], strides = [1, 1, 1]} : vector<4x4x128xf32> to vector<1x1x128xf32>
    %31 = vector.shape_cast %30 : vector<1x1x128xf32> to vector<128xf32>
    %32 = vector.extract_strided_slice %4 {offsets = [2, 0, 0], sizes = [1, 1, 128], strides = [1, 1, 1]} : vector<4x4x128xf32> to vector<1x1x128xf32>
    %33 = vector.shape_cast %32 : vector<1x1x128xf32> to vector<128xf32>
    %34 = vector.extract_strided_slice %4 {offsets = [2, 1, 0], sizes = [1, 1, 128], strides = [1, 1, 1]} : vector<4x4x128xf32> to vector<1x1x128xf32>
    %35 = vector.shape_cast %34 : vector<1x1x128xf32> to vector<128xf32>
    %36 = vector.extract_strided_slice %4 {offsets = [2, 2, 0], sizes = [1, 1, 128], strides = [1, 1, 1]} : vector<4x4x128xf32> to vector<1x1x128xf32>
    %37 = vector.shape_cast %36 : vector<1x1x128xf32> to vector<128xf32>
    %38 = vector.extract_strided_slice %4 {offsets = [2, 3, 0], sizes = [1, 1, 128], strides = [1, 1, 1]} : vector<4x4x128xf32> to vector<1x1x128xf32>
    %39 = vector.shape_cast %38 : vector<1x1x128xf32> to vector<128xf32>
    %40 = vector.extract_strided_slice %4 {offsets = [3, 0, 0], sizes = [1, 1, 128], strides = [1, 1, 1]} : vector<4x4x128xf32> to vector<1x1x128xf32>
    %41 = vector.shape_cast %40 : vector<1x1x128xf32> to vector<128xf32>
    %42 = vector.extract_strided_slice %4 {offsets = [3, 1, 0], sizes = [1, 1, 128], strides = [1, 1, 1]} : vector<4x4x128xf32> to vector<1x1x128xf32>
    %43 = vector.shape_cast %42 : vector<1x1x128xf32> to vector<128xf32>
    %44 = vector.extract_strided_slice %4 {offsets = [3, 2, 0], sizes = [1, 1, 128], strides = [1, 1, 1]} : vector<4x4x128xf32> to vector<1x1x128xf32>
    %45 = vector.shape_cast %44 : vector<1x1x128xf32> to vector<128xf32>
    %46 = vector.extract_strided_slice %4 {offsets = [3, 3, 0], sizes = [1, 1, 128], strides = [1, 1, 1]} : vector<4x4x128xf32> to vector<1x1x128xf32>
    %47 = vector.shape_cast %46 : vector<1x1x128xf32> to vector<128xf32>
    %48 = vector.extract_strided_slice %7 {offsets = [0, 0], sizes = [1, 128], strides = [1, 1]} : vector<2x128xf32> to vector<1x128xf32>
    %49 = vector.shape_cast %48 : vector<1x128xf32> to vector<128xf32>
    %50 = vector.extract_strided_slice %7 {offsets = [1, 0], sizes = [1, 128], strides = [1, 1]} : vector<2x128xf32> to vector<1x128xf32>
    %51 = vector.shape_cast %50 : vector<1x128xf32> to vector<128xf32>
    %52 = math.cos %9 : vector<128xf32>
    %cst = arith.constant 1.000000e-01 : f32
    %53 = vector.broadcast %cst : f32 to vector<128xf32>
    %54 = arith.mulf %53, %52 : vector<128xf32>
    %55 = math.cos %11 : vector<128xf32>
    %cst_8 = arith.constant 1.000000e-01 : f32
    %56 = vector.broadcast %cst_8 : f32 to vector<128xf32>
    %57 = arith.mulf %56, %55 : vector<128xf32>
    %58 = math.cos %13 : vector<128xf32>
    %cst_9 = arith.constant 1.000000e-01 : f32
    %59 = vector.broadcast %cst_9 : f32 to vector<128xf32>
    %60 = arith.mulf %59, %58 : vector<128xf32>
    %61 = math.cos %15 : vector<128xf32>
    %cst_10 = arith.constant 1.000000e-01 : f32
    %62 = vector.broadcast %cst_10 : f32 to vector<128xf32>
    %63 = arith.mulf %62, %61 : vector<128xf32>
    %64 = math.sin %9 : vector<128xf32>
    %cst_11 = arith.constant 1.000000e-01 : f32
    %65 = vector.broadcast %cst_11 : f32 to vector<128xf32>
    %66 = arith.mulf %65, %64 : vector<128xf32>
    %67 = arith.addf %66, %9 : vector<128xf32>
    %cst_12 = arith.constant 1.000000e-01 : f32
    %68 = vector.broadcast %cst_12 : f32 to vector<128xf32>
    %69 = arith.mulf %68, %13 : vector<128xf32>
    %70 = arith.addf %67, %69 : vector<128xf32>
    %71 = math.sin %11 : vector<128xf32>
    %cst_13 = arith.constant 1.000000e-01 : f32
    %72 = vector.broadcast %cst_13 : f32 to vector<128xf32>
    %73 = arith.mulf %72, %71 : vector<128xf32>
    %74 = arith.addf %73, %11 : vector<128xf32>
    %cst_14 = arith.constant 1.000000e-01 : f32
    %75 = vector.broadcast %cst_14 : f32 to vector<128xf32>
    %76 = arith.mulf %75, %15 : vector<128xf32>
    %77 = arith.addf %74, %76 : vector<128xf32>
    %78 = math.sin %13 : vector<128xf32>
    %cst_15 = arith.constant 1.000000e-01 : f32
    %79 = vector.broadcast %cst_15 : f32 to vector<128xf32>
    %80 = arith.mulf %79, %78 : vector<128xf32>
    %81 = arith.addf %80, %13 : vector<128xf32>
    %82 = math.sin %15 : vector<128xf32>
    %cst_16 = arith.constant 1.000000e-01 : f32
    %83 = vector.broadcast %cst_16 : f32 to vector<128xf32>
    %84 = arith.mulf %83, %82 : vector<128xf32>
    %85 = arith.addf %84, %15 : vector<128xf32>
    %86 = arith.mulf %54, %17 : vector<128xf32>
    %87 = arith.addf %86, %17 : vector<128xf32>
    %cst_17 = arith.constant 1.000000e-01 : f32
    %88 = vector.broadcast %cst_17 : f32 to vector<128xf32>
    %89 = arith.mulf %88, %33 : vector<128xf32>
    %90 = arith.addf %87, %89 : vector<128xf32>
    %91 = arith.mulf %54, %19 : vector<128xf32>
    %92 = arith.addf %91, %19 : vector<128xf32>
    %cst_18 = arith.constant 1.000000e-01 : f32
    %93 = vector.broadcast %cst_18 : f32 to vector<128xf32>
    %94 = arith.mulf %93, %35 : vector<128xf32>
    %95 = arith.addf %92, %94 : vector<128xf32>
    %96 = arith.mulf %54, %21 : vector<128xf32>
    %97 = arith.addf %96, %21 : vector<128xf32>
    %cst_19 = arith.constant 1.000000e-01 : f32
    %98 = vector.broadcast %cst_19 : f32 to vector<128xf32>
    %99 = arith.mulf %98, %37 : vector<128xf32>
    %100 = arith.addf %97, %99 : vector<128xf32>
    %101 = arith.mulf %54, %23 : vector<128xf32>
    %102 = arith.addf %101, %23 : vector<128xf32>
    %cst_20 = arith.constant 1.000000e-01 : f32
    %103 = vector.broadcast %cst_20 : f32 to vector<128xf32>
    %104 = arith.mulf %103, %39 : vector<128xf32>
    %105 = arith.addf %102, %104 : vector<128xf32>
    %106 = arith.mulf %57, %25 : vector<128xf32>
    %107 = arith.addf %106, %25 : vector<128xf32>
    %cst_21 = arith.constant 1.000000e-01 : f32
    %108 = vector.broadcast %cst_21 : f32 to vector<128xf32>
    %109 = arith.mulf %108, %41 : vector<128xf32>
    %110 = arith.addf %107, %109 : vector<128xf32>
    %111 = arith.mulf %57, %27 : vector<128xf32>
    %112 = arith.addf %111, %27 : vector<128xf32>
    %cst_22 = arith.constant 1.000000e-01 : f32
    %113 = vector.broadcast %cst_22 : f32 to vector<128xf32>
    %114 = arith.mulf %113, %43 : vector<128xf32>
    %115 = arith.addf %112, %114 : vector<128xf32>
    %116 = arith.mulf %57, %29 : vector<128xf32>
    %117 = arith.addf %116, %29 : vector<128xf32>
    %cst_23 = arith.constant 1.000000e-01 : f32
    %118 = vector.broadcast %cst_23 : f32 to vector<128xf32>
    %119 = arith.mulf %118, %45 : vector<128xf32>
    %120 = arith.addf %117, %119 : vector<128xf32>
    %121 = arith.mulf %57, %31 : vector<128xf32>
    %122 = arith.addf %121, %31 : vector<128xf32>
    %cst_24 = arith.constant 1.000000e-01 : f32
    %123 = vector.broadcast %cst_24 : f32 to vector<128xf32>
    %124 = arith.mulf %123, %47 : vector<128xf32>
    %125 = arith.addf %122, %124 : vector<128xf32>
    %126 = arith.mulf %60, %33 : vector<128xf32>
    %127 = arith.addf %126, %33 : vector<128xf32>
    %128 = arith.mulf %60, %35 : vector<128xf32>
    %129 = arith.addf %128, %35 : vector<128xf32>
    %130 = arith.mulf %60, %37 : vector<128xf32>
    %131 = arith.addf %130, %37 : vector<128xf32>
    %132 = arith.mulf %60, %39 : vector<128xf32>
    %133 = arith.addf %132, %39 : vector<128xf32>
    %134 = arith.mulf %63, %41 : vector<128xf32>
    %135 = arith.addf %134, %41 : vector<128xf32>
    %136 = arith.mulf %63, %43 : vector<128xf32>
    %137 = arith.addf %136, %43 : vector<128xf32>
    %138 = arith.mulf %63, %45 : vector<128xf32>
    %139 = arith.addf %138, %45 : vector<128xf32>
    %140 = arith.mulf %63, %47 : vector<128xf32>
    %141 = arith.addf %140, %47 : vector<128xf32>
    %142 = arith.mulf %90, %54 : vector<128xf32>
    %143 = arith.addf %142, %90 : vector<128xf32>
    %cst_25 = arith.constant 1.000000e-01 : f32
    %144 = vector.broadcast %cst_25 : f32 to vector<128xf32>
    %145 = arith.mulf %144, %100 : vector<128xf32>
    %146 = arith.addf %143, %145 : vector<128xf32>
    %cst_26 = arith.constant 0.00999999977 : f32
    %147 = vector.broadcast %cst_26 : f32 to vector<128xf32>
    %148 = arith.addf %146, %147 : vector<128xf32>
    %149 = arith.mulf %95, %57 : vector<128xf32>
    %150 = arith.addf %149, %95 : vector<128xf32>
    %cst_27 = arith.constant 1.000000e-01 : f32
    %151 = vector.broadcast %cst_27 : f32 to vector<128xf32>
    %152 = arith.mulf %151, %105 : vector<128xf32>
    %153 = arith.addf %150, %152 : vector<128xf32>
    %154 = arith.mulf %100, %60 : vector<128xf32>
    %155 = arith.addf %154, %100 : vector<128xf32>
    %156 = arith.mulf %105, %63 : vector<128xf32>
    %157 = arith.addf %156, %105 : vector<128xf32>
    %158 = arith.mulf %110, %54 : vector<128xf32>
    %159 = arith.addf %158, %110 : vector<128xf32>
    %cst_28 = arith.constant 1.000000e-01 : f32
    %160 = vector.broadcast %cst_28 : f32 to vector<128xf32>
    %161 = arith.mulf %160, %120 : vector<128xf32>
    %162 = arith.addf %159, %161 : vector<128xf32>
    %163 = arith.mulf %115, %57 : vector<128xf32>
    %164 = arith.addf %163, %115 : vector<128xf32>
    %cst_29 = arith.constant 1.000000e-01 : f32
    %165 = vector.broadcast %cst_29 : f32 to vector<128xf32>
    %166 = arith.mulf %165, %125 : vector<128xf32>
    %167 = arith.addf %164, %166 : vector<128xf32>
    %cst_30 = arith.constant 0.00999999977 : f32
    %168 = vector.broadcast %cst_30 : f32 to vector<128xf32>
    %169 = arith.addf %167, %168 : vector<128xf32>
    %170 = arith.mulf %120, %60 : vector<128xf32>
    %171 = arith.addf %170, %120 : vector<128xf32>
    %172 = arith.mulf %125, %63 : vector<128xf32>
    %173 = arith.addf %172, %125 : vector<128xf32>
    %174 = arith.mulf %127, %54 : vector<128xf32>
    %175 = arith.addf %174, %127 : vector<128xf32>
    %cst_31 = arith.constant 1.000000e-01 : f32
    %176 = vector.broadcast %cst_31 : f32 to vector<128xf32>
    %177 = arith.mulf %176, %131 : vector<128xf32>
    %178 = arith.addf %175, %177 : vector<128xf32>
    %179 = arith.mulf %129, %57 : vector<128xf32>
    %180 = arith.addf %179, %129 : vector<128xf32>
    %cst_32 = arith.constant 1.000000e-01 : f32
    %181 = vector.broadcast %cst_32 : f32 to vector<128xf32>
    %182 = arith.mulf %181, %133 : vector<128xf32>
    %183 = arith.addf %180, %182 : vector<128xf32>
    %184 = arith.mulf %131, %60 : vector<128xf32>
    %185 = arith.addf %184, %131 : vector<128xf32>
    %cst_33 = arith.constant 0.00999999977 : f32
    %186 = vector.broadcast %cst_33 : f32 to vector<128xf32>
    %187 = arith.addf %185, %186 : vector<128xf32>
    %188 = arith.mulf %133, %63 : vector<128xf32>
    %189 = arith.addf %188, %133 : vector<128xf32>
    %190 = arith.mulf %135, %54 : vector<128xf32>
    %191 = arith.addf %190, %135 : vector<128xf32>
    %cst_34 = arith.constant 1.000000e-01 : f32
    %192 = vector.broadcast %cst_34 : f32 to vector<128xf32>
    %193 = arith.mulf %192, %139 : vector<128xf32>
    %194 = arith.addf %191, %193 : vector<128xf32>
    %195 = arith.mulf %137, %57 : vector<128xf32>
    %196 = arith.addf %195, %137 : vector<128xf32>
    %cst_35 = arith.constant 1.000000e-01 : f32
    %197 = vector.broadcast %cst_35 : f32 to vector<128xf32>
    %198 = arith.mulf %197, %141 : vector<128xf32>
    %199 = arith.addf %196, %198 : vector<128xf32>
    %200 = arith.mulf %139, %60 : vector<128xf32>
    %201 = arith.addf %200, %139 : vector<128xf32>
    %202 = arith.mulf %141, %63 : vector<128xf32>
    %203 = arith.addf %202, %141 : vector<128xf32>
    %cst_36 = arith.constant 0.00999999977 : f32
    %204 = vector.broadcast %cst_36 : f32 to vector<128xf32>
    %205 = arith.addf %203, %204 : vector<128xf32>
    %cst_37 = arith.constant 1.000000e-01 : f32
    %206 = vector.broadcast %cst_37 : f32 to vector<128xf32>
    %207 = arith.addf %148, %206 : vector<128xf32>
    %cst_38 = arith.constant 1.000000e-01 : f32
    %208 = vector.broadcast %cst_38 : f32 to vector<128xf32>
    %209 = arith.addf %169, %208 : vector<128xf32>
    %210 = arith.mulf %207, %209 : vector<128xf32>
    %211 = arith.mulf %153, %162 : vector<128xf32>
    %212 = arith.subf %210, %211 : vector<128xf32>
    %213 = tpu.reciprocal %212 : vector<128xf32> -> vector<128xf32>
    %214 = arith.mulf %209, %213 : vector<128xf32>
    %cst_39 = arith.constant 0.000000e+00 : f32
    %215 = vector.broadcast %cst_39 : f32 to vector<128xf32>
    %216 = arith.subf %215, %153 : vector<128xf32>
    %217 = arith.mulf %216, %213 : vector<128xf32>
    %cst_40 = arith.constant 0.000000e+00 : f32
    %218 = vector.broadcast %cst_40 : f32 to vector<128xf32>
    %219 = arith.subf %218, %162 : vector<128xf32>
    %220 = arith.mulf %219, %213 : vector<128xf32>
    %221 = arith.mulf %207, %213 : vector<128xf32>
    %222 = arith.mulf %148, %214 : vector<128xf32>
    %cst_41 = arith.constant 0.000000e+00 : f32
    %223 = vector.broadcast %cst_41 : f32 to vector<128xf32>
    %224 = arith.addf %223, %222 : vector<128xf32>
    %225 = arith.mulf %153, %220 : vector<128xf32>
    %226 = arith.addf %224, %225 : vector<128xf32>
    %227 = arith.mulf %148, %217 : vector<128xf32>
    %cst_42 = arith.constant 0.000000e+00 : f32
    %228 = vector.broadcast %cst_42 : f32 to vector<128xf32>
    %229 = arith.addf %228, %227 : vector<128xf32>
    %230 = arith.mulf %153, %221 : vector<128xf32>
    %231 = arith.addf %229, %230 : vector<128xf32>
    %232 = arith.mulf %162, %214 : vector<128xf32>
    %cst_43 = arith.constant 0.000000e+00 : f32
    %233 = vector.broadcast %cst_43 : f32 to vector<128xf32>
    %234 = arith.addf %233, %232 : vector<128xf32>
    %235 = arith.mulf %169, %220 : vector<128xf32>
    %236 = arith.addf %234, %235 : vector<128xf32>
    %237 = arith.mulf %162, %217 : vector<128xf32>
    %cst_44 = arith.constant 0.000000e+00 : f32
    %238 = vector.broadcast %cst_44 : f32 to vector<128xf32>
    %239 = arith.addf %238, %237 : vector<128xf32>
    %240 = arith.mulf %169, %221 : vector<128xf32>
    %241 = arith.addf %239, %240 : vector<128xf32>
    %242 = arith.mulf %178, %214 : vector<128xf32>
    %cst_45 = arith.constant 0.000000e+00 : f32
    %243 = vector.broadcast %cst_45 : f32 to vector<128xf32>
    %244 = arith.addf %243, %242 : vector<128xf32>
    %245 = arith.mulf %183, %220 : vector<128xf32>
    %246 = arith.addf %244, %245 : vector<128xf32>
    %247 = arith.mulf %178, %217 : vector<128xf32>
    %cst_46 = arith.constant 0.000000e+00 : f32
    %248 = vector.broadcast %cst_46 : f32 to vector<128xf32>
    %249 = arith.addf %248, %247 : vector<128xf32>
    %250 = arith.mulf %183, %221 : vector<128xf32>
    %251 = arith.addf %249, %250 : vector<128xf32>
    %252 = arith.mulf %194, %214 : vector<128xf32>
    %cst_47 = arith.constant 0.000000e+00 : f32
    %253 = vector.broadcast %cst_47 : f32 to vector<128xf32>
    %254 = arith.addf %253, %252 : vector<128xf32>
    %255 = arith.mulf %199, %220 : vector<128xf32>
    %256 = arith.addf %254, %255 : vector<128xf32>
    %257 = arith.mulf %194, %217 : vector<128xf32>
    %cst_48 = arith.constant 0.000000e+00 : f32
    %258 = vector.broadcast %cst_48 : f32 to vector<128xf32>
    %259 = arith.addf %258, %257 : vector<128xf32>
    %260 = arith.mulf %199, %221 : vector<128xf32>
    %261 = arith.addf %259, %260 : vector<128xf32>
    %262 = arith.subf %49, %70 : vector<128xf32>
    %263 = arith.subf %51, %77 : vector<128xf32>
    %264 = arith.mulf %226, %262 : vector<128xf32>
    %cst_49 = arith.constant 0.000000e+00 : f32
    %265 = vector.broadcast %cst_49 : f32 to vector<128xf32>
    %266 = arith.addf %265, %264 : vector<128xf32>
    %267 = arith.mulf %231, %263 : vector<128xf32>
    %268 = arith.addf %266, %267 : vector<128xf32>
    %269 = arith.addf %70, %268 : vector<128xf32>
    %270 = arith.mulf %236, %262 : vector<128xf32>
    %cst_50 = arith.constant 0.000000e+00 : f32
    %271 = vector.broadcast %cst_50 : f32 to vector<128xf32>
    %272 = arith.addf %271, %270 : vector<128xf32>
    %273 = arith.mulf %241, %263 : vector<128xf32>
    %274 = arith.addf %272, %273 : vector<128xf32>
    %275 = arith.addf %77, %274 : vector<128xf32>
    %276 = arith.mulf %246, %262 : vector<128xf32>
    %cst_51 = arith.constant 0.000000e+00 : f32
    %277 = vector.broadcast %cst_51 : f32 to vector<128xf32>
    %278 = arith.addf %277, %276 : vector<128xf32>
    %279 = arith.mulf %251, %263 : vector<128xf32>
    %280 = arith.addf %278, %279 : vector<128xf32>
    %281 = arith.addf %81, %280 : vector<128xf32>
    %282 = arith.mulf %256, %262 : vector<128xf32>
    %cst_52 = arith.constant 0.000000e+00 : f32
    %283 = vector.broadcast %cst_52 : f32 to vector<128xf32>
    %284 = arith.addf %283, %282 : vector<128xf32>
    %285 = arith.mulf %261, %263 : vector<128xf32>
    %286 = arith.addf %284, %285 : vector<128xf32>
    %287 = arith.addf %85, %286 : vector<128xf32>
    %288 = arith.mulf %226, %148 : vector<128xf32>
    %cst_53 = arith.constant 0.000000e+00 : f32
    %289 = vector.broadcast %cst_53 : f32 to vector<128xf32>
    %290 = arith.addf %289, %288 : vector<128xf32>
    %291 = arith.mulf %231, %162 : vector<128xf32>
    %292 = arith.addf %290, %291 : vector<128xf32>
    %293 = arith.subf %148, %292 : vector<128xf32>
    %294 = arith.mulf %226, %153 : vector<128xf32>
    %cst_54 = arith.constant 0.000000e+00 : f32
    %295 = vector.broadcast %cst_54 : f32 to vector<128xf32>
    %296 = arith.addf %295, %294 : vector<128xf32>
    %297 = arith.mulf %231, %169 : vector<128xf32>
    %298 = arith.addf %296, %297 : vector<128xf32>
    %299 = arith.subf %153, %298 : vector<128xf32>
    %300 = arith.mulf %226, %155 : vector<128xf32>
    %cst_55 = arith.constant 0.000000e+00 : f32
    %301 = vector.broadcast %cst_55 : f32 to vector<128xf32>
    %302 = arith.addf %301, %300 : vector<128xf32>
    %303 = arith.mulf %231, %171 : vector<128xf32>
    %304 = arith.addf %302, %303 : vector<128xf32>
    %305 = arith.subf %155, %304 : vector<128xf32>
    %306 = arith.mulf %226, %157 : vector<128xf32>
    %cst_56 = arith.constant 0.000000e+00 : f32
    %307 = vector.broadcast %cst_56 : f32 to vector<128xf32>
    %308 = arith.addf %307, %306 : vector<128xf32>
    %309 = arith.mulf %231, %173 : vector<128xf32>
    %310 = arith.addf %308, %309 : vector<128xf32>
    %311 = arith.subf %157, %310 : vector<128xf32>
    %312 = arith.mulf %236, %148 : vector<128xf32>
    %cst_57 = arith.constant 0.000000e+00 : f32
    %313 = vector.broadcast %cst_57 : f32 to vector<128xf32>
    %314 = arith.addf %313, %312 : vector<128xf32>
    %315 = arith.mulf %241, %162 : vector<128xf32>
    %316 = arith.addf %314, %315 : vector<128xf32>
    %317 = arith.subf %162, %316 : vector<128xf32>
    %318 = arith.mulf %236, %153 : vector<128xf32>
    %cst_58 = arith.constant 0.000000e+00 : f32
    %319 = vector.broadcast %cst_58 : f32 to vector<128xf32>
    %320 = arith.addf %319, %318 : vector<128xf32>
    %321 = arith.mulf %241, %169 : vector<128xf32>
    %322 = arith.addf %320, %321 : vector<128xf32>
    %323 = arith.subf %169, %322 : vector<128xf32>
    %324 = arith.mulf %236, %155 : vector<128xf32>
    %cst_59 = arith.constant 0.000000e+00 : f32
    %325 = vector.broadcast %cst_59 : f32 to vector<128xf32>
    %326 = arith.addf %325, %324 : vector<128xf32>
    %327 = arith.mulf %241, %171 : vector<128xf32>
    %328 = arith.addf %326, %327 : vector<128xf32>
    %329 = arith.subf %171, %328 : vector<128xf32>
    %330 = arith.mulf %236, %157 : vector<128xf32>
    %cst_60 = arith.constant 0.000000e+00 : f32
    %331 = vector.broadcast %cst_60 : f32 to vector<128xf32>
    %332 = arith.addf %331, %330 : vector<128xf32>
    %333 = arith.mulf %241, %173 : vector<128xf32>
    %334 = arith.addf %332, %333 : vector<128xf32>
    %335 = arith.subf %173, %334 : vector<128xf32>
    %336 = arith.mulf %246, %148 : vector<128xf32>
    %cst_61 = arith.constant 0.000000e+00 : f32
    %337 = vector.broadcast %cst_61 : f32 to vector<128xf32>
    %338 = arith.addf %337, %336 : vector<128xf32>
    %339 = arith.mulf %251, %162 : vector<128xf32>
    %340 = arith.addf %338, %339 : vector<128xf32>
    %341 = arith.subf %178, %340 : vector<128xf32>
    %342 = arith.mulf %246, %153 : vector<128xf32>
    %cst_62 = arith.constant 0.000000e+00 : f32
    %343 = vector.broadcast %cst_62 : f32 to vector<128xf32>
    %344 = arith.addf %343, %342 : vector<128xf32>
    %345 = arith.mulf %251, %169 : vector<128xf32>
    %346 = arith.addf %344, %345 : vector<128xf32>
    %347 = arith.subf %183, %346 : vector<128xf32>
    %348 = arith.mulf %246, %155 : vector<128xf32>
    %cst_63 = arith.constant 0.000000e+00 : f32
    %349 = vector.broadcast %cst_63 : f32 to vector<128xf32>
    %350 = arith.addf %349, %348 : vector<128xf32>
    %351 = arith.mulf %251, %171 : vector<128xf32>
    %352 = arith.addf %350, %351 : vector<128xf32>
    %353 = arith.subf %187, %352 : vector<128xf32>
    %354 = arith.mulf %246, %157 : vector<128xf32>
    %cst_64 = arith.constant 0.000000e+00 : f32
    %355 = vector.broadcast %cst_64 : f32 to vector<128xf32>
    %356 = arith.addf %355, %354 : vector<128xf32>
    %357 = arith.mulf %251, %173 : vector<128xf32>
    %358 = arith.addf %356, %357 : vector<128xf32>
    %359 = arith.subf %189, %358 : vector<128xf32>
    %360 = arith.mulf %256, %148 : vector<128xf32>
    %cst_65 = arith.constant 0.000000e+00 : f32
    %361 = vector.broadcast %cst_65 : f32 to vector<128xf32>
    %362 = arith.addf %361, %360 : vector<128xf32>
    %363 = arith.mulf %261, %162 : vector<128xf32>
    %364 = arith.addf %362, %363 : vector<128xf32>
    %365 = arith.subf %194, %364 : vector<128xf32>
    %366 = arith.mulf %256, %153 : vector<128xf32>
    %cst_66 = arith.constant 0.000000e+00 : f32
    %367 = vector.broadcast %cst_66 : f32 to vector<128xf32>
    %368 = arith.addf %367, %366 : vector<128xf32>
    %369 = arith.mulf %261, %169 : vector<128xf32>
    %370 = arith.addf %368, %369 : vector<128xf32>
    %371 = arith.subf %199, %370 : vector<128xf32>
    %372 = arith.mulf %256, %155 : vector<128xf32>
    %cst_67 = arith.constant 0.000000e+00 : f32
    %373 = vector.broadcast %cst_67 : f32 to vector<128xf32>
    %374 = arith.addf %373, %372 : vector<128xf32>
    %375 = arith.mulf %261, %171 : vector<128xf32>
    %376 = arith.addf %374, %375 : vector<128xf32>
    %377 = arith.subf %201, %376 : vector<128xf32>
    %378 = arith.mulf %256, %157 : vector<128xf32>
    %cst_68 = arith.constant 0.000000e+00 : f32
    %379 = vector.broadcast %cst_68 : f32 to vector<128xf32>
    %380 = arith.addf %379, %378 : vector<128xf32>
    %381 = arith.mulf %261, %173 : vector<128xf32>
    %382 = arith.addf %380, %381 : vector<128xf32>
    %383 = arith.subf %205, %382 : vector<128xf32>
    %384 = vector.shape_cast %269 : vector<128xf32> to vector<1x128xf32>
    %385 = vector.shape_cast %275 : vector<128xf32> to vector<1x128xf32>
    %386 = vector.shape_cast %281 : vector<128xf32> to vector<1x128xf32>
    %387 = vector.shape_cast %287 : vector<128xf32> to vector<1x128xf32>
    %388 = tpu.concatenate %384, %385, %386, %387 in 0 : vector<1x128xf32>, vector<1x128xf32>, vector<1x128xf32>, vector<1x128xf32> -> vector<4x128xf32>
    %389 = vector.shape_cast %293 : vector<128xf32> to vector<1x128xf32>
    %390 = vector.shape_cast %299 : vector<128xf32> to vector<1x128xf32>
    %391 = vector.shape_cast %305 : vector<128xf32> to vector<1x128xf32>
    %392 = vector.shape_cast %311 : vector<128xf32> to vector<1x128xf32>
    %393 = tpu.concatenate %389, %390, %391, %392 in 0 : vector<1x128xf32>, vector<1x128xf32>, vector<1x128xf32>, vector<1x128xf32> -> vector<4x128xf32>
    %394 = vector.shape_cast %317 : vector<128xf32> to vector<1x128xf32>
    %395 = vector.shape_cast %323 : vector<128xf32> to vector<1x128xf32>
    %396 = vector.shape_cast %329 : vector<128xf32> to vector<1x128xf32>
    %397 = vector.shape_cast %335 : vector<128xf32> to vector<1x128xf32>
    %398 = tpu.concatenate %394, %395, %396, %397 in 0 : vector<1x128xf32>, vector<1x128xf32>, vector<1x128xf32>, vector<1x128xf32> -> vector<4x128xf32>
    %399 = vector.shape_cast %341 : vector<128xf32> to vector<1x128xf32>
    %400 = vector.shape_cast %347 : vector<128xf32> to vector<1x128xf32>
    %401 = vector.shape_cast %353 : vector<128xf32> to vector<1x128xf32>
    %402 = vector.shape_cast %359 : vector<128xf32> to vector<1x128xf32>
    %403 = tpu.concatenate %399, %400, %401, %402 in 0 : vector<1x128xf32>, vector<1x128xf32>, vector<1x128xf32>, vector<1x128xf32> -> vector<4x128xf32>
    %404 = vector.shape_cast %365 : vector<128xf32> to vector<1x128xf32>
    %405 = vector.shape_cast %371 : vector<128xf32> to vector<1x128xf32>
    %406 = vector.shape_cast %377 : vector<128xf32> to vector<1x128xf32>
    %407 = vector.shape_cast %383 : vector<128xf32> to vector<1x128xf32>
    %408 = tpu.concatenate %404, %405, %406, %407 in 0 : vector<1x128xf32>, vector<1x128xf32>, vector<1x128xf32>, vector<1x128xf32> -> vector<4x128xf32>
    %409 = vector.shape_cast %393 : vector<4x128xf32> to vector<1x4x128xf32>
    %410 = vector.shape_cast %398 : vector<4x128xf32> to vector<1x4x128xf32>
    %411 = vector.shape_cast %403 : vector<4x128xf32> to vector<1x4x128xf32>
    %412 = vector.shape_cast %408 : vector<4x128xf32> to vector<1x4x128xf32>
    %413 = tpu.concatenate %409, %410, %411, %412 in 0 : vector<1x4x128xf32>, vector<1x4x128xf32>, vector<1x4x128xf32>, vector<1x4x128xf32> -> vector<4x4x128xf32>
    %414 = arith.index_cast %c0_i32_5 : i32 to index
    %c0_69 = arith.constant 0 : index
    %c0_70 = arith.constant 0 : index
    %415 = vector.load %arg5[%414, %c0_69, %c0_70] : memref<8x4x128xf32, #tpu.memory_space<vmem>>, vector<1x4x128xf32>
    %416 = vector.shape_cast %415 : vector<1x4x128xf32> to vector<4x128xf32>
    %417 = vector.shape_cast %388 : vector<4x128xf32> to vector<1x4x128xf32>
    tpu.vector_store %arg5[%414, %c0_69, %c0_70], %417 {strides = array<i32>} : memref<8x4x128xf32, #tpu.memory_space<vmem>>, vector<1x4x128xf32>,
    %c1_i32 = arith.constant 1 : i32
    %418 = arith.index_cast %c1_i32 : i32 to index
    %c0_71 = arith.constant 0 : index
    %c0_72 = arith.constant 0 : index
    %419 = vector.load %arg2[%418, %c0_71, %c0_72] : memref<8x2x128xf32, #tpu.memory_space<vmem>>, vector<1x2x128xf32>
    %420 = vector.shape_cast %419 : vector<1x2x128xf32> to vector<2x128xf32>
    %421 = vector.extract_strided_slice %388 {offsets = [0, 0], sizes = [1, 128], strides = [1, 1]} : vector<4x128xf32> to vector<1x128xf32>
    %422 = vector.shape_cast %421 : vector<1x128xf32> to vector<128xf32>
    %423 = vector.extract_strided_slice %388 {offsets = [1, 0], sizes = [1, 128], strides = [1, 1]} : vector<4x128xf32> to vector<1x128xf32>
    %424 = vector.shape_cast %423 : vector<1x128xf32> to vector<128xf32>
    %425 = vector.extract_strided_slice %388 {offsets = [2, 0], sizes = [1, 128], strides = [1, 1]} : vector<4x128xf32> to vector<1x128xf32>
    %426 = vector.shape_cast %425 : vector<1x128xf32> to vector<128xf32>
    %427 = vector.extract_strided_slice %388 {offsets = [3, 0], sizes = [1, 128], strides = [1, 1]} : vector<4x128xf32> to vector<1x128xf32>
    %428 = vector.shape_cast %427 : vector<1x128xf32> to vector<128xf32>
    %429 = vector.extract_strided_slice %413 {offsets = [0, 0, 0], sizes = [1, 1, 128], strides = [1, 1, 1]} : vector<4x4x128xf32> to vector<1x1x128xf32>
    %430 = vector.shape_cast %429 : vector<1x1x128xf32> to vector<128xf32>
    %431 = vector.extract_strided_slice %413 {offsets = [0, 1, 0], sizes = [1, 1, 128], strides = [1, 1, 1]} : vector<4x4x128xf32> to vector<1x1x128xf32>
    %432 = vector.shape_cast %431 : vector<1x1x128xf32> to vector<128xf32>
    %433 = vector.extract_strided_slice %413 {offsets = [0, 2, 0], sizes = [1, 1, 128], strides = [1, 1, 1]} : vector<4x4x128xf32> to vector<1x1x128xf32>
    %434 = vector.shape_cast %433 : vector<1x1x128xf32> to vector<128xf32>
    %435 = vector.extract_strided_slice %413 {offsets = [0, 3, 0], sizes = [1, 1, 128], strides = [1, 1, 1]} : vector<4x4x128xf32> to vector<1x1x128xf32>
    %436 = vector.shape_cast %435 : vector<1x1x128xf32> to vector<128xf32>
    %437 = vector.extract_strided_slice %413 {offsets = [1, 0, 0], sizes = [1, 1, 128], strides = [1, 1, 1]} : vector<4x4x128xf32> to vector<1x1x128xf32>
    %438 = vector.shape_cast %437 : vector<1x1x128xf32> to vector<128xf32>
    %439 = vector.extract_strided_slice %413 {offsets = [1, 1, 0], sizes = [1, 1, 128], strides = [1, 1, 1]} : vector<4x4x128xf32> to vector<1x1x128xf32>
    %440 = vector.shape_cast %439 : vector<1x1x128xf32> to vector<128xf32>
    %441 = vector.extract_strided_slice %413 {offsets = [1, 2, 0], sizes = [1, 1, 128], strides = [1, 1, 1]} : vector<4x4x128xf32> to vector<1x1x128xf32>
    %442 = vector.shape_cast %441 : vector<1x1x128xf32> to vector<128xf32>
    %443 = vector.extract_strided_slice %413 {offsets = [1, 3, 0], sizes = [1, 1, 128], strides = [1, 1, 1]} : vector<4x4x128xf32> to vector<1x1x128xf32>
    %444 = vector.shape_cast %443 : vector<1x1x128xf32> to vector<128xf32>
    %445 = vector.extract_strided_slice %413 {offsets = [2, 0, 0], sizes = [1, 1, 128], strides = [1, 1, 1]} : vector<4x4x128xf32> to vector<1x1x128xf32>
    %446 = vector.shape_cast %445 : vector<1x1x128xf32> to vector<128xf32>
    %447 = vector.extract_strided_slice %413 {offsets = [2, 1, 0], sizes = [1, 1, 128], strides = [1, 1, 1]} : vector<4x4x128xf32> to vector<1x1x128xf32>
    %448 = vector.shape_cast %447 : vector<1x1x128xf32> to vector<128xf32>
    %449 = vector.extract_strided_slice %413 {offsets = [2, 2, 0], sizes = [1, 1, 128], strides = [1, 1, 1]} : vector<4x4x128xf32> to vector<1x1x128xf32>
    %450 = vector.shape_cast %449 : vector<1x1x128xf32> to vector<128xf32>
    %451 = vector.extract_strided_slice %413 {offsets = [2, 3, 0], sizes = [1, 1, 128], strides = [1, 1, 1]} : vector<4x4x128xf32> to vector<1x1x128xf32>
    %452 = vector.shape_cast %451 : vector<1x1x128xf32> to vector<128xf32>
    %453 = vector.extract_strided_slice %413 {offsets = [3, 0, 0], sizes = [1, 1, 128], strides = [1, 1, 1]} : vector<4x4x128xf32> to vector<1x1x128xf32>
    %454 = vector.shape_cast %453 : vector<1x1x128xf32> to vector<128xf32>
    %455 = vector.extract_strided_slice %413 {offsets = [3, 1, 0], sizes = [1, 1, 128], strides = [1, 1, 1]} : vector<4x4x128xf32> to vector<1x1x128xf32>
    %456 = vector.shape_cast %455 : vector<1x1x128xf32> to vector<128xf32>
    %457 = vector.extract_strided_slice %413 {offsets = [3, 2, 0], sizes = [1, 1, 128], strides = [1, 1, 1]} : vector<4x4x128xf32> to vector<1x1x128xf32>
    %458 = vector.shape_cast %457 : vector<1x1x128xf32> to vector<128xf32>
    %459 = vector.extract_strided_slice %413 {offsets = [3, 3, 0], sizes = [1, 1, 128], strides = [1, 1, 1]} : vector<4x4x128xf32> to vector<1x1x128xf32>
    %460 = vector.shape_cast %459 : vector<1x1x128xf32> to vector<128xf32>
    %461 = vector.extract_strided_slice %420 {offsets = [0, 0], sizes = [1, 128], strides = [1, 1]} : vector<2x128xf32> to vector<1x128xf32>
    %462 = vector.shape_cast %461 : vector<1x128xf32> to vector<128xf32>
    %463 = vector.extract_strided_slice %420 {offsets = [1, 0], sizes = [1, 128], strides = [1, 1]} : vector<2x128xf32> to vector<1x128xf32>
    %464 = vector.shape_cast %463 : vector<1x128xf32> to vector<128xf32>
    %465 = math.cos %422 : vector<128xf32>
    %cst_73 = arith.constant 1.000000e-01 : f32
    %466 = vector.broadcast %cst_73 : f32 to vector<128xf32>
    %467 = arith.mulf %466, %465 : vector<128xf32>
    %468 = math.cos %424 : vector<128xf32>
    %cst_74 = arith.constant 1.000000e-01 : f32
    %469 = vector.broadcast %cst_74 : f32 to vector<128xf32>
    %470 = arith.mulf %469, %468 : vector<128xf32>
    %471 = math.cos %426 : vector<128xf32>
    %cst_75 = arith.constant 1.000000e-01 : f32
    %472 = vector.broadcast %cst_75 : f32 to vector<128xf32>
    %473 = arith.mulf %472, %471 : vector<128xf32>
    %474 = math.cos %428 : vector<128xf32>
    %cst_76 = arith.constant 1.000000e-01 : f32
    %475 = vector.broadcast %cst_76 : f32 to vector<128xf32>
    %476 = arith.mulf %475, %474 : vector<128xf32>
    %477 = math.sin %422 : vector<128xf32>
    %cst_77 = arith.constant 1.000000e-01 : f32
    %478 = vector.broadcast %cst_77 : f32 to vector<128xf32>
    %479 = arith.mulf %478, %477 : vector<128xf32>
    %480 = arith.addf %479, %422 : vector<128xf32>
    %cst_78 = arith.constant 1.000000e-01 : f32
    %481 = vector.broadcast %cst_78 : f32 to vector<128xf32>
    %482 = arith.mulf %481, %426 : vector<128xf32>
    %483 = arith.addf %480, %482 : vector<128xf32>
    %484 = math.sin %424 : vector<128xf32>
    %cst_79 = arith.constant 1.000000e-01 : f32
    %485 = vector.broadcast %cst_79 : f32 to vector<128xf32>
    %486 = arith.mulf %485, %484 : vector<128xf32>
    %487 = arith.addf %486, %424 : vector<128xf32>
    %cst_80 = arith.constant 1.000000e-01 : f32
    %488 = vector.broadcast %cst_80 : f32 to vector<128xf32>
    %489 = arith.mulf %488, %428 : vector<128xf32>
    %490 = arith.addf %487, %489 : vector<128xf32>
    %491 = math.sin %426 : vector<128xf32>
    %cst_81 = arith.constant 1.000000e-01 : f32
    %492 = vector.broadcast %cst_81 : f32 to vector<128xf32>
    %493 = arith.mulf %492, %491 : vector<128xf32>
    %494 = arith.addf %493, %426 : vector<128xf32>
    %495 = math.sin %428 : vector<128xf32>
    %cst_82 = arith.constant 1.000000e-01 : f32
    %496 = vector.broadcast %cst_82 : f32 to vector<128xf32>
    %497 = arith.mulf %496, %495 : vector<128xf32>
    %498 = arith.addf %497, %428 : vector<128xf32>
    %499 = arith.mulf %467, %430 : vector<128xf32>
    %500 = arith.addf %499, %430 : vector<128xf32>
    %cst_83 = arith.constant 1.000000e-01 : f32
    %501 = vector.broadcast %cst_83 : f32 to vector<128xf32>
    %502 = arith.mulf %501, %446 : vector<128xf32>
    %503 = arith.addf %500, %502 : vector<128xf32>
    %504 = arith.mulf %467, %432 : vector<128xf32>
    %505 = arith.addf %504, %432 : vector<128xf32>
    %cst_84 = arith.constant 1.000000e-01 : f32
    %506 = vector.broadcast %cst_84 : f32 to vector<128xf32>
    %507 = arith.mulf %506, %448 : vector<128xf32>
    %508 = arith.addf %505, %507 : vector<128xf32>
    %509 = arith.mulf %467, %434 : vector<128xf32>
    %510 = arith.addf %509, %434 : vector<128xf32>
    %cst_85 = arith.constant 1.000000e-01 : f32
    %511 = vector.broadcast %cst_85 : f32 to vector<128xf32>
    %512 = arith.mulf %511, %450 : vector<128xf32>
    %513 = arith.addf %510, %512 : vector<128xf32>
    %514 = arith.mulf %467, %436 : vector<128xf32>
    %515 = arith.addf %514, %436 : vector<128xf32>
    %cst_86 = arith.constant 1.000000e-01 : f32
    %516 = vector.broadcast %cst_86 : f32 to vector<128xf32>
    %517 = arith.mulf %516, %452 : vector<128xf32>
    %518 = arith.addf %515, %517 : vector<128xf32>
    %519 = arith.mulf %470, %438 : vector<128xf32>
    %520 = arith.addf %519, %438 : vector<128xf32>
    %cst_87 = arith.constant 1.000000e-01 : f32
    %521 = vector.broadcast %cst_87 : f32 to vector<128xf32>
    %522 = arith.mulf %521, %454 : vector<128xf32>
    %523 = arith.addf %520, %522 : vector<128xf32>
    %524 = arith.mulf %470, %440 : vector<128xf32>
    %525 = arith.addf %524, %440 : vector<128xf32>
    %cst_88 = arith.constant 1.000000e-01 : f32
    %526 = vector.broadcast %cst_88 : f32 to vector<128xf32>
    %527 = arith.mulf %526, %456 : vector<128xf32>
    %528 = arith.addf %525, %527 : vector<128xf32>
    %529 = arith.mulf %470, %442 : vector<128xf32>
    %530 = arith.addf %529, %442 : vector<128xf32>
    %cst_89 = arith.constant 1.000000e-01 : f32
    %531 = vector.broadcast %cst_89 : f32 to vector<128xf32>
    %532 = arith.mulf %531, %458 : vector<128xf32>
    %533 = arith.addf %530, %532 : vector<128xf32>
    %534 = arith.mulf %470, %444 : vector<128xf32>
    %535 = arith.addf %534, %444 : vector<128xf32>
    %cst_90 = arith.constant 1.000000e-01 : f32
    %536 = vector.broadcast %cst_90 : f32 to vector<128xf32>
    %537 = arith.mulf %536, %460 : vector<128xf32>
    %538 = arith.addf %535, %537 : vector<128xf32>
    %539 = arith.mulf %473, %446 : vector<128xf32>
    %540 = arith.addf %539, %446 : vector<128xf32>
    %541 = arith.mulf %473, %448 : vector<128xf32>
    %542 = arith.addf %541, %448 : vector<128xf32>
    %543 = arith.mulf %473, %450 : vector<128xf32>
    %544 = arith.addf %543, %450 : vector<128xf32>
    %545 = arith.mulf %473, %452 : vector<128xf32>
    %546 = arith.addf %545, %452 : vector<128xf32>
    %547 = arith.mulf %476, %454 : vector<128xf32>
    %548 = arith.addf %547, %454 : vector<128xf32>
    %549 = arith.mulf %476, %456 : vector<128xf32>
    %550 = arith.addf %549, %456 : vector<128xf32>
    %551 = arith.mulf %476, %458 : vector<128xf32>
    %552 = arith.addf %551, %458 : vector<128xf32>
    %553 = arith.mulf %476, %460 : vector<128xf32>
    %554 = arith.addf %553, %460 : vector<128xf32>
    %555 = arith.mulf %503, %467 : vector<128xf32>
    %556 = arith.addf %555, %503 : vector<128xf32>
    %cst_91 = arith.constant 1.000000e-01 : f32
    %557 = vector.broadcast %cst_91 : f32 to vector<128xf32>
    %558 = arith.mulf %557, %513 : vector<128xf32>
    %559 = arith.addf %556, %558 : vector<128xf32>
    %cst_92 = arith.constant 0.00999999977 : f32
    %560 = vector.broadcast %cst_92 : f32 to vector<128xf32>
    %561 = arith.addf %559, %560 : vector<128xf32>
    %562 = arith.mulf %508, %470 : vector<128xf32>
    %563 = arith.addf %562, %508 : vector<128xf32>
    %cst_93 = arith.constant 1.000000e-01 : f32
    %564 = vector.broadcast %cst_93 : f32 to vector<128xf32>
    %565 = arith.mulf %564, %518 : vector<128xf32>
    %566 = arith.addf %563, %565 : vector<128xf32>
    %567 = arith.mulf %513, %473 : vector<128xf32>
    %568 = arith.addf %567, %513 : vector<128xf32>
    %569 = arith.mulf %518, %476 : vector<128xf32>
    %570 = arith.addf %569, %518 : vector<128xf32>
    %571 = arith.mulf %523, %467 : vector<128xf32>
    %572 = arith.addf %571, %523 : vector<128xf32>
    %cst_94 = arith.constant 1.000000e-01 : f32
    %573 = vector.broadcast %cst_94 : f32 to vector<128xf32>
    %574 = arith.mulf %573, %533 : vector<128xf32>
    %575 = arith.addf %572, %574 : vector<128xf32>
    %576 = arith.mulf %528, %470 : vector<128xf32>
    %577 = arith.addf %576, %528 : vector<128xf32>
    %cst_95 = arith.constant 1.000000e-01 : f32
    %578 = vector.broadcast %cst_95 : f32 to vector<128xf32>
    %579 = arith.mulf %578, %538 : vector<128xf32>
    %580 = arith.addf %577, %579 : vector<128xf32>
    %cst_96 = arith.constant 0.00999999977 : f32
    %581 = vector.broadcast %cst_96 : f32 to vector<128xf32>
    %582 = arith.addf %580, %581 : vector<128xf32>
    %583 = arith.mulf %533, %473 : vector<128xf32>
    %584 = arith.addf %583, %533 : vector<128xf32>
    %585 = arith.mulf %538, %476 : vector<128xf32>
    %586 = arith.addf %585, %538 : vector<128xf32>
    %587 = arith.mulf %540, %467 : vector<128xf32>
    %588 = arith.addf %587, %540 : vector<128xf32>
    %cst_97 = arith.constant 1.000000e-01 : f32
    %589 = vector.broadcast %cst_97 : f32 to vector<128xf32>
    %590 = arith.mulf %589, %544 : vector<128xf32>
    %591 = arith.addf %588, %590 : vector<128xf32>
    %592 = arith.mulf %542, %470 : vector<128xf32>
    %593 = arith.addf %592, %542 : vector<128xf32>
    %cst_98 = arith.constant 1.000000e-01 : f32
    %594 = vector.broadcast %cst_98 : f32 to vector<128xf32>
    %595 = arith.mulf %594, %546 : vector<128xf32>
    %596 = arith.addf %593, %595 : vector<128xf32>
    %597 = arith.mulf %544, %473 : vector<128xf32>
    %598 = arith.addf %597, %544 : vector<128xf32>
    %cst_99 = arith.constant 0.00999999977 : f32
    %599 = vector.broadcast %cst_99 : f32 to vector<128xf32>
    %600 = arith.addf %598, %599 : vector<128xf32>
    %601 = arith.mulf %546, %476 : vector<128xf32>
    %602 = arith.addf %601, %546 : vector<128xf32>
    %603 = arith.mulf %548, %467 : vector<128xf32>
    %604 = arith.addf %603, %548 : vector<128xf32>
    %cst_100 = arith.constant 1.000000e-01 : f32
    %605 = vector.broadcast %cst_100 : f32 to vector<128xf32>
    %606 = arith.mulf %605, %552 : vector<128xf32>
    %607 = arith.addf %604, %606 : vector<128xf32>
    %608 = arith.mulf %550, %470 : vector<128xf32>
    %609 = arith.addf %608, %550 : vector<128xf32>
    %cst_101 = arith.constant 1.000000e-01 : f32
    %610 = vector.broadcast %cst_101 : f32 to vector<128xf32>
    %611 = arith.mulf %610, %554 : vector<128xf32>
    %612 = arith.addf %609, %611 : vector<128xf32>
    %613 = arith.mulf %552, %473 : vector<128xf32>
    %614 = arith.addf %613, %552 : vector<128xf32>
    %615 = arith.mulf %554, %476 : vector<128xf32>
    %616 = arith.addf %615, %554 : vector<128xf32>
    %cst_102 = arith.constant 0.00999999977 : f32
    %617 = vector.broadcast %cst_102 : f32 to vector<128xf32>
    %618 = arith.addf %616, %617 : vector<128xf32>
    %cst_103 = arith.constant 1.000000e-01 : f32
    %619 = vector.broadcast %cst_103 : f32 to vector<128xf32>
    %620 = arith.addf %561, %619 : vector<128xf32>
    %cst_104 = arith.constant 1.000000e-01 : f32
    %621 = vector.broadcast %cst_104 : f32 to vector<128xf32>
    %622 = arith.addf %582, %621 : vector<128xf32>
    %623 = arith.mulf %620, %622 : vector<128xf32>
    %624 = arith.mulf %566, %575 : vector<128xf32>
    %625 = arith.subf %623, %624 : vector<128xf32>
    %626 = tpu.reciprocal %625 : vector<128xf32> -> vector<128xf32>
    %627 = arith.mulf %622, %626 : vector<128xf32>
    %cst_105 = arith.constant 0.000000e+00 : f32
    %628 = vector.broadcast %cst_105 : f32 to vector<128xf32>
    %629 = arith.subf %628, %566 : vector<128xf32>
    %630 = arith.mulf %629, %626 : vector<128xf32>
    %cst_106 = arith.constant 0.000000e+00 : f32
    %631 = vector.broadcast %cst_106 : f32 to vector<128xf32>
    %632 = arith.subf %631, %575 : vector<128xf32>
    %633 = arith.mulf %632, %626 : vector<128xf32>
    %634 = arith.mulf %620, %626 : vector<128xf32>
    %635 = arith.mulf %561, %627 : vector<128xf32>
    %cst_107 = arith.constant 0.000000e+00 : f32
    %636 = vector.broadcast %cst_107 : f32 to vector<128xf32>
    %637 = arith.addf %636, %635 : vector<128xf32>
    %638 = arith.mulf %566, %633 : vector<128xf32>
    %639 = arith.addf %637, %638 : vector<128xf32>
    %640 = arith.mulf %561, %630 : vector<128xf32>
    %cst_108 = arith.constant 0.000000e+00 : f32
    %641 = vector.broadcast %cst_108 : f32 to vector<128xf32>
    %642 = arith.addf %641, %640 : vector<128xf32>
    %643 = arith.mulf %566, %634 : vector<128xf32>
    %644 = arith.addf %642, %643 : vector<128xf32>
    %645 = arith.mulf %575, %627 : vector<128xf32>
    %cst_109 = arith.constant 0.000000e+00 : f32
    %646 = vector.broadcast %cst_109 : f32 to vector<128xf32>
    %647 = arith.addf %646, %645 : vector<128xf32>
    %648 = arith.mulf %582, %633 : vector<128xf32>
    %649 = arith.addf %647, %648 : vector<128xf32>
    %650 = arith.mulf %575, %630 : vector<128xf32>
    %cst_110 = arith.constant 0.000000e+00 : f32
    %651 = vector.broadcast %cst_110 : f32 to vector<128xf32>
    %652 = arith.addf %651, %650 : vector<128xf32>
    %653 = arith.mulf %582, %634 : vector<128xf32>
    %654 = arith.addf %652, %653 : vector<128xf32>
    %655 = arith.mulf %591, %627 : vector<128xf32>
    %cst_111 = arith.constant 0.000000e+00 : f32
    %656 = vector.broadcast %cst_111 : f32 to vector<128xf32>
    %657 = arith.addf %656, %655 : vector<128xf32>
    %658 = arith.mulf %596, %633 : vector<128xf32>
    %659 = arith.addf %657, %658 : vector<128xf32>
    %660 = arith.mulf %591, %630 : vector<128xf32>
    %cst_112 = arith.constant 0.000000e+00 : f32
    %661 = vector.broadcast %cst_112 : f32 to vector<128xf32>
    %662 = arith.addf %661, %660 : vector<128xf32>
    %663 = arith.mulf %596, %634 : vector<128xf32>
    %664 = arith.addf %662, %663 : vector<128xf32>
    %665 = arith.mulf %607, %627 : vector<128xf32>
    %cst_113 = arith.constant 0.000000e+00 : f32
    %666 = vector.broadcast %cst_113 : f32 to vector<128xf32>
    %667 = arith.addf %666, %665 : vector<128xf32>
    %668 = arith.mulf %612, %633 : vector<128xf32>
    %669 = arith.addf %667, %668 : vector<128xf32>
    %670 = arith.mulf %607, %630 : vector<128xf32>
    %cst_114 = arith.constant 0.000000e+00 : f32
    %671 = vector.broadcast %cst_114 : f32 to vector<128xf32>
    %672 = arith.addf %671, %670 : vector<128xf32>
    %673 = arith.mulf %612, %634 : vector<128xf32>
    %674 = arith.addf %672, %673 : vector<128xf32>
    %675 = arith.subf %462, %483 : vector<128xf32>
    %676 = arith.subf %464, %490 : vector<128xf32>
    %677 = arith.mulf %639, %675 : vector<128xf32>
    %cst_115 = arith.constant 0.000000e+00 : f32
    %678 = vector.broadcast %cst_115 : f32 to vector<128xf32>
    %679 = arith.addf %678, %677 : vector<128xf32>
    %680 = arith.mulf %644, %676 : vector<128xf32>
    %681 = arith.addf %679, %680 : vector<128xf32>
    %682 = arith.addf %483, %681 : vector<128xf32>
    %683 = arith.mulf %649, %675 : vector<128xf32>
    %cst_116 = arith.constant 0.000000e+00 : f32
    %684 = vector.broadcast %cst_116 : f32 to vector<128xf32>
    %685 = arith.addf %684, %683 : vector<128xf32>
    %686 = arith.mulf %654, %676 : vector<128xf32>
    %687 = arith.addf %685, %686 : vector<128xf32>
    %688 = arith.addf %490, %687 : vector<128xf32>
    %689 = arith.mulf %659, %675 : vector<128xf32>
    %cst_117 = arith.constant 0.000000e+00 : f32
    %690 = vector.broadcast %cst_117 : f32 to vector<128xf32>
    %691 = arith.addf %690, %689 : vector<128xf32>
    %692 = arith.mulf %664, %676 : vector<128xf32>
    %693 = arith.addf %691, %692 : vector<128xf32>
    %694 = arith.addf %494, %693 : vector<128xf32>
    %695 = arith.mulf %669, %675 : vector<128xf32>
    %cst_118 = arith.constant 0.000000e+00 : f32
    %696 = vector.broadcast %cst_118 : f32 to vector<128xf32>
    %697 = arith.addf %696, %695 : vector<128xf32>
    %698 = arith.mulf %674, %676 : vector<128xf32>
    %699 = arith.addf %697, %698 : vector<128xf32>
    %700 = arith.addf %498, %699 : vector<128xf32>
    %701 = arith.mulf %639, %561 : vector<128xf32>
    %cst_119 = arith.constant 0.000000e+00 : f32
    %702 = vector.broadcast %cst_119 : f32 to vector<128xf32>
    %703 = arith.addf %702, %701 : vector<128xf32>
    %704 = arith.mulf %644, %575 : vector<128xf32>
    %705 = arith.addf %703, %704 : vector<128xf32>
    %706 = arith.subf %561, %705 : vector<128xf32>
    %707 = arith.mulf %639, %566 : vector<128xf32>
    %cst_120 = arith.constant 0.000000e+00 : f32
    %708 = vector.broadcast %cst_120 : f32 to vector<128xf32>
    %709 = arith.addf %708, %707 : vector<128xf32>
    %710 = arith.mulf %644, %582 : vector<128xf32>
    %711 = arith.addf %709, %710 : vector<128xf32>
    %712 = arith.subf %566, %711 : vector<128xf32>
    %713 = arith.mulf %639, %568 : vector<128xf32>
    %cst_121 = arith.constant 0.000000e+00 : f32
    %714 = vector.broadcast %cst_121 : f32 to vector<128xf32>
    %715 = arith.addf %714, %713 : vector<128xf32>
    %716 = arith.mulf %644, %584 : vector<128xf32>
    %717 = arith.addf %715, %716 : vector<128xf32>
    %718 = arith.subf %568, %717 : vector<128xf32>
    %719 = arith.mulf %639, %570 : vector<128xf32>
    %cst_122 = arith.constant 0.000000e+00 : f32
    %720 = vector.broadcast %cst_122 : f32 to vector<128xf32>
    %721 = arith.addf %720, %719 : vector<128xf32>
    %722 = arith.mulf %644, %586 : vector<128xf32>
    %723 = arith.addf %721, %722 : vector<128xf32>
    %724 = arith.subf %570, %723 : vector<128xf32>
    %725 = arith.mulf %649, %561 : vector<128xf32>
    %cst_123 = arith.constant 0.000000e+00 : f32
    %726 = vector.broadcast %cst_123 : f32 to vector<128xf32>
    %727 = arith.addf %726, %725 : vector<128xf32>
    %728 = arith.mulf %654, %575 : vector<128xf32>
    %729 = arith.addf %727, %728 : vector<128xf32>
    %730 = arith.subf %575, %729 : vector<128xf32>
    %731 = arith.mulf %649, %566 : vector<128xf32>
    %cst_124 = arith.constant 0.000000e+00 : f32
    %732 = vector.broadcast %cst_124 : f32 to vector<128xf32>
    %733 = arith.addf %732, %731 : vector<128xf32>
    %734 = arith.mulf %654, %582 : vector<128xf32>
    %735 = arith.addf %733, %734 : vector<128xf32>
    %736 = arith.subf %582, %735 : vector<128xf32>
    %737 = arith.mulf %649, %568 : vector<128xf32>
    %cst_125 = arith.constant 0.000000e+00 : f32
    %738 = vector.broadcast %cst_125 : f32 to vector<128xf32>
    %739 = arith.addf %738, %737 : vector<128xf32>
    %740 = arith.mulf %654, %584 : vector<128xf32>
    %741 = arith.addf %739, %740 : vector<128xf32>
    %742 = arith.subf %584, %741 : vector<128xf32>
    %743 = arith.mulf %649, %570 : vector<128xf32>
    %cst_126 = arith.constant 0.000000e+00 : f32
    %744 = vector.broadcast %cst_126 : f32 to vector<128xf32>
    %745 = arith.addf %744, %743 : vector<128xf32>
    %746 = arith.mulf %654, %586 : vector<128xf32>
    %747 = arith.addf %745, %746 : vector<128xf32>
    %748 = arith.subf %586, %747 : vector<128xf32>
    %749 = arith.mulf %659, %561 : vector<128xf32>
    %cst_127 = arith.constant 0.000000e+00 : f32
    %750 = vector.broadcast %cst_127 : f32 to vector<128xf32>
    %751 = arith.addf %750, %749 : vector<128xf32>
    %752 = arith.mulf %664, %575 : vector<128xf32>
    %753 = arith.addf %751, %752 : vector<128xf32>
    %754 = arith.subf %591, %753 : vector<128xf32>
    %755 = arith.mulf %659, %566 : vector<128xf32>
    %cst_128 = arith.constant 0.000000e+00 : f32
    %756 = vector.broadcast %cst_128 : f32 to vector<128xf32>
    %757 = arith.addf %756, %755 : vector<128xf32>
    %758 = arith.mulf %664, %582 : vector<128xf32>
    %759 = arith.addf %757, %758 : vector<128xf32>
    %760 = arith.subf %596, %759 : vector<128xf32>
    %761 = arith.mulf %659, %568 : vector<128xf32>
    %cst_129 = arith.constant 0.000000e+00 : f32
    %762 = vector.broadcast %cst_129 : f32 to vector<128xf32>
    %763 = arith.addf %762, %761 : vector<128xf32>
    %764 = arith.mulf %664, %584 : vector<128xf32>
    %765 = arith.addf %763, %764 : vector<128xf32>
    %766 = arith.subf %600, %765 : vector<128xf32>
    %767 = arith.mulf %659, %570 : vector<128xf32>
    %cst_130 = arith.constant 0.000000e+00 : f32
    %768 = vector.broadcast %cst_130 : f32 to vector<128xf32>
    %769 = arith.addf %768, %767 : vector<128xf32>
    %770 = arith.mulf %664, %586 : vector<128xf32>
    %771 = arith.addf %769, %770 : vector<128xf32>
    %772 = arith.subf %602, %771 : vector<128xf32>
    %773 = arith.mulf %669, %561 : vector<128xf32>
    %cst_131 = arith.constant 0.000000e+00 : f32
    %774 = vector.broadcast %cst_131 : f32 to vector<128xf32>
    %775 = arith.addf %774, %773 : vector<128xf32>
    %776 = arith.mulf %674, %575 : vector<128xf32>
    %777 = arith.addf %775, %776 : vector<128xf32>
    %778 = arith.subf %607, %777 : vector<128xf32>
    %779 = arith.mulf %669, %566 : vector<128xf32>
    %cst_132 = arith.constant 0.000000e+00 : f32
    %780 = vector.broadcast %cst_132 : f32 to vector<128xf32>
    %781 = arith.addf %780, %779 : vector<128xf32>
    %782 = arith.mulf %674, %582 : vector<128xf32>
    %783 = arith.addf %781, %782 : vector<128xf32>
    %784 = arith.subf %612, %783 : vector<128xf32>
    %785 = arith.mulf %669, %568 : vector<128xf32>
    %cst_133 = arith.constant 0.000000e+00 : f32
    %786 = vector.broadcast %cst_133 : f32 to vector<128xf32>
    %787 = arith.addf %786, %785 : vector<128xf32>
    %788 = arith.mulf %674, %584 : vector<128xf32>
    %789 = arith.addf %787, %788 : vector<128xf32>
    %790 = arith.subf %614, %789 : vector<128xf32>
    %791 = arith.mulf %669, %570 : vector<128xf32>
    %cst_134 = arith.constant 0.000000e+00 : f32
    %792 = vector.broadcast %cst_134 : f32 to vector<128xf32>
    %793 = arith.addf %792, %791 : vector<128xf32>
    %794 = arith.mulf %674, %586 : vector<128xf32>
    %795 = arith.addf %793, %794 : vector<128xf32>
    %796 = arith.subf %618, %795 : vector<128xf32>
    %797 = vector.shape_cast %682 : vector<128xf32> to vector<1x128xf32>
    %798 = vector.shape_cast %688 : vector<128xf32> to vector<1x128xf32>
    %799 = vector.shape_cast %694 : vector<128xf32> to vector<1x128xf32>
    %800 = vector.shape_cast %700 : vector<128xf32> to vector<1x128xf32>
    %801 = tpu.concatenate %797, %798, %799, %800 in 0 : vector<1x128xf32>, vector<1x128xf32>, vector<1x128xf32>, vector<1x128xf32> -> vector<4x128xf32>
    %802 = vector.shape_cast %706 : vector<128xf32> to vector<1x128xf32>
    %803 = vector.shape_cast %712 : vector<128xf32> to vector<1x128xf32>
    %804 = vector.shape_cast %718 : vector<128xf32> to vector<1x128xf32>
    %805 = vector.shape_cast %724 : vector<128xf32> to vector<1x128xf32>
    %806 = tpu.concatenate %802, %803, %804, %805 in 0 : vector<1x128xf32>, vector<1x128xf32>, vector<1x128xf32>, vector<1x128xf32> -> vector<4x128xf32>
    %807 = vector.shape_cast %730 : vector<128xf32> to vector<1x128xf32>
    %808 = vector.shape_cast %736 : vector<128xf32> to vector<1x128xf32>
    %809 = vector.shape_cast %742 : vector<128xf32> to vector<1x128xf32>
    %810 = vector.shape_cast %748 : vector<128xf32> to vector<1x128xf32>
    %811 = tpu.concatenate %807, %808, %809, %810 in 0 : vector<1x128xf32>, vector<1x128xf32>, vector<1x128xf32>, vector<1x128xf32> -> vector<4x128xf32>
    %812 = vector.shape_cast %754 : vector<128xf32> to vector<1x128xf32>
    %813 = vector.shape_cast %760 : vector<128xf32> to vector<1x128xf32>
    %814 = vector.shape_cast %766 : vector<128xf32> to vector<1x128xf32>
    %815 = vector.shape_cast %772 : vector<128xf32> to vector<1x128xf32>
    %816 = tpu.concatenate %812, %813, %814, %815 in 0 : vector<1x128xf32>, vector<1x128xf32>, vector<1x128xf32>, vector<1x128xf32> -> vector<4x128xf32>
    %817 = vector.shape_cast %778 : vector<128xf32> to vector<1x128xf32>
    %818 = vector.shape_cast %784 : vector<128xf32> to vector<1x128xf32>
    %819 = vector.shape_cast %790 : vector<128xf32> to vector<1x128xf32>
    %820 = vector.shape_cast %796 : vector<128xf32> to vector<1x128xf32>
    %821 = tpu.concatenate %817, %818, %819, %820 in 0 : vector<1x128xf32>, vector<1x128xf32>, vector<1x128xf32>, vector<1x128xf32> -> vector<4x128xf32>
    %822 = vector.shape_cast %806 : vector<4x128xf32> to vector<1x4x128xf32>
    %823 = vector.shape_cast %811 : vector<4x128xf32> to vector<1x4x128xf32>
    %824 = vector.shape_cast %816 : vector<4x128xf32> to vector<1x4x128xf32>
    %825 = vector.shape_cast %821 : vector<4x128xf32> to vector<1x4x128xf32>
    %826 = tpu.concatenate %822, %823, %824, %825 in 0 : vector<1x4x128xf32>, vector<1x4x128xf32>, vector<1x4x128xf32>, vector<1x4x128xf32> -> vector<4x4x128xf32>
    %827 = arith.index_cast %c1_i32 : i32 to index
    %c0_135 = arith.constant 0 : index
    %c0_136 = arith.constant 0 : index
    %828 = vector.load %arg5[%827, %c0_135, %c0_136] : memref<8x4x128xf32, #tpu.memory_space<vmem>>, vector<1x4x128xf32>
    %829 = vector.shape_cast %828 : vector<1x4x128xf32> to vector<4x128xf32>
    %830 = vector.shape_cast %801 : vector<4x128xf32> to vector<1x4x128xf32>
    tpu.vector_store %arg5[%827, %c0_135, %c0_136], %830 {strides = array<i32>} : memref<8x4x128xf32, #tpu.memory_space<vmem>>, vector<1x4x128xf32>,
    %c2_i32 = arith.constant 2 : i32
    %831 = arith.index_cast %c2_i32 : i32 to index
    %c0_137 = arith.constant 0 : index
    %c0_138 = arith.constant 0 : index
    %832 = vector.load %arg2[%831, %c0_137, %c0_138] : memref<8x2x128xf32, #tpu.memory_space<vmem>>, vector<1x2x128xf32>
    %833 = vector.shape_cast %832 : vector<1x2x128xf32> to vector<2x128xf32>
    %834 = vector.extract_strided_slice %801 {offsets = [0, 0], sizes = [1, 128], strides = [1, 1]} : vector<4x128xf32> to vector<1x128xf32>
    %835 = vector.shape_cast %834 : vector<1x128xf32> to vector<128xf32>
    %836 = vector.extract_strided_slice %801 {offsets = [1, 0], sizes = [1, 128], strides = [1, 1]} : vector<4x128xf32> to vector<1x128xf32>
    %837 = vector.shape_cast %836 : vector<1x128xf32> to vector<128xf32>
    %838 = vector.extract_strided_slice %801 {offsets = [2, 0], sizes = [1, 128], strides = [1, 1]} : vector<4x128xf32> to vector<1x128xf32>
    %839 = vector.shape_cast %838 : vector<1x128xf32> to vector<128xf32>
    %840 = vector.extract_strided_slice %801 {offsets = [3, 0], sizes = [1, 128], strides = [1, 1]} : vector<4x128xf32> to vector<1x128xf32>
    %841 = vector.shape_cast %840 : vector<1x128xf32> to vector<128xf32>
    %842 = vector.extract_strided_slice %826 {offsets = [0, 0, 0], sizes = [1, 1, 128], strides = [1, 1, 1]} : vector<4x4x128xf32> to vector<1x1x128xf32>
    %843 = vector.shape_cast %842 : vector<1x1x128xf32> to vector<128xf32>
    %844 = vector.extract_strided_slice %826 {offsets = [0, 1, 0], sizes = [1, 1, 128], strides = [1, 1, 1]} : vector<4x4x128xf32> to vector<1x1x128xf32>
    %845 = vector.shape_cast %844 : vector<1x1x128xf32> to vector<128xf32>
    %846 = vector.extract_strided_slice %826 {offsets = [0, 2, 0], sizes = [1, 1, 128], strides = [1, 1, 1]} : vector<4x4x128xf32> to vector<1x1x128xf32>
    %847 = vector.shape_cast %846 : vector<1x1x128xf32> to vector<128xf32>
    %848 = vector.extract_strided_slice %826 {offsets = [0, 3, 0], sizes = [1, 1, 128], strides = [1, 1, 1]} : vector<4x4x128xf32> to vector<1x1x128xf32>
    %849 = vector.shape_cast %848 : vector<1x1x128xf32> to vector<128xf32>
    %850 = vector.extract_strided_slice %826 {offsets = [1, 0, 0], sizes = [1, 1, 128], strides = [1, 1, 1]} : vector<4x4x128xf32> to vector<1x1x128xf32>
    %851 = vector.shape_cast %850 : vector<1x1x128xf32> to vector<128xf32>
    %852 = vector.extract_strided_slice %826 {offsets = [1, 1, 0], sizes = [1, 1, 128], strides = [1, 1, 1]} : vector<4x4x128xf32> to vector<1x1x128xf32>
    %853 = vector.shape_cast %852 : vector<1x1x128xf32> to vector<128xf32>
    %854 = vector.extract_strided_slice %826 {offsets = [1, 2, 0], sizes = [1, 1, 128], strides = [1, 1, 1]} : vector<4x4x128xf32> to vector<1x1x128xf32>
    %855 = vector.shape_cast %854 : vector<1x1x128xf32> to vector<128xf32>
    %856 = vector.extract_strided_slice %826 {offsets = [1, 3, 0], sizes = [1, 1, 128], strides = [1, 1, 1]} : vector<4x4x128xf32> to vector<1x1x128xf32>
    %857 = vector.shape_cast %856 : vector<1x1x128xf32> to vector<128xf32>
    %858 = vector.extract_strided_slice %826 {offsets = [2, 0, 0], sizes = [1, 1, 128], strides = [1, 1, 1]} : vector<4x4x128xf32> to vector<1x1x128xf32>
    %859 = vector.shape_cast %858 : vector<1x1x128xf32> to vector<128xf32>
    %860 = vector.extract_strided_slice %826 {offsets = [2, 1, 0], sizes = [1, 1, 128], strides = [1, 1, 1]} : vector<4x4x128xf32> to vector<1x1x128xf32>
    %861 = vector.shape_cast %860 : vector<1x1x128xf32> to vector<128xf32>
    %862 = vector.extract_strided_slice %826 {offsets = [2, 2, 0], sizes = [1, 1, 128], strides = [1, 1, 1]} : vector<4x4x128xf32> to vector<1x1x128xf32>
    %863 = vector.shape_cast %862 : vector<1x1x128xf32> to vector<128xf32>
    %864 = vector.extract_strided_slice %826 {offsets = [2, 3, 0], sizes = [1, 1, 128], strides = [1, 1, 1]} : vector<4x4x128xf32> to vector<1x1x128xf32>
    %865 = vector.shape_cast %864 : vector<1x1x128xf32> to vector<128xf32>
    %866 = vector.extract_strided_slice %826 {offsets = [3, 0, 0], sizes = [1, 1, 128], strides = [1, 1, 1]} : vector<4x4x128xf32> to vector<1x1x128xf32>
    %867 = vector.shape_cast %866 : vector<1x1x128xf32> to vector<128xf32>
    %868 = vector.extract_strided_slice %826 {offsets = [3, 1, 0], sizes = [1, 1, 128], strides = [1, 1, 1]} : vector<4x4x128xf32> to vector<1x1x128xf32>
    %869 = vector.shape_cast %868 : vector<1x1x128xf32> to vector<128xf32>
    %870 = vector.extract_strided_slice %826 {offsets = [3, 2, 0], sizes = [1, 1, 128], strides = [1, 1, 1]} : vector<4x4x128xf32> to vector<1x1x128xf32>
    %871 = vector.shape_cast %870 : vector<1x1x128xf32> to vector<128xf32>
    %872 = vector.extract_strided_slice %826 {offsets = [3, 3, 0], sizes = [1, 1, 128], strides = [1, 1, 1]} : vector<4x4x128xf32> to vector<1x1x128xf32>
    %873 = vector.shape_cast %872 : vector<1x1x128xf32> to vector<128xf32>
    %874 = vector.extract_strided_slice %833 {offsets = [0, 0], sizes = [1, 128], strides = [1, 1]} : vector<2x128xf32> to vector<1x128xf32>
    %875 = vector.shape_cast %874 : vector<1x128xf32> to vector<128xf32>
    %876 = vector.extract_strided_slice %833 {offsets = [1, 0], sizes = [1, 128], strides = [1, 1]} : vector<2x128xf32> to vector<1x128xf32>
    %877 = vector.shape_cast %876 : vector<1x128xf32> to vector<128xf32>
    %878 = math.cos %835 : vector<128xf32>
    %cst_139 = arith.constant 1.000000e-01 : f32
    %879 = vector.broadcast %cst_139 : f32 to vector<128xf32>
    %880 = arith.mulf %879, %878 : vector<128xf32>
    %881 = math.cos %837 : vector<128xf32>
    %cst_140 = arith.constant 1.000000e-01 : f32
    %882 = vector.broadcast %cst_140 : f32 to vector<128xf32>
    %883 = arith.mulf %882, %881 : vector<128xf32>
    %884 = math.cos %839 : vector<128xf32>
    %cst_141 = arith.constant 1.000000e-01 : f32
    %885 = vector.broadcast %cst_141 : f32 to vector<128xf32>
    %886 = arith.mulf %885, %884 : vector<128xf32>
    %887 = math.cos %841 : vector<128xf32>
    %cst_142 = arith.constant 1.000000e-01 : f32
    %888 = vector.broadcast %cst_142 : f32 to vector<128xf32>
    %889 = arith.mulf %888, %887 : vector<128xf32>
    %890 = math.sin %835 : vector<128xf32>
    %cst_143 = arith.constant 1.000000e-01 : f32
    %891 = vector.broadcast %cst_143 : f32 to vector<128xf32>
    %892 = arith.mulf %891, %890 : vector<128xf32>
    %893 = arith.addf %892, %835 : vector<128xf32>
    %cst_144 = arith.constant 1.000000e-01 : f32
    %894 = vector.broadcast %cst_144 : f32 to vector<128xf32>
    %895 = arith.mulf %894, %839 : vector<128xf32>
    %896 = arith.addf %893, %895 : vector<128xf32>
    %897 = math.sin %837 : vector<128xf32>
    %cst_145 = arith.constant 1.000000e-01 : f32
    %898 = vector.broadcast %cst_145 : f32 to vector<128xf32>
    %899 = arith.mulf %898, %897 : vector<128xf32>
    %900 = arith.addf %899, %837 : vector<128xf32>
    %cst_146 = arith.constant 1.000000e-01 : f32
    %901 = vector.broadcast %cst_146 : f32 to vector<128xf32>
    %902 = arith.mulf %901, %841 : vector<128xf32>
    %903 = arith.addf %900, %902 : vector<128xf32>
    %904 = math.sin %839 : vector<128xf32>
    %cst_147 = arith.constant 1.000000e-01 : f32
    %905 = vector.broadcast %cst_147 : f32 to vector<128xf32>
    %906 = arith.mulf %905, %904 : vector<128xf32>
    %907 = arith.addf %906, %839 : vector<128xf32>
    %908 = math.sin %841 : vector<128xf32>
    %cst_148 = arith.constant 1.000000e-01 : f32
    %909 = vector.broadcast %cst_148 : f32 to vector<128xf32>
    %910 = arith.mulf %909, %908 : vector<128xf32>
    %911 = arith.addf %910, %841 : vector<128xf32>
    %912 = arith.mulf %880, %843 : vector<128xf32>
    %913 = arith.addf %912, %843 : vector<128xf32>
    %cst_149 = arith.constant 1.000000e-01 : f32
    %914 = vector.broadcast %cst_149 : f32 to vector<128xf32>
    %915 = arith.mulf %914, %859 : vector<128xf32>
    %916 = arith.addf %913, %915 : vector<128xf32>
    %917 = arith.mulf %880, %845 : vector<128xf32>
    %918 = arith.addf %917, %845 : vector<128xf32>
    %cst_150 = arith.constant 1.000000e-01 : f32
    %919 = vector.broadcast %cst_150 : f32 to vector<128xf32>
    %920 = arith.mulf %919, %861 : vector<128xf32>
    %921 = arith.addf %918, %920 : vector<128xf32>
    %922 = arith.mulf %880, %847 : vector<128xf32>
    %923 = arith.addf %922, %847 : vector<128xf32>
    %cst_151 = arith.constant 1.000000e-01 : f32
    %924 = vector.broadcast %cst_151 : f32 to vector<128xf32>
    %925 = arith.mulf %924, %863 : vector<128xf32>
    %926 = arith.addf %923, %925 : vector<128xf32>
    %927 = arith.mulf %880, %849 : vector<128xf32>
    %928 = arith.addf %927, %849 : vector<128xf32>
    %cst_152 = arith.constant 1.000000e-01 : f32
    %929 = vector.broadcast %cst_152 : f32 to vector<128xf32>
    %930 = arith.mulf %929, %865 : vector<128xf32>
    %931 = arith.addf %928, %930 : vector<128xf32>
    %932 = arith.mulf %883, %851 : vector<128xf32>
    %933 = arith.addf %932, %851 : vector<128xf32>
    %cst_153 = arith.constant 1.000000e-01 : f32
    %934 = vector.broadcast %cst_153 : f32 to vector<128xf32>
    %935 = arith.mulf %934, %867 : vector<128xf32>
    %936 = arith.addf %933, %935 : vector<128xf32>
    %937 = arith.mulf %883, %853 : vector<128xf32>
    %938 = arith.addf %937, %853 : vector<128xf32>
    %cst_154 = arith.constant 1.000000e-01 : f32
    %939 = vector.broadcast %cst_154 : f32 to vector<128xf32>
    %940 = arith.mulf %939, %869 : vector<128xf32>
    %941 = arith.addf %938, %940 : vector<128xf32>
    %942 = arith.mulf %883, %855 : vector<128xf32>
    %943 = arith.addf %942, %855 : vector<128xf32>
    %cst_155 = arith.constant 1.000000e-01 : f32
    %944 = vector.broadcast %cst_155 : f32 to vector<128xf32>
    %945 = arith.mulf %944, %871 : vector<128xf32>
    %946 = arith.addf %943, %945 : vector<128xf32>
    %947 = arith.mulf %883, %857 : vector<128xf32>
    %948 = arith.addf %947, %857 : vector<128xf32>
    %cst_156 = arith.constant 1.000000e-01 : f32
    %949 = vector.broadcast %cst_156 : f32 to vector<128xf32>
    %950 = arith.mulf %949, %873 : vector<128xf32>
    %951 = arith.addf %948, %950 : vector<128xf32>
    %952 = arith.mulf %886, %859 : vector<128xf32>
    %953 = arith.addf %952, %859 : vector<128xf32>
    %954 = arith.mulf %886, %861 : vector<128xf32>
    %955 = arith.addf %954, %861 : vector<128xf32>
    %956 = arith.mulf %886, %863 : vector<128xf32>
    %957 = arith.addf %956, %863 : vector<128xf32>
    %958 = arith.mulf %886, %865 : vector<128xf32>
    %959 = arith.addf %958, %865 : vector<128xf32>
    %960 = arith.mulf %889, %867 : vector<128xf32>
    %961 = arith.addf %960, %867 : vector<128xf32>
    %962 = arith.mulf %889, %869 : vector<128xf32>
    %963 = arith.addf %962, %869 : vector<128xf32>
    %964 = arith.mulf %889, %871 : vector<128xf32>
    %965 = arith.addf %964, %871 : vector<128xf32>
    %966 = arith.mulf %889, %873 : vector<128xf32>
    %967 = arith.addf %966, %873 : vector<128xf32>
    %968 = arith.mulf %916, %880 : vector<128xf32>
    %969 = arith.addf %968, %916 : vector<128xf32>
    %cst_157 = arith.constant 1.000000e-01 : f32
    %970 = vector.broadcast %cst_157 : f32 to vector<128xf32>
    %971 = arith.mulf %970, %926 : vector<128xf32>
    %972 = arith.addf %969, %971 : vector<128xf32>
    %cst_158 = arith.constant 0.00999999977 : f32
    %973 = vector.broadcast %cst_158 : f32 to vector<128xf32>
    %974 = arith.addf %972, %973 : vector<128xf32>
    %975 = arith.mulf %921, %883 : vector<128xf32>
    %976 = arith.addf %975, %921 : vector<128xf32>
    %cst_159 = arith.constant 1.000000e-01 : f32
    %977 = vector.broadcast %cst_159 : f32 to vector<128xf32>
    %978 = arith.mulf %977, %931 : vector<128xf32>
    %979 = arith.addf %976, %978 : vector<128xf32>
    %980 = arith.mulf %926, %886 : vector<128xf32>
    %981 = arith.addf %980, %926 : vector<128xf32>
    %982 = arith.mulf %931, %889 : vector<128xf32>
    %983 = arith.addf %982, %931 : vector<128xf32>
    %984 = arith.mulf %936, %880 : vector<128xf32>
    %985 = arith.addf %984, %936 : vector<128xf32>
    %cst_160 = arith.constant 1.000000e-01 : f32
    %986 = vector.broadcast %cst_160 : f32 to vector<128xf32>
    %987 = arith.mulf %986, %946 : vector<128xf32>
    %988 = arith.addf %985, %987 : vector<128xf32>
    %989 = arith.mulf %941, %883 : vector<128xf32>
    %990 = arith.addf %989, %941 : vector<128xf32>
    %cst_161 = arith.constant 1.000000e-01 : f32
    %991 = vector.broadcast %cst_161 : f32 to vector<128xf32>
    %992 = arith.mulf %991, %951 : vector<128xf32>
    %993 = arith.addf %990, %992 : vector<128xf32>
    %cst_162 = arith.constant 0.00999999977 : f32
    %994 = vector.broadcast %cst_162 : f32 to vector<128xf32>
    %995 = arith.addf %993, %994 : vector<128xf32>
    %996 = arith.mulf %946, %886 : vector<128xf32>
    %997 = arith.addf %996, %946 : vector<128xf32>
    %998 = arith.mulf %951, %889 : vector<128xf32>
    %999 = arith.addf %998, %951 : vector<128xf32>
    %1000 = arith.mulf %953, %880 : vector<128xf32>
    %1001 = arith.addf %1000, %953 : vector<128xf32>
    %cst_163 = arith.constant 1.000000e-01 : f32
    %1002 = vector.broadcast %cst_163 : f32 to vector<128xf32>
    %1003 = arith.mulf %1002, %957 : vector<128xf32>
    %1004 = arith.addf %1001, %1003 : vector<128xf32>
    %1005 = arith.mulf %955, %883 : vector<128xf32>
    %1006 = arith.addf %1005, %955 : vector<128xf32>
    %cst_164 = arith.constant 1.000000e-01 : f32
    %1007 = vector.broadcast %cst_164 : f32 to vector<128xf32>
    %1008 = arith.mulf %1007, %959 : vector<128xf32>
    %1009 = arith.addf %1006, %1008 : vector<128xf32>
    %1010 = arith.mulf %957, %886 : vector<128xf32>
    %1011 = arith.addf %1010, %957 : vector<128xf32>
    %cst_165 = arith.constant 0.00999999977 : f32
    %1012 = vector.broadcast %cst_165 : f32 to vector<128xf32>
    %1013 = arith.addf %1011, %1012 : vector<128xf32>
    %1014 = arith.mulf %959, %889 : vector<128xf32>
    %1015 = arith.addf %1014, %959 : vector<128xf32>
    %1016 = arith.mulf %961, %880 : vector<128xf32>
    %1017 = arith.addf %1016, %961 : vector<128xf32>
    %cst_166 = arith.constant 1.000000e-01 : f32
    %1018 = vector.broadcast %cst_166 : f32 to vector<128xf32>
    %1019 = arith.mulf %1018, %965 : vector<128xf32>
    %1020 = arith.addf %1017, %1019 : vector<128xf32>
    %1021 = arith.mulf %963, %883 : vector<128xf32>
    %1022 = arith.addf %1021, %963 : vector<128xf32>
    %cst_167 = arith.constant 1.000000e-01 : f32
    %1023 = vector.broadcast %cst_167 : f32 to vector<128xf32>
    %1024 = arith.mulf %1023, %967 : vector<128xf32>
    %1025 = arith.addf %1022, %1024 : vector<128xf32>
    %1026 = arith.mulf %965, %886 : vector<128xf32>
    %1027 = arith.addf %1026, %965 : vector<128xf32>
    %1028 = arith.mulf %967, %889 : vector<128xf32>
    %1029 = arith.addf %1028, %967 : vector<128xf32>
    %cst_168 = arith.constant 0.00999999977 : f32
    %1030 = vector.broadcast %cst_168 : f32 to vector<128xf32>
    %1031 = arith.addf %1029, %1030 : vector<128xf32>
    %cst_169 = arith.constant 1.000000e-01 : f32
    %1032 = vector.broadcast %cst_169 : f32 to vector<128xf32>
    %1033 = arith.addf %974, %1032 : vector<128xf32>
    %cst_170 = arith.constant 1.000000e-01 : f32
    %1034 = vector.broadcast %cst_170 : f32 to vector<128xf32>
    %1035 = arith.addf %995, %1034 : vector<128xf32>
    %1036 = arith.mulf %1033, %1035 : vector<128xf32>
    %1037 = arith.mulf %979, %988 : vector<128xf32>
    %1038 = arith.subf %1036, %1037 : vector<128xf32>
    %1039 = tpu.reciprocal %1038 : vector<128xf32> -> vector<128xf32>
    %1040 = arith.mulf %1035, %1039 : vector<128xf32>
    %cst_171 = arith.constant 0.000000e+00 : f32
    %1041 = vector.broadcast %cst_171 : f32 to vector<128xf32>
    %1042 = arith.subf %1041, %979 : vector<128xf32>
    %1043 = arith.mulf %1042, %1039 : vector<128xf32>
    %cst_172 = arith.constant 0.000000e+00 : f32
    %1044 = vector.broadcast %cst_172 : f32 to vector<128xf32>
    %1045 = arith.subf %1044, %988 : vector<128xf32>
    %1046 = arith.mulf %1045, %1039 : vector<128xf32>
    %1047 = arith.mulf %1033, %1039 : vector<128xf32>
    %1048 = arith.mulf %974, %1040 : vector<128xf32>
    %cst_173 = arith.constant 0.000000e+00 : f32
    %1049 = vector.broadcast %cst_173 : f32 to vector<128xf32>
    %1050 = arith.addf %1049, %1048 : vector<128xf32>
    %1051 = arith.mulf %979, %1046 : vector<128xf32>
    %1052 = arith.addf %1050, %1051 : vector<128xf32>
    %1053 = arith.mulf %974, %1043 : vector<128xf32>
    %cst_174 = arith.constant 0.000000e+00 : f32
    %1054 = vector.broadcast %cst_174 : f32 to vector<128xf32>
    %1055 = arith.addf %1054, %1053 : vector<128xf32>
    %1056 = arith.mulf %979, %1047 : vector<128xf32>
    %1057 = arith.addf %1055, %1056 : vector<128xf32>
    %1058 = arith.mulf %988, %1040 : vector<128xf32>
    %cst_175 = arith.constant 0.000000e+00 : f32
    %1059 = vector.broadcast %cst_175 : f32 to vector<128xf32>
    %1060 = arith.addf %1059, %1058 : vector<128xf32>
    %1061 = arith.mulf %995, %1046 : vector<128xf32>
    %1062 = arith.addf %1060, %1061 : vector<128xf32>
    %1063 = arith.mulf %988, %1043 : vector<128xf32>
    %cst_176 = arith.constant 0.000000e+00 : f32
    %1064 = vector.broadcast %cst_176 : f32 to vector<128xf32>
    %1065 = arith.addf %1064, %1063 : vector<128xf32>
    %1066 = arith.mulf %995, %1047 : vector<128xf32>
    %1067 = arith.addf %1065, %1066 : vector<128xf32>
    %1068 = arith.mulf %1004, %1040 : vector<128xf32>
    %cst_177 = arith.constant 0.000000e+00 : f32
    %1069 = vector.broadcast %cst_177 : f32 to vector<128xf32>
    %1070 = arith.addf %1069, %1068 : vector<128xf32>
    %1071 = arith.mulf %1009, %1046 : vector<128xf32>
    %1072 = arith.addf %1070, %1071 : vector<128xf32>
    %1073 = arith.mulf %1004, %1043 : vector<128xf32>
    %cst_178 = arith.constant 0.000000e+00 : f32
    %1074 = vector.broadcast %cst_178 : f32 to vector<128xf32>
    %1075 = arith.addf %1074, %1073 : vector<128xf32>
    %1076 = arith.mulf %1009, %1047 : vector<128xf32>
    %1077 = arith.addf %1075, %1076 : vector<128xf32>
    %1078 = arith.mulf %1020, %1040 : vector<128xf32>
    %cst_179 = arith.constant 0.000000e+00 : f32
    %1079 = vector.broadcast %cst_179 : f32 to vector<128xf32>
    %1080 = arith.addf %1079, %1078 : vector<128xf32>
    %1081 = arith.mulf %1025, %1046 : vector<128xf32>
    %1082 = arith.addf %1080, %1081 : vector<128xf32>
    %1083 = arith.mulf %1020, %1043 : vector<128xf32>
    %cst_180 = arith.constant 0.000000e+00 : f32
    %1084 = vector.broadcast %cst_180 : f32 to vector<128xf32>
    %1085 = arith.addf %1084, %1083 : vector<128xf32>
    %1086 = arith.mulf %1025, %1047 : vector<128xf32>
    %1087 = arith.addf %1085, %1086 : vector<128xf32>
    %1088 = arith.subf %875, %896 : vector<128xf32>
    %1089 = arith.subf %877, %903 : vector<128xf32>
    %1090 = arith.mulf %1052, %1088 : vector<128xf32>
    %cst_181 = arith.constant 0.000000e+00 : f32
    %1091 = vector.broadcast %cst_181 : f32 to vector<128xf32>
    %1092 = arith.addf %1091, %1090 : vector<128xf32>
    %1093 = arith.mulf %1057, %1089 : vector<128xf32>
    %1094 = arith.addf %1092, %1093 : vector<128xf32>
    %1095 = arith.addf %896, %1094 : vector<128xf32>
    %1096 = arith.mulf %1062, %1088 : vector<128xf32>
    %cst_182 = arith.constant 0.000000e+00 : f32
    %1097 = vector.broadcast %cst_182 : f32 to vector<128xf32>
    %1098 = arith.addf %1097, %1096 : vector<128xf32>
    %1099 = arith.mulf %1067, %1089 : vector<128xf32>
    %1100 = arith.addf %1098, %1099 : vector<128xf32>
    %1101 = arith.addf %903, %1100 : vector<128xf32>
    %1102 = arith.mulf %1072, %1088 : vector<128xf32>
    %cst_183 = arith.constant 0.000000e+00 : f32
    %1103 = vector.broadcast %cst_183 : f32 to vector<128xf32>
    %1104 = arith.addf %1103, %1102 : vector<128xf32>
    %1105 = arith.mulf %1077, %1089 : vector<128xf32>
    %1106 = arith.addf %1104, %1105 : vector<128xf32>
    %1107 = arith.addf %907, %1106 : vector<128xf32>
    %1108 = arith.mulf %1082, %1088 : vector<128xf32>
    %cst_184 = arith.constant 0.000000e+00 : f32
    %1109 = vector.broadcast %cst_184 : f32 to vector<128xf32>
    %1110 = arith.addf %1109, %1108 : vector<128xf32>
    %1111 = arith.mulf %1087, %1089 : vector<128xf32>
    %1112 = arith.addf %1110, %1111 : vector<128xf32>
    %1113 = arith.addf %911, %1112 : vector<128xf32>
    %1114 = arith.mulf %1052, %974 : vector<128xf32>
    %cst_185 = arith.constant 0.000000e+00 : f32
    %1115 = vector.broadcast %cst_185 : f32 to vector<128xf32>
    %1116 = arith.addf %1115, %1114 : vector<128xf32>
    %1117 = arith.mulf %1057, %988 : vector<128xf32>
    %1118 = arith.addf %1116, %1117 : vector<128xf32>
    %1119 = arith.subf %974, %1118 : vector<128xf32>
    %1120 = arith.mulf %1052, %979 : vector<128xf32>
    %cst_186 = arith.constant 0.000000e+00 : f32
    %1121 = vector.broadcast %cst_186 : f32 to vector<128xf32>
    %1122 = arith.addf %1121, %1120 : vector<128xf32>
    %1123 = arith.mulf %1057, %995 : vector<128xf32>
    %1124 = arith.addf %1122, %1123 : vector<128xf32>
    %1125 = arith.subf %979, %1124 : vector<128xf32>
    %1126 = arith.mulf %1052, %981 : vector<128xf32>
    %cst_187 = arith.constant 0.000000e+00 : f32
    %1127 = vector.broadcast %cst_187 : f32 to vector<128xf32>
    %1128 = arith.addf %1127, %1126 : vector<128xf32>
    %1129 = arith.mulf %1057, %997 : vector<128xf32>
    %1130 = arith.addf %1128, %1129 : vector<128xf32>
    %1131 = arith.subf %981, %1130 : vector<128xf32>
    %1132 = arith.mulf %1052, %983 : vector<128xf32>
    %cst_188 = arith.constant 0.000000e+00 : f32
    %1133 = vector.broadcast %cst_188 : f32 to vector<128xf32>
    %1134 = arith.addf %1133, %1132 : vector<128xf32>
    %1135 = arith.mulf %1057, %999 : vector<128xf32>
    %1136 = arith.addf %1134, %1135 : vector<128xf32>
    %1137 = arith.subf %983, %1136 : vector<128xf32>
    %1138 = arith.mulf %1062, %974 : vector<128xf32>
    %cst_189 = arith.constant 0.000000e+00 : f32
    %1139 = vector.broadcast %cst_189 : f32 to vector<128xf32>
    %1140 = arith.addf %1139, %1138 : vector<128xf32>
    %1141 = arith.mulf %1067, %988 : vector<128xf32>
    %1142 = arith.addf %1140, %1141 : vector<128xf32>
    %1143 = arith.subf %988, %1142 : vector<128xf32>
    %1144 = arith.mulf %1062, %979 : vector<128xf32>
    %cst_190 = arith.constant 0.000000e+00 : f32
    %1145 = vector.broadcast %cst_190 : f32 to vector<128xf32>
    %1146 = arith.addf %1145, %1144 : vector<128xf32>
    %1147 = arith.mulf %1067, %995 : vector<128xf32>
    %1148 = arith.addf %1146, %1147 : vector<128xf32>
    %1149 = arith.subf %995, %1148 : vector<128xf32>
    %1150 = arith.mulf %1062, %981 : vector<128xf32>
    %cst_191 = arith.constant 0.000000e+00 : f32
    %1151 = vector.broadcast %cst_191 : f32 to vector<128xf32>
    %1152 = arith.addf %1151, %1150 : vector<128xf32>
    %1153 = arith.mulf %1067, %997 : vector<128xf32>
    %1154 = arith.addf %1152, %1153 : vector<128xf32>
    %1155 = arith.subf %997, %1154 : vector<128xf32>
    %1156 = arith.mulf %1062, %983 : vector<128xf32>
    %cst_192 = arith.constant 0.000000e+00 : f32
    %1157 = vector.broadcast %cst_192 : f32 to vector<128xf32>
    %1158 = arith.addf %1157, %1156 : vector<128xf32>
    %1159 = arith.mulf %1067, %999 : vector<128xf32>
    %1160 = arith.addf %1158, %1159 : vector<128xf32>
    %1161 = arith.subf %999, %1160 : vector<128xf32>
    %1162 = arith.mulf %1072, %974 : vector<128xf32>
    %cst_193 = arith.constant 0.000000e+00 : f32
    %1163 = vector.broadcast %cst_193 : f32 to vector<128xf32>
    %1164 = arith.addf %1163, %1162 : vector<128xf32>
    %1165 = arith.mulf %1077, %988 : vector<128xf32>
    %1166 = arith.addf %1164, %1165 : vector<128xf32>
    %1167 = arith.subf %1004, %1166 : vector<128xf32>
    %1168 = arith.mulf %1072, %979 : vector<128xf32>
    %cst_194 = arith.constant 0.000000e+00 : f32
    %1169 = vector.broadcast %cst_194 : f32 to vector<128xf32>
    %1170 = arith.addf %1169, %1168 : vector<128xf32>
    %1171 = arith.mulf %1077, %995 : vector<128xf32>
    %1172 = arith.addf %1170, %1171 : vector<128xf32>
    %1173 = arith.subf %1009, %1172 : vector<128xf32>
    %1174 = arith.mulf %1072, %981 : vector<128xf32>
    %cst_195 = arith.constant 0.000000e+00 : f32
    %1175 = vector.broadcast %cst_195 : f32 to vector<128xf32>
    %1176 = arith.addf %1175, %1174 : vector<128xf32>
    %1177 = arith.mulf %1077, %997 : vector<128xf32>
    %1178 = arith.addf %1176, %1177 : vector<128xf32>
    %1179 = arith.subf %1013, %1178 : vector<128xf32>
    %1180 = arith.mulf %1072, %983 : vector<128xf32>
    %cst_196 = arith.constant 0.000000e+00 : f32
    %1181 = vector.broadcast %cst_196 : f32 to vector<128xf32>
    %1182 = arith.addf %1181, %1180 : vector<128xf32>
    %1183 = arith.mulf %1077, %999 : vector<128xf32>
    %1184 = arith.addf %1182, %1183 : vector<128xf32>
    %1185 = arith.subf %1015, %1184 : vector<128xf32>
    %1186 = arith.mulf %1082, %974 : vector<128xf32>
    %cst_197 = arith.constant 0.000000e+00 : f32
    %1187 = vector.broadcast %cst_197 : f32 to vector<128xf32>
    %1188 = arith.addf %1187, %1186 : vector<128xf32>
    %1189 = arith.mulf %1087, %988 : vector<128xf32>
    %1190 = arith.addf %1188, %1189 : vector<128xf32>
    %1191 = arith.subf %1020, %1190 : vector<128xf32>
    %1192 = arith.mulf %1082, %979 : vector<128xf32>
    %cst_198 = arith.constant 0.000000e+00 : f32
    %1193 = vector.broadcast %cst_198 : f32 to vector<128xf32>
    %1194 = arith.addf %1193, %1192 : vector<128xf32>
    %1195 = arith.mulf %1087, %995 : vector<128xf32>
    %1196 = arith.addf %1194, %1195 : vector<128xf32>
    %1197 = arith.subf %1025, %1196 : vector<128xf32>
    %1198 = arith.mulf %1082, %981 : vector<128xf32>
    %cst_199 = arith.constant 0.000000e+00 : f32
    %1199 = vector.broadcast %cst_199 : f32 to vector<128xf32>
    %1200 = arith.addf %1199, %1198 : vector<128xf32>
    %1201 = arith.mulf %1087, %997 : vector<128xf32>
    %1202 = arith.addf %1200, %1201 : vector<128xf32>
    %1203 = arith.subf %1027, %1202 : vector<128xf32>
    %1204 = arith.mulf %1082, %983 : vector<128xf32>
    %cst_200 = arith.constant 0.000000e+00 : f32
    %1205 = vector.broadcast %cst_200 : f32 to vector<128xf32>
    %1206 = arith.addf %1205, %1204 : vector<128xf32>
    %1207 = arith.mulf %1087, %999 : vector<128xf32>
    %1208 = arith.addf %1206, %1207 : vector<128xf32>
    %1209 = arith.subf %1031, %1208 : vector<128xf32>
    %1210 = vector.shape_cast %1095 : vector<128xf32> to vector<1x128xf32>
    %1211 = vector.shape_cast %1101 : vector<128xf32> to vector<1x128xf32>
    %1212 = vector.shape_cast %1107 : vector<128xf32> to vector<1x128xf32>
    %1213 = vector.shape_cast %1113 : vector<128xf32> to vector<1x128xf32>
    %1214 = tpu.concatenate %1210, %1211, %1212, %1213 in 0 : vector<1x128xf32>, vector<1x128xf32>, vector<1x128xf32>, vector<1x128xf32> -> vector<4x128xf32>
    %1215 = vector.shape_cast %1119 : vector<128xf32> to vector<1x128xf32>
    %1216 = vector.shape_cast %1125 : vector<128xf32> to vector<1x128xf32>
    %1217 = vector.shape_cast %1131 : vector<128xf32> to vector<1x128xf32>
    %1218 = vector.shape_cast %1137 : vector<128xf32> to vector<1x128xf32>
    %1219 = tpu.concatenate %1215, %1216, %1217, %1218 in 0 : vector<1x128xf32>, vector<1x128xf32>, vector<1x128xf32>, vector<1x128xf32> -> vector<4x128xf32>
    %1220 = vector.shape_cast %1143 : vector<128xf32> to vector<1x128xf32>
    %1221 = vector.shape_cast %1149 : vector<128xf32> to vector<1x128xf32>
    %1222 = vector.shape_cast %1155 : vector<128xf32> to vector<1x128xf32>
    %1223 = vector.shape_cast %1161 : vector<128xf32> to vector<1x128xf32>
    %1224 = tpu.concatenate %1220, %1221, %1222, %1223 in 0 : vector<1x128xf32>, vector<1x128xf32>, vector<1x128xf32>, vector<1x128xf32> -> vector<4x128xf32>
    %1225 = vector.shape_cast %1167 : vector<128xf32> to vector<1x128xf32>
    %1226 = vector.shape_cast %1173 : vector<128xf32> to vector<1x128xf32>
    %1227 = vector.shape_cast %1179 : vector<128xf32> to vector<1x128xf32>
    %1228 = vector.shape_cast %1185 : vector<128xf32> to vector<1x128xf32>
    %1229 = tpu.concatenate %1225, %1226, %1227, %1228 in 0 : vector<1x128xf32>, vector<1x128xf32>, vector<1x128xf32>, vector<1x128xf32> -> vector<4x128xf32>
    %1230 = vector.shape_cast %1191 : vector<128xf32> to vector<1x128xf32>
    %1231 = vector.shape_cast %1197 : vector<128xf32> to vector<1x128xf32>
    %1232 = vector.shape_cast %1203 : vector<128xf32> to vector<1x128xf32>
    %1233 = vector.shape_cast %1209 : vector<128xf32> to vector<1x128xf32>
    %1234 = tpu.concatenate %1230, %1231, %1232, %1233 in 0 : vector<1x128xf32>, vector<1x128xf32>, vector<1x128xf32>, vector<1x128xf32> -> vector<4x128xf32>
    %1235 = vector.shape_cast %1219 : vector<4x128xf32> to vector<1x4x128xf32>
    %1236 = vector.shape_cast %1224 : vector<4x128xf32> to vector<1x4x128xf32>
    %1237 = vector.shape_cast %1229 : vector<4x128xf32> to vector<1x4x128xf32>
    %1238 = vector.shape_cast %1234 : vector<4x128xf32> to vector<1x4x128xf32>
    %1239 = tpu.concatenate %1235, %1236, %1237, %1238 in 0 : vector<1x4x128xf32>, vector<1x4x128xf32>, vector<1x4x128xf32>, vector<1x4x128xf32> -> vector<4x4x128xf32>
    %1240 = arith.index_cast %c2_i32 : i32 to index
    %c0_201 = arith.constant 0 : index
    %c0_202 = arith.constant 0 : index
    %1241 = vector.load %arg5[%1240, %c0_201, %c0_202] : memref<8x4x128xf32, #tpu.memory_space<vmem>>, vector<1x4x128xf32>
    %1242 = vector.shape_cast %1241 : vector<1x4x128xf32> to vector<4x128xf32>
    %1243 = vector.shape_cast %1214 : vector<4x128xf32> to vector<1x4x128xf32>
    tpu.vector_store %arg5[%1240, %c0_201, %c0_202], %1243 {strides = array<i32>} : memref<8x4x128xf32, #tpu.memory_space<vmem>>, vector<1x4x128xf32>,
    %c3_i32 = arith.constant 3 : i32
    %1244 = arith.index_cast %c3_i32 : i32 to index
    %c0_203 = arith.constant 0 : index
    %c0_204 = arith.constant 0 : index
    %1245 = vector.load %arg2[%1244, %c0_203, %c0_204] : memref<8x2x128xf32, #tpu.memory_space<vmem>>, vector<1x2x128xf32>
    %1246 = vector.shape_cast %1245 : vector<1x2x128xf32> to vector<2x128xf32>
    %1247 = vector.extract_strided_slice %1214 {offsets = [0, 0], sizes = [1, 128], strides = [1, 1]} : vector<4x128xf32> to vector<1x128xf32>
    %1248 = vector.shape_cast %1247 : vector<1x128xf32> to vector<128xf32>
    %1249 = vector.extract_strided_slice %1214 {offsets = [1, 0], sizes = [1, 128], strides = [1, 1]} : vector<4x128xf32> to vector<1x128xf32>
    %1250 = vector.shape_cast %1249 : vector<1x128xf32> to vector<128xf32>
    %1251 = vector.extract_strided_slice %1214 {offsets = [2, 0], sizes = [1, 128], strides = [1, 1]} : vector<4x128xf32> to vector<1x128xf32>
    %1252 = vector.shape_cast %1251 : vector<1x128xf32> to vector<128xf32>
    %1253 = vector.extract_strided_slice %1214 {offsets = [3, 0], sizes = [1, 128], strides = [1, 1]} : vector<4x128xf32> to vector<1x128xf32>
    %1254 = vector.shape_cast %1253 : vector<1x128xf32> to vector<128xf32>
    %1255 = vector.extract_strided_slice %1239 {offsets = [0, 0, 0], sizes = [1, 1, 128], strides = [1, 1, 1]} : vector<4x4x128xf32> to vector<1x1x128xf32>
    %1256 = vector.shape_cast %1255 : vector<1x1x128xf32> to vector<128xf32>
    %1257 = vector.extract_strided_slice %1239 {offsets = [0, 1, 0], sizes = [1, 1, 128], strides = [1, 1, 1]} : vector<4x4x128xf32> to vector<1x1x128xf32>
    %1258 = vector.shape_cast %1257 : vector<1x1x128xf32> to vector<128xf32>
    %1259 = vector.extract_strided_slice %1239 {offsets = [0, 2, 0], sizes = [1, 1, 128], strides = [1, 1, 1]} : vector<4x4x128xf32> to vector<1x1x128xf32>
    %1260 = vector.shape_cast %1259 : vector<1x1x128xf32> to vector<128xf32>
    %1261 = vector.extract_strided_slice %1239 {offsets = [0, 3, 0], sizes = [1, 1, 128], strides = [1, 1, 1]} : vector<4x4x128xf32> to vector<1x1x128xf32>
    %1262 = vector.shape_cast %1261 : vector<1x1x128xf32> to vector<128xf32>
    %1263 = vector.extract_strided_slice %1239 {offsets = [1, 0, 0], sizes = [1, 1, 128], strides = [1, 1, 1]} : vector<4x4x128xf32> to vector<1x1x128xf32>
    %1264 = vector.shape_cast %1263 : vector<1x1x128xf32> to vector<128xf32>
    %1265 = vector.extract_strided_slice %1239 {offsets = [1, 1, 0], sizes = [1, 1, 128], strides = [1, 1, 1]} : vector<4x4x128xf32> to vector<1x1x128xf32>
    %1266 = vector.shape_cast %1265 : vector<1x1x128xf32> to vector<128xf32>
    %1267 = vector.extract_strided_slice %1239 {offsets = [1, 2, 0], sizes = [1, 1, 128], strides = [1, 1, 1]} : vector<4x4x128xf32> to vector<1x1x128xf32>
    %1268 = vector.shape_cast %1267 : vector<1x1x128xf32> to vector<128xf32>
    %1269 = vector.extract_strided_slice %1239 {offsets = [1, 3, 0], sizes = [1, 1, 128], strides = [1, 1, 1]} : vector<4x4x128xf32> to vector<1x1x128xf32>
    %1270 = vector.shape_cast %1269 : vector<1x1x128xf32> to vector<128xf32>
    %1271 = vector.extract_strided_slice %1239 {offsets = [2, 0, 0], sizes = [1, 1, 128], strides = [1, 1, 1]} : vector<4x4x128xf32> to vector<1x1x128xf32>
    %1272 = vector.shape_cast %1271 : vector<1x1x128xf32> to vector<128xf32>
    %1273 = vector.extract_strided_slice %1239 {offsets = [2, 1, 0], sizes = [1, 1, 128], strides = [1, 1, 1]} : vector<4x4x128xf32> to vector<1x1x128xf32>
    %1274 = vector.shape_cast %1273 : vector<1x1x128xf32> to vector<128xf32>
    %1275 = vector.extract_strided_slice %1239 {offsets = [2, 2, 0], sizes = [1, 1, 128], strides = [1, 1, 1]} : vector<4x4x128xf32> to vector<1x1x128xf32>
    %1276 = vector.shape_cast %1275 : vector<1x1x128xf32> to vector<128xf32>
    %1277 = vector.extract_strided_slice %1239 {offsets = [2, 3, 0], sizes = [1, 1, 128], strides = [1, 1, 1]} : vector<4x4x128xf32> to vector<1x1x128xf32>
    %1278 = vector.shape_cast %1277 : vector<1x1x128xf32> to vector<128xf32>
    %1279 = vector.extract_strided_slice %1239 {offsets = [3, 0, 0], sizes = [1, 1, 128], strides = [1, 1, 1]} : vector<4x4x128xf32> to vector<1x1x128xf32>
    %1280 = vector.shape_cast %1279 : vector<1x1x128xf32> to vector<128xf32>
    %1281 = vector.extract_strided_slice %1239 {offsets = [3, 1, 0], sizes = [1, 1, 128], strides = [1, 1, 1]} : vector<4x4x128xf32> to vector<1x1x128xf32>
    %1282 = vector.shape_cast %1281 : vector<1x1x128xf32> to vector<128xf32>
    %1283 = vector.extract_strided_slice %1239 {offsets = [3, 2, 0], sizes = [1, 1, 128], strides = [1, 1, 1]} : vector<4x4x128xf32> to vector<1x1x128xf32>
    %1284 = vector.shape_cast %1283 : vector<1x1x128xf32> to vector<128xf32>
    %1285 = vector.extract_strided_slice %1239 {offsets = [3, 3, 0], sizes = [1, 1, 128], strides = [1, 1, 1]} : vector<4x4x128xf32> to vector<1x1x128xf32>
    %1286 = vector.shape_cast %1285 : vector<1x1x128xf32> to vector<128xf32>
    %1287 = vector.extract_strided_slice %1246 {offsets = [0, 0], sizes = [1, 128], strides = [1, 1]} : vector<2x128xf32> to vector<1x128xf32>
    %1288 = vector.shape_cast %1287 : vector<1x128xf32> to vector<128xf32>
    %1289 = vector.extract_strided_slice %1246 {offsets = [1, 0], sizes = [1, 128], strides = [1, 1]} : vector<2x128xf32> to vector<1x128xf32>
    %1290 = vector.shape_cast %1289 : vector<1x128xf32> to vector<128xf32>
    %1291 = math.cos %1248 : vector<128xf32>
    %cst_205 = arith.constant 1.000000e-01 : f32
    %1292 = vector.broadcast %cst_205 : f32 to vector<128xf32>
    %1293 = arith.mulf %1292, %1291 : vector<128xf32>
    %1294 = math.cos %1250 : vector<128xf32>
    %cst_206 = arith.constant 1.000000e-01 : f32
    %1295 = vector.broadcast %cst_206 : f32 to vector<128xf32>
    %1296 = arith.mulf %1295, %1294 : vector<128xf32>
    %1297 = math.cos %1252 : vector<128xf32>
    %cst_207 = arith.constant 1.000000e-01 : f32
    %1298 = vector.broadcast %cst_207 : f32 to vector<128xf32>
    %1299 = arith.mulf %1298, %1297 : vector<128xf32>
    %1300 = math.cos %1254 : vector<128xf32>
    %cst_208 = arith.constant 1.000000e-01 : f32
    %1301 = vector.broadcast %cst_208 : f32 to vector<128xf32>
    %1302 = arith.mulf %1301, %1300 : vector<128xf32>
    %1303 = math.sin %1248 : vector<128xf32>
    %cst_209 = arith.constant 1.000000e-01 : f32
    %1304 = vector.broadcast %cst_209 : f32 to vector<128xf32>
    %1305 = arith.mulf %1304, %1303 : vector<128xf32>
    %1306 = arith.addf %1305, %1248 : vector<128xf32>
    %cst_210 = arith.constant 1.000000e-01 : f32
    %1307 = vector.broadcast %cst_210 : f32 to vector<128xf32>
    %1308 = arith.mulf %1307, %1252 : vector<128xf32>
    %1309 = arith.addf %1306, %1308 : vector<128xf32>
    %1310 = math.sin %1250 : vector<128xf32>
    %cst_211 = arith.constant 1.000000e-01 : f32
    %1311 = vector.broadcast %cst_211 : f32 to vector<128xf32>
    %1312 = arith.mulf %1311, %1310 : vector<128xf32>
    %1313 = arith.addf %1312, %1250 : vector<128xf32>
    %cst_212 = arith.constant 1.000000e-01 : f32
    %1314 = vector.broadcast %cst_212 : f32 to vector<128xf32>
    %1315 = arith.mulf %1314, %1254 : vector<128xf32>
    %1316 = arith.addf %1313, %1315 : vector<128xf32>
    %1317 = math.sin %1252 : vector<128xf32>
    %cst_213 = arith.constant 1.000000e-01 : f32
    %1318 = vector.broadcast %cst_213 : f32 to vector<128xf32>
    %1319 = arith.mulf %1318, %1317 : vector<128xf32>
    %1320 = arith.addf %1319, %1252 : vector<128xf32>
    %1321 = math.sin %1254 : vector<128xf32>
    %cst_214 = arith.constant 1.000000e-01 : f32
    %1322 = vector.broadcast %cst_214 : f32 to vector<128xf32>
    %1323 = arith.mulf %1322, %1321 : vector<128xf32>
    %1324 = arith.addf %1323, %1254 : vector<128xf32>
    %1325 = arith.mulf %1293, %1256 : vector<128xf32>
    %1326 = arith.addf %1325, %1256 : vector<128xf32>
    %cst_215 = arith.constant 1.000000e-01 : f32
    %1327 = vector.broadcast %cst_215 : f32 to vector<128xf32>
    %1328 = arith.mulf %1327, %1272 : vector<128xf32>
    %1329 = arith.addf %1326, %1328 : vector<128xf32>
    %1330 = arith.mulf %1293, %1258 : vector<128xf32>
    %1331 = arith.addf %1330, %1258 : vector<128xf32>
    %cst_216 = arith.constant 1.000000e-01 : f32
    %1332 = vector.broadcast %cst_216 : f32 to vector<128xf32>
    %1333 = arith.mulf %1332, %1274 : vector<128xf32>
    %1334 = arith.addf %1331, %1333 : vector<128xf32>
    %1335 = arith.mulf %1293, %1260 : vector<128xf32>
    %1336 = arith.addf %1335, %1260 : vector<128xf32>
    %cst_217 = arith.constant 1.000000e-01 : f32
    %1337 = vector.broadcast %cst_217 : f32 to vector<128xf32>
    %1338 = arith.mulf %1337, %1276 : vector<128xf32>
    %1339 = arith.addf %1336, %1338 : vector<128xf32>
    %1340 = arith.mulf %1293, %1262 : vector<128xf32>
    %1341 = arith.addf %1340, %1262 : vector<128xf32>
    %cst_218 = arith.constant 1.000000e-01 : f32
    %1342 = vector.broadcast %cst_218 : f32 to vector<128xf32>
    %1343 = arith.mulf %1342, %1278 : vector<128xf32>
    %1344 = arith.addf %1341, %1343 : vector<128xf32>
    %1345 = arith.mulf %1296, %1264 : vector<128xf32>
    %1346 = arith.addf %1345, %1264 : vector<128xf32>
    %cst_219 = arith.constant 1.000000e-01 : f32
    %1347 = vector.broadcast %cst_219 : f32 to vector<128xf32>
    %1348 = arith.mulf %1347, %1280 : vector<128xf32>
    %1349 = arith.addf %1346, %1348 : vector<128xf32>
    %1350 = arith.mulf %1296, %1266 : vector<128xf32>
    %1351 = arith.addf %1350, %1266 : vector<128xf32>
    %cst_220 = arith.constant 1.000000e-01 : f32
    %1352 = vector.broadcast %cst_220 : f32 to vector<128xf32>
    %1353 = arith.mulf %1352, %1282 : vector<128xf32>
    %1354 = arith.addf %1351, %1353 : vector<128xf32>
    %1355 = arith.mulf %1296, %1268 : vector<128xf32>
    %1356 = arith.addf %1355, %1268 : vector<128xf32>
    %cst_221 = arith.constant 1.000000e-01 : f32
    %1357 = vector.broadcast %cst_221 : f32 to vector<128xf32>
    %1358 = arith.mulf %1357, %1284 : vector<128xf32>
    %1359 = arith.addf %1356, %1358 : vector<128xf32>
    %1360 = arith.mulf %1296, %1270 : vector<128xf32>
    %1361 = arith.addf %1360, %1270 : vector<128xf32>
    %cst_222 = arith.constant 1.000000e-01 : f32
    %1362 = vector.broadcast %cst_222 : f32 to vector<128xf32>
    %1363 = arith.mulf %1362, %1286 : vector<128xf32>
    %1364 = arith.addf %1361, %1363 : vector<128xf32>
    %1365 = arith.mulf %1299, %1272 : vector<128xf32>
    %1366 = arith.addf %1365, %1272 : vector<128xf32>
    %1367 = arith.mulf %1299, %1274 : vector<128xf32>
    %1368 = arith.addf %1367, %1274 : vector<128xf32>
    %1369 = arith.mulf %1299, %1276 : vector<128xf32>
    %1370 = arith.addf %1369, %1276 : vector<128xf32>
    %1371 = arith.mulf %1299, %1278 : vector<128xf32>
    %1372 = arith.addf %1371, %1278 : vector<128xf32>
    %1373 = arith.mulf %1302, %1280 : vector<128xf32>
    %1374 = arith.addf %1373, %1280 : vector<128xf32>
    %1375 = arith.mulf %1302, %1282 : vector<128xf32>
    %1376 = arith.addf %1375, %1282 : vector<128xf32>
    %1377 = arith.mulf %1302, %1284 : vector<128xf32>
    %1378 = arith.addf %1377, %1284 : vector<128xf32>
    %1379 = arith.mulf %1302, %1286 : vector<128xf32>
    %1380 = arith.addf %1379, %1286 : vector<128xf32>
    %1381 = arith.mulf %1329, %1293 : vector<128xf32>
    %1382 = arith.addf %1381, %1329 : vector<128xf32>
    %cst_223 = arith.constant 1.000000e-01 : f32
    %1383 = vector.broadcast %cst_223 : f32 to vector<128xf32>
    %1384 = arith.mulf %1383, %1339 : vector<128xf32>
    %1385 = arith.addf %1382, %1384 : vector<128xf32>
    %cst_224 = arith.constant 0.00999999977 : f32
    %1386 = vector.broadcast %cst_224 : f32 to vector<128xf32>
    %1387 = arith.addf %1385, %1386 : vector<128xf32>
    %1388 = arith.mulf %1334, %1296 : vector<128xf32>
    %1389 = arith.addf %1388, %1334 : vector<128xf32>
    %cst_225 = arith.constant 1.000000e-01 : f32
    %1390 = vector.broadcast %cst_225 : f32 to vector<128xf32>
    %1391 = arith.mulf %1390, %1344 : vector<128xf32>
    %1392 = arith.addf %1389, %1391 : vector<128xf32>
    %1393 = arith.mulf %1339, %1299 : vector<128xf32>
    %1394 = arith.addf %1393, %1339 : vector<128xf32>
    %1395 = arith.mulf %1344, %1302 : vector<128xf32>
    %1396 = arith.addf %1395, %1344 : vector<128xf32>
    %1397 = arith.mulf %1349, %1293 : vector<128xf32>
    %1398 = arith.addf %1397, %1349 : vector<128xf32>
    %cst_226 = arith.constant 1.000000e-01 : f32
    %1399 = vector.broadcast %cst_226 : f32 to vector<128xf32>
    %1400 = arith.mulf %1399, %1359 : vector<128xf32>
    %1401 = arith.addf %1398, %1400 : vector<128xf32>
    %1402 = arith.mulf %1354, %1296 : vector<128xf32>
    %1403 = arith.addf %1402, %1354 : vector<128xf32>
    %cst_227 = arith.constant 1.000000e-01 : f32
    %1404 = vector.broadcast %cst_227 : f32 to vector<128xf32>
    %1405 = arith.mulf %1404, %1364 : vector<128xf32>
    %1406 = arith.addf %1403, %1405 : vector<128xf32>
    %cst_228 = arith.constant 0.00999999977 : f32
    %1407 = vector.broadcast %cst_228 : f32 to vector<128xf32>
    %1408 = arith.addf %1406, %1407 : vector<128xf32>
    %1409 = arith.mulf %1359, %1299 : vector<128xf32>
    %1410 = arith.addf %1409, %1359 : vector<128xf32>
    %1411 = arith.mulf %1364, %1302 : vector<128xf32>
    %1412 = arith.addf %1411, %1364 : vector<128xf32>
    %1413 = arith.mulf %1366, %1293 : vector<128xf32>
    %1414 = arith.addf %1413, %1366 : vector<128xf32>
    %cst_229 = arith.constant 1.000000e-01 : f32
    %1415 = vector.broadcast %cst_229 : f32 to vector<128xf32>
    %1416 = arith.mulf %1415, %1370 : vector<128xf32>
    %1417 = arith.addf %1414, %1416 : vector<128xf32>
    %1418 = arith.mulf %1368, %1296 : vector<128xf32>
    %1419 = arith.addf %1418, %1368 : vector<128xf32>
    %cst_230 = arith.constant 1.000000e-01 : f32
    %1420 = vector.broadcast %cst_230 : f32 to vector<128xf32>
    %1421 = arith.mulf %1420, %1372 : vector<128xf32>
    %1422 = arith.addf %1419, %1421 : vector<128xf32>
    %1423 = arith.mulf %1370, %1299 : vector<128xf32>
    %1424 = arith.addf %1423, %1370 : vector<128xf32>
    %cst_231 = arith.constant 0.00999999977 : f32
    %1425 = vector.broadcast %cst_231 : f32 to vector<128xf32>
    %1426 = arith.addf %1424, %1425 : vector<128xf32>
    %1427 = arith.mulf %1372, %1302 : vector<128xf32>
    %1428 = arith.addf %1427, %1372 : vector<128xf32>
    %1429 = arith.mulf %1374, %1293 : vector<128xf32>
    %1430 = arith.addf %1429, %1374 : vector<128xf32>
    %cst_232 = arith.constant 1.000000e-01 : f32
    %1431 = vector.broadcast %cst_232 : f32 to vector<128xf32>
    %1432 = arith.mulf %1431, %1378 : vector<128xf32>
    %1433 = arith.addf %1430, %1432 : vector<128xf32>
    %1434 = arith.mulf %1376, %1296 : vector<128xf32>
    %1435 = arith.addf %1434, %1376 : vector<128xf32>
    %cst_233 = arith.constant 1.000000e-01 : f32
    %1436 = vector.broadcast %cst_233 : f32 to vector<128xf32>
    %1437 = arith.mulf %1436, %1380 : vector<128xf32>
    %1438 = arith.addf %1435, %1437 : vector<128xf32>
    %1439 = arith.mulf %1378, %1299 : vector<128xf32>
    %1440 = arith.addf %1439, %1378 : vector<128xf32>
    %1441 = arith.mulf %1380, %1302 : vector<128xf32>
    %1442 = arith.addf %1441, %1380 : vector<128xf32>
    %cst_234 = arith.constant 0.00999999977 : f32
    %1443 = vector.broadcast %cst_234 : f32 to vector<128xf32>
    %1444 = arith.addf %1442, %1443 : vector<128xf32>
    %cst_235 = arith.constant 1.000000e-01 : f32
    %1445 = vector.broadcast %cst_235 : f32 to vector<128xf32>
    %1446 = arith.addf %1387, %1445 : vector<128xf32>
    %cst_236 = arith.constant 1.000000e-01 : f32
    %1447 = vector.broadcast %cst_236 : f32 to vector<128xf32>
    %1448 = arith.addf %1408, %1447 : vector<128xf32>
    %1449 = arith.mulf %1446, %1448 : vector<128xf32>
    %1450 = arith.mulf %1392, %1401 : vector<128xf32>
    %1451 = arith.subf %1449, %1450 : vector<128xf32>
    %1452 = tpu.reciprocal %1451 : vector<128xf32> -> vector<128xf32>
    %1453 = arith.mulf %1448, %1452 : vector<128xf32>
    %cst_237 = arith.constant 0.000000e+00 : f32
    %1454 = vector.broadcast %cst_237 : f32 to vector<128xf32>
    %1455 = arith.subf %1454, %1392 : vector<128xf32>
    %1456 = arith.mulf %1455, %1452 : vector<128xf32>
    %cst_238 = arith.constant 0.000000e+00 : f32
    %1457 = vector.broadcast %cst_238 : f32 to vector<128xf32>
    %1458 = arith.subf %1457, %1401 : vector<128xf32>
    %1459 = arith.mulf %1458, %1452 : vector<128xf32>
    %1460 = arith.mulf %1446, %1452 : vector<128xf32>
    %1461 = arith.mulf %1387, %1453 : vector<128xf32>
    %cst_239 = arith.constant 0.000000e+00 : f32
    %1462 = vector.broadcast %cst_239 : f32 to vector<128xf32>
    %1463 = arith.addf %1462, %1461 : vector<128xf32>
    %1464 = arith.mulf %1392, %1459 : vector<128xf32>
    %1465 = arith.addf %1463, %1464 : vector<128xf32>
    %1466 = arith.mulf %1387, %1456 : vector<128xf32>
    %cst_240 = arith.constant 0.000000e+00 : f32
    %1467 = vector.broadcast %cst_240 : f32 to vector<128xf32>
    %1468 = arith.addf %1467, %1466 : vector<128xf32>
    %1469 = arith.mulf %1392, %1460 : vector<128xf32>
    %1470 = arith.addf %1468, %1469 : vector<128xf32>
    %1471 = arith.mulf %1401, %1453 : vector<128xf32>
    %cst_241 = arith.constant 0.000000e+00 : f32
    %1472 = vector.broadcast %cst_241 : f32 to vector<128xf32>
    %1473 = arith.addf %1472, %1471 : vector<128xf32>
    %1474 = arith.mulf %1408, %1459 : vector<128xf32>
    %1475 = arith.addf %1473, %1474 : vector<128xf32>
    %1476 = arith.mulf %1401, %1456 : vector<128xf32>
    %cst_242 = arith.constant 0.000000e+00 : f32
    %1477 = vector.broadcast %cst_242 : f32 to vector<128xf32>
    %1478 = arith.addf %1477, %1476 : vector<128xf32>
    %1479 = arith.mulf %1408, %1460 : vector<128xf32>
    %1480 = arith.addf %1478, %1479 : vector<128xf32>
    %1481 = arith.mulf %1417, %1453 : vector<128xf32>
    %cst_243 = arith.constant 0.000000e+00 : f32
    %1482 = vector.broadcast %cst_243 : f32 to vector<128xf32>
    %1483 = arith.addf %1482, %1481 : vector<128xf32>
    %1484 = arith.mulf %1422, %1459 : vector<128xf32>
    %1485 = arith.addf %1483, %1484 : vector<128xf32>
    %1486 = arith.mulf %1417, %1456 : vector<128xf32>
    %cst_244 = arith.constant 0.000000e+00 : f32
    %1487 = vector.broadcast %cst_244 : f32 to vector<128xf32>
    %1488 = arith.addf %1487, %1486 : vector<128xf32>
    %1489 = arith.mulf %1422, %1460 : vector<128xf32>
    %1490 = arith.addf %1488, %1489 : vector<128xf32>
    %1491 = arith.mulf %1433, %1453 : vector<128xf32>
    %cst_245 = arith.constant 0.000000e+00 : f32
    %1492 = vector.broadcast %cst_245 : f32 to vector<128xf32>
    %1493 = arith.addf %1492, %1491 : vector<128xf32>
    %1494 = arith.mulf %1438, %1459 : vector<128xf32>
    %1495 = arith.addf %1493, %1494 : vector<128xf32>
    %1496 = arith.mulf %1433, %1456 : vector<128xf32>
    %cst_246 = arith.constant 0.000000e+00 : f32
    %1497 = vector.broadcast %cst_246 : f32 to vector<128xf32>
    %1498 = arith.addf %1497, %1496 : vector<128xf32>
    %1499 = arith.mulf %1438, %1460 : vector<128xf32>
    %1500 = arith.addf %1498, %1499 : vector<128xf32>
    %1501 = arith.subf %1288, %1309 : vector<128xf32>
    %1502 = arith.subf %1290, %1316 : vector<128xf32>
    %1503 = arith.mulf %1465, %1501 : vector<128xf32>
    %cst_247 = arith.constant 0.000000e+00 : f32
    %1504 = vector.broadcast %cst_247 : f32 to vector<128xf32>
    %1505 = arith.addf %1504, %1503 : vector<128xf32>
    %1506 = arith.mulf %1470, %1502 : vector<128xf32>
    %1507 = arith.addf %1505, %1506 : vector<128xf32>
    %1508 = arith.addf %1309, %1507 : vector<128xf32>
    %1509 = arith.mulf %1475, %1501 : vector<128xf32>
    %cst_248 = arith.constant 0.000000e+00 : f32
    %1510 = vector.broadcast %cst_248 : f32 to vector<128xf32>
    %1511 = arith.addf %1510, %1509 : vector<128xf32>
    %1512 = arith.mulf %1480, %1502 : vector<128xf32>
    %1513 = arith.addf %1511, %1512 : vector<128xf32>
    %1514 = arith.addf %1316, %1513 : vector<128xf32>
    %1515 = arith.mulf %1485, %1501 : vector<128xf32>
    %cst_249 = arith.constant 0.000000e+00 : f32
    %1516 = vector.broadcast %cst_249 : f32 to vector<128xf32>
    %1517 = arith.addf %1516, %1515 : vector<128xf32>
    %1518 = arith.mulf %1490, %1502 : vector<128xf32>
    %1519 = arith.addf %1517, %1518 : vector<128xf32>
    %1520 = arith.addf %1320, %1519 : vector<128xf32>
    %1521 = arith.mulf %1495, %1501 : vector<128xf32>
    %cst_250 = arith.constant 0.000000e+00 : f32
    %1522 = vector.broadcast %cst_250 : f32 to vector<128xf32>
    %1523 = arith.addf %1522, %1521 : vector<128xf32>
    %1524 = arith.mulf %1500, %1502 : vector<128xf32>
    %1525 = arith.addf %1523, %1524 : vector<128xf32>
    %1526 = arith.addf %1324, %1525 : vector<128xf32>
    %1527 = arith.mulf %1465, %1387 : vector<128xf32>
    %cst_251 = arith.constant 0.000000e+00 : f32
    %1528 = vector.broadcast %cst_251 : f32 to vector<128xf32>
    %1529 = arith.addf %1528, %1527 : vector<128xf32>
    %1530 = arith.mulf %1470, %1401 : vector<128xf32>
    %1531 = arith.addf %1529, %1530 : vector<128xf32>
    %1532 = arith.subf %1387, %1531 : vector<128xf32>
    %1533 = arith.mulf %1465, %1392 : vector<128xf32>
    %cst_252 = arith.constant 0.000000e+00 : f32
    %1534 = vector.broadcast %cst_252 : f32 to vector<128xf32>
    %1535 = arith.addf %1534, %1533 : vector<128xf32>
    %1536 = arith.mulf %1470, %1408 : vector<128xf32>
    %1537 = arith.addf %1535, %1536 : vector<128xf32>
    %1538 = arith.subf %1392, %1537 : vector<128xf32>
    %1539 = arith.mulf %1465, %1394 : vector<128xf32>
    %cst_253 = arith.constant 0.000000e+00 : f32
    %1540 = vector.broadcast %cst_253 : f32 to vector<128xf32>
    %1541 = arith.addf %1540, %1539 : vector<128xf32>
    %1542 = arith.mulf %1470, %1410 : vector<128xf32>
    %1543 = arith.addf %1541, %1542 : vector<128xf32>
    %1544 = arith.subf %1394, %1543 : vector<128xf32>
    %1545 = arith.mulf %1465, %1396 : vector<128xf32>
    %cst_254 = arith.constant 0.000000e+00 : f32
    %1546 = vector.broadcast %cst_254 : f32 to vector<128xf32>
    %1547 = arith.addf %1546, %1545 : vector<128xf32>
    %1548 = arith.mulf %1470, %1412 : vector<128xf32>
    %1549 = arith.addf %1547, %1548 : vector<128xf32>
    %1550 = arith.subf %1396, %1549 : vector<128xf32>
    %1551 = arith.mulf %1475, %1387 : vector<128xf32>
    %cst_255 = arith.constant 0.000000e+00 : f32
    %1552 = vector.broadcast %cst_255 : f32 to vector<128xf32>
    %1553 = arith.addf %1552, %1551 : vector<128xf32>
    %1554 = arith.mulf %1480, %1401 : vector<128xf32>
    %1555 = arith.addf %1553, %1554 : vector<128xf32>
    %1556 = arith.subf %1401, %1555 : vector<128xf32>
    %1557 = arith.mulf %1475, %1392 : vector<128xf32>
    %cst_256 = arith.constant 0.000000e+00 : f32
    %1558 = vector.broadcast %cst_256 : f32 to vector<128xf32>
    %1559 = arith.addf %1558, %1557 : vector<128xf32>
    %1560 = arith.mulf %1480, %1408 : vector<128xf32>
    %1561 = arith.addf %1559, %1560 : vector<128xf32>
    %1562 = arith.subf %1408, %1561 : vector<128xf32>
    %1563 = arith.mulf %1475, %1394 : vector<128xf32>
    %cst_257 = arith.constant 0.000000e+00 : f32
    %1564 = vector.broadcast %cst_257 : f32 to vector<128xf32>
    %1565 = arith.addf %1564, %1563 : vector<128xf32>
    %1566 = arith.mulf %1480, %1410 : vector<128xf32>
    %1567 = arith.addf %1565, %1566 : vector<128xf32>
    %1568 = arith.subf %1410, %1567 : vector<128xf32>
    %1569 = arith.mulf %1475, %1396 : vector<128xf32>
    %cst_258 = arith.constant 0.000000e+00 : f32
    %1570 = vector.broadcast %cst_258 : f32 to vector<128xf32>
    %1571 = arith.addf %1570, %1569 : vector<128xf32>
    %1572 = arith.mulf %1480, %1412 : vector<128xf32>
    %1573 = arith.addf %1571, %1572 : vector<128xf32>
    %1574 = arith.subf %1412, %1573 : vector<128xf32>
    %1575 = arith.mulf %1485, %1387 : vector<128xf32>
    %cst_259 = arith.constant 0.000000e+00 : f32
    %1576 = vector.broadcast %cst_259 : f32 to vector<128xf32>
    %1577 = arith.addf %1576, %1575 : vector<128xf32>
    %1578 = arith.mulf %1490, %1401 : vector<128xf32>
    %1579 = arith.addf %1577, %1578 : vector<128xf32>
    %1580 = arith.subf %1417, %1579 : vector<128xf32>
    %1581 = arith.mulf %1485, %1392 : vector<128xf32>
    %cst_260 = arith.constant 0.000000e+00 : f32
    %1582 = vector.broadcast %cst_260 : f32 to vector<128xf32>
    %1583 = arith.addf %1582, %1581 : vector<128xf32>
    %1584 = arith.mulf %1490, %1408 : vector<128xf32>
    %1585 = arith.addf %1583, %1584 : vector<128xf32>
    %1586 = arith.subf %1422, %1585 : vector<128xf32>
    %1587 = arith.mulf %1485, %1394 : vector<128xf32>
    %cst_261 = arith.constant 0.000000e+00 : f32
    %1588 = vector.broadcast %cst_261 : f32 to vector<128xf32>
    %1589 = arith.addf %1588, %1587 : vector<128xf32>
    %1590 = arith.mulf %1490, %1410 : vector<128xf32>
    %1591 = arith.addf %1589, %1590 : vector<128xf32>
    %1592 = arith.subf %1426, %1591 : vector<128xf32>
    %1593 = arith.mulf %1485, %1396 : vector<128xf32>
    %cst_262 = arith.constant 0.000000e+00 : f32
    %1594 = vector.broadcast %cst_262 : f32 to vector<128xf32>
    %1595 = arith.addf %1594, %1593 : vector<128xf32>
    %1596 = arith.mulf %1490, %1412 : vector<128xf32>
    %1597 = arith.addf %1595, %1596 : vector<128xf32>
    %1598 = arith.subf %1428, %1597 : vector<128xf32>
    %1599 = arith.mulf %1495, %1387 : vector<128xf32>
    %cst_263 = arith.constant 0.000000e+00 : f32
    %1600 = vector.broadcast %cst_263 : f32 to vector<128xf32>
    %1601 = arith.addf %1600, %1599 : vector<128xf32>
    %1602 = arith.mulf %1500, %1401 : vector<128xf32>
    %1603 = arith.addf %1601, %1602 : vector<128xf32>
    %1604 = arith.subf %1433, %1603 : vector<128xf32>
    %1605 = arith.mulf %1495, %1392 : vector<128xf32>
    %cst_264 = arith.constant 0.000000e+00 : f32
    %1606 = vector.broadcast %cst_264 : f32 to vector<128xf32>
    %1607 = arith.addf %1606, %1605 : vector<128xf32>
    %1608 = arith.mulf %1500, %1408 : vector<128xf32>
    %1609 = arith.addf %1607, %1608 : vector<128xf32>
    %1610 = arith.subf %1438, %1609 : vector<128xf32>
    %1611 = arith.mulf %1495, %1394 : vector<128xf32>
    %cst_265 = arith.constant 0.000000e+00 : f32
    %1612 = vector.broadcast %cst_265 : f32 to vector<128xf32>
    %1613 = arith.addf %1612, %1611 : vector<128xf32>
    %1614 = arith.mulf %1500, %1410 : vector<128xf32>
    %1615 = arith.addf %1613, %1614 : vector<128xf32>
    %1616 = arith.subf %1440, %1615 : vector<128xf32>
    %1617 = arith.mulf %1495, %1396 : vector<128xf32>
    %cst_266 = arith.constant 0.000000e+00 : f32
    %1618 = vector.broadcast %cst_266 : f32 to vector<128xf32>
    %1619 = arith.addf %1618, %1617 : vector<128xf32>
    %1620 = arith.mulf %1500, %1412 : vector<128xf32>
    %1621 = arith.addf %1619, %1620 : vector<128xf32>
    %1622 = arith.subf %1444, %1621 : vector<128xf32>
    %1623 = vector.shape_cast %1508 : vector<128xf32> to vector<1x128xf32>
    %1624 = vector.shape_cast %1514 : vector<128xf32> to vector<1x128xf32>
    %1625 = vector.shape_cast %1520 : vector<128xf32> to vector<1x128xf32>
    %1626 = vector.shape_cast %1526 : vector<128xf32> to vector<1x128xf32>
    %1627 = tpu.concatenate %1623, %1624, %1625, %1626 in 0 : vector<1x128xf32>, vector<1x128xf32>, vector<1x128xf32>, vector<1x128xf32> -> vector<4x128xf32>
    %1628 = vector.shape_cast %1532 : vector<128xf32> to vector<1x128xf32>
    %1629 = vector.shape_cast %1538 : vector<128xf32> to vector<1x128xf32>
    %1630 = vector.shape_cast %1544 : vector<128xf32> to vector<1x128xf32>
    %1631 = vector.shape_cast %1550 : vector<128xf32> to vector<1x128xf32>
    %1632 = tpu.concatenate %1628, %1629, %1630, %1631 in 0 : vector<1x128xf32>, vector<1x128xf32>, vector<1x128xf32>, vector<1x128xf32> -> vector<4x128xf32>
    %1633 = vector.shape_cast %1556 : vector<128xf32> to vector<1x128xf32>
    %1634 = vector.shape_cast %1562 : vector<128xf32> to vector<1x128xf32>
    %1635 = vector.shape_cast %1568 : vector<128xf32> to vector<1x128xf32>
    %1636 = vector.shape_cast %1574 : vector<128xf32> to vector<1x128xf32>
    %1637 = tpu.concatenate %1633, %1634, %1635, %1636 in 0 : vector<1x128xf32>, vector<1x128xf32>, vector<1x128xf32>, vector<1x128xf32> -> vector<4x128xf32>
    %1638 = vector.shape_cast %1580 : vector<128xf32> to vector<1x128xf32>
    %1639 = vector.shape_cast %1586 : vector<128xf32> to vector<1x128xf32>
    %1640 = vector.shape_cast %1592 : vector<128xf32> to vector<1x128xf32>
    %1641 = vector.shape_cast %1598 : vector<128xf32> to vector<1x128xf32>
    %1642 = tpu.concatenate %1638, %1639, %1640, %1641 in 0 : vector<1x128xf32>, vector<1x128xf32>, vector<1x128xf32>, vector<1x128xf32> -> vector<4x128xf32>
    %1643 = vector.shape_cast %1604 : vector<128xf32> to vector<1x128xf32>
    %1644 = vector.shape_cast %1610 : vector<128xf32> to vector<1x128xf32>
    %1645 = vector.shape_cast %1616 : vector<128xf32> to vector<1x128xf32>
    %1646 = vector.shape_cast %1622 : vector<128xf32> to vector<1x128xf32>
    %1647 = tpu.concatenate %1643, %1644, %1645, %1646 in 0 : vector<1x128xf32>, vector<1x128xf32>, vector<1x128xf32>, vector<1x128xf32> -> vector<4x128xf32>
    %1648 = vector.shape_cast %1632 : vector<4x128xf32> to vector<1x4x128xf32>
    %1649 = vector.shape_cast %1637 : vector<4x128xf32> to vector<1x4x128xf32>
    %1650 = vector.shape_cast %1642 : vector<4x128xf32> to vector<1x4x128xf32>
    %1651 = vector.shape_cast %1647 : vector<4x128xf32> to vector<1x4x128xf32>
    %1652 = tpu.concatenate %1648, %1649, %1650, %1651 in 0 : vector<1x4x128xf32>, vector<1x4x128xf32>, vector<1x4x128xf32>, vector<1x4x128xf32> -> vector<4x4x128xf32>
    %1653 = arith.index_cast %c3_i32 : i32 to index
    %c0_267 = arith.constant 0 : index
    %c0_268 = arith.constant 0 : index
    %1654 = vector.load %arg5[%1653, %c0_267, %c0_268] : memref<8x4x128xf32, #tpu.memory_space<vmem>>, vector<1x4x128xf32>
    %1655 = vector.shape_cast %1654 : vector<1x4x128xf32> to vector<4x128xf32>
    %1656 = vector.shape_cast %1627 : vector<4x128xf32> to vector<1x4x128xf32>
    tpu.vector_store %arg5[%1653, %c0_267, %c0_268], %1656 {strides = array<i32>} : memref<8x4x128xf32, #tpu.memory_space<vmem>>, vector<1x4x128xf32>,
    %c4_i32 = arith.constant 4 : i32
    %1657 = arith.index_cast %c4_i32 : i32 to index
    %c0_269 = arith.constant 0 : index
    %c0_270 = arith.constant 0 : index
    %1658 = vector.load %arg2[%1657, %c0_269, %c0_270] : memref<8x2x128xf32, #tpu.memory_space<vmem>>, vector<1x2x128xf32>
    %1659 = vector.shape_cast %1658 : vector<1x2x128xf32> to vector<2x128xf32>
    %1660 = vector.extract_strided_slice %1627 {offsets = [0, 0], sizes = [1, 128], strides = [1, 1]} : vector<4x128xf32> to vector<1x128xf32>
    %1661 = vector.shape_cast %1660 : vector<1x128xf32> to vector<128xf32>
    %1662 = vector.extract_strided_slice %1627 {offsets = [1, 0], sizes = [1, 128], strides = [1, 1]} : vector<4x128xf32> to vector<1x128xf32>
    %1663 = vector.shape_cast %1662 : vector<1x128xf32> to vector<128xf32>
    %1664 = vector.extract_strided_slice %1627 {offsets = [2, 0], sizes = [1, 128], strides = [1, 1]} : vector<4x128xf32> to vector<1x128xf32>
    %1665 = vector.shape_cast %1664 : vector<1x128xf32> to vector<128xf32>
    %1666 = vector.extract_strided_slice %1627 {offsets = [3, 0], sizes = [1, 128], strides = [1, 1]} : vector<4x128xf32> to vector<1x128xf32>
    %1667 = vector.shape_cast %1666 : vector<1x128xf32> to vector<128xf32>
    %1668 = vector.extract_strided_slice %1652 {offsets = [0, 0, 0], sizes = [1, 1, 128], strides = [1, 1, 1]} : vector<4x4x128xf32> to vector<1x1x128xf32>
    %1669 = vector.shape_cast %1668 : vector<1x1x128xf32> to vector<128xf32>
    %1670 = vector.extract_strided_slice %1652 {offsets = [0, 1, 0], sizes = [1, 1, 128], strides = [1, 1, 1]} : vector<4x4x128xf32> to vector<1x1x128xf32>
    %1671 = vector.shape_cast %1670 : vector<1x1x128xf32> to vector<128xf32>
    %1672 = vector.extract_strided_slice %1652 {offsets = [0, 2, 0], sizes = [1, 1, 128], strides = [1, 1, 1]} : vector<4x4x128xf32> to vector<1x1x128xf32>
    %1673 = vector.shape_cast %1672 : vector<1x1x128xf32> to vector<128xf32>
    %1674 = vector.extract_strided_slice %1652 {offsets = [0, 3, 0], sizes = [1, 1, 128], strides = [1, 1, 1]} : vector<4x4x128xf32> to vector<1x1x128xf32>
    %1675 = vector.shape_cast %1674 : vector<1x1x128xf32> to vector<128xf32>
    %1676 = vector.extract_strided_slice %1652 {offsets = [1, 0, 0], sizes = [1, 1, 128], strides = [1, 1, 1]} : vector<4x4x128xf32> to vector<1x1x128xf32>
    %1677 = vector.shape_cast %1676 : vector<1x1x128xf32> to vector<128xf32>
    %1678 = vector.extract_strided_slice %1652 {offsets = [1, 1, 0], sizes = [1, 1, 128], strides = [1, 1, 1]} : vector<4x4x128xf32> to vector<1x1x128xf32>
    %1679 = vector.shape_cast %1678 : vector<1x1x128xf32> to vector<128xf32>
    %1680 = vector.extract_strided_slice %1652 {offsets = [1, 2, 0], sizes = [1, 1, 128], strides = [1, 1, 1]} : vector<4x4x128xf32> to vector<1x1x128xf32>
    %1681 = vector.shape_cast %1680 : vector<1x1x128xf32> to vector<128xf32>
    %1682 = vector.extract_strided_slice %1652 {offsets = [1, 3, 0], sizes = [1, 1, 128], strides = [1, 1, 1]} : vector<4x4x128xf32> to vector<1x1x128xf32>
    %1683 = vector.shape_cast %1682 : vector<1x1x128xf32> to vector<128xf32>
    %1684 = vector.extract_strided_slice %1652 {offsets = [2, 0, 0], sizes = [1, 1, 128], strides = [1, 1, 1]} : vector<4x4x128xf32> to vector<1x1x128xf32>
    %1685 = vector.shape_cast %1684 : vector<1x1x128xf32> to vector<128xf32>
    %1686 = vector.extract_strided_slice %1652 {offsets = [2, 1, 0], sizes = [1, 1, 128], strides = [1, 1, 1]} : vector<4x4x128xf32> to vector<1x1x128xf32>
    %1687 = vector.shape_cast %1686 : vector<1x1x128xf32> to vector<128xf32>
    %1688 = vector.extract_strided_slice %1652 {offsets = [2, 2, 0], sizes = [1, 1, 128], strides = [1, 1, 1]} : vector<4x4x128xf32> to vector<1x1x128xf32>
    %1689 = vector.shape_cast %1688 : vector<1x1x128xf32> to vector<128xf32>
    %1690 = vector.extract_strided_slice %1652 {offsets = [2, 3, 0], sizes = [1, 1, 128], strides = [1, 1, 1]} : vector<4x4x128xf32> to vector<1x1x128xf32>
    %1691 = vector.shape_cast %1690 : vector<1x1x128xf32> to vector<128xf32>
    %1692 = vector.extract_strided_slice %1652 {offsets = [3, 0, 0], sizes = [1, 1, 128], strides = [1, 1, 1]} : vector<4x4x128xf32> to vector<1x1x128xf32>
    %1693 = vector.shape_cast %1692 : vector<1x1x128xf32> to vector<128xf32>
    %1694 = vector.extract_strided_slice %1652 {offsets = [3, 1, 0], sizes = [1, 1, 128], strides = [1, 1, 1]} : vector<4x4x128xf32> to vector<1x1x128xf32>
    %1695 = vector.shape_cast %1694 : vector<1x1x128xf32> to vector<128xf32>
    %1696 = vector.extract_strided_slice %1652 {offsets = [3, 2, 0], sizes = [1, 1, 128], strides = [1, 1, 1]} : vector<4x4x128xf32> to vector<1x1x128xf32>
    %1697 = vector.shape_cast %1696 : vector<1x1x128xf32> to vector<128xf32>
    %1698 = vector.extract_strided_slice %1652 {offsets = [3, 3, 0], sizes = [1, 1, 128], strides = [1, 1, 1]} : vector<4x4x128xf32> to vector<1x1x128xf32>
    %1699 = vector.shape_cast %1698 : vector<1x1x128xf32> to vector<128xf32>
    %1700 = vector.extract_strided_slice %1659 {offsets = [0, 0], sizes = [1, 128], strides = [1, 1]} : vector<2x128xf32> to vector<1x128xf32>
    %1701 = vector.shape_cast %1700 : vector<1x128xf32> to vector<128xf32>
    %1702 = vector.extract_strided_slice %1659 {offsets = [1, 0], sizes = [1, 128], strides = [1, 1]} : vector<2x128xf32> to vector<1x128xf32>
    %1703 = vector.shape_cast %1702 : vector<1x128xf32> to vector<128xf32>
    %1704 = math.cos %1661 : vector<128xf32>
    %cst_271 = arith.constant 1.000000e-01 : f32
    %1705 = vector.broadcast %cst_271 : f32 to vector<128xf32>
    %1706 = arith.mulf %1705, %1704 : vector<128xf32>
    %1707 = math.cos %1663 : vector<128xf32>
    %cst_272 = arith.constant 1.000000e-01 : f32
    %1708 = vector.broadcast %cst_272 : f32 to vector<128xf32>
    %1709 = arith.mulf %1708, %1707 : vector<128xf32>
    %1710 = math.cos %1665 : vector<128xf32>
    %cst_273 = arith.constant 1.000000e-01 : f32
    %1711 = vector.broadcast %cst_273 : f32 to vector<128xf32>
    %1712 = arith.mulf %1711, %1710 : vector<128xf32>
    %1713 = math.cos %1667 : vector<128xf32>
    %cst_274 = arith.constant 1.000000e-01 : f32
    %1714 = vector.broadcast %cst_274 : f32 to vector<128xf32>
    %1715 = arith.mulf %1714, %1713 : vector<128xf32>
    %1716 = math.sin %1661 : vector<128xf32>
    %cst_275 = arith.constant 1.000000e-01 : f32
    %1717 = vector.broadcast %cst_275 : f32 to vector<128xf32>
    %1718 = arith.mulf %1717, %1716 : vector<128xf32>
    %1719 = arith.addf %1718, %1661 : vector<128xf32>
    %cst_276 = arith.constant 1.000000e-01 : f32
    %1720 = vector.broadcast %cst_276 : f32 to vector<128xf32>
    %1721 = arith.mulf %1720, %1665 : vector<128xf32>
    %1722 = arith.addf %1719, %1721 : vector<128xf32>
    %1723 = math.sin %1663 : vector<128xf32>
    %cst_277 = arith.constant 1.000000e-01 : f32
    %1724 = vector.broadcast %cst_277 : f32 to vector<128xf32>
    %1725 = arith.mulf %1724, %1723 : vector<128xf32>
    %1726 = arith.addf %1725, %1663 : vector<128xf32>
    %cst_278 = arith.constant 1.000000e-01 : f32
    %1727 = vector.broadcast %cst_278 : f32 to vector<128xf32>
    %1728 = arith.mulf %1727, %1667 : vector<128xf32>
    %1729 = arith.addf %1726, %1728 : vector<128xf32>
    %1730 = math.sin %1665 : vector<128xf32>
    %cst_279 = arith.constant 1.000000e-01 : f32
    %1731 = vector.broadcast %cst_279 : f32 to vector<128xf32>
    %1732 = arith.mulf %1731, %1730 : vector<128xf32>
    %1733 = arith.addf %1732, %1665 : vector<128xf32>
    %1734 = math.sin %1667 : vector<128xf32>
    %cst_280 = arith.constant 1.000000e-01 : f32
    %1735 = vector.broadcast %cst_280 : f32 to vector<128xf32>
    %1736 = arith.mulf %1735, %1734 : vector<128xf32>
    %1737 = arith.addf %1736, %1667 : vector<128xf32>
    %1738 = arith.mulf %1706, %1669 : vector<128xf32>
    %1739 = arith.addf %1738, %1669 : vector<128xf32>
    %cst_281 = arith.constant 1.000000e-01 : f32
    %1740 = vector.broadcast %cst_281 : f32 to vector<128xf32>
    %1741 = arith.mulf %1740, %1685 : vector<128xf32>
    %1742 = arith.addf %1739, %1741 : vector<128xf32>
    %1743 = arith.mulf %1706, %1671 : vector<128xf32>
    %1744 = arith.addf %1743, %1671 : vector<128xf32>
    %cst_282 = arith.constant 1.000000e-01 : f32
    %1745 = vector.broadcast %cst_282 : f32 to vector<128xf32>
    %1746 = arith.mulf %1745, %1687 : vector<128xf32>
    %1747 = arith.addf %1744, %1746 : vector<128xf32>
    %1748 = arith.mulf %1706, %1673 : vector<128xf32>
    %1749 = arith.addf %1748, %1673 : vector<128xf32>
    %cst_283 = arith.constant 1.000000e-01 : f32
    %1750 = vector.broadcast %cst_283 : f32 to vector<128xf32>
    %1751 = arith.mulf %1750, %1689 : vector<128xf32>
    %1752 = arith.addf %1749, %1751 : vector<128xf32>
    %1753 = arith.mulf %1706, %1675 : vector<128xf32>
    %1754 = arith.addf %1753, %1675 : vector<128xf32>
    %cst_284 = arith.constant 1.000000e-01 : f32
    %1755 = vector.broadcast %cst_284 : f32 to vector<128xf32>
    %1756 = arith.mulf %1755, %1691 : vector<128xf32>
    %1757 = arith.addf %1754, %1756 : vector<128xf32>
    %1758 = arith.mulf %1709, %1677 : vector<128xf32>
    %1759 = arith.addf %1758, %1677 : vector<128xf32>
    %cst_285 = arith.constant 1.000000e-01 : f32
    %1760 = vector.broadcast %cst_285 : f32 to vector<128xf32>
    %1761 = arith.mulf %1760, %1693 : vector<128xf32>
    %1762 = arith.addf %1759, %1761 : vector<128xf32>
    %1763 = arith.mulf %1709, %1679 : vector<128xf32>
    %1764 = arith.addf %1763, %1679 : vector<128xf32>
    %cst_286 = arith.constant 1.000000e-01 : f32
    %1765 = vector.broadcast %cst_286 : f32 to vector<128xf32>
    %1766 = arith.mulf %1765, %1695 : vector<128xf32>
    %1767 = arith.addf %1764, %1766 : vector<128xf32>
    %1768 = arith.mulf %1709, %1681 : vector<128xf32>
    %1769 = arith.addf %1768, %1681 : vector<128xf32>
    %cst_287 = arith.constant 1.000000e-01 : f32
    %1770 = vector.broadcast %cst_287 : f32 to vector<128xf32>
    %1771 = arith.mulf %1770, %1697 : vector<128xf32>
    %1772 = arith.addf %1769, %1771 : vector<128xf32>
    %1773 = arith.mulf %1709, %1683 : vector<128xf32>
    %1774 = arith.addf %1773, %1683 : vector<128xf32>
    %cst_288 = arith.constant 1.000000e-01 : f32
    %1775 = vector.broadcast %cst_288 : f32 to vector<128xf32>
    %1776 = arith.mulf %1775, %1699 : vector<128xf32>
    %1777 = arith.addf %1774, %1776 : vector<128xf32>
    %1778 = arith.mulf %1712, %1685 : vector<128xf32>
    %1779 = arith.addf %1778, %1685 : vector<128xf32>
    %1780 = arith.mulf %1712, %1687 : vector<128xf32>
    %1781 = arith.addf %1780, %1687 : vector<128xf32>
    %1782 = arith.mulf %1712, %1689 : vector<128xf32>
    %1783 = arith.addf %1782, %1689 : vector<128xf32>
    %1784 = arith.mulf %1712, %1691 : vector<128xf32>
    %1785 = arith.addf %1784, %1691 : vector<128xf32>
    %1786 = arith.mulf %1715, %1693 : vector<128xf32>
    %1787 = arith.addf %1786, %1693 : vector<128xf32>
    %1788 = arith.mulf %1715, %1695 : vector<128xf32>
    %1789 = arith.addf %1788, %1695 : vector<128xf32>
    %1790 = arith.mulf %1715, %1697 : vector<128xf32>
    %1791 = arith.addf %1790, %1697 : vector<128xf32>
    %1792 = arith.mulf %1715, %1699 : vector<128xf32>
    %1793 = arith.addf %1792, %1699 : vector<128xf32>
    %1794 = arith.mulf %1742, %1706 : vector<128xf32>
    %1795 = arith.addf %1794, %1742 : vector<128xf32>
    %cst_289 = arith.constant 1.000000e-01 : f32
    %1796 = vector.broadcast %cst_289 : f32 to vector<128xf32>
    %1797 = arith.mulf %1796, %1752 : vector<128xf32>
    %1798 = arith.addf %1795, %1797 : vector<128xf32>
    %cst_290 = arith.constant 0.00999999977 : f32
    %1799 = vector.broadcast %cst_290 : f32 to vector<128xf32>
    %1800 = arith.addf %1798, %1799 : vector<128xf32>
    %1801 = arith.mulf %1747, %1709 : vector<128xf32>
    %1802 = arith.addf %1801, %1747 : vector<128xf32>
    %cst_291 = arith.constant 1.000000e-01 : f32
    %1803 = vector.broadcast %cst_291 : f32 to vector<128xf32>
    %1804 = arith.mulf %1803, %1757 : vector<128xf32>
    %1805 = arith.addf %1802, %1804 : vector<128xf32>
    %1806 = arith.mulf %1752, %1712 : vector<128xf32>
    %1807 = arith.addf %1806, %1752 : vector<128xf32>
    %1808 = arith.mulf %1757, %1715 : vector<128xf32>
    %1809 = arith.addf %1808, %1757 : vector<128xf32>
    %1810 = arith.mulf %1762, %1706 : vector<128xf32>
    %1811 = arith.addf %1810, %1762 : vector<128xf32>
    %cst_292 = arith.constant 1.000000e-01 : f32
    %1812 = vector.broadcast %cst_292 : f32 to vector<128xf32>
    %1813 = arith.mulf %1812, %1772 : vector<128xf32>
    %1814 = arith.addf %1811, %1813 : vector<128xf32>
    %1815 = arith.mulf %1767, %1709 : vector<128xf32>
    %1816 = arith.addf %1815, %1767 : vector<128xf32>
    %cst_293 = arith.constant 1.000000e-01 : f32
    %1817 = vector.broadcast %cst_293 : f32 to vector<128xf32>
    %1818 = arith.mulf %1817, %1777 : vector<128xf32>
    %1819 = arith.addf %1816, %1818 : vector<128xf32>
    %cst_294 = arith.constant 0.00999999977 : f32
    %1820 = vector.broadcast %cst_294 : f32 to vector<128xf32>
    %1821 = arith.addf %1819, %1820 : vector<128xf32>
    %1822 = arith.mulf %1772, %1712 : vector<128xf32>
    %1823 = arith.addf %1822, %1772 : vector<128xf32>
    %1824 = arith.mulf %1777, %1715 : vector<128xf32>
    %1825 = arith.addf %1824, %1777 : vector<128xf32>
    %1826 = arith.mulf %1779, %1706 : vector<128xf32>
    %1827 = arith.addf %1826, %1779 : vector<128xf32>
    %cst_295 = arith.constant 1.000000e-01 : f32
    %1828 = vector.broadcast %cst_295 : f32 to vector<128xf32>
    %1829 = arith.mulf %1828, %1783 : vector<128xf32>
    %1830 = arith.addf %1827, %1829 : vector<128xf32>
    %1831 = arith.mulf %1781, %1709 : vector<128xf32>
    %1832 = arith.addf %1831, %1781 : vector<128xf32>
    %cst_296 = arith.constant 1.000000e-01 : f32
    %1833 = vector.broadcast %cst_296 : f32 to vector<128xf32>
    %1834 = arith.mulf %1833, %1785 : vector<128xf32>
    %1835 = arith.addf %1832, %1834 : vector<128xf32>
    %1836 = arith.mulf %1783, %1712 : vector<128xf32>
    %1837 = arith.addf %1836, %1783 : vector<128xf32>
    %cst_297 = arith.constant 0.00999999977 : f32
    %1838 = vector.broadcast %cst_297 : f32 to vector<128xf32>
    %1839 = arith.addf %1837, %1838 : vector<128xf32>
    %1840 = arith.mulf %1785, %1715 : vector<128xf32>
    %1841 = arith.addf %1840, %1785 : vector<128xf32>
    %1842 = arith.mulf %1787, %1706 : vector<128xf32>
    %1843 = arith.addf %1842, %1787 : vector<128xf32>
    %cst_298 = arith.constant 1.000000e-01 : f32
    %1844 = vector.broadcast %cst_298 : f32 to vector<128xf32>
    %1845 = arith.mulf %1844, %1791 : vector<128xf32>
    %1846 = arith.addf %1843, %1845 : vector<128xf32>
    %1847 = arith.mulf %1789, %1709 : vector<128xf32>
    %1848 = arith.addf %1847, %1789 : vector<128xf32>
    %cst_299 = arith.constant 1.000000e-01 : f32
    %1849 = vector.broadcast %cst_299 : f32 to vector<128xf32>
    %1850 = arith.mulf %1849, %1793 : vector<128xf32>
    %1851 = arith.addf %1848, %1850 : vector<128xf32>
    %1852 = arith.mulf %1791, %1712 : vector<128xf32>
    %1853 = arith.addf %1852, %1791 : vector<128xf32>
    %1854 = arith.mulf %1793, %1715 : vector<128xf32>
    %1855 = arith.addf %1854, %1793 : vector<128xf32>
    %cst_300 = arith.constant 0.00999999977 : f32
    %1856 = vector.broadcast %cst_300 : f32 to vector<128xf32>
    %1857 = arith.addf %1855, %1856 : vector<128xf32>
    %cst_301 = arith.constant 1.000000e-01 : f32
    %1858 = vector.broadcast %cst_301 : f32 to vector<128xf32>
    %1859 = arith.addf %1800, %1858 : vector<128xf32>
    %cst_302 = arith.constant 1.000000e-01 : f32
    %1860 = vector.broadcast %cst_302 : f32 to vector<128xf32>
    %1861 = arith.addf %1821, %1860 : vector<128xf32>
    %1862 = arith.mulf %1859, %1861 : vector<128xf32>
    %1863 = arith.mulf %1805, %1814 : vector<128xf32>
    %1864 = arith.subf %1862, %1863 : vector<128xf32>
    %1865 = tpu.reciprocal %1864 : vector<128xf32> -> vector<128xf32>
    %1866 = arith.mulf %1861, %1865 : vector<128xf32>
    %cst_303 = arith.constant 0.000000e+00 : f32
    %1867 = vector.broadcast %cst_303 : f32 to vector<128xf32>
    %1868 = arith.subf %1867, %1805 : vector<128xf32>
    %1869 = arith.mulf %1868, %1865 : vector<128xf32>
    %cst_304 = arith.constant 0.000000e+00 : f32
    %1870 = vector.broadcast %cst_304 : f32 to vector<128xf32>
    %1871 = arith.subf %1870, %1814 : vector<128xf32>
    %1872 = arith.mulf %1871, %1865 : vector<128xf32>
    %1873 = arith.mulf %1859, %1865 : vector<128xf32>
    %1874 = arith.mulf %1800, %1866 : vector<128xf32>
    %cst_305 = arith.constant 0.000000e+00 : f32
    %1875 = vector.broadcast %cst_305 : f32 to vector<128xf32>
    %1876 = arith.addf %1875, %1874 : vector<128xf32>
    %1877 = arith.mulf %1805, %1872 : vector<128xf32>
    %1878 = arith.addf %1876, %1877 : vector<128xf32>
    %1879 = arith.mulf %1800, %1869 : vector<128xf32>
    %cst_306 = arith.constant 0.000000e+00 : f32
    %1880 = vector.broadcast %cst_306 : f32 to vector<128xf32>
    %1881 = arith.addf %1880, %1879 : vector<128xf32>
    %1882 = arith.mulf %1805, %1873 : vector<128xf32>
    %1883 = arith.addf %1881, %1882 : vector<128xf32>
    %1884 = arith.mulf %1814, %1866 : vector<128xf32>
    %cst_307 = arith.constant 0.000000e+00 : f32
    %1885 = vector.broadcast %cst_307 : f32 to vector<128xf32>
    %1886 = arith.addf %1885, %1884 : vector<128xf32>
    %1887 = arith.mulf %1821, %1872 : vector<128xf32>
    %1888 = arith.addf %1886, %1887 : vector<128xf32>
    %1889 = arith.mulf %1814, %1869 : vector<128xf32>
    %cst_308 = arith.constant 0.000000e+00 : f32
    %1890 = vector.broadcast %cst_308 : f32 to vector<128xf32>
    %1891 = arith.addf %1890, %1889 : vector<128xf32>
    %1892 = arith.mulf %1821, %1873 : vector<128xf32>
    %1893 = arith.addf %1891, %1892 : vector<128xf32>
    %1894 = arith.mulf %1830, %1866 : vector<128xf32>
    %cst_309 = arith.constant 0.000000e+00 : f32
    %1895 = vector.broadcast %cst_309 : f32 to vector<128xf32>
    %1896 = arith.addf %1895, %1894 : vector<128xf32>
    %1897 = arith.mulf %1835, %1872 : vector<128xf32>
    %1898 = arith.addf %1896, %1897 : vector<128xf32>
    %1899 = arith.mulf %1830, %1869 : vector<128xf32>
    %cst_310 = arith.constant 0.000000e+00 : f32
    %1900 = vector.broadcast %cst_310 : f32 to vector<128xf32>
    %1901 = arith.addf %1900, %1899 : vector<128xf32>
    %1902 = arith.mulf %1835, %1873 : vector<128xf32>
    %1903 = arith.addf %1901, %1902 : vector<128xf32>
    %1904 = arith.mulf %1846, %1866 : vector<128xf32>
    %cst_311 = arith.constant 0.000000e+00 : f32
    %1905 = vector.broadcast %cst_311 : f32 to vector<128xf32>
    %1906 = arith.addf %1905, %1904 : vector<128xf32>
    %1907 = arith.mulf %1851, %1872 : vector<128xf32>
    %1908 = arith.addf %1906, %1907 : vector<128xf32>
    %1909 = arith.mulf %1846, %1869 : vector<128xf32>
    %cst_312 = arith.constant 0.000000e+00 : f32
    %1910 = vector.broadcast %cst_312 : f32 to vector<128xf32>
    %1911 = arith.addf %1910, %1909 : vector<128xf32>
    %1912 = arith.mulf %1851, %1873 : vector<128xf32>
    %1913 = arith.addf %1911, %1912 : vector<128xf32>
    %1914 = arith.subf %1701, %1722 : vector<128xf32>
    %1915 = arith.subf %1703, %1729 : vector<128xf32>
    %1916 = arith.mulf %1878, %1914 : vector<128xf32>
    %cst_313 = arith.constant 0.000000e+00 : f32
    %1917 = vector.broadcast %cst_313 : f32 to vector<128xf32>
    %1918 = arith.addf %1917, %1916 : vector<128xf32>
    %1919 = arith.mulf %1883, %1915 : vector<128xf32>
    %1920 = arith.addf %1918, %1919 : vector<128xf32>
    %1921 = arith.addf %1722, %1920 : vector<128xf32>
    %1922 = arith.mulf %1888, %1914 : vector<128xf32>
    %cst_314 = arith.constant 0.000000e+00 : f32
    %1923 = vector.broadcast %cst_314 : f32 to vector<128xf32>
    %1924 = arith.addf %1923, %1922 : vector<128xf32>
    %1925 = arith.mulf %1893, %1915 : vector<128xf32>
    %1926 = arith.addf %1924, %1925 : vector<128xf32>
    %1927 = arith.addf %1729, %1926 : vector<128xf32>
    %1928 = arith.mulf %1898, %1914 : vector<128xf32>
    %cst_315 = arith.constant 0.000000e+00 : f32
    %1929 = vector.broadcast %cst_315 : f32 to vector<128xf32>
    %1930 = arith.addf %1929, %1928 : vector<128xf32>
    %1931 = arith.mulf %1903, %1915 : vector<128xf32>
    %1932 = arith.addf %1930, %1931 : vector<128xf32>
    %1933 = arith.addf %1733, %1932 : vector<128xf32>
    %1934 = arith.mulf %1908, %1914 : vector<128xf32>
    %cst_316 = arith.constant 0.000000e+00 : f32
    %1935 = vector.broadcast %cst_316 : f32 to vector<128xf32>
    %1936 = arith.addf %1935, %1934 : vector<128xf32>
    %1937 = arith.mulf %1913, %1915 : vector<128xf32>
    %1938 = arith.addf %1936, %1937 : vector<128xf32>
    %1939 = arith.addf %1737, %1938 : vector<128xf32>
    %1940 = arith.mulf %1878, %1800 : vector<128xf32>
    %cst_317 = arith.constant 0.000000e+00 : f32
    %1941 = vector.broadcast %cst_317 : f32 to vector<128xf32>
    %1942 = arith.addf %1941, %1940 : vector<128xf32>
    %1943 = arith.mulf %1883, %1814 : vector<128xf32>
    %1944 = arith.addf %1942, %1943 : vector<128xf32>
    %1945 = arith.subf %1800, %1944 : vector<128xf32>
    %1946 = arith.mulf %1878, %1805 : vector<128xf32>
    %cst_318 = arith.constant 0.000000e+00 : f32
    %1947 = vector.broadcast %cst_318 : f32 to vector<128xf32>
    %1948 = arith.addf %1947, %1946 : vector<128xf32>
    %1949 = arith.mulf %1883, %1821 : vector<128xf32>
    %1950 = arith.addf %1948, %1949 : vector<128xf32>
    %1951 = arith.subf %1805, %1950 : vector<128xf32>
    %1952 = arith.mulf %1878, %1807 : vector<128xf32>
    %cst_319 = arith.constant 0.000000e+00 : f32
    %1953 = vector.broadcast %cst_319 : f32 to vector<128xf32>
    %1954 = arith.addf %1953, %1952 : vector<128xf32>
    %1955 = arith.mulf %1883, %1823 : vector<128xf32>
    %1956 = arith.addf %1954, %1955 : vector<128xf32>
    %1957 = arith.subf %1807, %1956 : vector<128xf32>
    %1958 = arith.mulf %1878, %1809 : vector<128xf32>
    %cst_320 = arith.constant 0.000000e+00 : f32
    %1959 = vector.broadcast %cst_320 : f32 to vector<128xf32>
    %1960 = arith.addf %1959, %1958 : vector<128xf32>
    %1961 = arith.mulf %1883, %1825 : vector<128xf32>
    %1962 = arith.addf %1960, %1961 : vector<128xf32>
    %1963 = arith.subf %1809, %1962 : vector<128xf32>
    %1964 = arith.mulf %1888, %1800 : vector<128xf32>
    %cst_321 = arith.constant 0.000000e+00 : f32
    %1965 = vector.broadcast %cst_321 : f32 to vector<128xf32>
    %1966 = arith.addf %1965, %1964 : vector<128xf32>
    %1967 = arith.mulf %1893, %1814 : vector<128xf32>
    %1968 = arith.addf %1966, %1967 : vector<128xf32>
    %1969 = arith.subf %1814, %1968 : vector<128xf32>
    %1970 = arith.mulf %1888, %1805 : vector<128xf32>
    %cst_322 = arith.constant 0.000000e+00 : f32
    %1971 = vector.broadcast %cst_322 : f32 to vector<128xf32>
    %1972 = arith.addf %1971, %1970 : vector<128xf32>
    %1973 = arith.mulf %1893, %1821 : vector<128xf32>
    %1974 = arith.addf %1972, %1973 : vector<128xf32>
    %1975 = arith.subf %1821, %1974 : vector<128xf32>
    %1976 = arith.mulf %1888, %1807 : vector<128xf32>
    %cst_323 = arith.constant 0.000000e+00 : f32
    %1977 = vector.broadcast %cst_323 : f32 to vector<128xf32>
    %1978 = arith.addf %1977, %1976 : vector<128xf32>
    %1979 = arith.mulf %1893, %1823 : vector<128xf32>
    %1980 = arith.addf %1978, %1979 : vector<128xf32>
    %1981 = arith.subf %1823, %1980 : vector<128xf32>
    %1982 = arith.mulf %1888, %1809 : vector<128xf32>
    %cst_324 = arith.constant 0.000000e+00 : f32
    %1983 = vector.broadcast %cst_324 : f32 to vector<128xf32>
    %1984 = arith.addf %1983, %1982 : vector<128xf32>
    %1985 = arith.mulf %1893, %1825 : vector<128xf32>
    %1986 = arith.addf %1984, %1985 : vector<128xf32>
    %1987 = arith.subf %1825, %1986 : vector<128xf32>
    %1988 = arith.mulf %1898, %1800 : vector<128xf32>
    %cst_325 = arith.constant 0.000000e+00 : f32
    %1989 = vector.broadcast %cst_325 : f32 to vector<128xf32>
    %1990 = arith.addf %1989, %1988 : vector<128xf32>
    %1991 = arith.mulf %1903, %1814 : vector<128xf32>
    %1992 = arith.addf %1990, %1991 : vector<128xf32>
    %1993 = arith.subf %1830, %1992 : vector<128xf32>
    %1994 = arith.mulf %1898, %1805 : vector<128xf32>
    %cst_326 = arith.constant 0.000000e+00 : f32
    %1995 = vector.broadcast %cst_326 : f32 to vector<128xf32>
    %1996 = arith.addf %1995, %1994 : vector<128xf32>
    %1997 = arith.mulf %1903, %1821 : vector<128xf32>
    %1998 = arith.addf %1996, %1997 : vector<128xf32>
    %1999 = arith.subf %1835, %1998 : vector<128xf32>
    %2000 = arith.mulf %1898, %1807 : vector<128xf32>
    %cst_327 = arith.constant 0.000000e+00 : f32
    %2001 = vector.broadcast %cst_327 : f32 to vector<128xf32>
    %2002 = arith.addf %2001, %2000 : vector<128xf32>
    %2003 = arith.mulf %1903, %1823 : vector<128xf32>
    %2004 = arith.addf %2002, %2003 : vector<128xf32>
    %2005 = arith.subf %1839, %2004 : vector<128xf32>
    %2006 = arith.mulf %1898, %1809 : vector<128xf32>
    %cst_328 = arith.constant 0.000000e+00 : f32
    %2007 = vector.broadcast %cst_328 : f32 to vector<128xf32>
    %2008 = arith.addf %2007, %2006 : vector<128xf32>
    %2009 = arith.mulf %1903, %1825 : vector<128xf32>
    %2010 = arith.addf %2008, %2009 : vector<128xf32>
    %2011 = arith.subf %1841, %2010 : vector<128xf32>
    %2012 = arith.mulf %1908, %1800 : vector<128xf32>
    %cst_329 = arith.constant 0.000000e+00 : f32
    %2013 = vector.broadcast %cst_329 : f32 to vector<128xf32>
    %2014 = arith.addf %2013, %2012 : vector<128xf32>
    %2015 = arith.mulf %1913, %1814 : vector<128xf32>
    %2016 = arith.addf %2014, %2015 : vector<128xf32>
    %2017 = arith.subf %1846, %2016 : vector<128xf32>
    %2018 = arith.mulf %1908, %1805 : vector<128xf32>
    %cst_330 = arith.constant 0.000000e+00 : f32
    %2019 = vector.broadcast %cst_330 : f32 to vector<128xf32>
    %2020 = arith.addf %2019, %2018 : vector<128xf32>
    %2021 = arith.mulf %1913, %1821 : vector<128xf32>
    %2022 = arith.addf %2020, %2021 : vector<128xf32>
    %2023 = arith.subf %1851, %2022 : vector<128xf32>
    %2024 = arith.mulf %1908, %1807 : vector<128xf32>
    %cst_331 = arith.constant 0.000000e+00 : f32
    %2025 = vector.broadcast %cst_331 : f32 to vector<128xf32>
    %2026 = arith.addf %2025, %2024 : vector<128xf32>
    %2027 = arith.mulf %1913, %1823 : vector<128xf32>
    %2028 = arith.addf %2026, %2027 : vector<128xf32>
    %2029 = arith.subf %1853, %2028 : vector<128xf32>
    %2030 = arith.mulf %1908, %1809 : vector<128xf32>
    %cst_332 = arith.constant 0.000000e+00 : f32
    %2031 = vector.broadcast %cst_332 : f32 to vector<128xf32>
    %2032 = arith.addf %2031, %2030 : vector<128xf32>
    %2033 = arith.mulf %1913, %1825 : vector<128xf32>
    %2034 = arith.addf %2032, %2033 : vector<128xf32>
    %2035 = arith.subf %1857, %2034 : vector<128xf32>
    %2036 = vector.shape_cast %1921 : vector<128xf32> to vector<1x128xf32>
    %2037 = vector.shape_cast %1927 : vector<128xf32> to vector<1x128xf32>
    %2038 = vector.shape_cast %1933 : vector<128xf32> to vector<1x128xf32>
    %2039 = vector.shape_cast %1939 : vector<128xf32> to vector<1x128xf32>
    %2040 = tpu.concatenate %2036, %2037, %2038, %2039 in 0 : vector<1x128xf32>, vector<1x128xf32>, vector<1x128xf32>, vector<1x128xf32> -> vector<4x128xf32>
    %2041 = vector.shape_cast %1945 : vector<128xf32> to vector<1x128xf32>
    %2042 = vector.shape_cast %1951 : vector<128xf32> to vector<1x128xf32>
    %2043 = vector.shape_cast %1957 : vector<128xf32> to vector<1x128xf32>
    %2044 = vector.shape_cast %1963 : vector<128xf32> to vector<1x128xf32>
    %2045 = tpu.concatenate %2041, %2042, %2043, %2044 in 0 : vector<1x128xf32>, vector<1x128xf32>, vector<1x128xf32>, vector<1x128xf32> -> vector<4x128xf32>
    %2046 = vector.shape_cast %1969 : vector<128xf32> to vector<1x128xf32>
    %2047 = vector.shape_cast %1975 : vector<128xf32> to vector<1x128xf32>
    %2048 = vector.shape_cast %1981 : vector<128xf32> to vector<1x128xf32>
    %2049 = vector.shape_cast %1987 : vector<128xf32> to vector<1x128xf32>
    %2050 = tpu.concatenate %2046, %2047, %2048, %2049 in 0 : vector<1x128xf32>, vector<1x128xf32>, vector<1x128xf32>, vector<1x128xf32> -> vector<4x128xf32>
    %2051 = vector.shape_cast %1993 : vector<128xf32> to vector<1x128xf32>
    %2052 = vector.shape_cast %1999 : vector<128xf32> to vector<1x128xf32>
    %2053 = vector.shape_cast %2005 : vector<128xf32> to vector<1x128xf32>
    %2054 = vector.shape_cast %2011 : vector<128xf32> to vector<1x128xf32>
    %2055 = tpu.concatenate %2051, %2052, %2053, %2054 in 0 : vector<1x128xf32>, vector<1x128xf32>, vector<1x128xf32>, vector<1x128xf32> -> vector<4x128xf32>
    %2056 = vector.shape_cast %2017 : vector<128xf32> to vector<1x128xf32>
    %2057 = vector.shape_cast %2023 : vector<128xf32> to vector<1x128xf32>
    %2058 = vector.shape_cast %2029 : vector<128xf32> to vector<1x128xf32>
    %2059 = vector.shape_cast %2035 : vector<128xf32> to vector<1x128xf32>
    %2060 = tpu.concatenate %2056, %2057, %2058, %2059 in 0 : vector<1x128xf32>, vector<1x128xf32>, vector<1x128xf32>, vector<1x128xf32> -> vector<4x128xf32>
    %2061 = vector.shape_cast %2045 : vector<4x128xf32> to vector<1x4x128xf32>
    %2062 = vector.shape_cast %2050 : vector<4x128xf32> to vector<1x4x128xf32>
    %2063 = vector.shape_cast %2055 : vector<4x128xf32> to vector<1x4x128xf32>
    %2064 = vector.shape_cast %2060 : vector<4x128xf32> to vector<1x4x128xf32>
    %2065 = tpu.concatenate %2061, %2062, %2063, %2064 in 0 : vector<1x4x128xf32>, vector<1x4x128xf32>, vector<1x4x128xf32>, vector<1x4x128xf32> -> vector<4x4x128xf32>
    %2066 = arith.index_cast %c4_i32 : i32 to index
    %c0_333 = arith.constant 0 : index
    %c0_334 = arith.constant 0 : index
    %2067 = vector.load %arg5[%2066, %c0_333, %c0_334] : memref<8x4x128xf32, #tpu.memory_space<vmem>>, vector<1x4x128xf32>
    %2068 = vector.shape_cast %2067 : vector<1x4x128xf32> to vector<4x128xf32>
    %2069 = vector.shape_cast %2040 : vector<4x128xf32> to vector<1x4x128xf32>
    tpu.vector_store %arg5[%2066, %c0_333, %c0_334], %2069 {strides = array<i32>} : memref<8x4x128xf32, #tpu.memory_space<vmem>>, vector<1x4x128xf32>,
    %c5_i32 = arith.constant 5 : i32
    %2070 = arith.index_cast %c5_i32 : i32 to index
    %c0_335 = arith.constant 0 : index
    %c0_336 = arith.constant 0 : index
    %2071 = vector.load %arg2[%2070, %c0_335, %c0_336] : memref<8x2x128xf32, #tpu.memory_space<vmem>>, vector<1x2x128xf32>
    %2072 = vector.shape_cast %2071 : vector<1x2x128xf32> to vector<2x128xf32>
    %2073 = vector.extract_strided_slice %2040 {offsets = [0, 0], sizes = [1, 128], strides = [1, 1]} : vector<4x128xf32> to vector<1x128xf32>
    %2074 = vector.shape_cast %2073 : vector<1x128xf32> to vector<128xf32>
    %2075 = vector.extract_strided_slice %2040 {offsets = [1, 0], sizes = [1, 128], strides = [1, 1]} : vector<4x128xf32> to vector<1x128xf32>
    %2076 = vector.shape_cast %2075 : vector<1x128xf32> to vector<128xf32>
    %2077 = vector.extract_strided_slice %2040 {offsets = [2, 0], sizes = [1, 128], strides = [1, 1]} : vector<4x128xf32> to vector<1x128xf32>
    %2078 = vector.shape_cast %2077 : vector<1x128xf32> to vector<128xf32>
    %2079 = vector.extract_strided_slice %2040 {offsets = [3, 0], sizes = [1, 128], strides = [1, 1]} : vector<4x128xf32> to vector<1x128xf32>
    %2080 = vector.shape_cast %2079 : vector<1x128xf32> to vector<128xf32>
    %2081 = vector.extract_strided_slice %2065 {offsets = [0, 0, 0], sizes = [1, 1, 128], strides = [1, 1, 1]} : vector<4x4x128xf32> to vector<1x1x128xf32>
    %2082 = vector.shape_cast %2081 : vector<1x1x128xf32> to vector<128xf32>
    %2083 = vector.extract_strided_slice %2065 {offsets = [0, 1, 0], sizes = [1, 1, 128], strides = [1, 1, 1]} : vector<4x4x128xf32> to vector<1x1x128xf32>
    %2084 = vector.shape_cast %2083 : vector<1x1x128xf32> to vector<128xf32>
    %2085 = vector.extract_strided_slice %2065 {offsets = [0, 2, 0], sizes = [1, 1, 128], strides = [1, 1, 1]} : vector<4x4x128xf32> to vector<1x1x128xf32>
    %2086 = vector.shape_cast %2085 : vector<1x1x128xf32> to vector<128xf32>
    %2087 = vector.extract_strided_slice %2065 {offsets = [0, 3, 0], sizes = [1, 1, 128], strides = [1, 1, 1]} : vector<4x4x128xf32> to vector<1x1x128xf32>
    %2088 = vector.shape_cast %2087 : vector<1x1x128xf32> to vector<128xf32>
    %2089 = vector.extract_strided_slice %2065 {offsets = [1, 0, 0], sizes = [1, 1, 128], strides = [1, 1, 1]} : vector<4x4x128xf32> to vector<1x1x128xf32>
    %2090 = vector.shape_cast %2089 : vector<1x1x128xf32> to vector<128xf32>
    %2091 = vector.extract_strided_slice %2065 {offsets = [1, 1, 0], sizes = [1, 1, 128], strides = [1, 1, 1]} : vector<4x4x128xf32> to vector<1x1x128xf32>
    %2092 = vector.shape_cast %2091 : vector<1x1x128xf32> to vector<128xf32>
    %2093 = vector.extract_strided_slice %2065 {offsets = [1, 2, 0], sizes = [1, 1, 128], strides = [1, 1, 1]} : vector<4x4x128xf32> to vector<1x1x128xf32>
    %2094 = vector.shape_cast %2093 : vector<1x1x128xf32> to vector<128xf32>
    %2095 = vector.extract_strided_slice %2065 {offsets = [1, 3, 0], sizes = [1, 1, 128], strides = [1, 1, 1]} : vector<4x4x128xf32> to vector<1x1x128xf32>
    %2096 = vector.shape_cast %2095 : vector<1x1x128xf32> to vector<128xf32>
    %2097 = vector.extract_strided_slice %2065 {offsets = [2, 0, 0], sizes = [1, 1, 128], strides = [1, 1, 1]} : vector<4x4x128xf32> to vector<1x1x128xf32>
    %2098 = vector.shape_cast %2097 : vector<1x1x128xf32> to vector<128xf32>
    %2099 = vector.extract_strided_slice %2065 {offsets = [2, 1, 0], sizes = [1, 1, 128], strides = [1, 1, 1]} : vector<4x4x128xf32> to vector<1x1x128xf32>
    %2100 = vector.shape_cast %2099 : vector<1x1x128xf32> to vector<128xf32>
    %2101 = vector.extract_strided_slice %2065 {offsets = [2, 2, 0], sizes = [1, 1, 128], strides = [1, 1, 1]} : vector<4x4x128xf32> to vector<1x1x128xf32>
    %2102 = vector.shape_cast %2101 : vector<1x1x128xf32> to vector<128xf32>
    %2103 = vector.extract_strided_slice %2065 {offsets = [2, 3, 0], sizes = [1, 1, 128], strides = [1, 1, 1]} : vector<4x4x128xf32> to vector<1x1x128xf32>
    %2104 = vector.shape_cast %2103 : vector<1x1x128xf32> to vector<128xf32>
    %2105 = vector.extract_strided_slice %2065 {offsets = [3, 0, 0], sizes = [1, 1, 128], strides = [1, 1, 1]} : vector<4x4x128xf32> to vector<1x1x128xf32>
    %2106 = vector.shape_cast %2105 : vector<1x1x128xf32> to vector<128xf32>
    %2107 = vector.extract_strided_slice %2065 {offsets = [3, 1, 0], sizes = [1, 1, 128], strides = [1, 1, 1]} : vector<4x4x128xf32> to vector<1x1x128xf32>
    %2108 = vector.shape_cast %2107 : vector<1x1x128xf32> to vector<128xf32>
    %2109 = vector.extract_strided_slice %2065 {offsets = [3, 2, 0], sizes = [1, 1, 128], strides = [1, 1, 1]} : vector<4x4x128xf32> to vector<1x1x128xf32>
    %2110 = vector.shape_cast %2109 : vector<1x1x128xf32> to vector<128xf32>
    %2111 = vector.extract_strided_slice %2065 {offsets = [3, 3, 0], sizes = [1, 1, 128], strides = [1, 1, 1]} : vector<4x4x128xf32> to vector<1x1x128xf32>
    %2112 = vector.shape_cast %2111 : vector<1x1x128xf32> to vector<128xf32>
    %2113 = vector.extract_strided_slice %2072 {offsets = [0, 0], sizes = [1, 128], strides = [1, 1]} : vector<2x128xf32> to vector<1x128xf32>
    %2114 = vector.shape_cast %2113 : vector<1x128xf32> to vector<128xf32>
    %2115 = vector.extract_strided_slice %2072 {offsets = [1, 0], sizes = [1, 128], strides = [1, 1]} : vector<2x128xf32> to vector<1x128xf32>
    %2116 = vector.shape_cast %2115 : vector<1x128xf32> to vector<128xf32>
    %2117 = math.cos %2074 : vector<128xf32>
    %cst_337 = arith.constant 1.000000e-01 : f32
    %2118 = vector.broadcast %cst_337 : f32 to vector<128xf32>
    %2119 = arith.mulf %2118, %2117 : vector<128xf32>
    %2120 = math.cos %2076 : vector<128xf32>
    %cst_338 = arith.constant 1.000000e-01 : f32
    %2121 = vector.broadcast %cst_338 : f32 to vector<128xf32>
    %2122 = arith.mulf %2121, %2120 : vector<128xf32>
    %2123 = math.cos %2078 : vector<128xf32>
    %cst_339 = arith.constant 1.000000e-01 : f32
    %2124 = vector.broadcast %cst_339 : f32 to vector<128xf32>
    %2125 = arith.mulf %2124, %2123 : vector<128xf32>
    %2126 = math.cos %2080 : vector<128xf32>
    %cst_340 = arith.constant 1.000000e-01 : f32
    %2127 = vector.broadcast %cst_340 : f32 to vector<128xf32>
    %2128 = arith.mulf %2127, %2126 : vector<128xf32>
    %2129 = math.sin %2074 : vector<128xf32>
    %cst_341 = arith.constant 1.000000e-01 : f32
    %2130 = vector.broadcast %cst_341 : f32 to vector<128xf32>
    %2131 = arith.mulf %2130, %2129 : vector<128xf32>
    %2132 = arith.addf %2131, %2074 : vector<128xf32>
    %cst_342 = arith.constant 1.000000e-01 : f32
    %2133 = vector.broadcast %cst_342 : f32 to vector<128xf32>
    %2134 = arith.mulf %2133, %2078 : vector<128xf32>
    %2135 = arith.addf %2132, %2134 : vector<128xf32>
    %2136 = math.sin %2076 : vector<128xf32>
    %cst_343 = arith.constant 1.000000e-01 : f32
    %2137 = vector.broadcast %cst_343 : f32 to vector<128xf32>
    %2138 = arith.mulf %2137, %2136 : vector<128xf32>
    %2139 = arith.addf %2138, %2076 : vector<128xf32>
    %cst_344 = arith.constant 1.000000e-01 : f32
    %2140 = vector.broadcast %cst_344 : f32 to vector<128xf32>
    %2141 = arith.mulf %2140, %2080 : vector<128xf32>
    %2142 = arith.addf %2139, %2141 : vector<128xf32>
    %2143 = math.sin %2078 : vector<128xf32>
    %cst_345 = arith.constant 1.000000e-01 : f32
    %2144 = vector.broadcast %cst_345 : f32 to vector<128xf32>
    %2145 = arith.mulf %2144, %2143 : vector<128xf32>
    %2146 = arith.addf %2145, %2078 : vector<128xf32>
    %2147 = math.sin %2080 : vector<128xf32>
    %cst_346 = arith.constant 1.000000e-01 : f32
    %2148 = vector.broadcast %cst_346 : f32 to vector<128xf32>
    %2149 = arith.mulf %2148, %2147 : vector<128xf32>
    %2150 = arith.addf %2149, %2080 : vector<128xf32>
    %2151 = arith.mulf %2119, %2082 : vector<128xf32>
    %2152 = arith.addf %2151, %2082 : vector<128xf32>
    %cst_347 = arith.constant 1.000000e-01 : f32
    %2153 = vector.broadcast %cst_347 : f32 to vector<128xf32>
    %2154 = arith.mulf %2153, %2098 : vector<128xf32>
    %2155 = arith.addf %2152, %2154 : vector<128xf32>
    %2156 = arith.mulf %2119, %2084 : vector<128xf32>
    %2157 = arith.addf %2156, %2084 : vector<128xf32>
    %cst_348 = arith.constant 1.000000e-01 : f32
    %2158 = vector.broadcast %cst_348 : f32 to vector<128xf32>
    %2159 = arith.mulf %2158, %2100 : vector<128xf32>
    %2160 = arith.addf %2157, %2159 : vector<128xf32>
    %2161 = arith.mulf %2119, %2086 : vector<128xf32>
    %2162 = arith.addf %2161, %2086 : vector<128xf32>
    %cst_349 = arith.constant 1.000000e-01 : f32
    %2163 = vector.broadcast %cst_349 : f32 to vector<128xf32>
    %2164 = arith.mulf %2163, %2102 : vector<128xf32>
    %2165 = arith.addf %2162, %2164 : vector<128xf32>
    %2166 = arith.mulf %2119, %2088 : vector<128xf32>
    %2167 = arith.addf %2166, %2088 : vector<128xf32>
    %cst_350 = arith.constant 1.000000e-01 : f32
    %2168 = vector.broadcast %cst_350 : f32 to vector<128xf32>
    %2169 = arith.mulf %2168, %2104 : vector<128xf32>
    %2170 = arith.addf %2167, %2169 : vector<128xf32>
    %2171 = arith.mulf %2122, %2090 : vector<128xf32>
    %2172 = arith.addf %2171, %2090 : vector<128xf32>
    %cst_351 = arith.constant 1.000000e-01 : f32
    %2173 = vector.broadcast %cst_351 : f32 to vector<128xf32>
    %2174 = arith.mulf %2173, %2106 : vector<128xf32>
    %2175 = arith.addf %2172, %2174 : vector<128xf32>
    %2176 = arith.mulf %2122, %2092 : vector<128xf32>
    %2177 = arith.addf %2176, %2092 : vector<128xf32>
    %cst_352 = arith.constant 1.000000e-01 : f32
    %2178 = vector.broadcast %cst_352 : f32 to vector<128xf32>
    %2179 = arith.mulf %2178, %2108 : vector<128xf32>
    %2180 = arith.addf %2177, %2179 : vector<128xf32>
    %2181 = arith.mulf %2122, %2094 : vector<128xf32>
    %2182 = arith.addf %2181, %2094 : vector<128xf32>
    %cst_353 = arith.constant 1.000000e-01 : f32
    %2183 = vector.broadcast %cst_353 : f32 to vector<128xf32>
    %2184 = arith.mulf %2183, %2110 : vector<128xf32>
    %2185 = arith.addf %2182, %2184 : vector<128xf32>
    %2186 = arith.mulf %2122, %2096 : vector<128xf32>
    %2187 = arith.addf %2186, %2096 : vector<128xf32>
    %cst_354 = arith.constant 1.000000e-01 : f32
    %2188 = vector.broadcast %cst_354 : f32 to vector<128xf32>
    %2189 = arith.mulf %2188, %2112 : vector<128xf32>
    %2190 = arith.addf %2187, %2189 : vector<128xf32>
    %2191 = arith.mulf %2125, %2098 : vector<128xf32>
    %2192 = arith.addf %2191, %2098 : vector<128xf32>
    %2193 = arith.mulf %2125, %2100 : vector<128xf32>
    %2194 = arith.addf %2193, %2100 : vector<128xf32>
    %2195 = arith.mulf %2125, %2102 : vector<128xf32>
    %2196 = arith.addf %2195, %2102 : vector<128xf32>
    %2197 = arith.mulf %2125, %2104 : vector<128xf32>
    %2198 = arith.addf %2197, %2104 : vector<128xf32>
    %2199 = arith.mulf %2128, %2106 : vector<128xf32>
    %2200 = arith.addf %2199, %2106 : vector<128xf32>
    %2201 = arith.mulf %2128, %2108 : vector<128xf32>
    %2202 = arith.addf %2201, %2108 : vector<128xf32>
    %2203 = arith.mulf %2128, %2110 : vector<128xf32>
    %2204 = arith.addf %2203, %2110 : vector<128xf32>
    %2205 = arith.mulf %2128, %2112 : vector<128xf32>
    %2206 = arith.addf %2205, %2112 : vector<128xf32>
    %2207 = arith.mulf %2155, %2119 : vector<128xf32>
    %2208 = arith.addf %2207, %2155 : vector<128xf32>
    %cst_355 = arith.constant 1.000000e-01 : f32
    %2209 = vector.broadcast %cst_355 : f32 to vector<128xf32>
    %2210 = arith.mulf %2209, %2165 : vector<128xf32>
    %2211 = arith.addf %2208, %2210 : vector<128xf32>
    %cst_356 = arith.constant 0.00999999977 : f32
    %2212 = vector.broadcast %cst_356 : f32 to vector<128xf32>
    %2213 = arith.addf %2211, %2212 : vector<128xf32>
    %2214 = arith.mulf %2160, %2122 : vector<128xf32>
    %2215 = arith.addf %2214, %2160 : vector<128xf32>
    %cst_357 = arith.constant 1.000000e-01 : f32
    %2216 = vector.broadcast %cst_357 : f32 to vector<128xf32>
    %2217 = arith.mulf %2216, %2170 : vector<128xf32>
    %2218 = arith.addf %2215, %2217 : vector<128xf32>
    %2219 = arith.mulf %2165, %2125 : vector<128xf32>
    %2220 = arith.addf %2219, %2165 : vector<128xf32>
    %2221 = arith.mulf %2170, %2128 : vector<128xf32>
    %2222 = arith.addf %2221, %2170 : vector<128xf32>
    %2223 = arith.mulf %2175, %2119 : vector<128xf32>
    %2224 = arith.addf %2223, %2175 : vector<128xf32>
    %cst_358 = arith.constant 1.000000e-01 : f32
    %2225 = vector.broadcast %cst_358 : f32 to vector<128xf32>
    %2226 = arith.mulf %2225, %2185 : vector<128xf32>
    %2227 = arith.addf %2224, %2226 : vector<128xf32>
    %2228 = arith.mulf %2180, %2122 : vector<128xf32>
    %2229 = arith.addf %2228, %2180 : vector<128xf32>
    %cst_359 = arith.constant 1.000000e-01 : f32
    %2230 = vector.broadcast %cst_359 : f32 to vector<128xf32>
    %2231 = arith.mulf %2230, %2190 : vector<128xf32>
    %2232 = arith.addf %2229, %2231 : vector<128xf32>
    %cst_360 = arith.constant 0.00999999977 : f32
    %2233 = vector.broadcast %cst_360 : f32 to vector<128xf32>
    %2234 = arith.addf %2232, %2233 : vector<128xf32>
    %2235 = arith.mulf %2185, %2125 : vector<128xf32>
    %2236 = arith.addf %2235, %2185 : vector<128xf32>
    %2237 = arith.mulf %2190, %2128 : vector<128xf32>
    %2238 = arith.addf %2237, %2190 : vector<128xf32>
    %2239 = arith.mulf %2192, %2119 : vector<128xf32>
    %2240 = arith.addf %2239, %2192 : vector<128xf32>
    %cst_361 = arith.constant 1.000000e-01 : f32
    %2241 = vector.broadcast %cst_361 : f32 to vector<128xf32>
    %2242 = arith.mulf %2241, %2196 : vector<128xf32>
    %2243 = arith.addf %2240, %2242 : vector<128xf32>
    %2244 = arith.mulf %2194, %2122 : vector<128xf32>
    %2245 = arith.addf %2244, %2194 : vector<128xf32>
    %cst_362 = arith.constant 1.000000e-01 : f32
    %2246 = vector.broadcast %cst_362 : f32 to vector<128xf32>
    %2247 = arith.mulf %2246, %2198 : vector<128xf32>
    %2248 = arith.addf %2245, %2247 : vector<128xf32>
    %2249 = arith.mulf %2196, %2125 : vector<128xf32>
    %2250 = arith.addf %2249, %2196 : vector<128xf32>
    %cst_363 = arith.constant 0.00999999977 : f32
    %2251 = vector.broadcast %cst_363 : f32 to vector<128xf32>
    %2252 = arith.addf %2250, %2251 : vector<128xf32>
    %2253 = arith.mulf %2198, %2128 : vector<128xf32>
    %2254 = arith.addf %2253, %2198 : vector<128xf32>
    %2255 = arith.mulf %2200, %2119 : vector<128xf32>
    %2256 = arith.addf %2255, %2200 : vector<128xf32>
    %cst_364 = arith.constant 1.000000e-01 : f32
    %2257 = vector.broadcast %cst_364 : f32 to vector<128xf32>
    %2258 = arith.mulf %2257, %2204 : vector<128xf32>
    %2259 = arith.addf %2256, %2258 : vector<128xf32>
    %2260 = arith.mulf %2202, %2122 : vector<128xf32>
    %2261 = arith.addf %2260, %2202 : vector<128xf32>
    %cst_365 = arith.constant 1.000000e-01 : f32
    %2262 = vector.broadcast %cst_365 : f32 to vector<128xf32>
    %2263 = arith.mulf %2262, %2206 : vector<128xf32>
    %2264 = arith.addf %2261, %2263 : vector<128xf32>
    %2265 = arith.mulf %2204, %2125 : vector<128xf32>
    %2266 = arith.addf %2265, %2204 : vector<128xf32>
    %2267 = arith.mulf %2206, %2128 : vector<128xf32>
    %2268 = arith.addf %2267, %2206 : vector<128xf32>
    %cst_366 = arith.constant 0.00999999977 : f32
    %2269 = vector.broadcast %cst_366 : f32 to vector<128xf32>
    %2270 = arith.addf %2268, %2269 : vector<128xf32>
    %cst_367 = arith.constant 1.000000e-01 : f32
    %2271 = vector.broadcast %cst_367 : f32 to vector<128xf32>
    %2272 = arith.addf %2213, %2271 : vector<128xf32>
    %cst_368 = arith.constant 1.000000e-01 : f32
    %2273 = vector.broadcast %cst_368 : f32 to vector<128xf32>
    %2274 = arith.addf %2234, %2273 : vector<128xf32>
    %2275 = arith.mulf %2272, %2274 : vector<128xf32>
    %2276 = arith.mulf %2218, %2227 : vector<128xf32>
    %2277 = arith.subf %2275, %2276 : vector<128xf32>
    %2278 = tpu.reciprocal %2277 : vector<128xf32> -> vector<128xf32>
    %2279 = arith.mulf %2274, %2278 : vector<128xf32>
    %cst_369 = arith.constant 0.000000e+00 : f32
    %2280 = vector.broadcast %cst_369 : f32 to vector<128xf32>
    %2281 = arith.subf %2280, %2218 : vector<128xf32>
    %2282 = arith.mulf %2281, %2278 : vector<128xf32>
    %cst_370 = arith.constant 0.000000e+00 : f32
    %2283 = vector.broadcast %cst_370 : f32 to vector<128xf32>
    %2284 = arith.subf %2283, %2227 : vector<128xf32>
    %2285 = arith.mulf %2284, %2278 : vector<128xf32>
    %2286 = arith.mulf %2272, %2278 : vector<128xf32>
    %2287 = arith.mulf %2213, %2279 : vector<128xf32>
    %cst_371 = arith.constant 0.000000e+00 : f32
    %2288 = vector.broadcast %cst_371 : f32 to vector<128xf32>
    %2289 = arith.addf %2288, %2287 : vector<128xf32>
    %2290 = arith.mulf %2218, %2285 : vector<128xf32>
    %2291 = arith.addf %2289, %2290 : vector<128xf32>
    %2292 = arith.mulf %2213, %2282 : vector<128xf32>
    %cst_372 = arith.constant 0.000000e+00 : f32
    %2293 = vector.broadcast %cst_372 : f32 to vector<128xf32>
    %2294 = arith.addf %2293, %2292 : vector<128xf32>
    %2295 = arith.mulf %2218, %2286 : vector<128xf32>
    %2296 = arith.addf %2294, %2295 : vector<128xf32>
    %2297 = arith.mulf %2227, %2279 : vector<128xf32>
    %cst_373 = arith.constant 0.000000e+00 : f32
    %2298 = vector.broadcast %cst_373 : f32 to vector<128xf32>
    %2299 = arith.addf %2298, %2297 : vector<128xf32>
    %2300 = arith.mulf %2234, %2285 : vector<128xf32>
    %2301 = arith.addf %2299, %2300 : vector<128xf32>
    %2302 = arith.mulf %2227, %2282 : vector<128xf32>
    %cst_374 = arith.constant 0.000000e+00 : f32
    %2303 = vector.broadcast %cst_374 : f32 to vector<128xf32>
    %2304 = arith.addf %2303, %2302 : vector<128xf32>
    %2305 = arith.mulf %2234, %2286 : vector<128xf32>
    %2306 = arith.addf %2304, %2305 : vector<128xf32>
    %2307 = arith.mulf %2243, %2279 : vector<128xf32>
    %cst_375 = arith.constant 0.000000e+00 : f32
    %2308 = vector.broadcast %cst_375 : f32 to vector<128xf32>
    %2309 = arith.addf %2308, %2307 : vector<128xf32>
    %2310 = arith.mulf %2248, %2285 : vector<128xf32>
    %2311 = arith.addf %2309, %2310 : vector<128xf32>
    %2312 = arith.mulf %2243, %2282 : vector<128xf32>
    %cst_376 = arith.constant 0.000000e+00 : f32
    %2313 = vector.broadcast %cst_376 : f32 to vector<128xf32>
    %2314 = arith.addf %2313, %2312 : vector<128xf32>
    %2315 = arith.mulf %2248, %2286 : vector<128xf32>
    %2316 = arith.addf %2314, %2315 : vector<128xf32>
    %2317 = arith.mulf %2259, %2279 : vector<128xf32>
    %cst_377 = arith.constant 0.000000e+00 : f32
    %2318 = vector.broadcast %cst_377 : f32 to vector<128xf32>
    %2319 = arith.addf %2318, %2317 : vector<128xf32>
    %2320 = arith.mulf %2264, %2285 : vector<128xf32>
    %2321 = arith.addf %2319, %2320 : vector<128xf32>
    %2322 = arith.mulf %2259, %2282 : vector<128xf32>
    %cst_378 = arith.constant 0.000000e+00 : f32
    %2323 = vector.broadcast %cst_378 : f32 to vector<128xf32>
    %2324 = arith.addf %2323, %2322 : vector<128xf32>
    %2325 = arith.mulf %2264, %2286 : vector<128xf32>
    %2326 = arith.addf %2324, %2325 : vector<128xf32>
    %2327 = arith.subf %2114, %2135 : vector<128xf32>
    %2328 = arith.subf %2116, %2142 : vector<128xf32>
    %2329 = arith.mulf %2291, %2327 : vector<128xf32>
    %cst_379 = arith.constant 0.000000e+00 : f32
    %2330 = vector.broadcast %cst_379 : f32 to vector<128xf32>
    %2331 = arith.addf %2330, %2329 : vector<128xf32>
    %2332 = arith.mulf %2296, %2328 : vector<128xf32>
    %2333 = arith.addf %2331, %2332 : vector<128xf32>
    %2334 = arith.addf %2135, %2333 : vector<128xf32>
    %2335 = arith.mulf %2301, %2327 : vector<128xf32>
    %cst_380 = arith.constant 0.000000e+00 : f32
    %2336 = vector.broadcast %cst_380 : f32 to vector<128xf32>
    %2337 = arith.addf %2336, %2335 : vector<128xf32>
    %2338 = arith.mulf %2306, %2328 : vector<128xf32>
    %2339 = arith.addf %2337, %2338 : vector<128xf32>
    %2340 = arith.addf %2142, %2339 : vector<128xf32>
    %2341 = arith.mulf %2311, %2327 : vector<128xf32>
    %cst_381 = arith.constant 0.000000e+00 : f32
    %2342 = vector.broadcast %cst_381 : f32 to vector<128xf32>
    %2343 = arith.addf %2342, %2341 : vector<128xf32>
    %2344 = arith.mulf %2316, %2328 : vector<128xf32>
    %2345 = arith.addf %2343, %2344 : vector<128xf32>
    %2346 = arith.addf %2146, %2345 : vector<128xf32>
    %2347 = arith.mulf %2321, %2327 : vector<128xf32>
    %cst_382 = arith.constant 0.000000e+00 : f32
    %2348 = vector.broadcast %cst_382 : f32 to vector<128xf32>
    %2349 = arith.addf %2348, %2347 : vector<128xf32>
    %2350 = arith.mulf %2326, %2328 : vector<128xf32>
    %2351 = arith.addf %2349, %2350 : vector<128xf32>
    %2352 = arith.addf %2150, %2351 : vector<128xf32>
    %2353 = arith.mulf %2291, %2213 : vector<128xf32>
    %cst_383 = arith.constant 0.000000e+00 : f32
    %2354 = vector.broadcast %cst_383 : f32 to vector<128xf32>
    %2355 = arith.addf %2354, %2353 : vector<128xf32>
    %2356 = arith.mulf %2296, %2227 : vector<128xf32>
    %2357 = arith.addf %2355, %2356 : vector<128xf32>
    %2358 = arith.subf %2213, %2357 : vector<128xf32>
    %2359 = arith.mulf %2291, %2218 : vector<128xf32>
    %cst_384 = arith.constant 0.000000e+00 : f32
    %2360 = vector.broadcast %cst_384 : f32 to vector<128xf32>
    %2361 = arith.addf %2360, %2359 : vector<128xf32>
    %2362 = arith.mulf %2296, %2234 : vector<128xf32>
    %2363 = arith.addf %2361, %2362 : vector<128xf32>
    %2364 = arith.subf %2218, %2363 : vector<128xf32>
    %2365 = arith.mulf %2291, %2220 : vector<128xf32>
    %cst_385 = arith.constant 0.000000e+00 : f32
    %2366 = vector.broadcast %cst_385 : f32 to vector<128xf32>
    %2367 = arith.addf %2366, %2365 : vector<128xf32>
    %2368 = arith.mulf %2296, %2236 : vector<128xf32>
    %2369 = arith.addf %2367, %2368 : vector<128xf32>
    %2370 = arith.subf %2220, %2369 : vector<128xf32>
    %2371 = arith.mulf %2291, %2222 : vector<128xf32>
    %cst_386 = arith.constant 0.000000e+00 : f32
    %2372 = vector.broadcast %cst_386 : f32 to vector<128xf32>
    %2373 = arith.addf %2372, %2371 : vector<128xf32>
    %2374 = arith.mulf %2296, %2238 : vector<128xf32>
    %2375 = arith.addf %2373, %2374 : vector<128xf32>
    %2376 = arith.subf %2222, %2375 : vector<128xf32>
    %2377 = arith.mulf %2301, %2213 : vector<128xf32>
    %cst_387 = arith.constant 0.000000e+00 : f32
    %2378 = vector.broadcast %cst_387 : f32 to vector<128xf32>
    %2379 = arith.addf %2378, %2377 : vector<128xf32>
    %2380 = arith.mulf %2306, %2227 : vector<128xf32>
    %2381 = arith.addf %2379, %2380 : vector<128xf32>
    %2382 = arith.subf %2227, %2381 : vector<128xf32>
    %2383 = arith.mulf %2301, %2218 : vector<128xf32>
    %cst_388 = arith.constant 0.000000e+00 : f32
    %2384 = vector.broadcast %cst_388 : f32 to vector<128xf32>
    %2385 = arith.addf %2384, %2383 : vector<128xf32>
    %2386 = arith.mulf %2306, %2234 : vector<128xf32>
    %2387 = arith.addf %2385, %2386 : vector<128xf32>
    %2388 = arith.subf %2234, %2387 : vector<128xf32>
    %2389 = arith.mulf %2301, %2220 : vector<128xf32>
    %cst_389 = arith.constant 0.000000e+00 : f32
    %2390 = vector.broadcast %cst_389 : f32 to vector<128xf32>
    %2391 = arith.addf %2390, %2389 : vector<128xf32>
    %2392 = arith.mulf %2306, %2236 : vector<128xf32>
    %2393 = arith.addf %2391, %2392 : vector<128xf32>
    %2394 = arith.subf %2236, %2393 : vector<128xf32>
    %2395 = arith.mulf %2301, %2222 : vector<128xf32>
    %cst_390 = arith.constant 0.000000e+00 : f32
    %2396 = vector.broadcast %cst_390 : f32 to vector<128xf32>
    %2397 = arith.addf %2396, %2395 : vector<128xf32>
    %2398 = arith.mulf %2306, %2238 : vector<128xf32>
    %2399 = arith.addf %2397, %2398 : vector<128xf32>
    %2400 = arith.subf %2238, %2399 : vector<128xf32>
    %2401 = arith.mulf %2311, %2213 : vector<128xf32>
    %cst_391 = arith.constant 0.000000e+00 : f32
    %2402 = vector.broadcast %cst_391 : f32 to vector<128xf32>
    %2403 = arith.addf %2402, %2401 : vector<128xf32>
    %2404 = arith.mulf %2316, %2227 : vector<128xf32>
    %2405 = arith.addf %2403, %2404 : vector<128xf32>
    %2406 = arith.subf %2243, %2405 : vector<128xf32>
    %2407 = arith.mulf %2311, %2218 : vector<128xf32>
    %cst_392 = arith.constant 0.000000e+00 : f32
    %2408 = vector.broadcast %cst_392 : f32 to vector<128xf32>
    %2409 = arith.addf %2408, %2407 : vector<128xf32>
    %2410 = arith.mulf %2316, %2234 : vector<128xf32>
    %2411 = arith.addf %2409, %2410 : vector<128xf32>
    %2412 = arith.subf %2248, %2411 : vector<128xf32>
    %2413 = arith.mulf %2311, %2220 : vector<128xf32>
    %cst_393 = arith.constant 0.000000e+00 : f32
    %2414 = vector.broadcast %cst_393 : f32 to vector<128xf32>
    %2415 = arith.addf %2414, %2413 : vector<128xf32>
    %2416 = arith.mulf %2316, %2236 : vector<128xf32>
    %2417 = arith.addf %2415, %2416 : vector<128xf32>
    %2418 = arith.subf %2252, %2417 : vector<128xf32>
    %2419 = arith.mulf %2311, %2222 : vector<128xf32>
    %cst_394 = arith.constant 0.000000e+00 : f32
    %2420 = vector.broadcast %cst_394 : f32 to vector<128xf32>
    %2421 = arith.addf %2420, %2419 : vector<128xf32>
    %2422 = arith.mulf %2316, %2238 : vector<128xf32>
    %2423 = arith.addf %2421, %2422 : vector<128xf32>
    %2424 = arith.subf %2254, %2423 : vector<128xf32>
    %2425 = arith.mulf %2321, %2213 : vector<128xf32>
    %cst_395 = arith.constant 0.000000e+00 : f32
    %2426 = vector.broadcast %cst_395 : f32 to vector<128xf32>
    %2427 = arith.addf %2426, %2425 : vector<128xf32>
    %2428 = arith.mulf %2326, %2227 : vector<128xf32>
    %2429 = arith.addf %2427, %2428 : vector<128xf32>
    %2430 = arith.subf %2259, %2429 : vector<128xf32>
    %2431 = arith.mulf %2321, %2218 : vector<128xf32>
    %cst_396 = arith.constant 0.000000e+00 : f32
    %2432 = vector.broadcast %cst_396 : f32 to vector<128xf32>
    %2433 = arith.addf %2432, %2431 : vector<128xf32>
    %2434 = arith.mulf %2326, %2234 : vector<128xf32>
    %2435 = arith.addf %2433, %2434 : vector<128xf32>
    %2436 = arith.subf %2264, %2435 : vector<128xf32>
    %2437 = arith.mulf %2321, %2220 : vector<128xf32>
    %cst_397 = arith.constant 0.000000e+00 : f32
    %2438 = vector.broadcast %cst_397 : f32 to vector<128xf32>
    %2439 = arith.addf %2438, %2437 : vector<128xf32>
    %2440 = arith.mulf %2326, %2236 : vector<128xf32>
    %2441 = arith.addf %2439, %2440 : vector<128xf32>
    %2442 = arith.subf %2266, %2441 : vector<128xf32>
    %2443 = arith.mulf %2321, %2222 : vector<128xf32>
    %cst_398 = arith.constant 0.000000e+00 : f32
    %2444 = vector.broadcast %cst_398 : f32 to vector<128xf32>
    %2445 = arith.addf %2444, %2443 : vector<128xf32>
    %2446 = arith.mulf %2326, %2238 : vector<128xf32>
    %2447 = arith.addf %2445, %2446 : vector<128xf32>
    %2448 = arith.subf %2270, %2447 : vector<128xf32>
    %2449 = vector.shape_cast %2334 : vector<128xf32> to vector<1x128xf32>
    %2450 = vector.shape_cast %2340 : vector<128xf32> to vector<1x128xf32>
    %2451 = vector.shape_cast %2346 : vector<128xf32> to vector<1x128xf32>
    %2452 = vector.shape_cast %2352 : vector<128xf32> to vector<1x128xf32>
    %2453 = tpu.concatenate %2449, %2450, %2451, %2452 in 0 : vector<1x128xf32>, vector<1x128xf32>, vector<1x128xf32>, vector<1x128xf32> -> vector<4x128xf32>
    %2454 = vector.shape_cast %2358 : vector<128xf32> to vector<1x128xf32>
    %2455 = vector.shape_cast %2364 : vector<128xf32> to vector<1x128xf32>
    %2456 = vector.shape_cast %2370 : vector<128xf32> to vector<1x128xf32>
    %2457 = vector.shape_cast %2376 : vector<128xf32> to vector<1x128xf32>
    %2458 = tpu.concatenate %2454, %2455, %2456, %2457 in 0 : vector<1x128xf32>, vector<1x128xf32>, vector<1x128xf32>, vector<1x128xf32> -> vector<4x128xf32>
    %2459 = vector.shape_cast %2382 : vector<128xf32> to vector<1x128xf32>
    %2460 = vector.shape_cast %2388 : vector<128xf32> to vector<1x128xf32>
    %2461 = vector.shape_cast %2394 : vector<128xf32> to vector<1x128xf32>
    %2462 = vector.shape_cast %2400 : vector<128xf32> to vector<1x128xf32>
    %2463 = tpu.concatenate %2459, %2460, %2461, %2462 in 0 : vector<1x128xf32>, vector<1x128xf32>, vector<1x128xf32>, vector<1x128xf32> -> vector<4x128xf32>
    %2464 = vector.shape_cast %2406 : vector<128xf32> to vector<1x128xf32>
    %2465 = vector.shape_cast %2412 : vector<128xf32> to vector<1x128xf32>
    %2466 = vector.shape_cast %2418 : vector<128xf32> to vector<1x128xf32>
    %2467 = vector.shape_cast %2424 : vector<128xf32> to vector<1x128xf32>
    %2468 = tpu.concatenate %2464, %2465, %2466, %2467 in 0 : vector<1x128xf32>, vector<1x128xf32>, vector<1x128xf32>, vector<1x128xf32> -> vector<4x128xf32>
    %2469 = vector.shape_cast %2430 : vector<128xf32> to vector<1x128xf32>
    %2470 = vector.shape_cast %2436 : vector<128xf32> to vector<1x128xf32>
    %2471 = vector.shape_cast %2442 : vector<128xf32> to vector<1x128xf32>
    %2472 = vector.shape_cast %2448 : vector<128xf32> to vector<1x128xf32>
    %2473 = tpu.concatenate %2469, %2470, %2471, %2472 in 0 : vector<1x128xf32>, vector<1x128xf32>, vector<1x128xf32>, vector<1x128xf32> -> vector<4x128xf32>
    %2474 = vector.shape_cast %2458 : vector<4x128xf32> to vector<1x4x128xf32>
    %2475 = vector.shape_cast %2463 : vector<4x128xf32> to vector<1x4x128xf32>
    %2476 = vector.shape_cast %2468 : vector<4x128xf32> to vector<1x4x128xf32>
    %2477 = vector.shape_cast %2473 : vector<4x128xf32> to vector<1x4x128xf32>
    %2478 = tpu.concatenate %2474, %2475, %2476, %2477 in 0 : vector<1x4x128xf32>, vector<1x4x128xf32>, vector<1x4x128xf32>, vector<1x4x128xf32> -> vector<4x4x128xf32>
    %2479 = arith.index_cast %c5_i32 : i32 to index
    %c0_399 = arith.constant 0 : index
    %c0_400 = arith.constant 0 : index
    %2480 = vector.load %arg5[%2479, %c0_399, %c0_400] : memref<8x4x128xf32, #tpu.memory_space<vmem>>, vector<1x4x128xf32>
    %2481 = vector.shape_cast %2480 : vector<1x4x128xf32> to vector<4x128xf32>
    %2482 = vector.shape_cast %2453 : vector<4x128xf32> to vector<1x4x128xf32>
    tpu.vector_store %arg5[%2479, %c0_399, %c0_400], %2482 {strides = array<i32>} : memref<8x4x128xf32, #tpu.memory_space<vmem>>, vector<1x4x128xf32>,
    %c6_i32 = arith.constant 6 : i32
    %2483 = arith.index_cast %c6_i32 : i32 to index
    %c0_401 = arith.constant 0 : index
    %c0_402 = arith.constant 0 : index
    %2484 = vector.load %arg2[%2483, %c0_401, %c0_402] : memref<8x2x128xf32, #tpu.memory_space<vmem>>, vector<1x2x128xf32>
    %2485 = vector.shape_cast %2484 : vector<1x2x128xf32> to vector<2x128xf32>
    %2486 = vector.extract_strided_slice %2453 {offsets = [0, 0], sizes = [1, 128], strides = [1, 1]} : vector<4x128xf32> to vector<1x128xf32>
    %2487 = vector.shape_cast %2486 : vector<1x128xf32> to vector<128xf32>
    %2488 = vector.extract_strided_slice %2453 {offsets = [1, 0], sizes = [1, 128], strides = [1, 1]} : vector<4x128xf32> to vector<1x128xf32>
    %2489 = vector.shape_cast %2488 : vector<1x128xf32> to vector<128xf32>
    %2490 = vector.extract_strided_slice %2453 {offsets = [2, 0], sizes = [1, 128], strides = [1, 1]} : vector<4x128xf32> to vector<1x128xf32>
    %2491 = vector.shape_cast %2490 : vector<1x128xf32> to vector<128xf32>
    %2492 = vector.extract_strided_slice %2453 {offsets = [3, 0], sizes = [1, 128], strides = [1, 1]} : vector<4x128xf32> to vector<1x128xf32>
    %2493 = vector.shape_cast %2492 : vector<1x128xf32> to vector<128xf32>
    %2494 = vector.extract_strided_slice %2478 {offsets = [0, 0, 0], sizes = [1, 1, 128], strides = [1, 1, 1]} : vector<4x4x128xf32> to vector<1x1x128xf32>
    %2495 = vector.shape_cast %2494 : vector<1x1x128xf32> to vector<128xf32>
    %2496 = vector.extract_strided_slice %2478 {offsets = [0, 1, 0], sizes = [1, 1, 128], strides = [1, 1, 1]} : vector<4x4x128xf32> to vector<1x1x128xf32>
    %2497 = vector.shape_cast %2496 : vector<1x1x128xf32> to vector<128xf32>
    %2498 = vector.extract_strided_slice %2478 {offsets = [0, 2, 0], sizes = [1, 1, 128], strides = [1, 1, 1]} : vector<4x4x128xf32> to vector<1x1x128xf32>
    %2499 = vector.shape_cast %2498 : vector<1x1x128xf32> to vector<128xf32>
    %2500 = vector.extract_strided_slice %2478 {offsets = [0, 3, 0], sizes = [1, 1, 128], strides = [1, 1, 1]} : vector<4x4x128xf32> to vector<1x1x128xf32>
    %2501 = vector.shape_cast %2500 : vector<1x1x128xf32> to vector<128xf32>
    %2502 = vector.extract_strided_slice %2478 {offsets = [1, 0, 0], sizes = [1, 1, 128], strides = [1, 1, 1]} : vector<4x4x128xf32> to vector<1x1x128xf32>
    %2503 = vector.shape_cast %2502 : vector<1x1x128xf32> to vector<128xf32>
    %2504 = vector.extract_strided_slice %2478 {offsets = [1, 1, 0], sizes = [1, 1, 128], strides = [1, 1, 1]} : vector<4x4x128xf32> to vector<1x1x128xf32>
    %2505 = vector.shape_cast %2504 : vector<1x1x128xf32> to vector<128xf32>
    %2506 = vector.extract_strided_slice %2478 {offsets = [1, 2, 0], sizes = [1, 1, 128], strides = [1, 1, 1]} : vector<4x4x128xf32> to vector<1x1x128xf32>
    %2507 = vector.shape_cast %2506 : vector<1x1x128xf32> to vector<128xf32>
    %2508 = vector.extract_strided_slice %2478 {offsets = [1, 3, 0], sizes = [1, 1, 128], strides = [1, 1, 1]} : vector<4x4x128xf32> to vector<1x1x128xf32>
    %2509 = vector.shape_cast %2508 : vector<1x1x128xf32> to vector<128xf32>
    %2510 = vector.extract_strided_slice %2478 {offsets = [2, 0, 0], sizes = [1, 1, 128], strides = [1, 1, 1]} : vector<4x4x128xf32> to vector<1x1x128xf32>
    %2511 = vector.shape_cast %2510 : vector<1x1x128xf32> to vector<128xf32>
    %2512 = vector.extract_strided_slice %2478 {offsets = [2, 1, 0], sizes = [1, 1, 128], strides = [1, 1, 1]} : vector<4x4x128xf32> to vector<1x1x128xf32>
    %2513 = vector.shape_cast %2512 : vector<1x1x128xf32> to vector<128xf32>
    %2514 = vector.extract_strided_slice %2478 {offsets = [2, 2, 0], sizes = [1, 1, 128], strides = [1, 1, 1]} : vector<4x4x128xf32> to vector<1x1x128xf32>
    %2515 = vector.shape_cast %2514 : vector<1x1x128xf32> to vector<128xf32>
    %2516 = vector.extract_strided_slice %2478 {offsets = [2, 3, 0], sizes = [1, 1, 128], strides = [1, 1, 1]} : vector<4x4x128xf32> to vector<1x1x128xf32>
    %2517 = vector.shape_cast %2516 : vector<1x1x128xf32> to vector<128xf32>
    %2518 = vector.extract_strided_slice %2478 {offsets = [3, 0, 0], sizes = [1, 1, 128], strides = [1, 1, 1]} : vector<4x4x128xf32> to vector<1x1x128xf32>
    %2519 = vector.shape_cast %2518 : vector<1x1x128xf32> to vector<128xf32>
    %2520 = vector.extract_strided_slice %2478 {offsets = [3, 1, 0], sizes = [1, 1, 128], strides = [1, 1, 1]} : vector<4x4x128xf32> to vector<1x1x128xf32>
    %2521 = vector.shape_cast %2520 : vector<1x1x128xf32> to vector<128xf32>
    %2522 = vector.extract_strided_slice %2478 {offsets = [3, 2, 0], sizes = [1, 1, 128], strides = [1, 1, 1]} : vector<4x4x128xf32> to vector<1x1x128xf32>
    %2523 = vector.shape_cast %2522 : vector<1x1x128xf32> to vector<128xf32>
    %2524 = vector.extract_strided_slice %2478 {offsets = [3, 3, 0], sizes = [1, 1, 128], strides = [1, 1, 1]} : vector<4x4x128xf32> to vector<1x1x128xf32>
    %2525 = vector.shape_cast %2524 : vector<1x1x128xf32> to vector<128xf32>
    %2526 = vector.extract_strided_slice %2485 {offsets = [0, 0], sizes = [1, 128], strides = [1, 1]} : vector<2x128xf32> to vector<1x128xf32>
    %2527 = vector.shape_cast %2526 : vector<1x128xf32> to vector<128xf32>
    %2528 = vector.extract_strided_slice %2485 {offsets = [1, 0], sizes = [1, 128], strides = [1, 1]} : vector<2x128xf32> to vector<1x128xf32>
    %2529 = vector.shape_cast %2528 : vector<1x128xf32> to vector<128xf32>
    %2530 = math.cos %2487 : vector<128xf32>
    %cst_403 = arith.constant 1.000000e-01 : f32
    %2531 = vector.broadcast %cst_403 : f32 to vector<128xf32>
    %2532 = arith.mulf %2531, %2530 : vector<128xf32>
    %2533 = math.cos %2489 : vector<128xf32>
    %cst_404 = arith.constant 1.000000e-01 : f32
    %2534 = vector.broadcast %cst_404 : f32 to vector<128xf32>
    %2535 = arith.mulf %2534, %2533 : vector<128xf32>
    %2536 = math.cos %2491 : vector<128xf32>
    %cst_405 = arith.constant 1.000000e-01 : f32
    %2537 = vector.broadcast %cst_405 : f32 to vector<128xf32>
    %2538 = arith.mulf %2537, %2536 : vector<128xf32>
    %2539 = math.cos %2493 : vector<128xf32>
    %cst_406 = arith.constant 1.000000e-01 : f32
    %2540 = vector.broadcast %cst_406 : f32 to vector<128xf32>
    %2541 = arith.mulf %2540, %2539 : vector<128xf32>
    %2542 = math.sin %2487 : vector<128xf32>
    %cst_407 = arith.constant 1.000000e-01 : f32
    %2543 = vector.broadcast %cst_407 : f32 to vector<128xf32>
    %2544 = arith.mulf %2543, %2542 : vector<128xf32>
    %2545 = arith.addf %2544, %2487 : vector<128xf32>
    %cst_408 = arith.constant 1.000000e-01 : f32
    %2546 = vector.broadcast %cst_408 : f32 to vector<128xf32>
    %2547 = arith.mulf %2546, %2491 : vector<128xf32>
    %2548 = arith.addf %2545, %2547 : vector<128xf32>
    %2549 = math.sin %2489 : vector<128xf32>
    %cst_409 = arith.constant 1.000000e-01 : f32
    %2550 = vector.broadcast %cst_409 : f32 to vector<128xf32>
    %2551 = arith.mulf %2550, %2549 : vector<128xf32>
    %2552 = arith.addf %2551, %2489 : vector<128xf32>
    %cst_410 = arith.constant 1.000000e-01 : f32
    %2553 = vector.broadcast %cst_410 : f32 to vector<128xf32>
    %2554 = arith.mulf %2553, %2493 : vector<128xf32>
    %2555 = arith.addf %2552, %2554 : vector<128xf32>
    %2556 = math.sin %2491 : vector<128xf32>
    %cst_411 = arith.constant 1.000000e-01 : f32
    %2557 = vector.broadcast %cst_411 : f32 to vector<128xf32>
    %2558 = arith.mulf %2557, %2556 : vector<128xf32>
    %2559 = arith.addf %2558, %2491 : vector<128xf32>
    %2560 = math.sin %2493 : vector<128xf32>
    %cst_412 = arith.constant 1.000000e-01 : f32
    %2561 = vector.broadcast %cst_412 : f32 to vector<128xf32>
    %2562 = arith.mulf %2561, %2560 : vector<128xf32>
    %2563 = arith.addf %2562, %2493 : vector<128xf32>
    %2564 = arith.mulf %2532, %2495 : vector<128xf32>
    %2565 = arith.addf %2564, %2495 : vector<128xf32>
    %cst_413 = arith.constant 1.000000e-01 : f32
    %2566 = vector.broadcast %cst_413 : f32 to vector<128xf32>
    %2567 = arith.mulf %2566, %2511 : vector<128xf32>
    %2568 = arith.addf %2565, %2567 : vector<128xf32>
    %2569 = arith.mulf %2532, %2497 : vector<128xf32>
    %2570 = arith.addf %2569, %2497 : vector<128xf32>
    %cst_414 = arith.constant 1.000000e-01 : f32
    %2571 = vector.broadcast %cst_414 : f32 to vector<128xf32>
    %2572 = arith.mulf %2571, %2513 : vector<128xf32>
    %2573 = arith.addf %2570, %2572 : vector<128xf32>
    %2574 = arith.mulf %2532, %2499 : vector<128xf32>
    %2575 = arith.addf %2574, %2499 : vector<128xf32>
    %cst_415 = arith.constant 1.000000e-01 : f32
    %2576 = vector.broadcast %cst_415 : f32 to vector<128xf32>
    %2577 = arith.mulf %2576, %2515 : vector<128xf32>
    %2578 = arith.addf %2575, %2577 : vector<128xf32>
    %2579 = arith.mulf %2532, %2501 : vector<128xf32>
    %2580 = arith.addf %2579, %2501 : vector<128xf32>
    %cst_416 = arith.constant 1.000000e-01 : f32
    %2581 = vector.broadcast %cst_416 : f32 to vector<128xf32>
    %2582 = arith.mulf %2581, %2517 : vector<128xf32>
    %2583 = arith.addf %2580, %2582 : vector<128xf32>
    %2584 = arith.mulf %2535, %2503 : vector<128xf32>
    %2585 = arith.addf %2584, %2503 : vector<128xf32>
    %cst_417 = arith.constant 1.000000e-01 : f32
    %2586 = vector.broadcast %cst_417 : f32 to vector<128xf32>
    %2587 = arith.mulf %2586, %2519 : vector<128xf32>
    %2588 = arith.addf %2585, %2587 : vector<128xf32>
    %2589 = arith.mulf %2535, %2505 : vector<128xf32>
    %2590 = arith.addf %2589, %2505 : vector<128xf32>
    %cst_418 = arith.constant 1.000000e-01 : f32
    %2591 = vector.broadcast %cst_418 : f32 to vector<128xf32>
    %2592 = arith.mulf %2591, %2521 : vector<128xf32>
    %2593 = arith.addf %2590, %2592 : vector<128xf32>
    %2594 = arith.mulf %2535, %2507 : vector<128xf32>
    %2595 = arith.addf %2594, %2507 : vector<128xf32>
    %cst_419 = arith.constant 1.000000e-01 : f32
    %2596 = vector.broadcast %cst_419 : f32 to vector<128xf32>
    %2597 = arith.mulf %2596, %2523 : vector<128xf32>
    %2598 = arith.addf %2595, %2597 : vector<128xf32>
    %2599 = arith.mulf %2535, %2509 : vector<128xf32>
    %2600 = arith.addf %2599, %2509 : vector<128xf32>
    %cst_420 = arith.constant 1.000000e-01 : f32
    %2601 = vector.broadcast %cst_420 : f32 to vector<128xf32>
    %2602 = arith.mulf %2601, %2525 : vector<128xf32>
    %2603 = arith.addf %2600, %2602 : vector<128xf32>
    %2604 = arith.mulf %2538, %2511 : vector<128xf32>
    %2605 = arith.addf %2604, %2511 : vector<128xf32>
    %2606 = arith.mulf %2538, %2513 : vector<128xf32>
    %2607 = arith.addf %2606, %2513 : vector<128xf32>
    %2608 = arith.mulf %2538, %2515 : vector<128xf32>
    %2609 = arith.addf %2608, %2515 : vector<128xf32>
    %2610 = arith.mulf %2538, %2517 : vector<128xf32>
    %2611 = arith.addf %2610, %2517 : vector<128xf32>
    %2612 = arith.mulf %2541, %2519 : vector<128xf32>
    %2613 = arith.addf %2612, %2519 : vector<128xf32>
    %2614 = arith.mulf %2541, %2521 : vector<128xf32>
    %2615 = arith.addf %2614, %2521 : vector<128xf32>
    %2616 = arith.mulf %2541, %2523 : vector<128xf32>
    %2617 = arith.addf %2616, %2523 : vector<128xf32>
    %2618 = arith.mulf %2541, %2525 : vector<128xf32>
    %2619 = arith.addf %2618, %2525 : vector<128xf32>
    %2620 = arith.mulf %2568, %2532 : vector<128xf32>
    %2621 = arith.addf %2620, %2568 : vector<128xf32>
    %cst_421 = arith.constant 1.000000e-01 : f32
    %2622 = vector.broadcast %cst_421 : f32 to vector<128xf32>
    %2623 = arith.mulf %2622, %2578 : vector<128xf32>
    %2624 = arith.addf %2621, %2623 : vector<128xf32>
    %cst_422 = arith.constant 0.00999999977 : f32
    %2625 = vector.broadcast %cst_422 : f32 to vector<128xf32>
    %2626 = arith.addf %2624, %2625 : vector<128xf32>
    %2627 = arith.mulf %2573, %2535 : vector<128xf32>
    %2628 = arith.addf %2627, %2573 : vector<128xf32>
    %cst_423 = arith.constant 1.000000e-01 : f32
    %2629 = vector.broadcast %cst_423 : f32 to vector<128xf32>
    %2630 = arith.mulf %2629, %2583 : vector<128xf32>
    %2631 = arith.addf %2628, %2630 : vector<128xf32>
    %2632 = arith.mulf %2578, %2538 : vector<128xf32>
    %2633 = arith.addf %2632, %2578 : vector<128xf32>
    %2634 = arith.mulf %2583, %2541 : vector<128xf32>
    %2635 = arith.addf %2634, %2583 : vector<128xf32>
    %2636 = arith.mulf %2588, %2532 : vector<128xf32>
    %2637 = arith.addf %2636, %2588 : vector<128xf32>
    %cst_424 = arith.constant 1.000000e-01 : f32
    %2638 = vector.broadcast %cst_424 : f32 to vector<128xf32>
    %2639 = arith.mulf %2638, %2598 : vector<128xf32>
    %2640 = arith.addf %2637, %2639 : vector<128xf32>
    %2641 = arith.mulf %2593, %2535 : vector<128xf32>
    %2642 = arith.addf %2641, %2593 : vector<128xf32>
    %cst_425 = arith.constant 1.000000e-01 : f32
    %2643 = vector.broadcast %cst_425 : f32 to vector<128xf32>
    %2644 = arith.mulf %2643, %2603 : vector<128xf32>
    %2645 = arith.addf %2642, %2644 : vector<128xf32>
    %cst_426 = arith.constant 0.00999999977 : f32
    %2646 = vector.broadcast %cst_426 : f32 to vector<128xf32>
    %2647 = arith.addf %2645, %2646 : vector<128xf32>
    %2648 = arith.mulf %2598, %2538 : vector<128xf32>
    %2649 = arith.addf %2648, %2598 : vector<128xf32>
    %2650 = arith.mulf %2603, %2541 : vector<128xf32>
    %2651 = arith.addf %2650, %2603 : vector<128xf32>
    %2652 = arith.mulf %2605, %2532 : vector<128xf32>
    %2653 = arith.addf %2652, %2605 : vector<128xf32>
    %cst_427 = arith.constant 1.000000e-01 : f32
    %2654 = vector.broadcast %cst_427 : f32 to vector<128xf32>
    %2655 = arith.mulf %2654, %2609 : vector<128xf32>
    %2656 = arith.addf %2653, %2655 : vector<128xf32>
    %2657 = arith.mulf %2607, %2535 : vector<128xf32>
    %2658 = arith.addf %2657, %2607 : vector<128xf32>
    %cst_428 = arith.constant 1.000000e-01 : f32
    %2659 = vector.broadcast %cst_428 : f32 to vector<128xf32>
    %2660 = arith.mulf %2659, %2611 : vector<128xf32>
    %2661 = arith.addf %2658, %2660 : vector<128xf32>
    %2662 = arith.mulf %2609, %2538 : vector<128xf32>
    %2663 = arith.addf %2662, %2609 : vector<128xf32>
    %cst_429 = arith.constant 0.00999999977 : f32
    %2664 = vector.broadcast %cst_429 : f32 to vector<128xf32>
    %2665 = arith.addf %2663, %2664 : vector<128xf32>
    %2666 = arith.mulf %2611, %2541 : vector<128xf32>
    %2667 = arith.addf %2666, %2611 : vector<128xf32>
    %2668 = arith.mulf %2613, %2532 : vector<128xf32>
    %2669 = arith.addf %2668, %2613 : vector<128xf32>
    %cst_430 = arith.constant 1.000000e-01 : f32
    %2670 = vector.broadcast %cst_430 : f32 to vector<128xf32>
    %2671 = arith.mulf %2670, %2617 : vector<128xf32>
    %2672 = arith.addf %2669, %2671 : vector<128xf32>
    %2673 = arith.mulf %2615, %2535 : vector<128xf32>
    %2674 = arith.addf %2673, %2615 : vector<128xf32>
    %cst_431 = arith.constant 1.000000e-01 : f32
    %2675 = vector.broadcast %cst_431 : f32 to vector<128xf32>
    %2676 = arith.mulf %2675, %2619 : vector<128xf32>
    %2677 = arith.addf %2674, %2676 : vector<128xf32>
    %2678 = arith.mulf %2617, %2538 : vector<128xf32>
    %2679 = arith.addf %2678, %2617 : vector<128xf32>
    %2680 = arith.mulf %2619, %2541 : vector<128xf32>
    %2681 = arith.addf %2680, %2619 : vector<128xf32>
    %cst_432 = arith.constant 0.00999999977 : f32
    %2682 = vector.broadcast %cst_432 : f32 to vector<128xf32>
    %2683 = arith.addf %2681, %2682 : vector<128xf32>
    %cst_433 = arith.constant 1.000000e-01 : f32
    %2684 = vector.broadcast %cst_433 : f32 to vector<128xf32>
    %2685 = arith.addf %2626, %2684 : vector<128xf32>
    %cst_434 = arith.constant 1.000000e-01 : f32
    %2686 = vector.broadcast %cst_434 : f32 to vector<128xf32>
    %2687 = arith.addf %2647, %2686 : vector<128xf32>
    %2688 = arith.mulf %2685, %2687 : vector<128xf32>
    %2689 = arith.mulf %2631, %2640 : vector<128xf32>
    %2690 = arith.subf %2688, %2689 : vector<128xf32>
    %2691 = tpu.reciprocal %2690 : vector<128xf32> -> vector<128xf32>
    %2692 = arith.mulf %2687, %2691 : vector<128xf32>
    %cst_435 = arith.constant 0.000000e+00 : f32
    %2693 = vector.broadcast %cst_435 : f32 to vector<128xf32>
    %2694 = arith.subf %2693, %2631 : vector<128xf32>
    %2695 = arith.mulf %2694, %2691 : vector<128xf32>
    %cst_436 = arith.constant 0.000000e+00 : f32
    %2696 = vector.broadcast %cst_436 : f32 to vector<128xf32>
    %2697 = arith.subf %2696, %2640 : vector<128xf32>
    %2698 = arith.mulf %2697, %2691 : vector<128xf32>
    %2699 = arith.mulf %2685, %2691 : vector<128xf32>
    %2700 = arith.mulf %2626, %2692 : vector<128xf32>
    %cst_437 = arith.constant 0.000000e+00 : f32
    %2701 = vector.broadcast %cst_437 : f32 to vector<128xf32>
    %2702 = arith.addf %2701, %2700 : vector<128xf32>
    %2703 = arith.mulf %2631, %2698 : vector<128xf32>
    %2704 = arith.addf %2702, %2703 : vector<128xf32>
    %2705 = arith.mulf %2626, %2695 : vector<128xf32>
    %cst_438 = arith.constant 0.000000e+00 : f32
    %2706 = vector.broadcast %cst_438 : f32 to vector<128xf32>
    %2707 = arith.addf %2706, %2705 : vector<128xf32>
    %2708 = arith.mulf %2631, %2699 : vector<128xf32>
    %2709 = arith.addf %2707, %2708 : vector<128xf32>
    %2710 = arith.mulf %2640, %2692 : vector<128xf32>
    %cst_439 = arith.constant 0.000000e+00 : f32
    %2711 = vector.broadcast %cst_439 : f32 to vector<128xf32>
    %2712 = arith.addf %2711, %2710 : vector<128xf32>
    %2713 = arith.mulf %2647, %2698 : vector<128xf32>
    %2714 = arith.addf %2712, %2713 : vector<128xf32>
    %2715 = arith.mulf %2640, %2695 : vector<128xf32>
    %cst_440 = arith.constant 0.000000e+00 : f32
    %2716 = vector.broadcast %cst_440 : f32 to vector<128xf32>
    %2717 = arith.addf %2716, %2715 : vector<128xf32>
    %2718 = arith.mulf %2647, %2699 : vector<128xf32>
    %2719 = arith.addf %2717, %2718 : vector<128xf32>
    %2720 = arith.mulf %2656, %2692 : vector<128xf32>
    %cst_441 = arith.constant 0.000000e+00 : f32
    %2721 = vector.broadcast %cst_441 : f32 to vector<128xf32>
    %2722 = arith.addf %2721, %2720 : vector<128xf32>
    %2723 = arith.mulf %2661, %2698 : vector<128xf32>
    %2724 = arith.addf %2722, %2723 : vector<128xf32>
    %2725 = arith.mulf %2656, %2695 : vector<128xf32>
    %cst_442 = arith.constant 0.000000e+00 : f32
    %2726 = vector.broadcast %cst_442 : f32 to vector<128xf32>
    %2727 = arith.addf %2726, %2725 : vector<128xf32>
    %2728 = arith.mulf %2661, %2699 : vector<128xf32>
    %2729 = arith.addf %2727, %2728 : vector<128xf32>
    %2730 = arith.mulf %2672, %2692 : vector<128xf32>
    %cst_443 = arith.constant 0.000000e+00 : f32
    %2731 = vector.broadcast %cst_443 : f32 to vector<128xf32>
    %2732 = arith.addf %2731, %2730 : vector<128xf32>
    %2733 = arith.mulf %2677, %2698 : vector<128xf32>
    %2734 = arith.addf %2732, %2733 : vector<128xf32>
    %2735 = arith.mulf %2672, %2695 : vector<128xf32>
    %cst_444 = arith.constant 0.000000e+00 : f32
    %2736 = vector.broadcast %cst_444 : f32 to vector<128xf32>
    %2737 = arith.addf %2736, %2735 : vector<128xf32>
    %2738 = arith.mulf %2677, %2699 : vector<128xf32>
    %2739 = arith.addf %2737, %2738 : vector<128xf32>
    %2740 = arith.subf %2527, %2548 : vector<128xf32>
    %2741 = arith.subf %2529, %2555 : vector<128xf32>
    %2742 = arith.mulf %2704, %2740 : vector<128xf32>
    %cst_445 = arith.constant 0.000000e+00 : f32
    %2743 = vector.broadcast %cst_445 : f32 to vector<128xf32>
    %2744 = arith.addf %2743, %2742 : vector<128xf32>
    %2745 = arith.mulf %2709, %2741 : vector<128xf32>
    %2746 = arith.addf %2744, %2745 : vector<128xf32>
    %2747 = arith.addf %2548, %2746 : vector<128xf32>
    %2748 = arith.mulf %2714, %2740 : vector<128xf32>
    %cst_446 = arith.constant 0.000000e+00 : f32
    %2749 = vector.broadcast %cst_446 : f32 to vector<128xf32>
    %2750 = arith.addf %2749, %2748 : vector<128xf32>
    %2751 = arith.mulf %2719, %2741 : vector<128xf32>
    %2752 = arith.addf %2750, %2751 : vector<128xf32>
    %2753 = arith.addf %2555, %2752 : vector<128xf32>
    %2754 = arith.mulf %2724, %2740 : vector<128xf32>
    %cst_447 = arith.constant 0.000000e+00 : f32
    %2755 = vector.broadcast %cst_447 : f32 to vector<128xf32>
    %2756 = arith.addf %2755, %2754 : vector<128xf32>
    %2757 = arith.mulf %2729, %2741 : vector<128xf32>
    %2758 = arith.addf %2756, %2757 : vector<128xf32>
    %2759 = arith.addf %2559, %2758 : vector<128xf32>
    %2760 = arith.mulf %2734, %2740 : vector<128xf32>
    %cst_448 = arith.constant 0.000000e+00 : f32
    %2761 = vector.broadcast %cst_448 : f32 to vector<128xf32>
    %2762 = arith.addf %2761, %2760 : vector<128xf32>
    %2763 = arith.mulf %2739, %2741 : vector<128xf32>
    %2764 = arith.addf %2762, %2763 : vector<128xf32>
    %2765 = arith.addf %2563, %2764 : vector<128xf32>
    %2766 = arith.mulf %2704, %2626 : vector<128xf32>
    %cst_449 = arith.constant 0.000000e+00 : f32
    %2767 = vector.broadcast %cst_449 : f32 to vector<128xf32>
    %2768 = arith.addf %2767, %2766 : vector<128xf32>
    %2769 = arith.mulf %2709, %2640 : vector<128xf32>
    %2770 = arith.addf %2768, %2769 : vector<128xf32>
    %2771 = arith.subf %2626, %2770 : vector<128xf32>
    %2772 = arith.mulf %2704, %2631 : vector<128xf32>
    %cst_450 = arith.constant 0.000000e+00 : f32
    %2773 = vector.broadcast %cst_450 : f32 to vector<128xf32>
    %2774 = arith.addf %2773, %2772 : vector<128xf32>
    %2775 = arith.mulf %2709, %2647 : vector<128xf32>
    %2776 = arith.addf %2774, %2775 : vector<128xf32>
    %2777 = arith.subf %2631, %2776 : vector<128xf32>
    %2778 = arith.mulf %2704, %2633 : vector<128xf32>
    %cst_451 = arith.constant 0.000000e+00 : f32
    %2779 = vector.broadcast %cst_451 : f32 to vector<128xf32>
    %2780 = arith.addf %2779, %2778 : vector<128xf32>
    %2781 = arith.mulf %2709, %2649 : vector<128xf32>
    %2782 = arith.addf %2780, %2781 : vector<128xf32>
    %2783 = arith.subf %2633, %2782 : vector<128xf32>
    %2784 = arith.mulf %2704, %2635 : vector<128xf32>
    %cst_452 = arith.constant 0.000000e+00 : f32
    %2785 = vector.broadcast %cst_452 : f32 to vector<128xf32>
    %2786 = arith.addf %2785, %2784 : vector<128xf32>
    %2787 = arith.mulf %2709, %2651 : vector<128xf32>
    %2788 = arith.addf %2786, %2787 : vector<128xf32>
    %2789 = arith.subf %2635, %2788 : vector<128xf32>
    %2790 = arith.mulf %2714, %2626 : vector<128xf32>
    %cst_453 = arith.constant 0.000000e+00 : f32
    %2791 = vector.broadcast %cst_453 : f32 to vector<128xf32>
    %2792 = arith.addf %2791, %2790 : vector<128xf32>
    %2793 = arith.mulf %2719, %2640 : vector<128xf32>
    %2794 = arith.addf %2792, %2793 : vector<128xf32>
    %2795 = arith.subf %2640, %2794 : vector<128xf32>
    %2796 = arith.mulf %2714, %2631 : vector<128xf32>
    %cst_454 = arith.constant 0.000000e+00 : f32
    %2797 = vector.broadcast %cst_454 : f32 to vector<128xf32>
    %2798 = arith.addf %2797, %2796 : vector<128xf32>
    %2799 = arith.mulf %2719, %2647 : vector<128xf32>
    %2800 = arith.addf %2798, %2799 : vector<128xf32>
    %2801 = arith.subf %2647, %2800 : vector<128xf32>
    %2802 = arith.mulf %2714, %2633 : vector<128xf32>
    %cst_455 = arith.constant 0.000000e+00 : f32
    %2803 = vector.broadcast %cst_455 : f32 to vector<128xf32>
    %2804 = arith.addf %2803, %2802 : vector<128xf32>
    %2805 = arith.mulf %2719, %2649 : vector<128xf32>
    %2806 = arith.addf %2804, %2805 : vector<128xf32>
    %2807 = arith.subf %2649, %2806 : vector<128xf32>
    %2808 = arith.mulf %2714, %2635 : vector<128xf32>
    %cst_456 = arith.constant 0.000000e+00 : f32
    %2809 = vector.broadcast %cst_456 : f32 to vector<128xf32>
    %2810 = arith.addf %2809, %2808 : vector<128xf32>
    %2811 = arith.mulf %2719, %2651 : vector<128xf32>
    %2812 = arith.addf %2810, %2811 : vector<128xf32>
    %2813 = arith.subf %2651, %2812 : vector<128xf32>
    %2814 = arith.mulf %2724, %2626 : vector<128xf32>
    %cst_457 = arith.constant 0.000000e+00 : f32
    %2815 = vector.broadcast %cst_457 : f32 to vector<128xf32>
    %2816 = arith.addf %2815, %2814 : vector<128xf32>
    %2817 = arith.mulf %2729, %2640 : vector<128xf32>
    %2818 = arith.addf %2816, %2817 : vector<128xf32>
    %2819 = arith.subf %2656, %2818 : vector<128xf32>
    %2820 = arith.mulf %2724, %2631 : vector<128xf32>
    %cst_458 = arith.constant 0.000000e+00 : f32
    %2821 = vector.broadcast %cst_458 : f32 to vector<128xf32>
    %2822 = arith.addf %2821, %2820 : vector<128xf32>
    %2823 = arith.mulf %2729, %2647 : vector<128xf32>
    %2824 = arith.addf %2822, %2823 : vector<128xf32>
    %2825 = arith.subf %2661, %2824 : vector<128xf32>
    %2826 = arith.mulf %2724, %2633 : vector<128xf32>
    %cst_459 = arith.constant 0.000000e+00 : f32
    %2827 = vector.broadcast %cst_459 : f32 to vector<128xf32>
    %2828 = arith.addf %2827, %2826 : vector<128xf32>
    %2829 = arith.mulf %2729, %2649 : vector<128xf32>
    %2830 = arith.addf %2828, %2829 : vector<128xf32>
    %2831 = arith.subf %2665, %2830 : vector<128xf32>
    %2832 = arith.mulf %2724, %2635 : vector<128xf32>
    %cst_460 = arith.constant 0.000000e+00 : f32
    %2833 = vector.broadcast %cst_460 : f32 to vector<128xf32>
    %2834 = arith.addf %2833, %2832 : vector<128xf32>
    %2835 = arith.mulf %2729, %2651 : vector<128xf32>
    %2836 = arith.addf %2834, %2835 : vector<128xf32>
    %2837 = arith.subf %2667, %2836 : vector<128xf32>
    %2838 = arith.mulf %2734, %2626 : vector<128xf32>
    %cst_461 = arith.constant 0.000000e+00 : f32
    %2839 = vector.broadcast %cst_461 : f32 to vector<128xf32>
    %2840 = arith.addf %2839, %2838 : vector<128xf32>
    %2841 = arith.mulf %2739, %2640 : vector<128xf32>
    %2842 = arith.addf %2840, %2841 : vector<128xf32>
    %2843 = arith.subf %2672, %2842 : vector<128xf32>
    %2844 = arith.mulf %2734, %2631 : vector<128xf32>
    %cst_462 = arith.constant 0.000000e+00 : f32
    %2845 = vector.broadcast %cst_462 : f32 to vector<128xf32>
    %2846 = arith.addf %2845, %2844 : vector<128xf32>
    %2847 = arith.mulf %2739, %2647 : vector<128xf32>
    %2848 = arith.addf %2846, %2847 : vector<128xf32>
    %2849 = arith.subf %2677, %2848 : vector<128xf32>
    %2850 = arith.mulf %2734, %2633 : vector<128xf32>
    %cst_463 = arith.constant 0.000000e+00 : f32
    %2851 = vector.broadcast %cst_463 : f32 to vector<128xf32>
    %2852 = arith.addf %2851, %2850 : vector<128xf32>
    %2853 = arith.mulf %2739, %2649 : vector<128xf32>
    %2854 = arith.addf %2852, %2853 : vector<128xf32>
    %2855 = arith.subf %2679, %2854 : vector<128xf32>
    %2856 = arith.mulf %2734, %2635 : vector<128xf32>
    %cst_464 = arith.constant 0.000000e+00 : f32
    %2857 = vector.broadcast %cst_464 : f32 to vector<128xf32>
    %2858 = arith.addf %2857, %2856 : vector<128xf32>
    %2859 = arith.mulf %2739, %2651 : vector<128xf32>
    %2860 = arith.addf %2858, %2859 : vector<128xf32>
    %2861 = arith.subf %2683, %2860 : vector<128xf32>
    %2862 = vector.shape_cast %2747 : vector<128xf32> to vector<1x128xf32>
    %2863 = vector.shape_cast %2753 : vector<128xf32> to vector<1x128xf32>
    %2864 = vector.shape_cast %2759 : vector<128xf32> to vector<1x128xf32>
    %2865 = vector.shape_cast %2765 : vector<128xf32> to vector<1x128xf32>
    %2866 = tpu.concatenate %2862, %2863, %2864, %2865 in 0 : vector<1x128xf32>, vector<1x128xf32>, vector<1x128xf32>, vector<1x128xf32> -> vector<4x128xf32>
    %2867 = vector.shape_cast %2771 : vector<128xf32> to vector<1x128xf32>
    %2868 = vector.shape_cast %2777 : vector<128xf32> to vector<1x128xf32>
    %2869 = vector.shape_cast %2783 : vector<128xf32> to vector<1x128xf32>
    %2870 = vector.shape_cast %2789 : vector<128xf32> to vector<1x128xf32>
    %2871 = tpu.concatenate %2867, %2868, %2869, %2870 in 0 : vector<1x128xf32>, vector<1x128xf32>, vector<1x128xf32>, vector<1x128xf32> -> vector<4x128xf32>
    %2872 = vector.shape_cast %2795 : vector<128xf32> to vector<1x128xf32>
    %2873 = vector.shape_cast %2801 : vector<128xf32> to vector<1x128xf32>
    %2874 = vector.shape_cast %2807 : vector<128xf32> to vector<1x128xf32>
    %2875 = vector.shape_cast %2813 : vector<128xf32> to vector<1x128xf32>
    %2876 = tpu.concatenate %2872, %2873, %2874, %2875 in 0 : vector<1x128xf32>, vector<1x128xf32>, vector<1x128xf32>, vector<1x128xf32> -> vector<4x128xf32>
    %2877 = vector.shape_cast %2819 : vector<128xf32> to vector<1x128xf32>
    %2878 = vector.shape_cast %2825 : vector<128xf32> to vector<1x128xf32>
    %2879 = vector.shape_cast %2831 : vector<128xf32> to vector<1x128xf32>
    %2880 = vector.shape_cast %2837 : vector<128xf32> to vector<1x128xf32>
    %2881 = tpu.concatenate %2877, %2878, %2879, %2880 in 0 : vector<1x128xf32>, vector<1x128xf32>, vector<1x128xf32>, vector<1x128xf32> -> vector<4x128xf32>
    %2882 = vector.shape_cast %2843 : vector<128xf32> to vector<1x128xf32>
    %2883 = vector.shape_cast %2849 : vector<128xf32> to vector<1x128xf32>
    %2884 = vector.shape_cast %2855 : vector<128xf32> to vector<1x128xf32>
    %2885 = vector.shape_cast %2861 : vector<128xf32> to vector<1x128xf32>
    %2886 = tpu.concatenate %2882, %2883, %2884, %2885 in 0 : vector<1x128xf32>, vector<1x128xf32>, vector<1x128xf32>, vector<1x128xf32> -> vector<4x128xf32>
    %2887 = vector.shape_cast %2871 : vector<4x128xf32> to vector<1x4x128xf32>
    %2888 = vector.shape_cast %2876 : vector<4x128xf32> to vector<1x4x128xf32>
    %2889 = vector.shape_cast %2881 : vector<4x128xf32> to vector<1x4x128xf32>
    %2890 = vector.shape_cast %2886 : vector<4x128xf32> to vector<1x4x128xf32>
    %2891 = tpu.concatenate %2887, %2888, %2889, %2890 in 0 : vector<1x4x128xf32>, vector<1x4x128xf32>, vector<1x4x128xf32>, vector<1x4x128xf32> -> vector<4x4x128xf32>
    %2892 = arith.index_cast %c6_i32 : i32 to index
    %c0_465 = arith.constant 0 : index
    %c0_466 = arith.constant 0 : index
    %2893 = vector.load %arg5[%2892, %c0_465, %c0_466] : memref<8x4x128xf32, #tpu.memory_space<vmem>>, vector<1x4x128xf32>
    %2894 = vector.shape_cast %2893 : vector<1x4x128xf32> to vector<4x128xf32>
    %2895 = vector.shape_cast %2866 : vector<4x128xf32> to vector<1x4x128xf32>
    tpu.vector_store %arg5[%2892, %c0_465, %c0_466], %2895 {strides = array<i32>} : memref<8x4x128xf32, #tpu.memory_space<vmem>>, vector<1x4x128xf32>,
    %c7_i32 = arith.constant 7 : i32
    %2896 = arith.index_cast %c7_i32 : i32 to index
    %c0_467 = arith.constant 0 : index
    %c0_468 = arith.constant 0 : index
    %2897 = vector.load %arg2[%2896, %c0_467, %c0_468] : memref<8x2x128xf32, #tpu.memory_space<vmem>>, vector<1x2x128xf32>
    %2898 = vector.shape_cast %2897 : vector<1x2x128xf32> to vector<2x128xf32>
    %2899 = vector.extract_strided_slice %2866 {offsets = [0, 0], sizes = [1, 128], strides = [1, 1]} : vector<4x128xf32> to vector<1x128xf32>
    %2900 = vector.shape_cast %2899 : vector<1x128xf32> to vector<128xf32>
    %2901 = vector.extract_strided_slice %2866 {offsets = [1, 0], sizes = [1, 128], strides = [1, 1]} : vector<4x128xf32> to vector<1x128xf32>
    %2902 = vector.shape_cast %2901 : vector<1x128xf32> to vector<128xf32>
    %2903 = vector.extract_strided_slice %2866 {offsets = [2, 0], sizes = [1, 128], strides = [1, 1]} : vector<4x128xf32> to vector<1x128xf32>
    %2904 = vector.shape_cast %2903 : vector<1x128xf32> to vector<128xf32>
    %2905 = vector.extract_strided_slice %2866 {offsets = [3, 0], sizes = [1, 128], strides = [1, 1]} : vector<4x128xf32> to vector<1x128xf32>
    %2906 = vector.shape_cast %2905 : vector<1x128xf32> to vector<128xf32>
    %2907 = vector.extract_strided_slice %2891 {offsets = [0, 0, 0], sizes = [1, 1, 128], strides = [1, 1, 1]} : vector<4x4x128xf32> to vector<1x1x128xf32>
    %2908 = vector.shape_cast %2907 : vector<1x1x128xf32> to vector<128xf32>
    %2909 = vector.extract_strided_slice %2891 {offsets = [0, 1, 0], sizes = [1, 1, 128], strides = [1, 1, 1]} : vector<4x4x128xf32> to vector<1x1x128xf32>
    %2910 = vector.shape_cast %2909 : vector<1x1x128xf32> to vector<128xf32>
    %2911 = vector.extract_strided_slice %2891 {offsets = [0, 2, 0], sizes = [1, 1, 128], strides = [1, 1, 1]} : vector<4x4x128xf32> to vector<1x1x128xf32>
    %2912 = vector.shape_cast %2911 : vector<1x1x128xf32> to vector<128xf32>
    %2913 = vector.extract_strided_slice %2891 {offsets = [0, 3, 0], sizes = [1, 1, 128], strides = [1, 1, 1]} : vector<4x4x128xf32> to vector<1x1x128xf32>
    %2914 = vector.shape_cast %2913 : vector<1x1x128xf32> to vector<128xf32>
    %2915 = vector.extract_strided_slice %2891 {offsets = [1, 0, 0], sizes = [1, 1, 128], strides = [1, 1, 1]} : vector<4x4x128xf32> to vector<1x1x128xf32>
    %2916 = vector.shape_cast %2915 : vector<1x1x128xf32> to vector<128xf32>
    %2917 = vector.extract_strided_slice %2891 {offsets = [1, 1, 0], sizes = [1, 1, 128], strides = [1, 1, 1]} : vector<4x4x128xf32> to vector<1x1x128xf32>
    %2918 = vector.shape_cast %2917 : vector<1x1x128xf32> to vector<128xf32>
    %2919 = vector.extract_strided_slice %2891 {offsets = [1, 2, 0], sizes = [1, 1, 128], strides = [1, 1, 1]} : vector<4x4x128xf32> to vector<1x1x128xf32>
    %2920 = vector.shape_cast %2919 : vector<1x1x128xf32> to vector<128xf32>
    %2921 = vector.extract_strided_slice %2891 {offsets = [1, 3, 0], sizes = [1, 1, 128], strides = [1, 1, 1]} : vector<4x4x128xf32> to vector<1x1x128xf32>
    %2922 = vector.shape_cast %2921 : vector<1x1x128xf32> to vector<128xf32>
    %2923 = vector.extract_strided_slice %2891 {offsets = [2, 0, 0], sizes = [1, 1, 128], strides = [1, 1, 1]} : vector<4x4x128xf32> to vector<1x1x128xf32>
    %2924 = vector.shape_cast %2923 : vector<1x1x128xf32> to vector<128xf32>
    %2925 = vector.extract_strided_slice %2891 {offsets = [2, 1, 0], sizes = [1, 1, 128], strides = [1, 1, 1]} : vector<4x4x128xf32> to vector<1x1x128xf32>
    %2926 = vector.shape_cast %2925 : vector<1x1x128xf32> to vector<128xf32>
    %2927 = vector.extract_strided_slice %2891 {offsets = [2, 2, 0], sizes = [1, 1, 128], strides = [1, 1, 1]} : vector<4x4x128xf32> to vector<1x1x128xf32>
    %2928 = vector.shape_cast %2927 : vector<1x1x128xf32> to vector<128xf32>
    %2929 = vector.extract_strided_slice %2891 {offsets = [2, 3, 0], sizes = [1, 1, 128], strides = [1, 1, 1]} : vector<4x4x128xf32> to vector<1x1x128xf32>
    %2930 = vector.shape_cast %2929 : vector<1x1x128xf32> to vector<128xf32>
    %2931 = vector.extract_strided_slice %2891 {offsets = [3, 0, 0], sizes = [1, 1, 128], strides = [1, 1, 1]} : vector<4x4x128xf32> to vector<1x1x128xf32>
    %2932 = vector.shape_cast %2931 : vector<1x1x128xf32> to vector<128xf32>
    %2933 = vector.extract_strided_slice %2891 {offsets = [3, 1, 0], sizes = [1, 1, 128], strides = [1, 1, 1]} : vector<4x4x128xf32> to vector<1x1x128xf32>
    %2934 = vector.shape_cast %2933 : vector<1x1x128xf32> to vector<128xf32>
    %2935 = vector.extract_strided_slice %2891 {offsets = [3, 2, 0], sizes = [1, 1, 128], strides = [1, 1, 1]} : vector<4x4x128xf32> to vector<1x1x128xf32>
    %2936 = vector.shape_cast %2935 : vector<1x1x128xf32> to vector<128xf32>
    %2937 = vector.extract_strided_slice %2891 {offsets = [3, 3, 0], sizes = [1, 1, 128], strides = [1, 1, 1]} : vector<4x4x128xf32> to vector<1x1x128xf32>
    %2938 = vector.shape_cast %2937 : vector<1x1x128xf32> to vector<128xf32>
    %2939 = vector.extract_strided_slice %2898 {offsets = [0, 0], sizes = [1, 128], strides = [1, 1]} : vector<2x128xf32> to vector<1x128xf32>
    %2940 = vector.shape_cast %2939 : vector<1x128xf32> to vector<128xf32>
    %2941 = vector.extract_strided_slice %2898 {offsets = [1, 0], sizes = [1, 128], strides = [1, 1]} : vector<2x128xf32> to vector<1x128xf32>
    %2942 = vector.shape_cast %2941 : vector<1x128xf32> to vector<128xf32>
    %2943 = math.cos %2900 : vector<128xf32>
    %cst_469 = arith.constant 1.000000e-01 : f32
    %2944 = vector.broadcast %cst_469 : f32 to vector<128xf32>
    %2945 = arith.mulf %2944, %2943 : vector<128xf32>
    %2946 = math.cos %2902 : vector<128xf32>
    %cst_470 = arith.constant 1.000000e-01 : f32
    %2947 = vector.broadcast %cst_470 : f32 to vector<128xf32>
    %2948 = arith.mulf %2947, %2946 : vector<128xf32>
    %2949 = math.cos %2904 : vector<128xf32>
    %cst_471 = arith.constant 1.000000e-01 : f32
    %2950 = vector.broadcast %cst_471 : f32 to vector<128xf32>
    %2951 = arith.mulf %2950, %2949 : vector<128xf32>
    %2952 = math.cos %2906 : vector<128xf32>
    %cst_472 = arith.constant 1.000000e-01 : f32
    %2953 = vector.broadcast %cst_472 : f32 to vector<128xf32>
    %2954 = arith.mulf %2953, %2952 : vector<128xf32>
    %2955 = math.sin %2900 : vector<128xf32>
    %cst_473 = arith.constant 1.000000e-01 : f32
    %2956 = vector.broadcast %cst_473 : f32 to vector<128xf32>
    %2957 = arith.mulf %2956, %2955 : vector<128xf32>
    %2958 = arith.addf %2957, %2900 : vector<128xf32>
    %cst_474 = arith.constant 1.000000e-01 : f32
    %2959 = vector.broadcast %cst_474 : f32 to vector<128xf32>
    %2960 = arith.mulf %2959, %2904 : vector<128xf32>
    %2961 = arith.addf %2958, %2960 : vector<128xf32>
    %2962 = math.sin %2902 : vector<128xf32>
    %cst_475 = arith.constant 1.000000e-01 : f32
    %2963 = vector.broadcast %cst_475 : f32 to vector<128xf32>
    %2964 = arith.mulf %2963, %2962 : vector<128xf32>
    %2965 = arith.addf %2964, %2902 : vector<128xf32>
    %cst_476 = arith.constant 1.000000e-01 : f32
    %2966 = vector.broadcast %cst_476 : f32 to vector<128xf32>
    %2967 = arith.mulf %2966, %2906 : vector<128xf32>
    %2968 = arith.addf %2965, %2967 : vector<128xf32>
    %2969 = math.sin %2904 : vector<128xf32>
    %cst_477 = arith.constant 1.000000e-01 : f32
    %2970 = vector.broadcast %cst_477 : f32 to vector<128xf32>
    %2971 = arith.mulf %2970, %2969 : vector<128xf32>
    %2972 = arith.addf %2971, %2904 : vector<128xf32>
    %2973 = math.sin %2906 : vector<128xf32>
    %cst_478 = arith.constant 1.000000e-01 : f32
    %2974 = vector.broadcast %cst_478 : f32 to vector<128xf32>
    %2975 = arith.mulf %2974, %2973 : vector<128xf32>
    %2976 = arith.addf %2975, %2906 : vector<128xf32>
    %2977 = arith.mulf %2945, %2908 : vector<128xf32>
    %2978 = arith.addf %2977, %2908 : vector<128xf32>
    %cst_479 = arith.constant 1.000000e-01 : f32
    %2979 = vector.broadcast %cst_479 : f32 to vector<128xf32>
    %2980 = arith.mulf %2979, %2924 : vector<128xf32>
    %2981 = arith.addf %2978, %2980 : vector<128xf32>
    %2982 = arith.mulf %2945, %2910 : vector<128xf32>
    %2983 = arith.addf %2982, %2910 : vector<128xf32>
    %cst_480 = arith.constant 1.000000e-01 : f32
    %2984 = vector.broadcast %cst_480 : f32 to vector<128xf32>
    %2985 = arith.mulf %2984, %2926 : vector<128xf32>
    %2986 = arith.addf %2983, %2985 : vector<128xf32>
    %2987 = arith.mulf %2945, %2912 : vector<128xf32>
    %2988 = arith.addf %2987, %2912 : vector<128xf32>
    %cst_481 = arith.constant 1.000000e-01 : f32
    %2989 = vector.broadcast %cst_481 : f32 to vector<128xf32>
    %2990 = arith.mulf %2989, %2928 : vector<128xf32>
    %2991 = arith.addf %2988, %2990 : vector<128xf32>
    %2992 = arith.mulf %2945, %2914 : vector<128xf32>
    %2993 = arith.addf %2992, %2914 : vector<128xf32>
    %cst_482 = arith.constant 1.000000e-01 : f32
    %2994 = vector.broadcast %cst_482 : f32 to vector<128xf32>
    %2995 = arith.mulf %2994, %2930 : vector<128xf32>
    %2996 = arith.addf %2993, %2995 : vector<128xf32>
    %2997 = arith.mulf %2948, %2916 : vector<128xf32>
    %2998 = arith.addf %2997, %2916 : vector<128xf32>
    %cst_483 = arith.constant 1.000000e-01 : f32
    %2999 = vector.broadcast %cst_483 : f32 to vector<128xf32>
    %3000 = arith.mulf %2999, %2932 : vector<128xf32>
    %3001 = arith.addf %2998, %3000 : vector<128xf32>
    %3002 = arith.mulf %2948, %2918 : vector<128xf32>
    %3003 = arith.addf %3002, %2918 : vector<128xf32>
    %cst_484 = arith.constant 1.000000e-01 : f32
    %3004 = vector.broadcast %cst_484 : f32 to vector<128xf32>
    %3005 = arith.mulf %3004, %2934 : vector<128xf32>
    %3006 = arith.addf %3003, %3005 : vector<128xf32>
    %3007 = arith.mulf %2948, %2920 : vector<128xf32>
    %3008 = arith.addf %3007, %2920 : vector<128xf32>
    %cst_485 = arith.constant 1.000000e-01 : f32
    %3009 = vector.broadcast %cst_485 : f32 to vector<128xf32>
    %3010 = arith.mulf %3009, %2936 : vector<128xf32>
    %3011 = arith.addf %3008, %3010 : vector<128xf32>
    %3012 = arith.mulf %2948, %2922 : vector<128xf32>
    %3013 = arith.addf %3012, %2922 : vector<128xf32>
    %cst_486 = arith.constant 1.000000e-01 : f32
    %3014 = vector.broadcast %cst_486 : f32 to vector<128xf32>
    %3015 = arith.mulf %3014, %2938 : vector<128xf32>
    %3016 = arith.addf %3013, %3015 : vector<128xf32>
    %3017 = arith.mulf %2951, %2924 : vector<128xf32>
    %3018 = arith.addf %3017, %2924 : vector<128xf32>
    %3019 = arith.mulf %2951, %2926 : vector<128xf32>
    %3020 = arith.addf %3019, %2926 : vector<128xf32>
    %3021 = arith.mulf %2951, %2928 : vector<128xf32>
    %3022 = arith.addf %3021, %2928 : vector<128xf32>
    %3023 = arith.mulf %2951, %2930 : vector<128xf32>
    %3024 = arith.addf %3023, %2930 : vector<128xf32>
    %3025 = arith.mulf %2954, %2932 : vector<128xf32>
    %3026 = arith.addf %3025, %2932 : vector<128xf32>
    %3027 = arith.mulf %2954, %2934 : vector<128xf32>
    %3028 = arith.addf %3027, %2934 : vector<128xf32>
    %3029 = arith.mulf %2954, %2936 : vector<128xf32>
    %3030 = arith.addf %3029, %2936 : vector<128xf32>
    %3031 = arith.mulf %2954, %2938 : vector<128xf32>
    %3032 = arith.addf %3031, %2938 : vector<128xf32>
    %3033 = arith.mulf %2981, %2945 : vector<128xf32>
    %3034 = arith.addf %3033, %2981 : vector<128xf32>
    %cst_487 = arith.constant 1.000000e-01 : f32
    %3035 = vector.broadcast %cst_487 : f32 to vector<128xf32>
    %3036 = arith.mulf %3035, %2991 : vector<128xf32>
    %3037 = arith.addf %3034, %3036 : vector<128xf32>
    %cst_488 = arith.constant 0.00999999977 : f32
    %3038 = vector.broadcast %cst_488 : f32 to vector<128xf32>
    %3039 = arith.addf %3037, %3038 : vector<128xf32>
    %3040 = arith.mulf %2986, %2948 : vector<128xf32>
    %3041 = arith.addf %3040, %2986 : vector<128xf32>
    %cst_489 = arith.constant 1.000000e-01 : f32
    %3042 = vector.broadcast %cst_489 : f32 to vector<128xf32>
    %3043 = arith.mulf %3042, %2996 : vector<128xf32>
    %3044 = arith.addf %3041, %3043 : vector<128xf32>
    %3045 = arith.mulf %2991, %2951 : vector<128xf32>
    %3046 = arith.addf %3045, %2991 : vector<128xf32>
    %3047 = arith.mulf %2996, %2954 : vector<128xf32>
    %3048 = arith.addf %3047, %2996 : vector<128xf32>
    %3049 = arith.mulf %3001, %2945 : vector<128xf32>
    %3050 = arith.addf %3049, %3001 : vector<128xf32>
    %cst_490 = arith.constant 1.000000e-01 : f32
    %3051 = vector.broadcast %cst_490 : f32 to vector<128xf32>
    %3052 = arith.mulf %3051, %3011 : vector<128xf32>
    %3053 = arith.addf %3050, %3052 : vector<128xf32>
    %3054 = arith.mulf %3006, %2948 : vector<128xf32>
    %3055 = arith.addf %3054, %3006 : vector<128xf32>
    %cst_491 = arith.constant 1.000000e-01 : f32
    %3056 = vector.broadcast %cst_491 : f32 to vector<128xf32>
    %3057 = arith.mulf %3056, %3016 : vector<128xf32>
    %3058 = arith.addf %3055, %3057 : vector<128xf32>
    %cst_492 = arith.constant 0.00999999977 : f32
    %3059 = vector.broadcast %cst_492 : f32 to vector<128xf32>
    %3060 = arith.addf %3058, %3059 : vector<128xf32>
    %3061 = arith.mulf %3011, %2951 : vector<128xf32>
    %3062 = arith.addf %3061, %3011 : vector<128xf32>
    %3063 = arith.mulf %3016, %2954 : vector<128xf32>
    %3064 = arith.addf %3063, %3016 : vector<128xf32>
    %3065 = arith.mulf %3018, %2945 : vector<128xf32>
    %3066 = arith.addf %3065, %3018 : vector<128xf32>
    %cst_493 = arith.constant 1.000000e-01 : f32
    %3067 = vector.broadcast %cst_493 : f32 to vector<128xf32>
    %3068 = arith.mulf %3067, %3022 : vector<128xf32>
    %3069 = arith.addf %3066, %3068 : vector<128xf32>
    %3070 = arith.mulf %3020, %2948 : vector<128xf32>
    %3071 = arith.addf %3070, %3020 : vector<128xf32>
    %cst_494 = arith.constant 1.000000e-01 : f32
    %3072 = vector.broadcast %cst_494 : f32 to vector<128xf32>
    %3073 = arith.mulf %3072, %3024 : vector<128xf32>
    %3074 = arith.addf %3071, %3073 : vector<128xf32>
    %3075 = arith.mulf %3022, %2951 : vector<128xf32>
    %3076 = arith.addf %3075, %3022 : vector<128xf32>
    %cst_495 = arith.constant 0.00999999977 : f32
    %3077 = vector.broadcast %cst_495 : f32 to vector<128xf32>
    %3078 = arith.addf %3076, %3077 : vector<128xf32>
    %3079 = arith.mulf %3024, %2954 : vector<128xf32>
    %3080 = arith.addf %3079, %3024 : vector<128xf32>
    %3081 = arith.mulf %3026, %2945 : vector<128xf32>
    %3082 = arith.addf %3081, %3026 : vector<128xf32>
    %cst_496 = arith.constant 1.000000e-01 : f32
    %3083 = vector.broadcast %cst_496 : f32 to vector<128xf32>
    %3084 = arith.mulf %3083, %3030 : vector<128xf32>
    %3085 = arith.addf %3082, %3084 : vector<128xf32>
    %3086 = arith.mulf %3028, %2948 : vector<128xf32>
    %3087 = arith.addf %3086, %3028 : vector<128xf32>
    %cst_497 = arith.constant 1.000000e-01 : f32
    %3088 = vector.broadcast %cst_497 : f32 to vector<128xf32>
    %3089 = arith.mulf %3088, %3032 : vector<128xf32>
    %3090 = arith.addf %3087, %3089 : vector<128xf32>
    %3091 = arith.mulf %3030, %2951 : vector<128xf32>
    %3092 = arith.addf %3091, %3030 : vector<128xf32>
    %3093 = arith.mulf %3032, %2954 : vector<128xf32>
    %3094 = arith.addf %3093, %3032 : vector<128xf32>
    %cst_498 = arith.constant 0.00999999977 : f32
    %3095 = vector.broadcast %cst_498 : f32 to vector<128xf32>
    %3096 = arith.addf %3094, %3095 : vector<128xf32>
    %cst_499 = arith.constant 1.000000e-01 : f32
    %3097 = vector.broadcast %cst_499 : f32 to vector<128xf32>
    %3098 = arith.addf %3039, %3097 : vector<128xf32>
    %cst_500 = arith.constant 1.000000e-01 : f32
    %3099 = vector.broadcast %cst_500 : f32 to vector<128xf32>
    %3100 = arith.addf %3060, %3099 : vector<128xf32>
    %3101 = arith.mulf %3098, %3100 : vector<128xf32>
    %3102 = arith.mulf %3044, %3053 : vector<128xf32>
    %3103 = arith.subf %3101, %3102 : vector<128xf32>
    %3104 = tpu.reciprocal %3103 : vector<128xf32> -> vector<128xf32>
    %3105 = arith.mulf %3100, %3104 : vector<128xf32>
    %cst_501 = arith.constant 0.000000e+00 : f32
    %3106 = vector.broadcast %cst_501 : f32 to vector<128xf32>
    %3107 = arith.subf %3106, %3044 : vector<128xf32>
    %3108 = arith.mulf %3107, %3104 : vector<128xf32>
    %cst_502 = arith.constant 0.000000e+00 : f32
    %3109 = vector.broadcast %cst_502 : f32 to vector<128xf32>
    %3110 = arith.subf %3109, %3053 : vector<128xf32>
    %3111 = arith.mulf %3110, %3104 : vector<128xf32>
    %3112 = arith.mulf %3098, %3104 : vector<128xf32>
    %3113 = arith.mulf %3039, %3105 : vector<128xf32>
    %cst_503 = arith.constant 0.000000e+00 : f32
    %3114 = vector.broadcast %cst_503 : f32 to vector<128xf32>
    %3115 = arith.addf %3114, %3113 : vector<128xf32>
    %3116 = arith.mulf %3044, %3111 : vector<128xf32>
    %3117 = arith.addf %3115, %3116 : vector<128xf32>
    %3118 = arith.mulf %3039, %3108 : vector<128xf32>
    %cst_504 = arith.constant 0.000000e+00 : f32
    %3119 = vector.broadcast %cst_504 : f32 to vector<128xf32>
    %3120 = arith.addf %3119, %3118 : vector<128xf32>
    %3121 = arith.mulf %3044, %3112 : vector<128xf32>
    %3122 = arith.addf %3120, %3121 : vector<128xf32>
    %3123 = arith.mulf %3053, %3105 : vector<128xf32>
    %cst_505 = arith.constant 0.000000e+00 : f32
    %3124 = vector.broadcast %cst_505 : f32 to vector<128xf32>
    %3125 = arith.addf %3124, %3123 : vector<128xf32>
    %3126 = arith.mulf %3060, %3111 : vector<128xf32>
    %3127 = arith.addf %3125, %3126 : vector<128xf32>
    %3128 = arith.mulf %3053, %3108 : vector<128xf32>
    %cst_506 = arith.constant 0.000000e+00 : f32
    %3129 = vector.broadcast %cst_506 : f32 to vector<128xf32>
    %3130 = arith.addf %3129, %3128 : vector<128xf32>
    %3131 = arith.mulf %3060, %3112 : vector<128xf32>
    %3132 = arith.addf %3130, %3131 : vector<128xf32>
    %3133 = arith.mulf %3069, %3105 : vector<128xf32>
    %cst_507 = arith.constant 0.000000e+00 : f32
    %3134 = vector.broadcast %cst_507 : f32 to vector<128xf32>
    %3135 = arith.addf %3134, %3133 : vector<128xf32>
    %3136 = arith.mulf %3074, %3111 : vector<128xf32>
    %3137 = arith.addf %3135, %3136 : vector<128xf32>
    %3138 = arith.mulf %3069, %3108 : vector<128xf32>
    %cst_508 = arith.constant 0.000000e+00 : f32
    %3139 = vector.broadcast %cst_508 : f32 to vector<128xf32>
    %3140 = arith.addf %3139, %3138 : vector<128xf32>
    %3141 = arith.mulf %3074, %3112 : vector<128xf32>
    %3142 = arith.addf %3140, %3141 : vector<128xf32>
    %3143 = arith.mulf %3085, %3105 : vector<128xf32>
    %cst_509 = arith.constant 0.000000e+00 : f32
    %3144 = vector.broadcast %cst_509 : f32 to vector<128xf32>
    %3145 = arith.addf %3144, %3143 : vector<128xf32>
    %3146 = arith.mulf %3090, %3111 : vector<128xf32>
    %3147 = arith.addf %3145, %3146 : vector<128xf32>
    %3148 = arith.mulf %3085, %3108 : vector<128xf32>
    %cst_510 = arith.constant 0.000000e+00 : f32
    %3149 = vector.broadcast %cst_510 : f32 to vector<128xf32>
    %3150 = arith.addf %3149, %3148 : vector<128xf32>
    %3151 = arith.mulf %3090, %3112 : vector<128xf32>
    %3152 = arith.addf %3150, %3151 : vector<128xf32>
    %3153 = arith.subf %2940, %2961 : vector<128xf32>
    %3154 = arith.subf %2942, %2968 : vector<128xf32>
    %3155 = arith.mulf %3117, %3153 : vector<128xf32>
    %cst_511 = arith.constant 0.000000e+00 : f32
    %3156 = vector.broadcast %cst_511 : f32 to vector<128xf32>
    %3157 = arith.addf %3156, %3155 : vector<128xf32>
    %3158 = arith.mulf %3122, %3154 : vector<128xf32>
    %3159 = arith.addf %3157, %3158 : vector<128xf32>
    %3160 = arith.addf %2961, %3159 : vector<128xf32>
    %3161 = arith.mulf %3127, %3153 : vector<128xf32>
    %cst_512 = arith.constant 0.000000e+00 : f32
    %3162 = vector.broadcast %cst_512 : f32 to vector<128xf32>
    %3163 = arith.addf %3162, %3161 : vector<128xf32>
    %3164 = arith.mulf %3132, %3154 : vector<128xf32>
    %3165 = arith.addf %3163, %3164 : vector<128xf32>
    %3166 = arith.addf %2968, %3165 : vector<128xf32>
    %3167 = arith.mulf %3137, %3153 : vector<128xf32>
    %cst_513 = arith.constant 0.000000e+00 : f32
    %3168 = vector.broadcast %cst_513 : f32 to vector<128xf32>
    %3169 = arith.addf %3168, %3167 : vector<128xf32>
    %3170 = arith.mulf %3142, %3154 : vector<128xf32>
    %3171 = arith.addf %3169, %3170 : vector<128xf32>
    %3172 = arith.addf %2972, %3171 : vector<128xf32>
    %3173 = arith.mulf %3147, %3153 : vector<128xf32>
    %cst_514 = arith.constant 0.000000e+00 : f32
    %3174 = vector.broadcast %cst_514 : f32 to vector<128xf32>
    %3175 = arith.addf %3174, %3173 : vector<128xf32>
    %3176 = arith.mulf %3152, %3154 : vector<128xf32>
    %3177 = arith.addf %3175, %3176 : vector<128xf32>
    %3178 = arith.addf %2976, %3177 : vector<128xf32>
    %3179 = arith.mulf %3117, %3039 : vector<128xf32>
    %cst_515 = arith.constant 0.000000e+00 : f32
    %3180 = vector.broadcast %cst_515 : f32 to vector<128xf32>
    %3181 = arith.addf %3180, %3179 : vector<128xf32>
    %3182 = arith.mulf %3122, %3053 : vector<128xf32>
    %3183 = arith.addf %3181, %3182 : vector<128xf32>
    %3184 = arith.subf %3039, %3183 : vector<128xf32>
    %3185 = arith.mulf %3117, %3044 : vector<128xf32>
    %cst_516 = arith.constant 0.000000e+00 : f32
    %3186 = vector.broadcast %cst_516 : f32 to vector<128xf32>
    %3187 = arith.addf %3186, %3185 : vector<128xf32>
    %3188 = arith.mulf %3122, %3060 : vector<128xf32>
    %3189 = arith.addf %3187, %3188 : vector<128xf32>
    %3190 = arith.subf %3044, %3189 : vector<128xf32>
    %3191 = arith.mulf %3117, %3046 : vector<128xf32>
    %cst_517 = arith.constant 0.000000e+00 : f32
    %3192 = vector.broadcast %cst_517 : f32 to vector<128xf32>
    %3193 = arith.addf %3192, %3191 : vector<128xf32>
    %3194 = arith.mulf %3122, %3062 : vector<128xf32>
    %3195 = arith.addf %3193, %3194 : vector<128xf32>
    %3196 = arith.subf %3046, %3195 : vector<128xf32>
    %3197 = arith.mulf %3117, %3048 : vector<128xf32>
    %cst_518 = arith.constant 0.000000e+00 : f32
    %3198 = vector.broadcast %cst_518 : f32 to vector<128xf32>
    %3199 = arith.addf %3198, %3197 : vector<128xf32>
    %3200 = arith.mulf %3122, %3064 : vector<128xf32>
    %3201 = arith.addf %3199, %3200 : vector<128xf32>
    %3202 = arith.subf %3048, %3201 : vector<128xf32>
    %3203 = arith.mulf %3127, %3039 : vector<128xf32>
    %cst_519 = arith.constant 0.000000e+00 : f32
    %3204 = vector.broadcast %cst_519 : f32 to vector<128xf32>
    %3205 = arith.addf %3204, %3203 : vector<128xf32>
    %3206 = arith.mulf %3132, %3053 : vector<128xf32>
    %3207 = arith.addf %3205, %3206 : vector<128xf32>
    %3208 = arith.subf %3053, %3207 : vector<128xf32>
    %3209 = arith.mulf %3127, %3044 : vector<128xf32>
    %cst_520 = arith.constant 0.000000e+00 : f32
    %3210 = vector.broadcast %cst_520 : f32 to vector<128xf32>
    %3211 = arith.addf %3210, %3209 : vector<128xf32>
    %3212 = arith.mulf %3132, %3060 : vector<128xf32>
    %3213 = arith.addf %3211, %3212 : vector<128xf32>
    %3214 = arith.subf %3060, %3213 : vector<128xf32>
    %3215 = arith.mulf %3127, %3046 : vector<128xf32>
    %cst_521 = arith.constant 0.000000e+00 : f32
    %3216 = vector.broadcast %cst_521 : f32 to vector<128xf32>
    %3217 = arith.addf %3216, %3215 : vector<128xf32>
    %3218 = arith.mulf %3132, %3062 : vector<128xf32>
    %3219 = arith.addf %3217, %3218 : vector<128xf32>
    %3220 = arith.subf %3062, %3219 : vector<128xf32>
    %3221 = arith.mulf %3127, %3048 : vector<128xf32>
    %cst_522 = arith.constant 0.000000e+00 : f32
    %3222 = vector.broadcast %cst_522 : f32 to vector<128xf32>
    %3223 = arith.addf %3222, %3221 : vector<128xf32>
    %3224 = arith.mulf %3132, %3064 : vector<128xf32>
    %3225 = arith.addf %3223, %3224 : vector<128xf32>
    %3226 = arith.subf %3064, %3225 : vector<128xf32>
    %3227 = arith.mulf %3137, %3039 : vector<128xf32>
    %cst_523 = arith.constant 0.000000e+00 : f32
    %3228 = vector.broadcast %cst_523 : f32 to vector<128xf32>
    %3229 = arith.addf %3228, %3227 : vector<128xf32>
    %3230 = arith.mulf %3142, %3053 : vector<128xf32>
    %3231 = arith.addf %3229, %3230 : vector<128xf32>
    %3232 = arith.subf %3069, %3231 : vector<128xf32>
    %3233 = arith.mulf %3137, %3044 : vector<128xf32>
    %cst_524 = arith.constant 0.000000e+00 : f32
    %3234 = vector.broadcast %cst_524 : f32 to vector<128xf32>
    %3235 = arith.addf %3234, %3233 : vector<128xf32>
    %3236 = arith.mulf %3142, %3060 : vector<128xf32>
    %3237 = arith.addf %3235, %3236 : vector<128xf32>
    %3238 = arith.subf %3074, %3237 : vector<128xf32>
    %3239 = arith.mulf %3137, %3046 : vector<128xf32>
    %cst_525 = arith.constant 0.000000e+00 : f32
    %3240 = vector.broadcast %cst_525 : f32 to vector<128xf32>
    %3241 = arith.addf %3240, %3239 : vector<128xf32>
    %3242 = arith.mulf %3142, %3062 : vector<128xf32>
    %3243 = arith.addf %3241, %3242 : vector<128xf32>
    %3244 = arith.subf %3078, %3243 : vector<128xf32>
    %3245 = arith.mulf %3137, %3048 : vector<128xf32>
    %cst_526 = arith.constant 0.000000e+00 : f32
    %3246 = vector.broadcast %cst_526 : f32 to vector<128xf32>
    %3247 = arith.addf %3246, %3245 : vector<128xf32>
    %3248 = arith.mulf %3142, %3064 : vector<128xf32>
    %3249 = arith.addf %3247, %3248 : vector<128xf32>
    %3250 = arith.subf %3080, %3249 : vector<128xf32>
    %3251 = arith.mulf %3147, %3039 : vector<128xf32>
    %cst_527 = arith.constant 0.000000e+00 : f32
    %3252 = vector.broadcast %cst_527 : f32 to vector<128xf32>
    %3253 = arith.addf %3252, %3251 : vector<128xf32>
    %3254 = arith.mulf %3152, %3053 : vector<128xf32>
    %3255 = arith.addf %3253, %3254 : vector<128xf32>
    %3256 = arith.subf %3085, %3255 : vector<128xf32>
    %3257 = arith.mulf %3147, %3044 : vector<128xf32>
    %cst_528 = arith.constant 0.000000e+00 : f32
    %3258 = vector.broadcast %cst_528 : f32 to vector<128xf32>
    %3259 = arith.addf %3258, %3257 : vector<128xf32>
    %3260 = arith.mulf %3152, %3060 : vector<128xf32>
    %3261 = arith.addf %3259, %3260 : vector<128xf32>
    %3262 = arith.subf %3090, %3261 : vector<128xf32>
    %3263 = arith.mulf %3147, %3046 : vector<128xf32>
    %cst_529 = arith.constant 0.000000e+00 : f32
    %3264 = vector.broadcast %cst_529 : f32 to vector<128xf32>
    %3265 = arith.addf %3264, %3263 : vector<128xf32>
    %3266 = arith.mulf %3152, %3062 : vector<128xf32>
    %3267 = arith.addf %3265, %3266 : vector<128xf32>
    %3268 = arith.subf %3092, %3267 : vector<128xf32>
    %3269 = arith.mulf %3147, %3048 : vector<128xf32>
    %cst_530 = arith.constant 0.000000e+00 : f32
    %3270 = vector.broadcast %cst_530 : f32 to vector<128xf32>
    %3271 = arith.addf %3270, %3269 : vector<128xf32>
    %3272 = arith.mulf %3152, %3064 : vector<128xf32>
    %3273 = arith.addf %3271, %3272 : vector<128xf32>
    %3274 = arith.subf %3096, %3273 : vector<128xf32>
    %3275 = vector.shape_cast %3160 : vector<128xf32> to vector<1x128xf32>
    %3276 = vector.shape_cast %3166 : vector<128xf32> to vector<1x128xf32>
    %3277 = vector.shape_cast %3172 : vector<128xf32> to vector<1x128xf32>
    %3278 = vector.shape_cast %3178 : vector<128xf32> to vector<1x128xf32>
    %3279 = tpu.concatenate %3275, %3276, %3277, %3278 in 0 : vector<1x128xf32>, vector<1x128xf32>, vector<1x128xf32>, vector<1x128xf32> -> vector<4x128xf32>
    %3280 = vector.shape_cast %3184 : vector<128xf32> to vector<1x128xf32>
    %3281 = vector.shape_cast %3190 : vector<128xf32> to vector<1x128xf32>
    %3282 = vector.shape_cast %3196 : vector<128xf32> to vector<1x128xf32>
    %3283 = vector.shape_cast %3202 : vector<128xf32> to vector<1x128xf32>
    %3284 = tpu.concatenate %3280, %3281, %3282, %3283 in 0 : vector<1x128xf32>, vector<1x128xf32>, vector<1x128xf32>, vector<1x128xf32> -> vector<4x128xf32>
    %3285 = vector.shape_cast %3208 : vector<128xf32> to vector<1x128xf32>
    %3286 = vector.shape_cast %3214 : vector<128xf32> to vector<1x128xf32>
    %3287 = vector.shape_cast %3220 : vector<128xf32> to vector<1x128xf32>
    %3288 = vector.shape_cast %3226 : vector<128xf32> to vector<1x128xf32>
    %3289 = tpu.concatenate %3285, %3286, %3287, %3288 in 0 : vector<1x128xf32>, vector<1x128xf32>, vector<1x128xf32>, vector<1x128xf32> -> vector<4x128xf32>
    %3290 = vector.shape_cast %3232 : vector<128xf32> to vector<1x128xf32>
    %3291 = vector.shape_cast %3238 : vector<128xf32> to vector<1x128xf32>
    %3292 = vector.shape_cast %3244 : vector<128xf32> to vector<1x128xf32>
    %3293 = vector.shape_cast %3250 : vector<128xf32> to vector<1x128xf32>
    %3294 = tpu.concatenate %3290, %3291, %3292, %3293 in 0 : vector<1x128xf32>, vector<1x128xf32>, vector<1x128xf32>, vector<1x128xf32> -> vector<4x128xf32>
    %3295 = vector.shape_cast %3256 : vector<128xf32> to vector<1x128xf32>
    %3296 = vector.shape_cast %3262 : vector<128xf32> to vector<1x128xf32>
    %3297 = vector.shape_cast %3268 : vector<128xf32> to vector<1x128xf32>
    %3298 = vector.shape_cast %3274 : vector<128xf32> to vector<1x128xf32>
    %3299 = tpu.concatenate %3295, %3296, %3297, %3298 in 0 : vector<1x128xf32>, vector<1x128xf32>, vector<1x128xf32>, vector<1x128xf32> -> vector<4x128xf32>
    %3300 = vector.shape_cast %3284 : vector<4x128xf32> to vector<1x4x128xf32>
    %3301 = vector.shape_cast %3289 : vector<4x128xf32> to vector<1x4x128xf32>
    %3302 = vector.shape_cast %3294 : vector<4x128xf32> to vector<1x4x128xf32>
    %3303 = vector.shape_cast %3299 : vector<4x128xf32> to vector<1x4x128xf32>
    %3304 = tpu.concatenate %3300, %3301, %3302, %3303 in 0 : vector<1x4x128xf32>, vector<1x4x128xf32>, vector<1x4x128xf32>, vector<1x4x128xf32> -> vector<4x4x128xf32>
    %3305 = arith.index_cast %c7_i32 : i32 to index
    %c0_531 = arith.constant 0 : index
    %c0_532 = arith.constant 0 : index
    %3306 = vector.load %arg5[%3305, %c0_531, %c0_532] : memref<8x4x128xf32, #tpu.memory_space<vmem>>, vector<1x4x128xf32>
    %3307 = vector.shape_cast %3306 : vector<1x4x128xf32> to vector<4x128xf32>
    %3308 = vector.shape_cast %3279 : vector<4x128xf32> to vector<1x4x128xf32>
    tpu.vector_store %arg5[%3305, %c0_531, %c0_532], %3308 {strides = array<i32>} : memref<8x4x128xf32, #tpu.memory_space<vmem>>, vector<1x4x128xf32>,
    %c8_i32 = arith.constant 8 : i32
    %c0_533 = arith.constant 0 : index
    %c0_534 = arith.constant 0 : index
    %3309 = vector.load %arg6[%c0_533, %c0_534] : memref<4x128xf32, #tpu.memory_space<vmem>>, vector<4x128xf32>
    tpu.vector_store %arg6[%c0_533, %c0_534], %3279 {strides = array<i32>} : memref<4x128xf32, #tpu.memory_space<vmem>>, vector<4x128xf32>,
    %c0_535 = arith.constant 0 : index
    %c0_536 = arith.constant 0 : index
    %c0_537 = arith.constant 0 : index
    %3310 = vector.load %arg7[%c0_535, %c0_536, %c0_537] : memref<4x4x128xf32, #tpu.memory_space<vmem>>, vector<4x4x128xf32>
    tpu.vector_store %arg7[%c0_535, %c0_536, %c0_537], %3304 {strides = array<i32>} : memref<4x4x128xf32, #tpu.memory_space<vmem>>, vector<4x4x128xf32>,
    return
  }
  func.func @transform_0(%arg0: i32, %arg1: i32) -> (i32, i32, i32) {
    %c0_i32 = arith.constant 0 : i32
    %c0_i32_0 = arith.constant 0 : i32
    return %arg1, %c0_i32, %arg0 : i32, i32, i32
  }
  func.func @transform_1(%arg0: i32, %arg1: i32) -> (i32, i32) {
    %c0_i32 = arith.constant 0 : i32
    %c0_i32_0 = arith.constant 0 : i32
    return %c0_i32, %arg0 : i32, i32
  }
  func.func @transform_2(%arg0: i32, %arg1: i32) -> (i32, i32, i32) {
    %c0_i32 = arith.constant 0 : i32
    %c0_i32_0 = arith.constant 0 : i32
    %c0_i32_1 = arith.constant 0 : i32
    return %c0_i32, %c0_i32_0, %arg0 : i32, i32, i32
  }
  func.func @transform_3(%arg0: i32, %arg1: i32) -> (i32, i32, i32) {
    %c0_i32 = arith.constant 0 : i32
    %c0_i32_0 = arith.constant 0 : i32
    return %arg1, %c0_i32, %arg0 : i32, i32, i32
  }
}

</mosaic_0001>

<llo_original>
// kernel: tpu_custom_call.1
$region0: #{tpu_custom_call.1}
  #allocation0 [shape = 'u32[]', space=smem, size = 0x4, offset = 0x4, fixed_abs, tag = 'smem constant byte address 0x4 - core index']
  #allocation1 [shape = 'u32[144,128]{1,0:T(1,128)}', space=vmem, size = 0x12000, scoped, tag = 'internal scratch']
  #allocation2 [shape = 'f32[4,128]{1,0:T(4,128)}', space=vmem, size = 0x800, scoped, tag = 'scratch operand']
  #allocation3 [shape = 'f32[4,4,128]{2,1,0:T(4,128)}', space=vmem, size = 0x2000, scoped, tag = 'scratch operand']
  %s0 = inlined_call_operand.hbm [shape: f32[8,2,128], index: 0, kind: input, shape index: {}]
  %s1 = inlined_call_operand.hbm [shape: f32[4,128], index: 1, kind: input, shape index: {}]
  %s2 = inlined_call_operand.hbm [shape: f32[4,4,128], index: 2, kind: input, shape index: {}]
  %s3 = inlined_call_operand.hbm [shape: f32[8,4,128], index: 3, kind: output, shape index: {}]
  %s4 = sld [smem:[#allocation0]]
  $region38: #{tpu_custom_call.1} parent=0
    _
  %s6 = ssub.s32 1, %s4
  %s7 = scalar_select 0, %s6, %s4
  $region1: #{tpu_custom_call.1} parent=0
    #allocation4 [shape = 'u8[8192]{0}', space=vmem, size = 0x2000, scoped, tag = 'input window, operand 0, single buffered']
    #allocation5 [shape = 's32[1]{0}', space=sflag, size = 0x4, scoped, tag = 'scoped memory for tpu_custom_call.1']
    #allocation6 [shape = 's32[1]{0}', space=sflag, size = 0x4, scoped, tag = 'scoped memory for tpu_custom_call.1']
    #allocation7 [shape = 'u8[2048]{0}', space=vmem, size = 0x800, scoped, tag = 'input window, operand 1, single buffered']
    #allocation8 [shape = 's32[1]{0}', space=sflag, size = 0x4, scoped, tag = 'scoped memory for tpu_custom_call.1']
    #allocation9 [shape = 'u8[8192]{0}', space=vmem, size = 0x2000, scoped, tag = 'input window, operand 2, single buffered']
    #allocation10 [shape = 'u8[16384]{0}', space=vmem, size = 0x4000, scoped, tag = 'output window, operand 0, single buffered']
    %8 = vsyncpa [#allocation5], 0
    %9 = vsyncpa [#allocation8], 0
    %10 = vsyncpa [#allocation6], 0
    // Predicated region
    $region2: #{tpu_custom_call.1} parent=1 // pred_check
      _
    $region3: #{tpu_custom_call.1} parent=1 // pred_check_branch
      %12 = sbr.rel (0) target = $region5
    $region4: #{tpu_custom_call.1} parent=1 // pred_region
      %s14 = ssub.s32 256, 256
      %15 = vsyncadd [#allocation5], %s14
      %s16 = sshll.u32 [#allocation4], 4
      %s17 = int_to_ptr.vmem [resolvable:$true] %s16
      %22 = dma.hbm_to_vmem [thread:$0]  %s0, 256, %s17, [#allocation5], 32, 32, 2
    $region5: #{tpu_custom_call.1} parent=1 // pred_fallthru
      _
    // Predicated region
    $region6: #{tpu_custom_call.1} parent=1 // pred_check
      _
    $region7: #{tpu_custom_call.1} parent=1 // pred_check_branch
      %24 = sbr.rel (0) target = $region9
    $region8: #{tpu_custom_call.1} parent=1 // pred_region
      %s26 = ssub.s32 64, 64
      %27 = vsyncadd [#allocation8], %s26
      %s29 = sshll.u32 [#allocation7], 4
      %s30 = int_to_ptr.vmem [resolvable:$true] %s29
      %32 = dma.hbm_to_vmem [thread:$0]  %s1, 64, %s30, [#allocation8]
    $region9: #{tpu_custom_call.1} parent=1 // pred_fallthru
      _
    // Predicated region
    $region10: #{tpu_custom_call.1} parent=1 // pred_check
      _
    $region11: #{tpu_custom_call.1} parent=1 // pred_check_branch
      %34 = sbr.rel (0) target = $region13
    $region12: #{tpu_custom_call.1} parent=1 // pred_region
      %s36 = ssub.s32 256, 256
      %37 = vsyncadd [#allocation8], %s36
      %s38 = sshll.u32 [#allocation9], 4
      %s39 = int_to_ptr.vmem [resolvable:$true] %s38
      %44 = dma.hbm_to_vmem [thread:$0]  %s2, 256, %s39, [#allocation8], 64, 64, 4
    $region13: #{tpu_custom_call.1} parent=1 // pred_fallthru
      _
    // Predicated region
    $region14: #{tpu_custom_call.1} parent=1 // pred_check
      _
    $region15: #{tpu_custom_call.1} parent=1 // pred_check_branch
      %46 = sbr.rel (0) target = $region17
    $region16: #{tpu_custom_call.1} parent=1 // pred_region
      %47 = dma.done [#allocation5], 256
    $region17: #{tpu_custom_call.1} parent=1 // pred_fallthru
      _
    // Predicated region
    $region18: #{tpu_custom_call.1} parent=1 // pred_check
      _
    $region19: #{tpu_custom_call.1} parent=1 // pred_check_branch
      %49 = sbr.rel (0) target = $region21
    $region20: #{tpu_custom_call.1} parent=1 // pred_region
      %50 = dma.done [#allocation8], 64
    $region21: #{tpu_custom_call.1} parent=1 // pred_fallthru
      _
    // Predicated region
    $region22: #{tpu_custom_call.1} parent=1 // pred_check
      _
    $region23: #{tpu_custom_call.1} parent=1 // pred_check_branch
      %52 = sbr.rel (0) target = $region25
    $region24: #{tpu_custom_call.1} parent=1 // pred_region
      %53 = dma.done [#allocation8], 256
    $region25: #{tpu_custom_call.1} parent=1 // pred_fallthru
      _
    %p54 = scmp.eq.s32.totalorder 0, 0
    // Predicated region
    $region26: #{tpu_custom_call.1} parent=1 // pred_check
      %p55 = pneg %p54
    $region27: #{tpu_custom_call.1} parent=1 // pred_check_branch
      %57 = sbr.rel (%p55) target = $region29
    $region28: #{tpu_custom_call.1} parent=1 // pred_region
      %v58 = vld [vmem:[#allocation7] sm:$0xf]
      %59 = vst [vmem:[#allocation2] sm:$0xf] %v58
      %v60 = vld [vmem:[#allocation9] sm:$0xf]
      %v61 = vld [vmem:[#allocation9 + $0x4] sm:$0xf]
      %v62 = vld [vmem:[#allocation9 + $0x8] sm:$0xf]
      %v63 = vld [vmem:[#allocation9 + $0xc] sm:$0xf]
      %64 = vst [vmem:[#allocation3] sm:$0xf] %v60
      %65 = vst [vmem:[#allocation3 + $0x4] sm:$0xf] %v61
      %66 = vst [vmem:[#allocation3 + $0x8] sm:$0xf] %v62
      %67 = vst [vmem:[#allocation3 + $0xc] sm:$0xf] %v63
    $region29: #{tpu_custom_call.1} parent=1 // pred_fallthru
      _
    %v68 = vld [vmem:[#allocation2] sm:$0xf]
    %v69 = vld [vmem:[#allocation3] sm:$0xf]
    %v70 = vld [vmem:[#allocation3 + $0x4] sm:$0xf]
    %v71 = vld [vmem:[#allocation3 + $0x8] sm:$0xf]
    %v72 = vld [vmem:[#allocation3 + $0xc] sm:$0xf]
    %v73 = vld [vmem:[#allocation4] sm:$0x3]
    %v74 = vand.u32 2147483647, %v68
    %vm75 = vcmp.le.f32.partialorder %v74, 0.7853982
    %vm76 = vcmp.lt.s32.totalorder %v68, 0
    %v77 = vand.u32 %v68, 2139095040
    %v78 = vshrl.u32 %v77, 23
    %v79 = vsub.s32 %v78, 127
    %v80 = vand.u32 2147483647, %v68
    %v81 = vand.u32 %v80, 8388607
    %v82 = vor.u32 %v81, 8388608
    %v83 = vsub.s32 0, %v82
    %v84 = vadd.s32 %v79, 1
    %vm85 = vcmp.gt.s32.totalorder %v84, 0
    %v86 = vsel %vm85, %v84, 0
    %v87 = vshrl.u32 %v86, 5
    %v88 = vand.u32 %v86, 31
    %v89 = vsub.s32 32, %v88
    %v90 = vshrl.u32 683565275, %v89
    %v91 = vshll.u32 683565275, %v88
    %v92 = vshrl.u32 2475754826, %v89
    %v93 = vor.u32 %v91, %v92
    %v94 = vshll.u32 2475754826, %v88
    %v95 = vshrl.u32 2131351028, %v89
    %v96 = vor.u32 %v94, %v95
    %v97 = vshll.u32 2131351028, %v88
    %v98 = vshrl.u32 2102212464, %v89
    %v99 = vor.u32 %v97, %v98
    %v100 = vshll.u32 2102212464, %v88
    %v101 = vshrl.u32 920167782, %v89
    %v102 = vor.u32 %v100, %v101
    %v103 = vshll.u32 920167782, %v88
    %v104 = vshrl.u32 1326507024, %v89
    %v105 = vor.u32 %v103, %v104
    %vm106 = vcmp.lt.s32.totalorder %v87, 1
    %vm107 = vcmp.lt.s32.totalorder %v87, 2
    %vm108 = vcmp.lt.s32.totalorder %v87, 3
    %vm109 = vcmp.lt.s32.totalorder %v87, 4
    %v110 = vsel %vm106, %v90, %v93
    %v111 = vsel %vm109, %v99, 2102212464
    %v112 = vsel %vm108, %v96, %v111
    %v113 = vsel %vm107, %v110, %v112
    %v114 = vsel %vm106, %v93, %v96
    %v115 = vsel %vm109, %v102, 920167782
    %v116 = vsel %vm108, %v99, %v115
    %v117 = vsel %vm107, %v114, %v116
    %v118 = vsel %vm106, %v96, %v99
    %v119 = vsel %vm109, %v105, 1326507024
    %v120 = vsel %vm108, %v102, %v119
    %v121 = vsel %vm107, %v118, %v120
    %v122 = vshll.u32 %v82, 8
    %v123 = vmul.u32.u64.compose %v122, %v121
    %v124 = vextract.low.u32 %v123
    %v125 = vextract.high.u32 %v123
    %v126 = vmul.u32.u64.compose %v122, %v117
    %v127 = vextract.low.u32 %v126
    %v128 = vextract.high.u32 %v126
    %v129 = vmul.u32 %v122, %v113
    %v130 = vadd.s32 %v125, %v127
    %vm131 = vc.u32 %v125, %v127
    %v132 = vadd.s32 %v128, 1
    %v133 = vsel %vm131, %v132, %v128
    %v134 = vadd.s32 %v129, %v133
    %v135 = vadd.s32 %v134, 536870912
    %v136 = vshrl.u32 %v135, 30
    %v137 = vshll.u32 %v136, 30
    %v138 = vsub.s32 %v134, %v137
    %vm139 = vcmp.lt.s32.totalorder %v138, 0
    %v140 = vsub.s32 0, %v138
    %v141 = vsel %vm139, %v140, %v138
    %v142 = vclz %v141
    %v143 = vsub.s32 %v142, 2
    %vm144 = vcmp.gt.s32.totalorder 0, %v143
    %v145 = vsel %vm144, 0, %v143
    %v146 = vsub.s32 32, %v145
    %v147 = vshll.u32 %v138, %v145
    %v148 = vshrl.u32 %v130, %v146
    %v149 = vor.u32 %v147, %v148
    %v150 = vsub.s32 4294967266, %v145
    %v151 = vadd.s32 %v150, 127
    %v152 = vshll.u32 %v151, 23
    %v153 = vor.u32 4788187, %v152
    %v154 = vand.u32 2147483647, %v153
    %v156 = vcvt.s32.f32 %v149
    %v157 = vmul.f32 %v156, %v154
    %v158 = vxor.u32 %v157, 2147483648
    %v159 = vsel %vm76, %v158, %v157
    %v160 = vsub.s32 4, %v136
    %v161 = vsel %vm76, %v160, %v136
    %v162 = vsel %vm75, %v68, %v159
    %v163 = vsel %vm75, 0, %v161
    %v164 = vcosq.f32.pop %v162
    %v165 = vsinq.f32.pop %v162
    %vm166 = vweird.f32 %v68
    %v167 = vand.u32 %v163, 3
    %vm168 = vcmp.lt.s32.totalorder %v167, 2
    %vm169 = vcmp.eq.s32.totalorder %v167, 0
    %v170 = vxor.u32 %v165, 2147483648
    %v171 = vsel %vm169, %v164, %v170
    %vm172 = vcmp.eq.s32.totalorder %v167, 2
    %v173 = vxor.u32 %v164, 2147483648
    %v174 = vsel %vm172, %v173, %v165
    %v175 = vsel %vm168, %v171, %v174
    %v176 = vsel %vm166, nan, %v175
    %v177 = vmul.f32 %v176, 0.1
    %v178 = vand.u32 2147483647, %v68
    %vm179 = vcmp.le.f32.partialorder %v178, 0.7853982
    %vm180 = vcmp.lt.s32.totalorder %v68, 0
    %v181 = vand.u32 %v68, 2139095040
    %v182 = vshrl.u32 %v181, 23
    %v183 = vsub.s32 %v182, 127
    %v184 = vand.u32 2147483647, %v68
    %v185 = vand.u32 %v184, 8388607
    %v186 = vor.u32 %v185, 8388608
    %v187 = vsub.s32 0, %v186
    %v188 = vadd.s32 %v183, 1
    %vm189 = vcmp.gt.s32.totalorder %v188, 0
    %v190 = vsel %vm189, %v188, 0
    %v191 = vshrl.u32 %v190, 5
    %v192 = vand.u32 %v190, 31
    %v193 = vsub.s32 32, %v192
    %v194 = vshrl.u32 683565275, %v193
    %v195 = vshll.u32 683565275, %v192
    %v196 = vshrl.u32 2475754826, %v193
    %v197 = vor.u32 %v195, %v196
    %v198 = vshll.u32 2475754826, %v192
    %v199 = vshrl.u32 2131351028, %v193
    %v200 = vor.u32 %v198, %v199
    %v201 = vshll.u32 2131351028, %v192
    %v202 = vshrl.u32 2102212464, %v193
    %v203 = vor.u32 %v201, %v202
    %v204 = vshll.u32 2102212464, %v192
    %v205 = vshrl.u32 920167782, %v193
    %v206 = vor.u32 %v204, %v205
    %v207 = vshll.u32 920167782, %v192
    %v208 = vshrl.u32 1326507024, %v193
    %v209 = vor.u32 %v207, %v208
    %vm210 = vcmp.lt.s32.totalorder %v191, 1
    %vm211 = vcmp.lt.s32.totalorder %v191, 2
    %vm212 = vcmp.lt.s32.totalorder %v191, 3
    %vm213 = vcmp.lt.s32.totalorder %v191, 4
    %v214 = vsel %vm210, %v194, %v197
    %v215 = vsel %vm213, %v203, 2102212464
    %v216 = vsel %vm212, %v200, %v215
    %v217 = vsel %vm211, %v214, %v216
    %v218 = vsel %vm210, %v197, %v200
    %v219 = vsel %vm213, %v206, 920167782
    %v220 = vsel %vm212, %v203, %v219
    %v221 = vsel %vm211, %v218, %v220
    %v222 = vsel %vm210, %v200, %v203
    %v223 = vsel %vm213, %v209, 1326507024
    %v224 = vsel %vm212, %v206, %v223
    %v225 = vsel %vm211, %v222, %v224
    %v226 = vshll.u32 %v186, 8
    %v227 = vmul.u32.u64.compose %v226, %v225
    %v228 = vextract.low.u32 %v227
    %v229 = vextract.high.u32 %v227
    %v230 = vmul.u32.u64.compose %v226, %v221
    %v231 = vextract.low.u32 %v230
    %v232 = vextract.high.u32 %v230
    %v233 = vmul.u32 %v226, %v217
    %v234 = vadd.s32 %v229, %v231
    %vm235 = vc.u32 %v229, %v231
    %v236 = vadd.s32 %v232, 1
    %v237 = vsel %vm235, %v236, %v232
    %v238 = vadd.s32 %v233, %v237
    %v239 = vadd.s32 %v238, 536870912
    %v240 = vshrl.u32 %v239, 30
    %v241 = vshll.u32 %v240, 30
    %v242 = vsub.s32 %v238, %v241
    %vm243 = vcmp.lt.s32.totalorder %v242, 0
    %v244 = vsub.s32 0, %v242
    %v245 = vsel %vm243, %v244, %v242
    %v246 = vclz %v245
    %v247 = vsub.s32 %v246, 2
    %vm248 = vcmp.gt.s32.totalorder 0, %v247
    %v249 = vsel %vm248, 0, %v247
    %v250 = vsub.s32 32, %v249
    %v251 = vshll.u32 %v242, %v249
    %v252 = vshrl.u32 %v234, %v250
    %v253 = vor.u32 %v251, %v252
    %v254 = vsub.s32 4294967266, %v249
    %v255 = vadd.s32 %v254, 127
    %v256 = vshll.u32 %v255, 23
    %v257 = vor.u32 4788187, %v256
    %v258 = vand.u32 2147483647, %v257
    %v260 = vcvt.s32.f32 %v253
    %v261 = vmul.f32 %v260, %v258
    %v262 = vxor.u32 %v261, 2147483648
    %v263 = vsel %vm180, %v262, %v261
    %v264 = vsub.s32 4, %v240
    %v265 = vsel %vm180, %v264, %v240
    %v266 = vsel %vm179, %v68, %v263
    %v267 = vsel %vm179, 0, %v265
    %v268 = vcosq.f32.pop %v266
    %v269 = vsinq.f32.pop %v266
    %vm270 = vweird.f32 %v68
    %v271 = vadd.s32 %v267, 3
    %v272 = vand.u32 %v271, 3
    %vm273 = vcmp.lt.s32.totalorder %v272, 2
    %vm274 = vcmp.eq.s32.totalorder %v272, 0
    %v275 = vxor.u32 %v269, 2147483648
    %v276 = vsel %vm274, %v268, %v275
    %vm277 = vcmp.eq.s32.totalorder %v272, 2
    %v278 = vxor.u32 %v268, 2147483648
    %v279 = vsel %vm277, %v278, %v269
    %v280 = vsel %vm273, %v276, %v279
    %v281 = vsel %vm270, nan, %v280
    %v282 = vmul.f32 %v281, 0.1
    %v283 = vadd.f32 %v282, %v68
    %v284 = vmul.f32 %v68, 0.1
    %v286 = vrot.slane %v284, 2
    %v288 = vadd.f32 %v283, %v286
    %v289 = vmul.f32 %v177, %v69
    %v290 = vadd.f32 %v289, %v69
    %v291 = vmul.f32 %v71, 0.1
    %v292 = vadd.f32 %v290, %v291
    %v294 = vrot.slane %v69, 1
    %v296 = vmul.f32 %v177, %v294
    %v297 = vadd.f32 %v296, %v294
    %v299 = vrot.slane %v291, 1
    %v301 = vadd.f32 %v297, %v299
    %v302 = vrot.slane %v69, 2
    %v304 = vmul.f32 %v177, %v302
    %v305 = vadd.f32 %v304, %v302
    %v306 = vrot.slane %v291, 2
    %v308 = vadd.f32 %v305, %v306
    %v309 = vrot.slane %v69, 3
    %v311 = vmul.f32 %v177, %v309
    %v312 = vadd.f32 %v311, %v309
    %v313 = vrot.slane %v291, 3
    %v315 = vadd.f32 %v312, %v313
    %v317 = vrot.slane %v70, 7
    %v319 = vmul.f32 %v177, %v317
    %v320 = vadd.f32 %v319, %v317
    %v321 = vmul.f32 %v72, 0.1
    %v323 = vrot.slane %v321, 7
    %v325 = vadd.f32 %v320, %v323
    %v326 = vmul.f32 %v177, %v70
    %v327 = vadd.f32 %v326, %v70
    %v328 = vadd.f32 %v327, %v321
    %v329 = vrot.slane %v70, 1
    %v331 = vmul.f32 %v177, %v329
    %v332 = vadd.f32 %v331, %v329
    %v333 = vrot.slane %v321, 1
    %v335 = vadd.f32 %v332, %v333
    %v336 = vrot.slane %v70, 2
    %v338 = vmul.f32 %v177, %v336
    %v339 = vadd.f32 %v338, %v336
    %v340 = vrot.slane %v321, 2
    %v342 = vadd.f32 %v339, %v340
    %v344 = vrot.slane %v71, 6
    %v346 = vmul.f32 %v177, %v344
    %v347 = vadd.f32 %v346, %v344
    %v348 = vrot.slane %v71, 7
    %v350 = vmul.f32 %v177, %v348
    %v351 = vadd.f32 %v350, %v348
    %v352 = vmul.f32 %v177, %v71
    %v353 = vadd.f32 %v352, %v71
    %v354 = vrot.slane %v71, 1
    %v356 = vmul.f32 %v177, %v354
    %v357 = vadd.f32 %v356, %v354
    %v359 = vrot.slane %v72, 5
    %v361 = vmul.f32 %v177, %v359
    %v362 = vadd.f32 %v361, %v359
    %v363 = vrot.slane %v72, 6
    %v365 = vmul.f32 %v177, %v363
    %v366 = vadd.f32 %v365, %v363
    %v367 = vrot.slane %v72, 7
    %v369 = vmul.f32 %v177, %v367
    %v370 = vadd.f32 %v369, %v367
    %v371 = vmul.f32 %v177, %v72
    %v372 = vadd.f32 %v371, %v72
    %v373 = vmul.f32 %v292, %v177
    %v374 = vadd.f32 %v373, %v292
    %v375 = vmul.f32 %v308, 0.1
    %v376 = vadd.f32 %v374, %v375
    %v377 = vadd.f32 %v376, 0.01
    %v379 = vrot.slane %v177, 1
    %v381 = vmul.f32 %v301, %v379
    %v382 = vadd.f32 %v381, %v301
    %v383 = vmul.f32 %v315, 0.1
    %v384 = vadd.f32 %v382, %v383
    %v385 = vrot.slane %v177, 2
    %v387 = vmul.f32 %v308, %v385
    %v388 = vadd.f32 %v387, %v308
    %v389 = vrot.slane %v177, 3
    %v391 = vmul.f32 %v315, %v389
    %v392 = vadd.f32 %v391, %v315
    %v393 = vrot.slane %v177, 7
    %v395 = vmul.f32 %v325, %v393
    %v396 = vadd.f32 %v395, %v325
    %v397 = vmul.f32 %v335, 0.1
    %v398 = vadd.f32 %v396, %v397
    %v399 = vmul.f32 %v328, %v177
    %v400 = vadd.f32 %v399, %v328
    %v401 = vmul.f32 %v342, 0.1
    %v402 = vadd.f32 %v400, %v401
    %v403 = vadd.f32 %v402, 0.01
    %v404 = vmul.f32 %v335, %v379
    %v405 = vadd.f32 %v404, %v335
    %v406 = vmul.f32 %v342, %v385
    %v407 = vadd.f32 %v406, %v342
    %v408 = vrot.slane %v177, 6
    %v410 = vmul.f32 %v347, %v408
    %v411 = vadd.f32 %v410, %v347
    %v412 = vmul.f32 %v353, 0.1
    %v413 = vadd.f32 %v411, %v412
    %v414 = vmul.f32 %v351, %v393
    %v415 = vadd.f32 %v414, %v351
    %v416 = vmul.f32 %v357, 0.1
    %v417 = vadd.f32 %v415, %v416
    %v418 = vmul.f32 %v353, %v177
    %v419 = vadd.f32 %v418, %v353
    %v420 = vadd.f32 %v419, 0.01
    %v421 = vmul.f32 %v357, %v379
    %v422 = vadd.f32 %v421, %v357
    %v423 = vrot.slane %v177, 5
    %v425 = vmul.f32 %v362, %v423
    %v426 = vadd.f32 %v425, %v362
    %v427 = vmul.f32 %v370, 0.1
    %v428 = vadd.f32 %v426, %v427
    %v429 = vmul.f32 %v366, %v408
    %v430 = vadd.f32 %v429, %v366
    %v431 = vmul.f32 %v372, 0.1
    %v432 = vadd.f32 %v430, %v431
    %v433 = vmul.f32 %v370, %v393
    %v434 = vadd.f32 %v433, %v370
    %v435 = vmul.f32 %v372, %v177
    %v436 = vadd.f32 %v435, %v372
    %v437 = vadd.f32 %v436, 0.01
    %v438 = vadd.f32 %v377, 0.1
    %v439 = vadd.f32 %v403, 0.1
    %v441 = vrot.slane %v439, 1
    %v443 = vmul.f32 %v438, %v441
    %v445 = vrot.slane %v398, 1
    %v447 = vmul.f32 %v384, %v445
    %v448 = vsub.f32 %v443, %v447
    %v449 = vrcp.pop %v448
    %v451 = vrot.slane %v449, 7
    %v453 = vmul.f32 %v439, %v451
    %v454 = vsub.f32 0.0, %v384
    %v455 = vmul.f32 %v454, %v449
    %v456 = vsub.f32 0.0, %v398
    %v457 = vmul.f32 %v456, %v451
    %v458 = vmul.f32 %v438, %v449
    %v460 = vrot.slane %v453, 1
    %v462 = vmul.f32 %v377, %v460
    %v463 = vadd.f32 %v462, 0.0
    %v465 = vrot.slane %v457, 1
    %v467 = vmul.f32 %v384, %v465
    %v468 = vadd.f32 %v463, %v467
    %v469 = vmul.f32 %v377, %v455
    %v470 = vadd.f32 %v469, 0.0
    %v471 = vmul.f32 %v384, %v458
    %v472 = vadd.f32 %v470, %v471
    %v473 = vmul.f32 %v398, %v453
    %v474 = vadd.f32 %v473, 0.0
    %v475 = vmul.f32 %v403, %v457
    %v476 = vadd.f32 %v474, %v475
    %v478 = vrot.slane %v455, 7
    %v480 = vmul.f32 %v398, %v478
    %v481 = vadd.f32 %v480, 0.0
    %v483 = vrot.slane %v458, 7
    %v485 = vmul.f32 %v403, %v483
    %v486 = vadd.f32 %v481, %v485
    %v487 = vrot.slane %v453, 7
    %v489 = vmul.f32 %v413, %v487
    %v490 = vadd.f32 %v489, 0.0
    %v491 = vrot.slane %v457, 7
    %v493 = vmul.f32 %v417, %v491
    %v494 = vadd.f32 %v490, %v493
    %v495 = vrot.slane %v455, 6
    %v497 = vmul.f32 %v413, %v495
    %v498 = vadd.f32 %v497, 0.0
    %v499 = vrot.slane %v458, 6
    %v501 = vmul.f32 %v417, %v499
    %v502 = vadd.f32 %v498, %v501
    %v503 = vrot.slane %v453, 6
    %v505 = vmul.f32 %v428, %v503
    %v506 = vadd.f32 %v505, 0.0
    %v507 = vrot.slane %v457, 6
    %v509 = vmul.f32 %v432, %v507
    %v510 = vadd.f32 %v506, %v509
    %v511 = vrot.slane %v455, 5
    %v513 = vmul.f32 %v428, %v511
    %v514 = vadd.f32 %v513, 0.0
    %v515 = vrot.slane %v458, 5
    %v517 = vmul.f32 %v432, %v515
    %v518 = vadd.f32 %v514, %v517
    %v519 = vsub.f32 %v73, %v288
    %v520 = vmul.f32 %v468, %v519
    %v521 = vadd.f32 %v520, 0.0
    %v523 = vrot.slane %v519, 1
    %v525 = vmul.f32 %v472, %v523
    %v526 = vadd.f32 %v521, %v525
    %v527 = vadd.f32 %v288, %v526
    %v528 = vrot.slane %v519, 7
    %v530 = vmul.f32 %v476, %v528
    %v531 = vadd.f32 %v530, 0.0
    %v532 = vmul.f32 %v486, %v519
    %v533 = vadd.f32 %v531, %v532
    %v534 = vadd.f32 %v288, %v533
    %v535 = vrot.slane %v519, 6
    %v537 = vmul.f32 %v494, %v535
    %v538 = vadd.f32 %v537, 0.0
    %v539 = vmul.f32 %v502, %v528
    %v540 = vadd.f32 %v538, %v539
    %v541 = vadd.f32 %v283, %v540
    %v542 = vrot.slane %v519, 5
    %v544 = vmul.f32 %v510, %v542
    %v545 = vadd.f32 %v544, 0.0
    %v546 = vmul.f32 %v518, %v535
    %v547 = vadd.f32 %v545, %v546
    %v548 = vadd.f32 %v283, %v547
    %v549 = vmul.f32 %v468, %v377
    %v550 = vadd.f32 %v549, 0.0
    %v551 = vmul.f32 %v472, %v445
    %v552 = vadd.f32 %v550, %v551
    %v553 = vsub.f32 %v377, %v552
    %v554 = vmul.f32 %v468, %v384
    %v555 = vadd.f32 %v554, 0.0
    %v557 = vrot.slane %v403, 1
    %v559 = vmul.f32 %v472, %v557
    %v560 = vadd.f32 %v555, %v559
    %v561 = vsub.f32 %v384, %v560
    %v562 = vmul.f32 %v468, %v388
    %v563 = vadd.f32 %v562, 0.0
    %v565 = vrot.slane %v405, 1
    %v567 = vmul.f32 %v472, %v565
    %v568 = vadd.f32 %v563, %v567
    %v569 = vsub.f32 %v388, %v568
    %v570 = vmul.f32 %v468, %v392
    %v571 = vadd.f32 %v570, 0.0
    %v573 = vrot.slane %v407, 1
    %v575 = vmul.f32 %v472, %v573
    %v576 = vadd.f32 %v571, %v575
    %v577 = vsub.f32 %v392, %v576
    %v579 = vrot.slane %v377, 7
    %v581 = vmul.f32 %v476, %v579
    %v582 = vadd.f32 %v581, 0.0
    %v583 = vmul.f32 %v486, %v398
    %v584 = vadd.f32 %v582, %v583
    %v585 = vsub.f32 %v398, %v584
    %v587 = vrot.slane %v384, 7
    %v589 = vmul.f32 %v476, %v587
    %v590 = vadd.f32 %v589, 0.0
    %v591 = vmul.f32 %v486, %v403
    %v592 = vadd.f32 %v590, %v591
    %v593 = vsub.f32 %v403, %v592
    %v595 = vrot.slane %v388, 7
    %v597 = vmul.f32 %v476, %v595
    %v598 = vadd.f32 %v597, 0.0
    %v599 = vmul.f32 %v486, %v405
    %v600 = vadd.f32 %v598, %v599
    %v601 = vsub.f32 %v405, %v600
    %v603 = vrot.slane %v392, 7
    %v605 = vmul.f32 %v476, %v603
    %v606 = vadd.f32 %v605, 0.0
    %v607 = vmul.f32 %v486, %v407
    %v608 = vadd.f32 %v606, %v607
    %v609 = vsub.f32 %v407, %v608
    %v610 = vrot.slane %v377, 6
    %v612 = vmul.f32 %v494, %v610
    %v613 = vadd.f32 %v612, 0.0
    %v614 = vrot.slane %v398, 7
    %v616 = vmul.f32 %v502, %v614
    %v617 = vadd.f32 %v613, %v616
    %v618 = vsub.f32 %v413, %v617
    %v619 = vrot.slane %v384, 6
    %v621 = vmul.f32 %v494, %v619
    %v622 = vadd.f32 %v621, 0.0
    %v623 = vrot.slane %v403, 7
    %v625 = vmul.f32 %v502, %v623
    %v626 = vadd.f32 %v622, %v625
    %v627 = vsub.f32 %v417, %v626
    %v628 = vrot.slane %v388, 6
    %v630 = vmul.f32 %v494, %v628
    %v631 = vadd.f32 %v630, 0.0
    %v632 = vrot.slane %v405, 7
    %v634 = vmul.f32 %v502, %v632
    %v635 = vadd.f32 %v631, %v634
    %v636 = vsub.f32 %v420, %v635
    %v637 = vrot.slane %v392, 6
    %v639 = vmul.f32 %v494, %v637
    %v640 = vadd.f32 %v639, 0.0
    %v641 = vrot.slane %v407, 7
    %v643 = vmul.f32 %v502, %v641
    %v644 = vadd.f32 %v640, %v643
    %v645 = vsub.f32 %v422, %v644
    %v646 = vrot.slane %v377, 5
    %v648 = vmul.f32 %v510, %v646
    %v649 = vadd.f32 %v648, 0.0
    %v650 = vrot.slane %v398, 6
    %v652 = vmul.f32 %v518, %v650
    %v653 = vadd.f32 %v649, %v652
    %v654 = vsub.f32 %v428, %v653
    %v655 = vrot.slane %v384, 5
    %v657 = vmul.f32 %v510, %v655
    %v658 = vadd.f32 %v657, 0.0
    %v659 = vrot.slane %v403, 6
    %v661 = vmul.f32 %v518, %v659
    %v662 = vadd.f32 %v658, %v661
    %v663 = vsub.f32 %v432, %v662
    %v664 = vrot.slane %v388, 5
    %v666 = vmul.f32 %v510, %v664
    %v667 = vadd.f32 %v666, 0.0
    %v668 = vrot.slane %v405, 6
    %v670 = vmul.f32 %v518, %v668
    %v671 = vadd.f32 %v667, %v670
    %v672 = vsub.f32 %v434, %v671
    %v673 = vrot.slane %v392, 5
    %v675 = vmul.f32 %v510, %v673
    %v676 = vadd.f32 %v675, 0.0
    %v677 = vrot.slane %v407, 6
    %v679 = vmul.f32 %v518, %v677
    %v680 = vadd.f32 %v676, %v679
    %v681 = vsub.f32 %v437, %v680
    %vm682 = vcmask 1040384
    %v683 = vsel %vm682, %v527, %v534
    %vm684 = vcmask 1041408
    %v685 = vsel %vm684, %v683, %v541
    %vm686 = vcmask 1042432
    %v687 = vsel %vm686, %v685, %v548
    %v689 = vrot.slane %v561, 7
    %v692 = vrot.slane %v569, 6
    %v695 = vrot.slane %v577, 5
    %v697 = vsel %vm682, %v553, %v689
    %v698 = vsel %vm684, %v697, %v692
    %v699 = vsel %vm686, %v698, %v695
    %v701 = vrot.slane %v585, 1
    %v704 = vrot.slane %v601, 7
    %v707 = vrot.slane %v609, 6
    %v709 = vsel %vm682, %v701, %v593
    %v710 = vsel %vm684, %v709, %v704
    %v711 = vsel %vm686, %v710, %v707
    %v713 = vrot.slane %v618, 2
    %v716 = vrot.slane %v627, 1
    %v719 = vrot.slane %v645, 7
    %v721 = vsel %vm682, %v713, %v716
    %v722 = vsel %vm684, %v721, %v636
    %v723 = vsel %vm686, %v722, %v719
    %v725 = vrot.slane %v654, 3
    %v728 = vrot.slane %v663, 2
    %v731 = vrot.slane %v672, 1
    %v733 = vsel %vm682, %v725, %v728
    %v734 = vsel %vm684, %v733, %v731
    %v735 = vsel %vm686, %v734, %v681
    %736 = vst [vmem:[#allocation10] sm:$0xf] %v687
    %s737 = scalar_lea.vmem [#allocation4], 2
    %v738 = vld [vmem:[%s737] sm:$0x3]
    %v739 = vand.u32 2147483647, %v687
    %vm740 = vcmp.le.f32.partialorder %v739, 0.7853982
    %vm741 = vcmp.lt.s32.totalorder %v687, 0
    %v742 = vand.u32 %v687, 2139095040
    %v743 = vshrl.u32 %v742, 23
    %v744 = vsub.s32 %v743, 127
    %v745 = vand.u32 2147483647, %v687
    %v746 = vand.u32 %v745, 8388607
    %v747 = vor.u32 %v746, 8388608
    %v748 = vsub.s32 0, %v747
    %v749 = vadd.s32 %v744, 1
    %vm750 = vcmp.gt.s32.totalorder %v749, 0
    %v751 = vsel %vm750, %v749, 0
    %v752 = vshrl.u32 %v751, 5
    %v753 = vand.u32 %v751, 31
    %v754 = vsub.s32 32, %v753
    %v755 = vshrl.u32 683565275, %v754
    %v756 = vshll.u32 683565275, %v753
    %v757 = vshrl.u32 2475754826, %v754
    %v758 = vor.u32 %v756, %v757
    %v759 = vshll.u32 2475754826, %v753
    %v760 = vshrl.u32 2131351028, %v754
    %v761 = vor.u32 %v759, %v760
    %v762 = vshll.u32 2131351028, %v753
    %v763 = vshrl.u32 2102212464, %v754
    %v764 = vor.u32 %v762, %v763
    %v765 = vshll.u32 2102212464, %v753
    %v766 = vshrl.u32 920167782, %v754
    %v767 = vor.u32 %v765, %v766
    %v768 = vshll.u32 920167782, %v753
    %v769 = vshrl.u32 1326507024, %v754
    %v770 = vor.u32 %v768, %v769
    %vm771 = vcmp.lt.s32.totalorder %v752, 1
    %vm772 = vcmp.lt.s32.totalorder %v752, 2
    %vm773 = vcmp.lt.s32.totalorder %v752, 3
    %vm774 = vcmp.lt.s32.totalorder %v752, 4
    %v775 = vsel %vm771, %v755, %v758
    %v776 = vsel %vm774, %v764, 2102212464
    %v777 = vsel %vm773, %v761, %v776
    %v778 = vsel %vm772, %v775, %v777
    %v779 = vsel %vm771, %v758, %v761
    %v780 = vsel %vm774, %v767, 920167782
    %v781 = vsel %vm773, %v764, %v780
    %v782 = vsel %vm772, %v779, %v781
    %v783 = vsel %vm771, %v761, %v764
    %v784 = vsel %vm774, %v770, 1326507024
    %v785 = vsel %vm773, %v767, %v784
    %v786 = vsel %vm772, %v783, %v785
    %v787 = vshll.u32 %v747, 8
    %v788 = vmul.u32.u64.compose %v787, %v786
    %v789 = vextract.low.u32 %v788
    %v790 = vextract.high.u32 %v788
    %v791 = vmul.u32.u64.compose %v787, %v782
    %v792 = vextract.low.u32 %v791
    %v793 = vextract.high.u32 %v791
    %v794 = vmul.u32 %v787, %v778
    %v795 = vadd.s32 %v790, %v792
    %vm796 = vc.u32 %v790, %v792
    %v797 = vadd.s32 %v793, 1
    %v798 = vsel %vm796, %v797, %v793
    %v799 = vadd.s32 %v794, %v798
    %v800 = vadd.s32 %v799, 536870912
    %v801 = vshrl.u32 %v800, 30
    %v802 = vshll.u32 %v801, 30
    %v803 = vsub.s32 %v799, %v802
    %vm804 = vcmp.lt.s32.totalorder %v803, 0
    %v805 = vsub.s32 0, %v803
    %v806 = vsel %vm804, %v805, %v803
    %v807 = vclz %v806
    %v808 = vsub.s32 %v807, 2
    %vm809 = vcmp.gt.s32.totalorder 0, %v808
    %v810 = vsel %vm809, 0, %v808
    %v811 = vsub.s32 32, %v810
    %v812 = vshll.u32 %v803, %v810
    %v813 = vshrl.u32 %v795, %v811
    %v814 = vor.u32 %v812, %v813
    %v815 = vsub.s32 4294967266, %v810
    %v816 = vadd.s32 %v815, 127
    %v817 = vshll.u32 %v816, 23
    %v818 = vor.u32 4788187, %v817
    %v819 = vand.u32 2147483647, %v818
    %v821 = vcvt.s32.f32 %v814
    %v822 = vmul.f32 %v821, %v819
    %v823 = vxor.u32 %v822, 2147483648
    %v824 = vsel %vm741, %v823, %v822
    %v825 = vsub.s32 4, %v801
    %v826 = vsel %vm741, %v825, %v801
    %v827 = vsel %vm740, %v687, %v824
    %v828 = vsel %vm740, 0, %v826
    %v829 = vcosq.f32.pop %v827
    %v830 = vsinq.f32.pop %v827
    %vm831 = vweird.f32 %v687
    %v832 = vand.u32 %v828, 3
    %vm833 = vcmp.lt.s32.totalorder %v832, 2
    %vm834 = vcmp.eq.s32.totalorder %v832, 0
    %v835 = vxor.u32 %v830, 2147483648
    %v836 = vsel %vm834, %v829, %v835
    %vm837 = vcmp.eq.s32.totalorder %v832, 2
    %v838 = vxor.u32 %v829, 2147483648
    %v839 = vsel %vm837, %v838, %v830
    %v840 = vsel %vm833, %v836, %v839
    %v841 = vsel %vm831, nan, %v840
    %v842 = vmul.f32 %v841, 0.1
    %v843 = vand.u32 2147483647, %v687
    %vm844 = vcmp.le.f32.partialorder %v843, 0.7853982
    %vm845 = vcmp.lt.s32.totalorder %v687, 0
    %v846 = vand.u32 %v687, 2139095040
    %v847 = vshrl.u32 %v846, 23
    %v848 = vsub.s32 %v847, 127
    %v849 = vand.u32 2147483647, %v687
    %v850 = vand.u32 %v849, 8388607
    %v851 = vor.u32 %v850, 8388608
    %v852 = vsub.s32 0, %v851
    %v853 = vadd.s32 %v848, 1
    %vm854 = vcmp.gt.s32.totalorder %v853, 0
    %v855 = vsel %vm854, %v853, 0
    %v856 = vshrl.u32 %v855, 5
    %v857 = vand.u32 %v855, 31
    %v858 = vsub.s32 32, %v857
    %v859 = vshrl.u32 683565275, %v858
    %v860 = vshll.u32 683565275, %v857
    %v861 = vshrl.u32 2475754826, %v858
    %v862 = vor.u32 %v860, %v861
    %v863 = vshll.u32 2475754826, %v857
    %v864 = vshrl.u32 2131351028, %v858
    %v865 = vor.u32 %v863, %v864
    %v866 = vshll.u32 2131351028, %v857
    %v867 = vshrl.u32 2102212464, %v858
    %v868 = vor.u32 %v866, %v867
    %v869 = vshll.u32 2102212464, %v857
    %v870 = vshrl.u32 920167782, %v858
    %v871 = vor.u32 %v869, %v870
    %v872 = vshll.u32 920167782, %v857
    %v873 = vshrl.u32 1326507024, %v858
    %v874 = vor.u32 %v872, %v873
    %vm875 = vcmp.lt.s32.totalorder %v856, 1
    %vm876 = vcmp.lt.s32.totalorder %v856, 2
    %vm877 = vcmp.lt.s32.totalorder %v856, 3
    %vm878 = vcmp.lt.s32.totalorder %v856, 4
    %v879 = vsel %vm875, %v859, %v862
    %v880 = vsel %vm878, %v868, 2102212464
    %v881 = vsel %vm877, %v865, %v880
    %v882 = vsel %vm876, %v879, %v881
    %v883 = vsel %vm875, %v862, %v865
    %v884 = vsel %vm878, %v871, 920167782
    %v885 = vsel %vm877, %v868, %v884
    %v886 = vsel %vm876, %v883, %v885
    %v887 = vsel %vm875, %v865, %v868
    %v888 = vsel %vm878, %v874, 1326507024
    %v889 = vsel %vm877, %v871, %v888
    %v890 = vsel %vm876, %v887, %v889
    %v891 = vshll.u32 %v851, 8
    %v892 = vmul.u32.u64.compose %v891, %v890
    %v893 = vextract.low.u32 %v892
    %v894 = vextract.high.u32 %v892
    %v895 = vmul.u32.u64.compose %v891, %v886
    %v896 = vextract.low.u32 %v895
    %v897 = vextract.high.u32 %v895
    %v898 = vmul.u32 %v891, %v882
    %v899 = vadd.s32 %v894, %v896
    %vm900 = vc.u32 %v894, %v896
    %v901 = vadd.s32 %v897, 1
    %v902 = vsel %vm900, %v901, %v897
    %v903 = vadd.s32 %v898, %v902
    %v904 = vadd.s32 %v903, 536870912
    %v905 = vshrl.u32 %v904, 30
    %v906 = vshll.u32 %v905, 30
    %v907 = vsub.s32 %v903, %v906
    %vm908 = vcmp.lt.s32.totalorder %v907, 0
    %v909 = vsub.s32 0, %v907
    %v910 = vsel %vm908, %v909, %v907
    %v911 = vclz %v910
    %v912 = vsub.s32 %v911, 2
    %vm913 = vcmp.gt.s32.totalorder 0, %v912
    %v914 = vsel %vm913, 0, %v912
    %v915 = vsub.s32 32, %v914
    %v916 = vshll.u32 %v907, %v914
    %v917 = vshrl.u32 %v899, %v915
    %v918 = vor.u32 %v916, %v917
    %v919 = vsub.s32 4294967266, %v914
    %v920 = vadd.s32 %v919, 127
    %v921 = vshll.u32 %v920, 23
    %v922 = vor.u32 4788187, %v921
    %v923 = vand.u32 2147483647, %v922
    %v925 = vcvt.s32.f32 %v918
    %v926 = vmul.f32 %v925, %v923
    %v927 = vxor.u32 %v926, 2147483648
    %v928 = vsel %vm845, %v927, %v926
    %v929 = vsub.s32 4, %v905
    %v930 = vsel %vm845, %v929, %v905
    %v931 = vsel %vm844, %v687, %v928
    %v932 = vsel %vm844, 0, %v930
    %v933 = vcosq.f32.pop %v931
    %v934 = vsinq.f32.pop %v931
    %vm935 = vweird.f32 %v687
    %v936 = vadd.s32 %v932, 3
    %v937 = vand.u32 %v936, 3
    %vm938 = vcmp.lt.s32.totalorder %v937, 2
    %vm939 = vcmp.eq.s32.totalorder %v937, 0
    %v940 = vxor.u32 %v934, 2147483648
    %v941 = vsel %vm939, %v933, %v940
    %vm942 = vcmp.eq.s32.totalorder %v937, 2
    %v943 = vxor.u32 %v933, 2147483648
    %v944 = vsel %vm942, %v943, %v934
    %v945 = vsel %vm938, %v941, %v944
    %v946 = vsel %vm935, nan, %v945
    %v947 = vmul.f32 %v946, 0.1
    %v948 = vadd.f32 %v947, %v687
    %v949 = vmul.f32 %v687, 0.1
    %v951 = vrot.slane %v949, 2
    %v953 = vadd.f32 %v948, %v951
    %v954 = vmul.f32 %v842, %v699
    %v955 = vadd.f32 %v954, %v699
    %v956 = vmul.f32 %v723, 0.1
    %v957 = vadd.f32 %v955, %v956
    %v959 = vrot.slane %v699, 1
    %v961 = vmul.f32 %v842, %v959
    %v962 = vadd.f32 %v961, %v959
    %v964 = vrot.slane %v956, 1
    %v966 = vadd.f32 %v962, %v964
    %v967 = vrot.slane %v699, 2
    %v969 = vmul.f32 %v842, %v967
    %v970 = vadd.f32 %v969, %v967
    %v971 = vrot.slane %v956, 2
    %v973 = vadd.f32 %v970, %v971
    %v974 = vrot.slane %v699, 3
    %v976 = vmul.f32 %v842, %v974
    %v977 = vadd.f32 %v976, %v974
    %v978 = vrot.slane %v956, 3
    %v980 = vadd.f32 %v977, %v978
    %v982 = vrot.slane %v711, 7
    %v984 = vmul.f32 %v842, %v982
    %v985 = vadd.f32 %v984, %v982
    %v986 = vmul.f32 %v735, 0.1
    %v988 = vrot.slane %v986, 7
    %v990 = vadd.f32 %v985, %v988
    %v991 = vmul.f32 %v842, %v711
    %v992 = vadd.f32 %v991, %v711
    %v993 = vadd.f32 %v992, %v986
    %v994 = vrot.slane %v711, 1
    %v996 = vmul.f32 %v842, %v994
    %v997 = vadd.f32 %v996, %v994
    %v998 = vrot.slane %v986, 1
    %v1000 = vadd.f32 %v997, %v998
    %v1001 = vrot.slane %v711, 2
    %v1003 = vmul.f32 %v842, %v1001
    %v1004 = vadd.f32 %v1003, %v1001
    %v1005 = vrot.slane %v986, 2
    %v1007 = vadd.f32 %v1004, %v1005
    %v1009 = vrot.slane %v723, 6
    %v1011 = vmul.f32 %v842, %v1009
    %v1012 = vadd.f32 %v1011, %v1009
    %v1013 = vrot.slane %v723, 7
    %v1015 = vmul.f32 %v842, %v1013
    %v1016 = vadd.f32 %v1015, %v1013
    %v1017 = vmul.f32 %v842, %v723
    %v1018 = vadd.f32 %v1017, %v723
    %v1019 = vrot.slane %v723, 1
    %v1021 = vmul.f32 %v842, %v1019
    %v1022 = vadd.f32 %v1021, %v1019
    %v1024 = vrot.slane %v735, 5
    %v1026 = vmul.f32 %v842, %v1024
    %v1027 = vadd.f32 %v1026, %v1024
    %v1028 = vrot.slane %v735, 6
    %v1030 = vmul.f32 %v842, %v1028
    %v1031 = vadd.f32 %v1030, %v1028
    %v1032 = vrot.slane %v735, 7
    %v1034 = vmul.f32 %v842, %v1032
    %v1035 = vadd.f32 %v1034, %v1032
    %v1036 = vmul.f32 %v842, %v735
    %v1037 = vadd.f32 %v1036, %v735
    %v1038 = vmul.f32 %v957, %v842
    %v1039 = vadd.f32 %v1038, %v957
    %v1040 = vmul.f32 %v973, 0.1
    %v1041 = vadd.f32 %v1039, %v1040
    %v1042 = vadd.f32 %v1041, 0.01
    %v1044 = vrot.slane %v842, 1
    %v1046 = vmul.f32 %v966, %v1044
    %v1047 = vadd.f32 %v1046, %v966
    %v1048 = vmul.f32 %v980, 0.1
    %v1049 = vadd.f32 %v1047, %v1048
    %v1050 = vrot.slane %v842, 2
    %v1052 = vmul.f32 %v973, %v1050
    %v1053 = vadd.f32 %v1052, %v973
    %v1054 = vrot.slane %v842, 3
    %v1056 = vmul.f32 %v980, %v1054
    %v1057 = vadd.f32 %v1056, %v980
    %v1058 = vrot.slane %v842, 7
    %v1060 = vmul.f32 %v990, %v1058
    %v1061 = vadd.f32 %v1060, %v990
    %v1062 = vmul.f32 %v1000, 0.1
    %v1063 = vadd.f32 %v1061, %v1062
    %v1064 = vmul.f32 %v993, %v842
    %v1065 = vadd.f32 %v1064, %v993
    %v1066 = vmul.f32 %v1007, 0.1
    %v1067 = vadd.f32 %v1065, %v1066
    %v1068 = vadd.f32 %v1067, 0.01
    %v1069 = vmul.f32 %v1000, %v1044
    %v1070 = vadd.f32 %v1069, %v1000
    %v1071 = vmul.f32 %v1007, %v1050
    %v1072 = vadd.f32 %v1071, %v1007
    %v1073 = vrot.slane %v842, 6
    %v1075 = vmul.f32 %v1012, %v1073
    %v1076 = vadd.f32 %v1075, %v1012
    %v1077 = vmul.f32 %v1018, 0.1
    %v1078 = vadd.f32 %v1076, %v1077
    %v1079 = vmul.f32 %v1016, %v1058
    %v1080 = vadd.f32 %v1079, %v1016
    %v1081 = vmul.f32 %v1022, 0.1
    %v1082 = vadd.f32 %v1080, %v1081
    %v1083 = vmul.f32 %v1018, %v842
    %v1084 = vadd.f32 %v1083, %v1018
    %v1085 = vadd.f32 %v1084, 0.01
    %v1086 = vmul.f32 %v1022, %v1044
    %v1087 = vadd.f32 %v1086, %v1022
    %v1088 = vrot.slane %v842, 5
    %v1090 = vmul.f32 %v1027, %v1088
    %v1091 = vadd.f32 %v1090, %v1027
    %v1092 = vmul.f32 %v1035, 0.1
    %v1093 = vadd.f32 %v1091, %v1092
    %v1094 = vmul.f32 %v1031, %v1073
    %v1095 = vadd.f32 %v1094, %v1031
    %v1096 = vmul.f32 %v1037, 0.1
    %v1097 = vadd.f32 %v1095, %v1096
    %v1098 = vmul.f32 %v1035, %v1058
    %v1099 = vadd.f32 %v1098, %v1035
    %v1100 = vmul.f32 %v1037, %v842
    %v1101 = vadd.f32 %v1100, %v1037
    %v1102 = vadd.f32 %v1101, 0.01
    %v1103 = vadd.f32 %v1042, 0.1
    %v1104 = vadd.f32 %v1068, 0.1
    %v1106 = vrot.slane %v1104, 1
    %v1108 = vmul.f32 %v1103, %v1106
    %v1110 = vrot.slane %v1063, 1
    %v1112 = vmul.f32 %v1049, %v1110
    %v1113 = vsub.f32 %v1108, %v1112
    %v1114 = vrcp.pop %v1113
    %v1116 = vrot.slane %v1114, 7
    %v1118 = vmul.f32 %v1104, %v1116
    %v1119 = vsub.f32 0.0, %v1049
    %v1120 = vmul.f32 %v1119, %v1114
    %v1121 = vsub.f32 0.0, %v1063
    %v1122 = vmul.f32 %v1121, %v1116
    %v1123 = vmul.f32 %v1103, %v1114
    %v1125 = vrot.slane %v1118, 1
    %v1127 = vmul.f32 %v1042, %v1125
    %v1128 = vadd.f32 %v1127, 0.0
    %v1130 = vrot.slane %v1122, 1
    %v1132 = vmul.f32 %v1049, %v1130
    %v1133 = vadd.f32 %v1128, %v1132
    %v1134 = vmul.f32 %v1042, %v1120
    %v1135 = vadd.f32 %v1134, 0.0
    %v1136 = vmul.f32 %v1049, %v1123
    %v1137 = vadd.f32 %v1135, %v1136
    %v1138 = vmul.f32 %v1063, %v1118
    %v1139 = vadd.f32 %v1138, 0.0
    %v1140 = vmul.f32 %v1068, %v1122
    %v1141 = vadd.f32 %v1139, %v1140
    %v1143 = vrot.slane %v1120, 7
    %v1145 = vmul.f32 %v1063, %v1143
    %v1146 = vadd.f32 %v1145, 0.0
    %v1148 = vrot.slane %v1123, 7
    %v1150 = vmul.f32 %v1068, %v1148
    %v1151 = vadd.f32 %v1146, %v1150
    %v1152 = vrot.slane %v1118, 7
    %v1154 = vmul.f32 %v1078, %v1152
    %v1155 = vadd.f32 %v1154, 0.0
    %v1156 = vrot.slane %v1122, 7
    %v1158 = vmul.f32 %v1082, %v1156
    %v1159 = vadd.f32 %v1155, %v1158
    %v1160 = vrot.slane %v1120, 6
    %v1162 = vmul.f32 %v1078, %v1160
    %v1163 = vadd.f32 %v1162, 0.0
    %v1164 = vrot.slane %v1123, 6
    %v1166 = vmul.f32 %v1082, %v1164
    %v1167 = vadd.f32 %v1163, %v1166
    %v1168 = vrot.slane %v1118, 6
    %v1170 = vmul.f32 %v1093, %v1168
    %v1171 = vadd.f32 %v1170, 0.0
    %v1172 = vrot.slane %v1122, 6
    %v1174 = vmul.f32 %v1097, %v1172
    %v1175 = vadd.f32 %v1171, %v1174
    %v1176 = vrot.slane %v1120, 5
    %v1178 = vmul.f32 %v1093, %v1176
    %v1179 = vadd.f32 %v1178, 0.0
    %v1180 = vrot.slane %v1123, 5
    %v1182 = vmul.f32 %v1097, %v1180
    %v1183 = vadd.f32 %v1179, %v1182
    %v1184 = vsub.f32 %v738, %v953
    %v1185 = vmul.f32 %v1133, %v1184
    %v1186 = vadd.f32 %v1185, 0.0
    %v1188 = vrot.slane %v1184, 1
    %v1190 = vmul.f32 %v1137, %v1188
    %v1191 = vadd.f32 %v1186, %v1190
    %v1192 = vadd.f32 %v953, %v1191
    %v1193 = vrot.slane %v1184, 7
    %v1195 = vmul.f32 %v1141, %v1193
    %v1196 = vadd.f32 %v1195, 0.0
    %v1197 = vmul.f32 %v1151, %v1184
    %v1198 = vadd.f32 %v1196, %v1197
    %v1199 = vadd.f32 %v953, %v1198
    %v1200 = vrot.slane %v1184, 6
    %v1202 = vmul.f32 %v1159, %v1200
    %v1203 = vadd.f32 %v1202, 0.0
    %v1204 = vmul.f32 %v1167, %v1193
    %v1205 = vadd.f32 %v1203, %v1204
    %v1206 = vadd.f32 %v948, %v1205
    %v1207 = vrot.slane %v1184, 5
    %v1209 = vmul.f32 %v1175, %v1207
    %v1210 = vadd.f32 %v1209, 0.0
    %v1211 = vmul.f32 %v1183, %v1200
    %v1212 = vadd.f32 %v1210, %v1211
    %v1213 = vadd.f32 %v948, %v1212
    %v1214 = vmul.f32 %v1133, %v1042
    %v1215 = vadd.f32 %v1214, 0.0
    %v1216 = vmul.f32 %v1137, %v1110
    %v1217 = vadd.f32 %v1215, %v1216
    %v1218 = vsub.f32 %v1042, %v1217
    %v1219 = vmul.f32 %v1133, %v1049
    %v1220 = vadd.f32 %v1219, 0.0
    %v1222 = vrot.slane %v1068, 1
    %v1224 = vmul.f32 %v1137, %v1222
    %v1225 = vadd.f32 %v1220, %v1224
    %v1226 = vsub.f32 %v1049, %v1225
    %v1227 = vmul.f32 %v1133, %v1053
    %v1228 = vadd.f32 %v1227, 0.0
    %v1230 = vrot.slane %v1070, 1
    %v1232 = vmul.f32 %v1137, %v1230
    %v1233 = vadd.f32 %v1228, %v1232
    %v1234 = vsub.f32 %v1053, %v1233
    %v1235 = vmul.f32 %v1133, %v1057
    %v1236 = vadd.f32 %v1235, 0.0
    %v1238 = vrot.slane %v1072, 1
    %v1240 = vmul.f32 %v1137, %v1238
    %v1241 = vadd.f32 %v1236, %v1240
    %v1242 = vsub.f32 %v1057, %v1241
    %v1244 = vrot.slane %v1042, 7
    %v1246 = vmul.f32 %v1141, %v1244
    %v1247 = vadd.f32 %v1246, 0.0
    %v1248 = vmul.f32 %v1151, %v1063
    %v1249 = vadd.f32 %v1247, %v1248
    %v1250 = vsub.f32 %v1063, %v1249
    %v1252 = vrot.slane %v1049, 7
    %v1254 = vmul.f32 %v1141, %v1252
    %v1255 = vadd.f32 %v1254, 0.0
    %v1256 = vmul.f32 %v1151, %v1068
    %v1257 = vadd.f32 %v1255, %v1256
    %v1258 = vsub.f32 %v1068, %v1257
    %v1260 = vrot.slane %v1053, 7
    %v1262 = vmul.f32 %v1141, %v1260
    %v1263 = vadd.f32 %v1262, 0.0
    %v1264 = vmul.f32 %v1151, %v1070
    %v1265 = vadd.f32 %v1263, %v1264
    %v1266 = vsub.f32 %v1070, %v1265
    %v1268 = vrot.slane %v1057, 7
    %v1270 = vmul.f32 %v1141, %v1268
    %v1271 = vadd.f32 %v1270, 0.0
    %v1272 = vmul.f32 %v1151, %v1072
    %v1273 = vadd.f32 %v1271, %v1272
    %v1274 = vsub.f32 %v1072, %v1273
    %v1275 = vrot.slane %v1042, 6
    %v1277 = vmul.f32 %v1159, %v1275
    %v1278 = vadd.f32 %v1277, 0.0
    %v1279 = vrot.slane %v1063, 7
    %v1281 = vmul.f32 %v1167, %v1279
    %v1282 = vadd.f32 %v1278, %v1281
    %v1283 = vsub.f32 %v1078, %v1282
    %v1284 = vrot.slane %v1049, 6
    %v1286 = vmul.f32 %v1159, %v1284
    %v1287 = vadd.f32 %v1286, 0.0
    %v1288 = vrot.slane %v1068, 7
    %v1290 = vmul.f32 %v1167, %v1288
    %v1291 = vadd.f32 %v1287, %v1290
    %v1292 = vsub.f32 %v1082, %v1291
    %v1293 = vrot.slane %v1053, 6
    %v1295 = vmul.f32 %v1159, %v1293
    %v1296 = vadd.f32 %v1295, 0.0
    %v1297 = vrot.slane %v1070, 7
    %v1299 = vmul.f32 %v1167, %v1297
    %v1300 = vadd.f32 %v1296, %v1299
    %v1301 = vsub.f32 %v1085, %v1300
    %v1302 = vrot.slane %v1057, 6
    %v1304 = vmul.f32 %v1159, %v1302
    %v1305 = vadd.f32 %v1304, 0.0
    %v1306 = vrot.slane %v1072, 7
    %v1308 = vmul.f32 %v1167, %v1306
    %v1309 = vadd.f32 %v1305, %v1308
    %v1310 = vsub.f32 %v1087, %v1309
    %v1311 = vrot.slane %v1042, 5
    %v1313 = vmul.f32 %v1175, %v1311
    %v1314 = vadd.f32 %v1313, 0.0
    %v1315 = vrot.slane %v1063, 6
    %v1317 = vmul.f32 %v1183, %v1315
    %v1318 = vadd.f32 %v1314, %v1317
    %v1319 = vsub.f32 %v1093, %v1318
    %v1320 = vrot.slane %v1049, 5
    %v1322 = vmul.f32 %v1175, %v1320
    %v1323 = vadd.f32 %v1322, 0.0
    %v1324 = vrot.slane %v1068, 6
    %v1326 = vmul.f32 %v1183, %v1324
    %v1327 = vadd.f32 %v1323, %v1326
    %v1328 = vsub.f32 %v1097, %v1327
    %v1329 = vrot.slane %v1053, 5
    %v1331 = vmul.f32 %v1175, %v1329
    %v1332 = vadd.f32 %v1331, 0.0
    %v1333 = vrot.slane %v1070, 6
    %v1335 = vmul.f32 %v1183, %v1333
    %v1336 = vadd.f32 %v1332, %v1335
    %v1337 = vsub.f32 %v1099, %v1336
    %v1338 = vrot.slane %v1057, 5
    %v1340 = vmul.f32 %v1175, %v1338
    %v1341 = vadd.f32 %v1340, 0.0
    %v1342 = vrot.slane %v1072, 6
    %v1344 = vmul.f32 %v1183, %v1342
    %v1345 = vadd.f32 %v1341, %v1344
    %v1346 = vsub.f32 %v1102, %v1345
    %v1347 = vsel %vm682, %v1192, %v1199
    %v1348 = vsel %vm684, %v1347, %v1206
    %v1349 = vsel %vm686, %v1348, %v1213
    %v1351 = vrot.slane %v1226, 7
    %v1354 = vrot.slane %v1234, 6
    %v1357 = vrot.slane %v1242, 5
    %v1359 = vsel %vm682, %v1218, %v1351
    %v1360 = vsel %vm684, %v1359, %v1354
    %v1361 = vsel %vm686, %v1360, %v1357
    %v1363 = vrot.slane %v1250, 1
    %v1366 = vrot.slane %v1266, 7
    %v1369 = vrot.slane %v1274, 6
    %v1371 = vsel %vm682, %v1363, %v1258
    %v1372 = vsel %vm684, %v1371, %v1366
    %v1373 = vsel %vm686, %v1372, %v1369
    %v1375 = vrot.slane %v1283, 2
    %v1378 = vrot.slane %v1292, 1
    %v1381 = vrot.slane %v1310, 7
    %v1383 = vsel %vm682, %v1375, %v1378
    %v1384 = vsel %vm684, %v1383, %v1301
    %v1385 = vsel %vm686, %v1384, %v1381
    %v1387 = vrot.slane %v1319, 3
    %v1390 = vrot.slane %v1328, 2
    %v1393 = vrot.slane %v1337, 1
    %v1395 = vsel %vm682, %v1387, %v1390
    %v1396 = vsel %vm684, %v1395, %v1393
    %v1397 = vsel %vm686, %v1396, %v1346
    %s1398 = scalar_lea.vmem [#allocation10], 4
    %1399 = vst [vmem:[%s1398] sm:$0xf] %v1349
    %s1400 = scalar_lea.vmem [#allocation4], 4
    %v1401 = vld [vmem:[%s1400] sm:$0x3]
    %v1402 = vand.u32 2147483647, %v1349
    %vm1403 = vcmp.le.f32.partialorder %v1402, 0.7853982
    %vm1404 = vcmp.lt.s32.totalorder %v1349, 0
    %v1405 = vand.u32 %v1349, 2139095040
    %v1406 = vshrl.u32 %v1405, 23
    %v1407 = vsub.s32 %v1406, 127
    %v1408 = vand.u32 2147483647, %v1349
    %v1409 = vand.u32 %v1408, 8388607
    %v1410 = vor.u32 %v1409, 8388608
    %v1411 = vsub.s32 0, %v1410
    %v1412 = vadd.s32 %v1407, 1
    %vm1413 = vcmp.gt.s32.totalorder %v1412, 0
    %v1414 = vsel %vm1413, %v1412, 0
    %v1415 = vshrl.u32 %v1414, 5
    %v1416 = vand.u32 %v1414, 31
    %v1417 = vsub.s32 32, %v1416
    %v1418 = vshrl.u32 683565275, %v1417
    %v1419 = vshll.u32 683565275, %v1416
    %v1420 = vshrl.u32 2475754826, %v1417
    %v1421 = vor.u32 %v1419, %v1420
    %v1422 = vshll.u32 2475754826, %v1416
    %v1423 = vshrl.u32 2131351028, %v1417
    %v1424 = vor.u32 %v1422, %v1423
    %v1425 = vshll.u32 2131351028, %v1416
    %v1426 = vshrl.u32 2102212464, %v1417
    %v1427 = vor.u32 %v1425, %v1426
    %v1428 = vshll.u32 2102212464, %v1416
    %v1429 = vshrl.u32 920167782, %v1417
    %v1430 = vor.u32 %v1428, %v1429
    %v1431 = vshll.u32 920167782, %v1416
    %v1432 = vshrl.u32 1326507024, %v1417
    %v1433 = vor.u32 %v1431, %v1432
    %vm1434 = vcmp.lt.s32.totalorder %v1415, 1
    %vm1435 = vcmp.lt.s32.totalorder %v1415, 2
    %vm1436 = vcmp.lt.s32.totalorder %v1415, 3
    %vm1437 = vcmp.lt.s32.totalorder %v1415, 4
    %v1438 = vsel %vm1434, %v1418, %v1421
    %v1439 = vsel %vm1437, %v1427, 2102212464
    %v1440 = vsel %vm1436, %v1424, %v1439
    %v1441 = vsel %vm1435, %v1438, %v1440
    %v1442 = vsel %vm1434, %v1421, %v1424
    %v1443 = vsel %vm1437, %v1430, 920167782
    %v1444 = vsel %vm1436, %v1427, %v1443
    %v1445 = vsel %vm1435, %v1442, %v1444
    %v1446 = vsel %vm1434, %v1424, %v1427
    %v1447 = vsel %vm1437, %v1433, 1326507024
    %v1448 = vsel %vm1436, %v1430, %v1447
    %v1449 = vsel %vm1435, %v1446, %v1448
    %v1450 = vshll.u32 %v1410, 8
    %v1451 = vmul.u32.u64.compose %v1450, %v1449
    %v1452 = vextract.low.u32 %v1451
    %v1453 = vextract.high.u32 %v1451
    %v1454 = vmul.u32.u64.compose %v1450, %v1445
    %v1455 = vextract.low.u32 %v1454
    %v1456 = vextract.high.u32 %v1454
    %v1457 = vmul.u32 %v1450, %v1441
    %v1458 = vadd.s32 %v1453, %v1455
    %vm1459 = vc.u32 %v1453, %v1455
    %v1460 = vadd.s32 %v1456, 1
    %v1461 = vsel %vm1459, %v1460, %v1456
    %v1462 = vadd.s32 %v1457, %v1461
    %v1463 = vadd.s32 %v1462, 536870912
    %v1464 = vshrl.u32 %v1463, 30
    %v1465 = vshll.u32 %v1464, 30
    %v1466 = vsub.s32 %v1462, %v1465
    %vm1467 = vcmp.lt.s32.totalorder %v1466, 0
    %v1468 = vsub.s32 0, %v1466
    %v1469 = vsel %vm1467, %v1468, %v1466
    %v1470 = vclz %v1469
    %v1471 = vsub.s32 %v1470, 2
    %vm1472 = vcmp.gt.s32.totalorder 0, %v1471
    %v1473 = vsel %vm1472, 0, %v1471
    %v1474 = vsub.s32 32, %v1473
    %v1475 = vshll.u32 %v1466, %v1473
    %v1476 = vshrl.u32 %v1458, %v1474
    %v1477 = vor.u32 %v1475, %v1476
    %v1478 = vsub.s32 4294967266, %v1473
    %v1479 = vadd.s32 %v1478, 127
    %v1480 = vshll.u32 %v1479, 23
    %v1481 = vor.u32 4788187, %v1480
    %v1482 = vand.u32 2147483647, %v1481
    %v1484 = vcvt.s32.f32 %v1477
    %v1485 = vmul.f32 %v1484, %v1482
    %v1486 = vxor.u32 %v1485, 2147483648
    %v1487 = vsel %vm1404, %v1486, %v1485
    %v1488 = vsub.s32 4, %v1464
    %v1489 = vsel %vm1404, %v1488, %v1464
    %v1490 = vsel %vm1403, %v1349, %v1487
    %v1491 = vsel %vm1403, 0, %v1489
    %v1492 = vcosq.f32.pop %v1490
    %v1493 = vsinq.f32.pop %v1490
    %vm1494 = vweird.f32 %v1349
    %v1495 = vand.u32 %v1491, 3
    %vm1496 = vcmp.lt.s32.totalorder %v1495, 2
    %vm1497 = vcmp.eq.s32.totalorder %v1495, 0
    %v1498 = vxor.u32 %v1493, 2147483648
    %v1499 = vsel %vm1497, %v1492, %v1498
    %vm1500 = vcmp.eq.s32.totalorder %v1495, 2
    %v1501 = vxor.u32 %v1492, 2147483648
    %v1502 = vsel %vm1500, %v1501, %v1493
    %v1503 = vsel %vm1496, %v1499, %v1502
    %v1504 = vsel %vm1494, nan, %v1503
    %v1505 = vmul.f32 %v1504, 0.1
    %v1506 = vand.u32 2147483647, %v1349
    %vm1507 = vcmp.le.f32.partialorder %v1506, 0.7853982
    %vm1508 = vcmp.lt.s32.totalorder %v1349, 0
    %v1509 = vand.u32 %v1349, 2139095040
    %v1510 = vshrl.u32 %v1509, 23
    %v1511 = vsub.s32 %v1510, 127
    %v1512 = vand.u32 2147483647, %v1349
    %v1513 = vand.u32 %v1512, 8388607
    %v1514 = vor.u32 %v1513, 8388608
    %v1515 = vsub.s32 0, %v1514
    %v1516 = vadd.s32 %v1511, 1
    %vm1517 = vcmp.gt.s32.totalorder %v1516, 0
    %v1518 = vsel %vm1517, %v1516, 0
    %v1519 = vshrl.u32 %v1518, 5
    %v1520 = vand.u32 %v1518, 31
    %v1521 = vsub.s32 32, %v1520
    %v1522 = vshrl.u32 683565275, %v1521
    %v1523 = vshll.u32 683565275, %v1520
    %v1524 = vshrl.u32 2475754826, %v1521
    %v1525 = vor.u32 %v1523, %v1524
    %v1526 = vshll.u32 2475754826, %v1520
    %v1527 = vshrl.u32 2131351028, %v1521
    %v1528 = vor.u32 %v1526, %v1527
    %v1529 = vshll.u32 2131351028, %v1520
    %v1530 = vshrl.u32 2102212464, %v1521
    %v1531 = vor.u32 %v1529, %v1530
    %v1532 = vshll.u32 2102212464, %v1520
    %v1533 = vshrl.u32 920167782, %v1521
    %v1534 = vor.u32 %v1532, %v1533
    %v1535 = vshll.u32 920167782, %v1520
    %v1536 = vshrl.u32 1326507024, %v1521
    %v1537 = vor.u32 %v1535, %v1536
    %vm1538 = vcmp.lt.s32.totalorder %v1519, 1
    %vm1539 = vcmp.lt.s32.totalorder %v1519, 2
    %vm1540 = vcmp.lt.s32.totalorder %v1519, 3
    %vm1541 = vcmp.lt.s32.totalorder %v1519, 4
    %v1542 = vsel %vm1538, %v1522, %v1525
    %v1543 = vsel %vm1541, %v1531, 2102212464
    %v1544 = vsel %vm1540, %v1528, %v1543
    %v1545 = vsel %vm1539, %v1542, %v1544
    %v1546 = vsel %vm1538, %v1525, %v1528
    %v1547 = vsel %vm1541, %v1534, 920167782
    %v1548 = vsel %vm1540, %v1531, %v1547
    %v1549 = vsel %vm1539, %v1546, %v1548
    %v1550 = vsel %vm1538, %v1528, %v1531
    %v1551 = vsel %vm1541, %v1537, 1326507024
    %v1552 = vsel %vm1540, %v1534, %v1551
    %v1553 = vsel %vm1539, %v1550, %v1552
    %v1554 = vshll.u32 %v1514, 8
    %v1555 = vmul.u32.u64.compose %v1554, %v1553
    %v1556 = vextract.low.u32 %v1555
    %v1557 = vextract.high.u32 %v1555
    %v1558 = vmul.u32.u64.compose %v1554, %v1549
    %v1559 = vextract.low.u32 %v1558
    %v1560 = vextract.high.u32 %v1558
    %v1561 = vmul.u32 %v1554, %v1545
    %v1562 = vadd.s32 %v1557, %v1559
    %vm1563 = vc.u32 %v1557, %v1559
    %v1564 = vadd.s32 %v1560, 1
    %v1565 = vsel %vm1563, %v1564, %v1560
    %v1566 = vadd.s32 %v1561, %v1565
    %v1567 = vadd.s32 %v1566, 536870912
    %v1568 = vshrl.u32 %v1567, 30
    %v1569 = vshll.u32 %v1568, 30
    %v1570 = vsub.s32 %v1566, %v1569
    %vm1571 = vcmp.lt.s32.totalorder %v1570, 0
    %v1572 = vsub.s32 0, %v1570
    %v1573 = vsel %vm1571, %v1572, %v1570
    %v1574 = vclz %v1573
    %v1575 = vsub.s32 %v1574, 2
    %vm1576 = vcmp.gt.s32.totalorder 0, %v1575
    %v1577 = vsel %vm1576, 0, %v1575
    %v1578 = vsub.s32 32, %v1577
    %v1579 = vshll.u32 %v1570, %v1577
    %v1580 = vshrl.u32 %v1562, %v1578
    %v1581 = vor.u32 %v1579, %v1580
    %v1582 = vsub.s32 4294967266, %v1577
    %v1583 = vadd.s32 %v1582, 127
    %v1584 = vshll.u32 %v1583, 23
    %v1585 = vor.u32 4788187, %v1584
    %v1586 = vand.u32 2147483647, %v1585
    %v1588 = vcvt.s32.f32 %v1581
    %v1589 = vmul.f32 %v1588, %v1586
    %v1590 = vxor.u32 %v1589, 2147483648
    %v1591 = vsel %vm1508, %v1590, %v1589
    %v1592 = vsub.s32 4, %v1568
    %v1593 = vsel %vm1508, %v1592, %v1568
    %v1594 = vsel %vm1507, %v1349, %v1591
    %v1595 = vsel %vm1507, 0, %v1593
    %v1596 = vcosq.f32.pop %v1594
    %v1597 = vsinq.f32.pop %v1594
    %vm1598 = vweird.f32 %v1349
    %v1599 = vadd.s32 %v1595, 3
    %v1600 = vand.u32 %v1599, 3
    %vm1601 = vcmp.lt.s32.totalorder %v1600, 2
    %vm1602 = vcmp.eq.s32.totalorder %v1600, 0
    %v1603 = vxor.u32 %v1597, 2147483648
    %v1604 = vsel %vm1602, %v1596, %v1603
    %vm1605 = vcmp.eq.s32.totalorder %v1600, 2
    %v1606 = vxor.u32 %v1596, 2147483648
    %v1607 = vsel %vm1605, %v1606, %v1597
    %v1608 = vsel %vm1601, %v1604, %v1607
    %v1609 = vsel %vm1598, nan, %v1608
    %v1610 = vmul.f32 %v1609, 0.1
    %v1611 = vadd.f32 %v1610, %v1349
    %v1612 = vmul.f32 %v1349, 0.1
    %v1614 = vrot.slane %v1612, 2
    %v1616 = vadd.f32 %v1611, %v1614
    %v1617 = vmul.f32 %v1505, %v1361
    %v1618 = vadd.f32 %v1617, %v1361
    %v1619 = vmul.f32 %v1385, 0.1
    %v1620 = vadd.f32 %v1618, %v1619
    %v1622 = vrot.slane %v1361, 1
    %v1624 = vmul.f32 %v1505, %v1622
    %v1625 = vadd.f32 %v1624, %v1622
    %v1627 = vrot.slane %v1619, 1
    %v1629 = vadd.f32 %v1625, %v1627
    %v1630 = vrot.slane %v1361, 2
    %v1632 = vmul.f32 %v1505, %v1630
    %v1633 = vadd.f32 %v1632, %v1630
    %v1634 = vrot.slane %v1619, 2
    %v1636 = vadd.f32 %v1633, %v1634
    %v1637 = vrot.slane %v1361, 3
    %v1639 = vmul.f32 %v1505, %v1637
    %v1640 = vadd.f32 %v1639, %v1637
    %v1641 = vrot.slane %v1619, 3
    %v1643 = vadd.f32 %v1640, %v1641
    %v1645 = vrot.slane %v1373, 7
    %v1647 = vmul.f32 %v1505, %v1645
    %v1648 = vadd.f32 %v1647, %v1645
    %v1649 = vmul.f32 %v1397, 0.1
    %v1651 = vrot.slane %v1649, 7
    %v1653 = vadd.f32 %v1648, %v1651
    %v1654 = vmul.f32 %v1505, %v1373
    %v1655 = vadd.f32 %v1654, %v1373
    %v1656 = vadd.f32 %v1655, %v1649
    %v1657 = vrot.slane %v1373, 1
    %v1659 = vmul.f32 %v1505, %v1657
    %v1660 = vadd.f32 %v1659, %v1657
    %v1661 = vrot.slane %v1649, 1
    %v1663 = vadd.f32 %v1660, %v1661
    %v1664 = vrot.slane %v1373, 2
    %v1666 = vmul.f32 %v1505, %v1664
    %v1667 = vadd.f32 %v1666, %v1664
    %v1668 = vrot.slane %v1649, 2
    %v1670 = vadd.f32 %v1667, %v1668
    %v1672 = vrot.slane %v1385, 6
    %v1674 = vmul.f32 %v1505, %v1672
    %v1675 = vadd.f32 %v1674, %v1672
    %v1676 = vrot.slane %v1385, 7
    %v1678 = vmul.f32 %v1505, %v1676
    %v1679 = vadd.f32 %v1678, %v1676
    %v1680 = vmul.f32 %v1505, %v1385
    %v1681 = vadd.f32 %v1680, %v1385
    %v1682 = vrot.slane %v1385, 1
    %v1684 = vmul.f32 %v1505, %v1682
    %v1685 = vadd.f32 %v1684, %v1682
    %v1687 = vrot.slane %v1397, 5
    %v1689 = vmul.f32 %v1505, %v1687
    %v1690 = vadd.f32 %v1689, %v1687
    %v1691 = vrot.slane %v1397, 6
    %v1693 = vmul.f32 %v1505, %v1691
    %v1694 = vadd.f32 %v1693, %v1691
    %v1695 = vrot.slane %v1397, 7
    %v1697 = vmul.f32 %v1505, %v1695
    %v1698 = vadd.f32 %v1697, %v1695
    %v1699 = vmul.f32 %v1505, %v1397
    %v1700 = vadd.f32 %v1699, %v1397
    %v1701 = vmul.f32 %v1620, %v1505
    %v1702 = vadd.f32 %v1701, %v1620
    %v1703 = vmul.f32 %v1636, 0.1
    %v1704 = vadd.f32 %v1702, %v1703
    %v1705 = vadd.f32 %v1704, 0.01
    %v1707 = vrot.slane %v1505, 1
    %v1709 = vmul.f32 %v1629, %v1707
    %v1710 = vadd.f32 %v1709, %v1629
    %v1711 = vmul.f32 %v1643, 0.1
    %v1712 = vadd.f32 %v1710, %v1711
    %v1713 = vrot.slane %v1505, 2
    %v1715 = vmul.f32 %v1636, %v1713
    %v1716 = vadd.f32 %v1715, %v1636
    %v1717 = vrot.slane %v1505, 3
    %v1719 = vmul.f32 %v1643, %v1717
    %v1720 = vadd.f32 %v1719, %v1643
    %v1721 = vrot.slane %v1505, 7
    %v1723 = vmul.f32 %v1653, %v1721
    %v1724 = vadd.f32 %v1723, %v1653
    %v1725 = vmul.f32 %v1663, 0.1
    %v1726 = vadd.f32 %v1724, %v1725
    %v1727 = vmul.f32 %v1656, %v1505
    %v1728 = vadd.f32 %v1727, %v1656
    %v1729 = vmul.f32 %v1670, 0.1
    %v1730 = vadd.f32 %v1728, %v1729
    %v1731 = vadd.f32 %v1730, 0.01
    %v1732 = vmul.f32 %v1663, %v1707
    %v1733 = vadd.f32 %v1732, %v1663
    %v1734 = vmul.f32 %v1670, %v1713
    %v1735 = vadd.f32 %v1734, %v1670
    %v1736 = vrot.slane %v1505, 6
    %v1738 = vmul.f32 %v1675, %v1736
    %v1739 = vadd.f32 %v1738, %v1675
    %v1740 = vmul.f32 %v1681, 0.1
    %v1741 = vadd.f32 %v1739, %v1740
    %v1742 = vmul.f32 %v1679, %v1721
    %v1743 = vadd.f32 %v1742, %v1679
    %v1744 = vmul.f32 %v1685, 0.1
    %v1745 = vadd.f32 %v1743, %v1744
    %v1746 = vmul.f32 %v1681, %v1505
    %v1747 = vadd.f32 %v1746, %v1681
    %v1748 = vadd.f32 %v1747, 0.01
    %v1749 = vmul.f32 %v1685, %v1707
    %v1750 = vadd.f32 %v1749, %v1685
    %v1751 = vrot.slane %v1505, 5
    %v1753 = vmul.f32 %v1690, %v1751
    %v1754 = vadd.f32 %v1753, %v1690
    %v1755 = vmul.f32 %v1698, 0.1
    %v1756 = vadd.f32 %v1754, %v1755
    %v1757 = vmul.f32 %v1694, %v1736
    %v1758 = vadd.f32 %v1757, %v1694
    %v1759 = vmul.f32 %v1700, 0.1
    %v1760 = vadd.f32 %v1758, %v1759
    %v1761 = vmul.f32 %v1698, %v1721
    %v1762 = vadd.f32 %v1761, %v1698
    %v1763 = vmul.f32 %v1700, %v1505
    %v1764 = vadd.f32 %v1763, %v1700
    %v1765 = vadd.f32 %v1764, 0.01
    %v1766 = vadd.f32 %v1705, 0.1
    %v1767 = vadd.f32 %v1731, 0.1
    %v1769 = vrot.slane %v1767, 1
    %v1771 = vmul.f32 %v1766, %v1769
    %v1773 = vrot.slane %v1726, 1
    %v1775 = vmul.f32 %v1712, %v1773
    %v1776 = vsub.f32 %v1771, %v1775
    %v1777 = vrcp.pop %v1776
    %v1779 = vrot.slane %v1777, 7
    %v1781 = vmul.f32 %v1767, %v1779
    %v1782 = vsub.f32 0.0, %v1712
    %v1783 = vmul.f32 %v1782, %v1777
    %v1784 = vsub.f32 0.0, %v1726
    %v1785 = vmul.f32 %v1784, %v1779
    %v1786 = vmul.f32 %v1766, %v1777
    %v1788 = vrot.slane %v1781, 1
    %v1790 = vmul.f32 %v1705, %v1788
    %v1791 = vadd.f32 %v1790, 0.0
    %v1793 = vrot.slane %v1785, 1
    %v1795 = vmul.f32 %v1712, %v1793
    %v1796 = vadd.f32 %v1791, %v1795
    %v1797 = vmul.f32 %v1705, %v1783
    %v1798 = vadd.f32 %v1797, 0.0
    %v1799 = vmul.f32 %v1712, %v1786
    %v1800 = vadd.f32 %v1798, %v1799
    %v1801 = vmul.f32 %v1726, %v1781
    %v1802 = vadd.f32 %v1801, 0.0
    %v1803 = vmul.f32 %v1731, %v1785
    %v1804 = vadd.f32 %v1802, %v1803
    %v1806 = vrot.slane %v1783, 7
    %v1808 = vmul.f32 %v1726, %v1806
    %v1809 = vadd.f32 %v1808, 0.0
    %v1811 = vrot.slane %v1786, 7
    %v1813 = vmul.f32 %v1731, %v1811
    %v1814 = vadd.f32 %v1809, %v1813
    %v1815 = vrot.slane %v1781, 7
    %v1817 = vmul.f32 %v1741, %v1815
    %v1818 = vadd.f32 %v1817, 0.0
    %v1819 = vrot.slane %v1785, 7
    %v1821 = vmul.f32 %v1745, %v1819
    %v1822 = vadd.f32 %v1818, %v1821
    %v1823 = vrot.slane %v1783, 6
    %v1825 = vmul.f32 %v1741, %v1823
    %v1826 = vadd.f32 %v1825, 0.0
    %v1827 = vrot.slane %v1786, 6
    %v1829 = vmul.f32 %v1745, %v1827
    %v1830 = vadd.f32 %v1826, %v1829
    %v1831 = vrot.slane %v1781, 6
    %v1833 = vmul.f32 %v1756, %v1831
    %v1834 = vadd.f32 %v1833, 0.0
    %v1835 = vrot.slane %v1785, 6
    %v1837 = vmul.f32 %v1760, %v1835
    %v1838 = vadd.f32 %v1834, %v1837
    %v1839 = vrot.slane %v1783, 5
    %v1841 = vmul.f32 %v1756, %v1839
    %v1842 = vadd.f32 %v1841, 0.0
    %v1843 = vrot.slane %v1786, 5
    %v1845 = vmul.f32 %v1760, %v1843
    %v1846 = vadd.f32 %v1842, %v1845
    %v1847 = vsub.f32 %v1401, %v1616
    %v1848 = vmul.f32 %v1796, %v1847
    %v1849 = vadd.f32 %v1848, 0.0
    %v1851 = vrot.slane %v1847, 1
    %v1853 = vmul.f32 %v1800, %v1851
    %v1854 = vadd.f32 %v1849, %v1853
    %v1855 = vadd.f32 %v1616, %v1854
    %v1856 = vrot.slane %v1847, 7
    %v1858 = vmul.f32 %v1804, %v1856
    %v1859 = vadd.f32 %v1858, 0.0
    %v1860 = vmul.f32 %v1814, %v1847
    %v1861 = vadd.f32 %v1859, %v1860
    %v1862 = vadd.f32 %v1616, %v1861
    %v1863 = vrot.slane %v1847, 6
    %v1865 = vmul.f32 %v1822, %v1863
    %v1866 = vadd.f32 %v1865, 0.0
    %v1867 = vmul.f32 %v1830, %v1856
    %v1868 = vadd.f32 %v1866, %v1867
    %v1869 = vadd.f32 %v1611, %v1868
    %v1870 = vrot.slane %v1847, 5
    %v1872 = vmul.f32 %v1838, %v1870
    %v1873 = vadd.f32 %v1872, 0.0
    %v1874 = vmul.f32 %v1846, %v1863
    %v1875 = vadd.f32 %v1873, %v1874
    %v1876 = vadd.f32 %v1611, %v1875
    %v1877 = vmul.f32 %v1796, %v1705
    %v1878 = vadd.f32 %v1877, 0.0
    %v1879 = vmul.f32 %v1800, %v1773
    %v1880 = vadd.f32 %v1878, %v1879
    %v1881 = vsub.f32 %v1705, %v1880
    %v1882 = vmul.f32 %v1796, %v1712
    %v1883 = vadd.f32 %v1882, 0.0
    %v1885 = vrot.slane %v1731, 1
    %v1887 = vmul.f32 %v1800, %v1885
    %v1888 = vadd.f32 %v1883, %v1887
    %v1889 = vsub.f32 %v1712, %v1888
    %v1890 = vmul.f32 %v1796, %v1716
    %v1891 = vadd.f32 %v1890, 0.0
    %v1893 = vrot.slane %v1733, 1
    %v1895 = vmul.f32 %v1800, %v1893
    %v1896 = vadd.f32 %v1891, %v1895
    %v1897 = vsub.f32 %v1716, %v1896
    %v1898 = vmul.f32 %v1796, %v1720
    %v1899 = vadd.f32 %v1898, 0.0
    %v1901 = vrot.slane %v1735, 1
    %v1903 = vmul.f32 %v1800, %v1901
    %v1904 = vadd.f32 %v1899, %v1903
    %v1905 = vsub.f32 %v1720, %v1904
    %v1907 = vrot.slane %v1705, 7
    %v1909 = vmul.f32 %v1804, %v1907
    %v1910 = vadd.f32 %v1909, 0.0
    %v1911 = vmul.f32 %v1814, %v1726
    %v1912 = vadd.f32 %v1910, %v1911
    %v1913 = vsub.f32 %v1726, %v1912
    %v1915 = vrot.slane %v1712, 7
    %v1917 = vmul.f32 %v1804, %v1915
    %v1918 = vadd.f32 %v1917, 0.0
    %v1919 = vmul.f32 %v1814, %v1731
    %v1920 = vadd.f32 %v1918, %v1919
    %v1921 = vsub.f32 %v1731, %v1920
    %v1923 = vrot.slane %v1716, 7
    %v1925 = vmul.f32 %v1804, %v1923
    %v1926 = vadd.f32 %v1925, 0.0
    %v1927 = vmul.f32 %v1814, %v1733
    %v1928 = vadd.f32 %v1926, %v1927
    %v1929 = vsub.f32 %v1733, %v1928
    %v1931 = vrot.slane %v1720, 7
    %v1933 = vmul.f32 %v1804, %v1931
    %v1934 = vadd.f32 %v1933, 0.0
    %v1935 = vmul.f32 %v1814, %v1735
    %v1936 = vadd.f32 %v1934, %v1935
    %v1937 = vsub.f32 %v1735, %v1936
    %v1938 = vrot.slane %v1705, 6
    %v1940 = vmul.f32 %v1822, %v1938
    %v1941 = vadd.f32 %v1940, 0.0
    %v1942 = vrot.slane %v1726, 7
    %v1944 = vmul.f32 %v1830, %v1942
    %v1945 = vadd.f32 %v1941, %v1944
    %v1946 = vsub.f32 %v1741, %v1945
    %v1947 = vrot.slane %v1712, 6
    %v1949 = vmul.f32 %v1822, %v1947
    %v1950 = vadd.f32 %v1949, 0.0
    %v1951 = vrot.slane %v1731, 7
    %v1953 = vmul.f32 %v1830, %v1951
    %v1954 = vadd.f32 %v1950, %v1953
    %v1955 = vsub.f32 %v1745, %v1954
    %v1956 = vrot.slane %v1716, 6
    %v1958 = vmul.f32 %v1822, %v1956
    %v1959 = vadd.f32 %v1958, 0.0
    %v1960 = vrot.slane %v1733, 7
    %v1962 = vmul.f32 %v1830, %v1960
    %v1963 = vadd.f32 %v1959, %v1962
    %v1964 = vsub.f32 %v1748, %v1963
    %v1965 = vrot.slane %v1720, 6
    %v1967 = vmul.f32 %v1822, %v1965
    %v1968 = vadd.f32 %v1967, 0.0
    %v1969 = vrot.slane %v1735, 7
    %v1971 = vmul.f32 %v1830, %v1969
    %v1972 = vadd.f32 %v1968, %v1971
    %v1973 = vsub.f32 %v1750, %v1972
    %v1974 = vrot.slane %v1705, 5
    %v1976 = vmul.f32 %v1838, %v1974
    %v1977 = vadd.f32 %v1976, 0.0
    %v1978 = vrot.slane %v1726, 6
    %v1980 = vmul.f32 %v1846, %v1978
    %v1981 = vadd.f32 %v1977, %v1980
    %v1982 = vsub.f32 %v1756, %v1981
    %v1983 = vrot.slane %v1712, 5
    %v1985 = vmul.f32 %v1838, %v1983
    %v1986 = vadd.f32 %v1985, 0.0
    %v1987 = vrot.slane %v1731, 6
    %v1989 = vmul.f32 %v1846, %v1987
    %v1990 = vadd.f32 %v1986, %v1989
    %v1991 = vsub.f32 %v1760, %v1990
    %v1992 = vrot.slane %v1716, 5
    %v1994 = vmul.f32 %v1838, %v1992
    %v1995 = vadd.f32 %v1994, 0.0
    %v1996 = vrot.slane %v1733, 6
    %v1998 = vmul.f32 %v1846, %v1996
    %v1999 = vadd.f32 %v1995, %v1998
    %v2000 = vsub.f32 %v1762, %v1999
    %v2001 = vrot.slane %v1720, 5
    %v2003 = vmul.f32 %v1838, %v2001
    %v2004 = vadd.f32 %v2003, 0.0
    %v2005 = vrot.slane %v1735, 6
    %v2007 = vmul.f32 %v1846, %v2005
    %v2008 = vadd.f32 %v2004, %v2007
    %v2009 = vsub.f32 %v1765, %v2008
    %v2010 = vsel %vm682, %v1855, %v1862
    %v2011 = vsel %vm684, %v2010, %v1869
    %v2012 = vsel %vm686, %v2011, %v1876
    %v2014 = vrot.slane %v1889, 7
    %v2017 = vrot.slane %v1897, 6
    %v2020 = vrot.slane %v1905, 5
    %v2022 = vsel %vm682, %v1881, %v2014
    %v2023 = vsel %vm684, %v2022, %v2017
    %v2024 = vsel %vm686, %v2023, %v2020
    %v2026 = vrot.slane %v1913, 1
    %v2029 = vrot.slane %v1929, 7
    %v2032 = vrot.slane %v1937, 6
    %v2034 = vsel %vm682, %v2026, %v1921
    %v2035 = vsel %vm684, %v2034, %v2029
    %v2036 = vsel %vm686, %v2035, %v2032
    %v2038 = vrot.slane %v1946, 2
    %v2041 = vrot.slane %v1955, 1
    %v2044 = vrot.slane %v1973, 7
    %v2046 = vsel %vm682, %v2038, %v2041
    %v2047 = vsel %vm684, %v2046, %v1964
    %v2048 = vsel %vm686, %v2047, %v2044
    %v2050 = vrot.slane %v1982, 3
    %v2053 = vrot.slane %v1991, 2
    %v2056 = vrot.slane %v2000, 1
    %v2058 = vsel %vm682, %v2050, %v2053
    %v2059 = vsel %vm684, %v2058, %v2056
    %v2060 = vsel %vm686, %v2059, %v2009
    %s2061 = scalar_lea.vmem [#allocation10], 8
    %2062 = vst [vmem:[%s2061] sm:$0xf] %v2012
    %s2063 = scalar_lea.vmem [#allocation4], 6
    %v2064 = vld [vmem:[%s2063] sm:$0x3]
    %v2065 = vand.u32 2147483647, %v2012
    %vm2066 = vcmp.le.f32.partialorder %v2065, 0.7853982
    %vm2067 = vcmp.lt.s32.totalorder %v2012, 0
    %v2068 = vand.u32 %v2012, 2139095040
    %v2069 = vshrl.u32 %v2068, 23
    %v2070 = vsub.s32 %v2069, 127
    %v2071 = vand.u32 2147483647, %v2012
    %v2072 = vand.u32 %v2071, 8388607
    %v2073 = vor.u32 %v2072, 8388608
    %v2074 = vsub.s32 0, %v2073
    %v2075 = vadd.s32 %v2070, 1
    %vm2076 = vcmp.gt.s32.totalorder %v2075, 0
    %v2077 = vsel %vm2076, %v2075, 0
    %v2078 = vshrl.u32 %v2077, 5
    %v2079 = vand.u32 %v2077, 31
    %v2080 = vsub.s32 32, %v2079
    %v2081 = vshrl.u32 683565275, %v2080
    %v2082 = vshll.u32 683565275, %v2079
    %v2083 = vshrl.u32 2475754826, %v2080
    %v2084 = vor.u32 %v2082, %v2083
    %v2085 = vshll.u32 2475754826, %v2079
    %v2086 = vshrl.u32 2131351028, %v2080
    %v2087 = vor.u32 %v2085, %v2086
    %v2088 = vshll.u32 2131351028, %v2079
    %v2089 = vshrl.u32 2102212464, %v2080
    %v2090 = vor.u32 %v2088, %v2089
    %v2091 = vshll.u32 2102212464, %v2079
    %v2092 = vshrl.u32 920167782, %v2080
    %v2093 = vor.u32 %v2091, %v2092
    %v2094 = vshll.u32 920167782, %v2079
    %v2095 = vshrl.u32 1326507024, %v2080
    %v2096 = vor.u32 %v2094, %v2095
    %vm2097 = vcmp.lt.s32.totalorder %v2078, 1
    %vm2098 = vcmp.lt.s32.totalorder %v2078, 2
    %vm2099 = vcmp.lt.s32.totalorder %v2078, 3
    %vm2100 = vcmp.lt.s32.totalorder %v2078, 4
    %v2101 = vsel %vm2097, %v2081, %v2084
    %v2102 = vsel %vm2100, %v2090, 2102212464
    %v2103 = vsel %vm2099, %v2087, %v2102
    %v2104 = vsel %vm2098, %v2101, %v2103
    %v2105 = vsel %vm2097, %v2084, %v2087
    %v2106 = vsel %vm2100, %v2093, 920167782
    %v2107 = vsel %vm2099, %v2090, %v2106
    %v2108 = vsel %vm2098, %v2105, %v2107
    %v2109 = vsel %vm2097, %v2087, %v2090
    %v2110 = vsel %vm2100, %v2096, 1326507024
    %v2111 = vsel %vm2099, %v2093, %v2110
    %v2112 = vsel %vm2098, %v2109, %v2111
    %v2113 = vshll.u32 %v2073, 8
    %v2114 = vmul.u32.u64.compose %v2113, %v2112
    %v2115 = vextract.low.u32 %v2114
    %v2116 = vextract.high.u32 %v2114
    %v2117 = vmul.u32.u64.compose %v2113, %v2108
    %v2118 = vextract.low.u32 %v2117
    %v2119 = vextract.high.u32 %v2117
    %v2120 = vmul.u32 %v2113, %v2104
    %v2121 = vadd.s32 %v2116, %v2118
    %vm2122 = vc.u32 %v2116, %v2118
    %v2123 = vadd.s32 %v2119, 1
    %v2124 = vsel %vm2122, %v2123, %v2119
    %v2125 = vadd.s32 %v2120, %v2124
    %v2126 = vadd.s32 %v2125, 536870912
    %v2127 = vshrl.u32 %v2126, 30
    %v2128 = vshll.u32 %v2127, 30
    %v2129 = vsub.s32 %v2125, %v2128
    %vm2130 = vcmp.lt.s32.totalorder %v2129, 0
    %v2131 = vsub.s32 0, %v2129
    %v2132 = vsel %vm2130, %v2131, %v2129
    %v2133 = vclz %v2132
    %v2134 = vsub.s32 %v2133, 2
    %vm2135 = vcmp.gt.s32.totalorder 0, %v2134
    %v2136 = vsel %vm2135, 0, %v2134
    %v2137 = vsub.s32 32, %v2136
    %v2138 = vshll.u32 %v2129, %v2136
    %v2139 = vshrl.u32 %v2121, %v2137
    %v2140 = vor.u32 %v2138, %v2139
    %v2141 = vsub.s32 4294967266, %v2136
    %v2142 = vadd.s32 %v2141, 127
    %v2143 = vshll.u32 %v2142, 23
    %v2144 = vor.u32 4788187, %v2143
    %v2145 = vand.u32 2147483647, %v2144
    %v2147 = vcvt.s32.f32 %v2140
    %v2148 = vmul.f32 %v2147, %v2145
    %v2149 = vxor.u32 %v2148, 2147483648
    %v2150 = vsel %vm2067, %v2149, %v2148
    %v2151 = vsub.s32 4, %v2127
    %v2152 = vsel %vm2067, %v2151, %v2127
    %v2153 = vsel %vm2066, %v2012, %v2150
    %v2154 = vsel %vm2066, 0, %v2152
    %v2155 = vcosq.f32.pop %v2153
    %v2156 = vsinq.f32.pop %v2153
    %vm2157 = vweird.f32 %v2012
    %v2158 = vand.u32 %v2154, 3
    %vm2159 = vcmp.lt.s32.totalorder %v2158, 2
    %vm2160 = vcmp.eq.s32.totalorder %v2158, 0
    %v2161 = vxor.u32 %v2156, 2147483648
    %v2162 = vsel %vm2160, %v2155, %v2161
    %vm2163 = vcmp.eq.s32.totalorder %v2158, 2
    %v2164 = vxor.u32 %v2155, 2147483648
    %v2165 = vsel %vm2163, %v2164, %v2156
    %v2166 = vsel %vm2159, %v2162, %v2165
    %v2167 = vsel %vm2157, nan, %v2166
    %v2168 = vmul.f32 %v2167, 0.1
    %v2169 = vand.u32 2147483647, %v2012
    %vm2170 = vcmp.le.f32.partialorder %v2169, 0.7853982
    %vm2171 = vcmp.lt.s32.totalorder %v2012, 0
    %v2172 = vand.u32 %v2012, 2139095040
    %v2173 = vshrl.u32 %v2172, 23
    %v2174 = vsub.s32 %v2173, 127
    %v2175 = vand.u32 2147483647, %v2012
    %v2176 = vand.u32 %v2175, 8388607
    %v2177 = vor.u32 %v2176, 8388608
    %v2178 = vsub.s32 0, %v2177
    %v2179 = vadd.s32 %v2174, 1
    %vm2180 = vcmp.gt.s32.totalorder %v2179, 0
    %v2181 = vsel %vm2180, %v2179, 0
    %v2182 = vshrl.u32 %v2181, 5
    %v2183 = vand.u32 %v2181, 31
    %v2184 = vsub.s32 32, %v2183
    %v2185 = vshrl.u32 683565275, %v2184
    %v2186 = vshll.u32 683565275, %v2183
    %v2187 = vshrl.u32 2475754826, %v2184
    %v2188 = vor.u32 %v2186, %v2187
    %v2189 = vshll.u32 2475754826, %v2183
    %v2190 = vshrl.u32 2131351028, %v2184
    %v2191 = vor.u32 %v2189, %v2190
    %v2192 = vshll.u32 2131351028, %v2183
    %v2193 = vshrl.u32 2102212464, %v2184
    %v2194 = vor.u32 %v2192, %v2193
    %v2195 = vshll.u32 2102212464, %v2183
    %v2196 = vshrl.u32 920167782, %v2184
    %v2197 = vor.u32 %v2195, %v2196
    %v2198 = vshll.u32 920167782, %v2183
    %v2199 = vshrl.u32 1326507024, %v2184
    %v2200 = vor.u32 %v2198, %v2199
    %vm2201 = vcmp.lt.s32.totalorder %v2182, 1
    %vm2202 = vcmp.lt.s32.totalorder %v2182, 2
    %vm2203 = vcmp.lt.s32.totalorder %v2182, 3
    %vm2204 = vcmp.lt.s32.totalorder %v2182, 4
    %v2205 = vsel %vm2201, %v2185, %v2188
    %v2206 = vsel %vm2204, %v2194, 2102212464
    %v2207 = vsel %vm2203, %v2191, %v2206
    %v2208 = vsel %vm2202, %v2205, %v2207
    %v2209 = vsel %vm2201, %v2188, %v2191
    %v2210 = vsel %vm2204, %v2197, 920167782
    %v2211 = vsel %vm2203, %v2194, %v2210
    %v2212 = vsel %vm2202, %v2209, %v2211
    %v2213 = vsel %vm2201, %v2191, %v2194
    %v2214 = vsel %vm2204, %v2200, 1326507024
    %v2215 = vsel %vm2203, %v2197, %v2214
    %v2216 = vsel %vm2202, %v2213, %v2215
    %v2217 = vshll.u32 %v2177, 8
    %v2218 = vmul.u32.u64.compose %v2217, %v2216
    %v2219 = vextract.low.u32 %v2218
    %v2220 = vextract.high.u32 %v2218
    %v2221 = vmul.u32.u64.compose %v2217, %v2212
    %v2222 = vextract.low.u32 %v2221
    %v2223 = vextract.high.u32 %v2221
    %v2224 = vmul.u32 %v2217, %v2208
    %v2225 = vadd.s32 %v2220, %v2222
    %vm2226 = vc.u32 %v2220, %v2222
    %v2227 = vadd.s32 %v2223, 1
    %v2228 = vsel %vm2226, %v2227, %v2223
    %v2229 = vadd.s32 %v2224, %v2228
    %v2230 = vadd.s32 %v2229, 536870912
    %v2231 = vshrl.u32 %v2230, 30
    %v2232 = vshll.u32 %v2231, 30
    %v2233 = vsub.s32 %v2229, %v2232
    %vm2234 = vcmp.lt.s32.totalorder %v2233, 0
    %v2235 = vsub.s32 0, %v2233
    %v2236 = vsel %vm2234, %v2235, %v2233
    %v2237 = vclz %v2236
    %v2238 = vsub.s32 %v2237, 2
    %vm2239 = vcmp.gt.s32.totalorder 0, %v2238
    %v2240 = vsel %vm2239, 0, %v2238
    %v2241 = vsub.s32 32, %v2240
    %v2242 = vshll.u32 %v2233, %v2240
    %v2243 = vshrl.u32 %v2225, %v2241
    %v2244 = vor.u32 %v2242, %v2243
    %v2245 = vsub.s32 4294967266, %v2240
    %v2246 = vadd.s32 %v2245, 127
    %v2247 = vshll.u32 %v2246, 23
    %v2248 = vor.u32 4788187, %v2247
    %v2249 = vand.u32 2147483647, %v2248
    %v2251 = vcvt.s32.f32 %v2244
    %v2252 = vmul.f32 %v2251, %v2249
    %v2253 = vxor.u32 %v2252, 2147483648
    %v2254 = vsel %vm2171, %v2253, %v2252
    %v2255 = vsub.s32 4, %v2231
    %v2256 = vsel %vm2171, %v2255, %v2231
    %v2257 = vsel %vm2170, %v2012, %v2254
    %v2258 = vsel %vm2170, 0, %v2256
    %v2259 = vcosq.f32.pop %v2257
    %v2260 = vsinq.f32.pop %v2257
    %vm2261 = vweird.f32 %v2012
    %v2262 = vadd.s32 %v2258, 3
    %v2263 = vand.u32 %v2262, 3
    %vm2264 = vcmp.lt.s32.totalorder %v2263, 2
    %vm2265 = vcmp.eq.s32.totalorder %v2263, 0
    %v2266 = vxor.u32 %v2260, 2147483648
    %v2267 = vsel %vm2265, %v2259, %v2266
    %vm2268 = vcmp.eq.s32.totalorder %v2263, 2
    %v2269 = vxor.u32 %v2259, 2147483648
    %v2270 = vsel %vm2268, %v2269, %v2260
    %v2271 = vsel %vm2264, %v2267, %v2270
    %v2272 = vsel %vm2261, nan, %v2271
    %v2273 = vmul.f32 %v2272, 0.1
    %v2274 = vadd.f32 %v2273, %v2012
    %v2275 = vmul.f32 %v2012, 0.1
    %v2277 = vrot.slane %v2275, 2
    %v2279 = vadd.f32 %v2274, %v2277
    %v2280 = vmul.f32 %v2168, %v2024
    %v2281 = vadd.f32 %v2280, %v2024
    %v2282 = vmul.f32 %v2048, 0.1
    %v2283 = vadd.f32 %v2281, %v2282
    %v2285 = vrot.slane %v2024, 1
    %v2287 = vmul.f32 %v2168, %v2285
    %v2288 = vadd.f32 %v2287, %v2285
    %v2290 = vrot.slane %v2282, 1
    %v2292 = vadd.f32 %v2288, %v2290
    %v2293 = vrot.slane %v2024, 2
    %v2295 = vmul.f32 %v2168, %v2293
    %v2296 = vadd.f32 %v2295, %v2293
    %v2297 = vrot.slane %v2282, 2
    %v2299 = vadd.f32 %v2296, %v2297
    %v2300 = vrot.slane %v2024, 3
    %v2302 = vmul.f32 %v2168, %v2300
    %v2303 = vadd.f32 %v2302, %v2300
    %v2304 = vrot.slane %v2282, 3
    %v2306 = vadd.f32 %v2303, %v2304
    %v2308 = vrot.slane %v2036, 7
    %v2310 = vmul.f32 %v2168, %v2308
    %v2311 = vadd.f32 %v2310, %v2308
    %v2312 = vmul.f32 %v2060, 0.1
    %v2314 = vrot.slane %v2312, 7
    %v2316 = vadd.f32 %v2311, %v2314
    %v2317 = vmul.f32 %v2168, %v2036
    %v2318 = vadd.f32 %v2317, %v2036
    %v2319 = vadd.f32 %v2318, %v2312
    %v2320 = vrot.slane %v2036, 1
    %v2322 = vmul.f32 %v2168, %v2320
    %v2323 = vadd.f32 %v2322, %v2320
    %v2324 = vrot.slane %v2312, 1
    %v2326 = vadd.f32 %v2323, %v2324
    %v2327 = vrot.slane %v2036, 2
    %v2329 = vmul.f32 %v2168, %v2327
    %v2330 = vadd.f32 %v2329, %v2327
    %v2331 = vrot.slane %v2312, 2
    %v2333 = vadd.f32 %v2330, %v2331
    %v2335 = vrot.slane %v2048, 6
    %v2337 = vmul.f32 %v2168, %v2335
    %v2338 = vadd.f32 %v2337, %v2335
    %v2339 = vrot.slane %v2048, 7
    %v2341 = vmul.f32 %v2168, %v2339
    %v2342 = vadd.f32 %v2341, %v2339
    %v2343 = vmul.f32 %v2168, %v2048
    %v2344 = vadd.f32 %v2343, %v2048
    %v2345 = vrot.slane %v2048, 1
    %v2347 = vmul.f32 %v2168, %v2345
    %v2348 = vadd.f32 %v2347, %v2345
    %v2350 = vrot.slane %v2060, 5
    %v2352 = vmul.f32 %v2168, %v2350
    %v2353 = vadd.f32 %v2352, %v2350
    %v2354 = vrot.slane %v2060, 6
    %v2356 = vmul.f32 %v2168, %v2354
    %v2357 = vadd.f32 %v2356, %v2354
    %v2358 = vrot.slane %v2060, 7
    %v2360 = vmul.f32 %v2168, %v2358
    %v2361 = vadd.f32 %v2360, %v2358
    %v2362 = vmul.f32 %v2168, %v2060
    %v2363 = vadd.f32 %v2362, %v2060
    %v2364 = vmul.f32 %v2283, %v2168
    %v2365 = vadd.f32 %v2364, %v2283
    %v2366 = vmul.f32 %v2299, 0.1
    %v2367 = vadd.f32 %v2365, %v2366
    %v2368 = vadd.f32 %v2367, 0.01
    %v2370 = vrot.slane %v2168, 1
    %v2372 = vmul.f32 %v2292, %v2370
    %v2373 = vadd.f32 %v2372, %v2292
    %v2374 = vmul.f32 %v2306, 0.1
    %v2375 = vadd.f32 %v2373, %v2374
    %v2376 = vrot.slane %v2168, 2
    %v2378 = vmul.f32 %v2299, %v2376
    %v2379 = vadd.f32 %v2378, %v2299
    %v2380 = vrot.slane %v2168, 3
    %v2382 = vmul.f32 %v2306, %v2380
    %v2383 = vadd.f32 %v2382, %v2306
    %v2384 = vrot.slane %v2168, 7
    %v2386 = vmul.f32 %v2316, %v2384
    %v2387 = vadd.f32 %v2386, %v2316
    %v2388 = vmul.f32 %v2326, 0.1
    %v2389 = vadd.f32 %v2387, %v2388
    %v2390 = vmul.f32 %v2319, %v2168
    %v2391 = vadd.f32 %v2390, %v2319
    %v2392 = vmul.f32 %v2333, 0.1
    %v2393 = vadd.f32 %v2391, %v2392
    %v2394 = vadd.f32 %v2393, 0.01
    %v2395 = vmul.f32 %v2326, %v2370
    %v2396 = vadd.f32 %v2395, %v2326
    %v2397 = vmul.f32 %v2333, %v2376
    %v2398 = vadd.f32 %v2397, %v2333
    %v2399 = vrot.slane %v2168, 6
    %v2401 = vmul.f32 %v2338, %v2399
    %v2402 = vadd.f32 %v2401, %v2338
    %v2403 = vmul.f32 %v2344, 0.1
    %v2404 = vadd.f32 %v2402, %v2403
    %v2405 = vmul.f32 %v2342, %v2384
    %v2406 = vadd.f32 %v2405, %v2342
    %v2407 = vmul.f32 %v2348, 0.1
    %v2408 = vadd.f32 %v2406, %v2407
    %v2409 = vmul.f32 %v2344, %v2168
    %v2410 = vadd.f32 %v2409, %v2344
    %v2411 = vadd.f32 %v2410, 0.01
    %v2412 = vmul.f32 %v2348, %v2370
    %v2413 = vadd.f32 %v2412, %v2348
    %v2414 = vrot.slane %v2168, 5
    %v2416 = vmul.f32 %v2353, %v2414
    %v2417 = vadd.f32 %v2416, %v2353
    %v2418 = vmul.f32 %v2361, 0.1
    %v2419 = vadd.f32 %v2417, %v2418
    %v2420 = vmul.f32 %v2357, %v2399
    %v2421 = vadd.f32 %v2420, %v2357
    %v2422 = vmul.f32 %v2363, 0.1
    %v2423 = vadd.f32 %v2421, %v2422
    %v2424 = vmul.f32 %v2361, %v2384
    %v2425 = vadd.f32 %v2424, %v2361
    %v2426 = vmul.f32 %v2363, %v2168
    %v2427 = vadd.f32 %v2426, %v2363
    %v2428 = vadd.f32 %v2427, 0.01
    %v2429 = vadd.f32 %v2368, 0.1
    %v2430 = vadd.f32 %v2394, 0.1
    %v2432 = vrot.slane %v2430, 1
    %v2434 = vmul.f32 %v2429, %v2432
    %v2436 = vrot.slane %v2389, 1
    %v2438 = vmul.f32 %v2375, %v2436
    %v2439 = vsub.f32 %v2434, %v2438
    %v2440 = vrcp.pop %v2439
    %v2442 = vrot.slane %v2440, 7
    %v2444 = vmul.f32 %v2430, %v2442
    %v2445 = vsub.f32 0.0, %v2375
    %v2446 = vmul.f32 %v2445, %v2440
    %v2447 = vsub.f32 0.0, %v2389
    %v2448 = vmul.f32 %v2447, %v2442
    %v2449 = vmul.f32 %v2429, %v2440
    %v2451 = vrot.slane %v2444, 1
    %v2453 = vmul.f32 %v2368, %v2451
    %v2454 = vadd.f32 %v2453, 0.0
    %v2456 = vrot.slane %v2448, 1
    %v2458 = vmul.f32 %v2375, %v2456
    %v2459 = vadd.f32 %v2454, %v2458
    %v2460 = vmul.f32 %v2368, %v2446
    %v2461 = vadd.f32 %v2460, 0.0
    %v2462 = vmul.f32 %v2375, %v2449
    %v2463 = vadd.f32 %v2461, %v2462
    %v2464 = vmul.f32 %v2389, %v2444
    %v2465 = vadd.f32 %v2464, 0.0
    %v2466 = vmul.f32 %v2394, %v2448
    %v2467 = vadd.f32 %v2465, %v2466
    %v2469 = vrot.slane %v2446, 7
    %v2471 = vmul.f32 %v2389, %v2469
    %v2472 = vadd.f32 %v2471, 0.0
    %v2474 = vrot.slane %v2449, 7
    %v2476 = vmul.f32 %v2394, %v2474
    %v2477 = vadd.f32 %v2472, %v2476
    %v2478 = vrot.slane %v2444, 7
    %v2480 = vmul.f32 %v2404, %v2478
    %v2481 = vadd.f32 %v2480, 0.0
    %v2482 = vrot.slane %v2448, 7
    %v2484 = vmul.f32 %v2408, %v2482
    %v2485 = vadd.f32 %v2481, %v2484
    %v2486 = vrot.slane %v2446, 6
    %v2488 = vmul.f32 %v2404, %v2486
    %v2489 = vadd.f32 %v2488, 0.0
    %v2490 = vrot.slane %v2449, 6
    %v2492 = vmul.f32 %v2408, %v2490
    %v2493 = vadd.f32 %v2489, %v2492
    %v2494 = vrot.slane %v2444, 6
    %v2496 = vmul.f32 %v2419, %v2494
    %v2497 = vadd.f32 %v2496, 0.0
    %v2498 = vrot.slane %v2448, 6
    %v2500 = vmul.f32 %v2423, %v2498
    %v2501 = vadd.f32 %v2497, %v2500
    %v2502 = vrot.slane %v2446, 5
    %v2504 = vmul.f32 %v2419, %v2502
    %v2505 = vadd.f32 %v2504, 0.0
    %v2506 = vrot.slane %v2449, 5
    %v2508 = vmul.f32 %v2423, %v2506
    %v2509 = vadd.f32 %v2505, %v2508
    %v2510 = vsub.f32 %v2064, %v2279
    %v2511 = vmul.f32 %v2459, %v2510
    %v2512 = vadd.f32 %v2511, 0.0
    %v2514 = vrot.slane %v2510, 1
    %v2516 = vmul.f32 %v2463, %v2514
    %v2517 = vadd.f32 %v2512, %v2516
    %v2518 = vadd.f32 %v2279, %v2517
    %v2519 = vrot.slane %v2510, 7
    %v2521 = vmul.f32 %v2467, %v2519
    %v2522 = vadd.f32 %v2521, 0.0
    %v2523 = vmul.f32 %v2477, %v2510
    %v2524 = vadd.f32 %v2522, %v2523
    %v2525 = vadd.f32 %v2279, %v2524
    %v2526 = vrot.slane %v2510, 6
    %v2528 = vmul.f32 %v2485, %v2526
    %v2529 = vadd.f32 %v2528, 0.0
    %v2530 = vmul.f32 %v2493, %v2519
    %v2531 = vadd.f32 %v2529, %v2530
    %v2532 = vadd.f32 %v2274, %v2531
    %v2533 = vrot.slane %v2510, 5
    %v2535 = vmul.f32 %v2501, %v2533
    %v2536 = vadd.f32 %v2535, 0.0
    %v2537 = vmul.f32 %v2509, %v2526
    %v2538 = vadd.f32 %v2536, %v2537
    %v2539 = vadd.f32 %v2274, %v2538
    %v2540 = vmul.f32 %v2459, %v2368
    %v2541 = vadd.f32 %v2540, 0.0
    %v2542 = vmul.f32 %v2463, %v2436
    %v2543 = vadd.f32 %v2541, %v2542
    %v2544 = vsub.f32 %v2368, %v2543
    %v2545 = vmul.f32 %v2459, %v2375
    %v2546 = vadd.f32 %v2545, 0.0
    %v2548 = vrot.slane %v2394, 1
    %v2550 = vmul.f32 %v2463, %v2548
    %v2551 = vadd.f32 %v2546, %v2550
    %v2552 = vsub.f32 %v2375, %v2551
    %v2553 = vmul.f32 %v2459, %v2379
    %v2554 = vadd.f32 %v2553, 0.0
    %v2556 = vrot.slane %v2396, 1
    %v2558 = vmul.f32 %v2463, %v2556
    %v2559 = vadd.f32 %v2554, %v2558
    %v2560 = vsub.f32 %v2379, %v2559
    %v2561 = vmul.f32 %v2459, %v2383
    %v2562 = vadd.f32 %v2561, 0.0
    %v2564 = vrot.slane %v2398, 1
    %v2566 = vmul.f32 %v2463, %v2564
    %v2567 = vadd.f32 %v2562, %v2566
    %v2568 = vsub.f32 %v2383, %v2567
    %v2570 = vrot.slane %v2368, 7
    %v2572 = vmul.f32 %v2467, %v2570
    %v2573 = vadd.f32 %v2572, 0.0
    %v2574 = vmul.f32 %v2477, %v2389
    %v2575 = vadd.f32 %v2573, %v2574
    %v2576 = vsub.f32 %v2389, %v2575
    %v2578 = vrot.slane %v2375, 7
    %v2580 = vmul.f32 %v2467, %v2578
    %v2581 = vadd.f32 %v2580, 0.0
    %v2582 = vmul.f32 %v2477, %v2394
    %v2583 = vadd.f32 %v2581, %v2582
    %v2584 = vsub.f32 %v2394, %v2583
    %v2586 = vrot.slane %v2379, 7
    %v2588 = vmul.f32 %v2467, %v2586
    %v2589 = vadd.f32 %v2588, 0.0
    %v2590 = vmul.f32 %v2477, %v2396
    %v2591 = vadd.f32 %v2589, %v2590
    %v2592 = vsub.f32 %v2396, %v2591
    %v2594 = vrot.slane %v2383, 7
    %v2596 = vmul.f32 %v2467, %v2594
    %v2597 = vadd.f32 %v2596, 0.0
    %v2598 = vmul.f32 %v2477, %v2398
    %v2599 = vadd.f32 %v2597, %v2598
    %v2600 = vsub.f32 %v2398, %v2599
    %v2601 = vrot.slane %v2368, 6
    %v2603 = vmul.f32 %v2485, %v2601
    %v2604 = vadd.f32 %v2603, 0.0
    %v2605 = vrot.slane %v2389, 7
    %v2607 = vmul.f32 %v2493, %v2605
    %v2608 = vadd.f32 %v2604, %v2607
    %v2609 = vsub.f32 %v2404, %v2608
    %v2610 = vrot.slane %v2375, 6
    %v2612 = vmul.f32 %v2485, %v2610
    %v2613 = vadd.f32 %v2612, 0.0
    %v2614 = vrot.slane %v2394, 7
    %v2616 = vmul.f32 %v2493, %v2614
    %v2617 = vadd.f32 %v2613, %v2616
    %v2618 = vsub.f32 %v2408, %v2617
    %v2619 = vrot.slane %v2379, 6
    %v2621 = vmul.f32 %v2485, %v2619
    %v2622 = vadd.f32 %v2621, 0.0
    %v2623 = vrot.slane %v2396, 7
    %v2625 = vmul.f32 %v2493, %v2623
    %v2626 = vadd.f32 %v2622, %v2625
    %v2627 = vsub.f32 %v2411, %v2626
    %v2628 = vrot.slane %v2383, 6
    %v2630 = vmul.f32 %v2485, %v2628
    %v2631 = vadd.f32 %v2630, 0.0
    %v2632 = vrot.slane %v2398, 7
    %v2634 = vmul.f32 %v2493, %v2632
    %v2635 = vadd.f32 %v2631, %v2634
    %v2636 = vsub.f32 %v2413, %v2635
    %v2637 = vrot.slane %v2368, 5
    %v2639 = vmul.f32 %v2501, %v2637
    %v2640 = vadd.f32 %v2639, 0.0
    %v2641 = vrot.slane %v2389, 6
    %v2643 = vmul.f32 %v2509, %v2641
    %v2644 = vadd.f32 %v2640, %v2643
    %v2645 = vsub.f32 %v2419, %v2644
    %v2646 = vrot.slane %v2375, 5
    %v2648 = vmul.f32 %v2501, %v2646
    %v2649 = vadd.f32 %v2648, 0.0
    %v2650 = vrot.slane %v2394, 6
    %v2652 = vmul.f32 %v2509, %v2650
    %v2653 = vadd.f32 %v2649, %v2652
    %v2654 = vsub.f32 %v2423, %v2653
    %v2655 = vrot.slane %v2379, 5
    %v2657 = vmul.f32 %v2501, %v2655
    %v2658 = vadd.f32 %v2657, 0.0
    %v2659 = vrot.slane %v2396, 6
    %v2661 = vmul.f32 %v2509, %v2659
    %v2662 = vadd.f32 %v2658, %v2661
    %v2663 = vsub.f32 %v2425, %v2662
    %v2664 = vrot.slane %v2383, 5
    %v2666 = vmul.f32 %v2501, %v2664
    %v2667 = vadd.f32 %v2666, 0.0
    %v2668 = vrot.slane %v2398, 6
    %v2670 = vmul.f32 %v2509, %v2668
    %v2671 = vadd.f32 %v2667, %v2670
    %v2672 = vsub.f32 %v2428, %v2671
    %v2673 = vsel %vm682, %v2518, %v2525
    %v2674 = vsel %vm684, %v2673, %v2532
    %v2675 = vsel %vm686, %v2674, %v2539
    %v2677 = vrot.slane %v2552, 7
    %v2680 = vrot.slane %v2560, 6
    %v2683 = vrot.slane %v2568, 5
    %v2685 = vsel %vm682, %v2544, %v2677
    %v2686 = vsel %vm684, %v2685, %v2680
    %v2687 = vsel %vm686, %v2686, %v2683
    %v2689 = vrot.slane %v2576, 1
    %v2692 = vrot.slane %v2592, 7
    %v2695 = vrot.slane %v2600, 6
    %v2697 = vsel %vm682, %v2689, %v2584
    %v2698 = vsel %vm684, %v2697, %v2692
    %v2699 = vsel %vm686, %v2698, %v2695
    %v2701 = vrot.slane %v2609, 2
    %v2704 = vrot.slane %v2618, 1
    %v2707 = vrot.slane %v2636, 7
    %v2709 = vsel %vm682, %v2701, %v2704
    %v2710 = vsel %vm684, %v2709, %v2627
    %v2711 = vsel %vm686, %v2710, %v2707
    %v2713 = vrot.slane %v2645, 3
    %v2716 = vrot.slane %v2654, 2
    %v2719 = vrot.slane %v2663, 1
    %v2721 = vsel %vm682, %v2713, %v2716
    %v2722 = vsel %vm684, %v2721, %v2719
    %v2723 = vsel %vm686, %v2722, %v2672
    %s2724 = scalar_lea.vmem [#allocation10], 12
    %2725 = vst [vmem:[%s2724] sm:$0xf] %v2675
    %s2726 = scalar_lea.vmem [#allocation4], 8
    %v2727 = vld [vmem:[%s2726] sm:$0x3]
    %v2728 = vand.u32 2147483647, %v2675
    %vm2729 = vcmp.le.f32.partialorder %v2728, 0.7853982
    %vm2730 = vcmp.lt.s32.totalorder %v2675, 0
    %v2731 = vand.u32 %v2675, 2139095040
    %v2732 = vshrl.u32 %v2731, 23
    %v2733 = vsub.s32 %v2732, 127
    %v2734 = vand.u32 2147483647, %v2675
    %v2735 = vand.u32 %v2734, 8388607
    %v2736 = vor.u32 %v2735, 8388608
    %v2737 = vsub.s32 0, %v2736
    %v2738 = vadd.s32 %v2733, 1
    %vm2739 = vcmp.gt.s32.totalorder %v2738, 0
    %v2740 = vsel %vm2739, %v2738, 0
    %v2741 = vshrl.u32 %v2740, 5
    %v2742 = vand.u32 %v2740, 31
    %v2743 = vsub.s32 32, %v2742
    %v2744 = vshrl.u32 683565275, %v2743
    %v2745 = vshll.u32 683565275, %v2742
    %v2746 = vshrl.u32 2475754826, %v2743
    %v2747 = vor.u32 %v2745, %v2746
    %v2748 = vshll.u32 2475754826, %v2742
    %v2749 = vshrl.u32 2131351028, %v2743
    %v2750 = vor.u32 %v2748, %v2749
    %v2751 = vshll.u32 2131351028, %v2742
    %v2752 = vshrl.u32 2102212464, %v2743
    %v2753 = vor.u32 %v2751, %v2752
    %v2754 = vshll.u32 2102212464, %v2742
    %v2755 = vshrl.u32 920167782, %v2743
    %v2756 = vor.u32 %v2754, %v2755
    %v2757 = vshll.u32 920167782, %v2742
    %v2758 = vshrl.u32 1326507024, %v2743
    %v2759 = vor.u32 %v2757, %v2758
    %vm2760 = vcmp.lt.s32.totalorder %v2741, 1
    %vm2761 = vcmp.lt.s32.totalorder %v2741, 2
    %vm2762 = vcmp.lt.s32.totalorder %v2741, 3
    %vm2763 = vcmp.lt.s32.totalorder %v2741, 4
    %v2764 = vsel %vm2760, %v2744, %v2747
    %v2765 = vsel %vm2763, %v2753, 2102212464
    %v2766 = vsel %vm2762, %v2750, %v2765
    %v2767 = vsel %vm2761, %v2764, %v2766
    %v2768 = vsel %vm2760, %v2747, %v2750
    %v2769 = vsel %vm2763, %v2756, 920167782
    %v2770 = vsel %vm2762, %v2753, %v2769
    %v2771 = vsel %vm2761, %v2768, %v2770
    %v2772 = vsel %vm2760, %v2750, %v2753
    %v2773 = vsel %vm2763, %v2759, 1326507024
    %v2774 = vsel %vm2762, %v2756, %v2773
    %v2775 = vsel %vm2761, %v2772, %v2774
    %v2776 = vshll.u32 %v2736, 8
    %v2777 = vmul.u32.u64.compose %v2776, %v2775
    %v2778 = vextract.low.u32 %v2777
    %v2779 = vextract.high.u32 %v2777
    %v2780 = vmul.u32.u64.compose %v2776, %v2771
    %v2781 = vextract.low.u32 %v2780
    %v2782 = vextract.high.u32 %v2780
    %v2783 = vmul.u32 %v2776, %v2767
    %v2784 = vadd.s32 %v2779, %v2781
    %vm2785 = vc.u32 %v2779, %v2781
    %v2786 = vadd.s32 %v2782, 1
    %v2787 = vsel %vm2785, %v2786, %v2782
    %v2788 = vadd.s32 %v2783, %v2787
    %v2789 = vadd.s32 %v2788, 536870912
    %v2790 = vshrl.u32 %v2789, 30
    %v2791 = vshll.u32 %v2790, 30
    %v2792 = vsub.s32 %v2788, %v2791
    %vm2793 = vcmp.lt.s32.totalorder %v2792, 0
    %v2794 = vsub.s32 0, %v2792
    %v2795 = vsel %vm2793, %v2794, %v2792
    %v2796 = vclz %v2795
    %v2797 = vsub.s32 %v2796, 2
    %vm2798 = vcmp.gt.s32.totalorder 0, %v2797
    %v2799 = vsel %vm2798, 0, %v2797
    %v2800 = vsub.s32 32, %v2799
    %v2801 = vshll.u32 %v2792, %v2799
    %v2802 = vshrl.u32 %v2784, %v2800
    %v2803 = vor.u32 %v2801, %v2802
    %v2804 = vsub.s32 4294967266, %v2799
    %v2805 = vadd.s32 %v2804, 127
    %v2806 = vshll.u32 %v2805, 23
    %v2807 = vor.u32 4788187, %v2806
    %v2808 = vand.u32 2147483647, %v2807
    %v2810 = vcvt.s32.f32 %v2803
    %v2811 = vmul.f32 %v2810, %v2808
    %v2812 = vxor.u32 %v2811, 2147483648
    %v2813 = vsel %vm2730, %v2812, %v2811
    %v2814 = vsub.s32 4, %v2790
    %v2815 = vsel %vm2730, %v2814, %v2790
    %v2816 = vsel %vm2729, %v2675, %v2813
    %v2817 = vsel %vm2729, 0, %v2815
    %v2818 = vcosq.f32.pop %v2816
    %v2819 = vsinq.f32.pop %v2816
    %vm2820 = vweird.f32 %v2675
    %v2821 = vand.u32 %v2817, 3
    %vm2822 = vcmp.lt.s32.totalorder %v2821, 2
    %vm2823 = vcmp.eq.s32.totalorder %v2821, 0
    %v2824 = vxor.u32 %v2819, 2147483648
    %v2825 = vsel %vm2823, %v2818, %v2824
    %vm2826 = vcmp.eq.s32.totalorder %v2821, 2
    %v2827 = vxor.u32 %v2818, 2147483648
    %v2828 = vsel %vm2826, %v2827, %v2819
    %v2829 = vsel %vm2822, %v2825, %v2828
    %v2830 = vsel %vm2820, nan, %v2829
    %v2831 = vmul.f32 %v2830, 0.1
    %v2832 = vand.u32 2147483647, %v2675
    %vm2833 = vcmp.le.f32.partialorder %v2832, 0.7853982
    %vm2834 = vcmp.lt.s32.totalorder %v2675, 0
    %v2835 = vand.u32 %v2675, 2139095040
    %v2836 = vshrl.u32 %v2835, 23
    %v2837 = vsub.s32 %v2836, 127
    %v2838 = vand.u32 2147483647, %v2675
    %v2839 = vand.u32 %v2838, 8388607
    %v2840 = vor.u32 %v2839, 8388608
    %v2841 = vsub.s32 0, %v2840
    %v2842 = vadd.s32 %v2837, 1
    %vm2843 = vcmp.gt.s32.totalorder %v2842, 0
    %v2844 = vsel %vm2843, %v2842, 0
    %v2845 = vshrl.u32 %v2844, 5
    %v2846 = vand.u32 %v2844, 31
    %v2847 = vsub.s32 32, %v2846
    %v2848 = vshrl.u32 683565275, %v2847
    %v2849 = vshll.u32 683565275, %v2846
    %v2850 = vshrl.u32 2475754826, %v2847
    %v2851 = vor.u32 %v2849, %v2850
    %v2852 = vshll.u32 2475754826, %v2846
    %v2853 = vshrl.u32 2131351028, %v2847
    %v2854 = vor.u32 %v2852, %v2853
    %v2855 = vshll.u32 2131351028, %v2846
    %v2856 = vshrl.u32 2102212464, %v2847
    %v2857 = vor.u32 %v2855, %v2856
    %v2858 = vshll.u32 2102212464, %v2846
    %v2859 = vshrl.u32 920167782, %v2847
    %v2860 = vor.u32 %v2858, %v2859
    %v2861 = vshll.u32 920167782, %v2846
    %v2862 = vshrl.u32 1326507024, %v2847
    %v2863 = vor.u32 %v2861, %v2862
    %vm2864 = vcmp.lt.s32.totalorder %v2845, 1
    %vm2865 = vcmp.lt.s32.totalorder %v2845, 2
    %vm2866 = vcmp.lt.s32.totalorder %v2845, 3
    %vm2867 = vcmp.lt.s32.totalorder %v2845, 4
    %v2868 = vsel %vm2864, %v2848, %v2851
    %v2869 = vsel %vm2867, %v2857, 2102212464
    %v2870 = vsel %vm2866, %v2854, %v2869
    %v2871 = vsel %vm2865, %v2868, %v2870
    %v2872 = vsel %vm2864, %v2851, %v2854
    %v2873 = vsel %vm2867, %v2860, 920167782
    %v2874 = vsel %vm2866, %v2857, %v2873
    %v2875 = vsel %vm2865, %v2872, %v2874
    %v2876 = vsel %vm2864, %v2854, %v2857
    %v2877 = vsel %vm2867, %v2863, 1326507024
    %v2878 = vsel %vm2866, %v2860, %v2877
    %v2879 = vsel %vm2865, %v2876, %v2878
    %v2880 = vshll.u32 %v2840, 8
    %v2881 = vmul.u32.u64.compose %v2880, %v2879
    %v2882 = vextract.low.u32 %v2881
    %v2883 = vextract.high.u32 %v2881
    %v2884 = vmul.u32.u64.compose %v2880, %v2875
    %v2885 = vextract.low.u32 %v2884
    %v2886 = vextract.high.u32 %v2884
    %v2887 = vmul.u32 %v2880, %v2871
    %v2888 = vadd.s32 %v2883, %v2885
    %vm2889 = vc.u32 %v2883, %v2885
    %v2890 = vadd.s32 %v2886, 1
    %v2891 = vsel %vm2889, %v2890, %v2886
    %v2892 = vadd.s32 %v2887, %v2891
    %v2893 = vadd.s32 %v2892, 536870912
    %v2894 = vshrl.u32 %v2893, 30
    %v2895 = vshll.u32 %v2894, 30
    %v2896 = vsub.s32 %v2892, %v2895
    %vm2897 = vcmp.lt.s32.totalorder %v2896, 0
    %v2898 = vsub.s32 0, %v2896
    %v2899 = vsel %vm2897, %v2898, %v2896
    %v2900 = vclz %v2899
    %v2901 = vsub.s32 %v2900, 2
    %vm2902 = vcmp.gt.s32.totalorder 0, %v2901
    %v2903 = vsel %vm2902, 0, %v2901
    %v2904 = vsub.s32 32, %v2903
    %v2905 = vshll.u32 %v2896, %v2903
    %v2906 = vshrl.u32 %v2888, %v2904
    %v2907 = vor.u32 %v2905, %v2906
    %v2908 = vsub.s32 4294967266, %v2903
    %v2909 = vadd.s32 %v2908, 127
    %v2910 = vshll.u32 %v2909, 23
    %v2911 = vor.u32 4788187, %v2910
    %v2912 = vand.u32 2147483647, %v2911
    %v2914 = vcvt.s32.f32 %v2907
    %v2915 = vmul.f32 %v2914, %v2912
    %v2916 = vxor.u32 %v2915, 2147483648
    %v2917 = vsel %vm2834, %v2916, %v2915
    %v2918 = vsub.s32 4, %v2894
    %v2919 = vsel %vm2834, %v2918, %v2894
    %v2920 = vsel %vm2833, %v2675, %v2917
    %v2921 = vsel %vm2833, 0, %v2919
    %v2922 = vcosq.f32.pop %v2920
    %v2923 = vsinq.f32.pop %v2920
    %vm2924 = vweird.f32 %v2675
    %v2925 = vadd.s32 %v2921, 3
    %v2926 = vand.u32 %v2925, 3
    %vm2927 = vcmp.lt.s32.totalorder %v2926, 2
    %vm2928 = vcmp.eq.s32.totalorder %v2926, 0
    %v2929 = vxor.u32 %v2923, 2147483648
    %v2930 = vsel %vm2928, %v2922, %v2929
    %vm2931 = vcmp.eq.s32.totalorder %v2926, 2
    %v2932 = vxor.u32 %v2922, 2147483648
    %v2933 = vsel %vm2931, %v2932, %v2923
    %v2934 = vsel %vm2927, %v2930, %v2933
    %v2935 = vsel %vm2924, nan, %v2934
    %v2936 = vmul.f32 %v2935, 0.1
    %v2937 = vadd.f32 %v2936, %v2675
    %v2938 = vmul.f32 %v2675, 0.1
    %v2940 = vrot.slane %v2938, 2
    %v2942 = vadd.f32 %v2937, %v2940
    %v2943 = vmul.f32 %v2831, %v2687
    %v2944 = vadd.f32 %v2943, %v2687
    %v2945 = vmul.f32 %v2711, 0.1
    %v2946 = vadd.f32 %v2944, %v2945
    %v2948 = vrot.slane %v2687, 1
    %v2950 = vmul.f32 %v2831, %v2948
    %v2951 = vadd.f32 %v2950, %v2948
    %v2953 = vrot.slane %v2945, 1
    %v2955 = vadd.f32 %v2951, %v2953
    %v2956 = vrot.slane %v2687, 2
    %v2958 = vmul.f32 %v2831, %v2956
    %v2959 = vadd.f32 %v2958, %v2956
    %v2960 = vrot.slane %v2945, 2
    %v2962 = vadd.f32 %v2959, %v2960
    %v2963 = vrot.slane %v2687, 3
    %v2965 = vmul.f32 %v2831, %v2963
    %v2966 = vadd.f32 %v2965, %v2963
    %v2967 = vrot.slane %v2945, 3
    %v2969 = vadd.f32 %v2966, %v2967
    %v2971 = vrot.slane %v2699, 7
    %v2973 = vmul.f32 %v2831, %v2971
    %v2974 = vadd.f32 %v2973, %v2971
    %v2975 = vmul.f32 %v2723, 0.1
    %v2977 = vrot.slane %v2975, 7
    %v2979 = vadd.f32 %v2974, %v2977
    %v2980 = vmul.f32 %v2831, %v2699
    %v2981 = vadd.f32 %v2980, %v2699
    %v2982 = vadd.f32 %v2981, %v2975
    %v2983 = vrot.slane %v2699, 1
    %v2985 = vmul.f32 %v2831, %v2983
    %v2986 = vadd.f32 %v2985, %v2983
    %v2987 = vrot.slane %v2975, 1
    %v2989 = vadd.f32 %v2986, %v2987
    %v2990 = vrot.slane %v2699, 2
    %v2992 = vmul.f32 %v2831, %v2990
    %v2993 = vadd.f32 %v2992, %v2990
    %v2994 = vrot.slane %v2975, 2
    %v2996 = vadd.f32 %v2993, %v2994
    %v2998 = vrot.slane %v2711, 6
    %v3000 = vmul.f32 %v2831, %v2998
    %v3001 = vadd.f32 %v3000, %v2998
    %v3002 = vrot.slane %v2711, 7
    %v3004 = vmul.f32 %v2831, %v3002
    %v3005 = vadd.f32 %v3004, %v3002
    %v3006 = vmul.f32 %v2831, %v2711
    %v3007 = vadd.f32 %v3006, %v2711
    %v3008 = vrot.slane %v2711, 1
    %v3010 = vmul.f32 %v2831, %v3008
    %v3011 = vadd.f32 %v3010, %v3008
    %v3013 = vrot.slane %v2723, 5
    %v3015 = vmul.f32 %v2831, %v3013
    %v3016 = vadd.f32 %v3015, %v3013
    %v3017 = vrot.slane %v2723, 6
    %v3019 = vmul.f32 %v2831, %v3017
    %v3020 = vadd.f32 %v3019, %v3017
    %v3021 = vrot.slane %v2723, 7
    %v3023 = vmul.f32 %v2831, %v3021
    %v3024 = vadd.f32 %v3023, %v3021
    %v3025 = vmul.f32 %v2831, %v2723
    %v3026 = vadd.f32 %v3025, %v2723
    %v3027 = vmul.f32 %v2946, %v2831
    %v3028 = vadd.f32 %v3027, %v2946
    %v3029 = vmul.f32 %v2962, 0.1
    %v3030 = vadd.f32 %v3028, %v3029
    %v3031 = vadd.f32 %v3030, 0.01
    %v3033 = vrot.slane %v2831, 1
    %v3035 = vmul.f32 %v2955, %v3033
    %v3036 = vadd.f32 %v3035, %v2955
    %v3037 = vmul.f32 %v2969, 0.1
    %v3038 = vadd.f32 %v3036, %v3037
    %v3039 = vrot.slane %v2831, 2
    %v3041 = vmul.f32 %v2962, %v3039
    %v3042 = vadd.f32 %v3041, %v2962
    %v3043 = vrot.slane %v2831, 3
    %v3045 = vmul.f32 %v2969, %v3043
    %v3046 = vadd.f32 %v3045, %v2969
    %v3047 = vrot.slane %v2831, 7
    %v3049 = vmul.f32 %v2979, %v3047
    %v3050 = vadd.f32 %v3049, %v2979
    %v3051 = vmul.f32 %v2989, 0.1
    %v3052 = vadd.f32 %v3050, %v3051
    %v3053 = vmul.f32 %v2982, %v2831
    %v3054 = vadd.f32 %v3053, %v2982
    %v3055 = vmul.f32 %v2996, 0.1
    %v3056 = vadd.f32 %v3054, %v3055
    %v3057 = vadd.f32 %v3056, 0.01
    %v3058 = vmul.f32 %v2989, %v3033
    %v3059 = vadd.f32 %v3058, %v2989
    %v3060 = vmul.f32 %v2996, %v3039
    %v3061 = vadd.f32 %v3060, %v2996
    %v3062 = vrot.slane %v2831, 6
    %v3064 = vmul.f32 %v3001, %v3062
    %v3065 = vadd.f32 %v3064, %v3001
    %v3066 = vmul.f32 %v3007, 0.1
    %v3067 = vadd.f32 %v3065, %v3066
    %v3068 = vmul.f32 %v3005, %v3047
    %v3069 = vadd.f32 %v3068, %v3005
    %v3070 = vmul.f32 %v3011, 0.1
    %v3071 = vadd.f32 %v3069, %v3070
    %v3072 = vmul.f32 %v3007, %v2831
    %v3073 = vadd.f32 %v3072, %v3007
    %v3074 = vadd.f32 %v3073, 0.01
    %v3075 = vmul.f32 %v3011, %v3033
    %v3076 = vadd.f32 %v3075, %v3011
    %v3077 = vrot.slane %v2831, 5
    %v3079 = vmul.f32 %v3016, %v3077
    %v3080 = vadd.f32 %v3079, %v3016
    %v3081 = vmul.f32 %v3024, 0.1
    %v3082 = vadd.f32 %v3080, %v3081
    %v3083 = vmul.f32 %v3020, %v3062
    %v3084 = vadd.f32 %v3083, %v3020
    %v3085 = vmul.f32 %v3026, 0.1
    %v3086 = vadd.f32 %v3084, %v3085
    %v3087 = vmul.f32 %v3024, %v3047
    %v3088 = vadd.f32 %v3087, %v3024
    %v3089 = vmul.f32 %v3026, %v2831
    %v3090 = vadd.f32 %v3089, %v3026
    %v3091 = vadd.f32 %v3090, 0.01
    %v3092 = vadd.f32 %v3031, 0.1
    %v3093 = vadd.f32 %v3057, 0.1
    %v3095 = vrot.slane %v3093, 1
    %v3097 = vmul.f32 %v3092, %v3095
    %v3099 = vrot.slane %v3052, 1
    %v3101 = vmul.f32 %v3038, %v3099
    %v3102 = vsub.f32 %v3097, %v3101
    %v3103 = vrcp.pop %v3102
    %v3105 = vrot.slane %v3103, 7
    %v3107 = vmul.f32 %v3093, %v3105
    %v3108 = vsub.f32 0.0, %v3038
    %v3109 = vmul.f32 %v3108, %v3103
    %v3110 = vsub.f32 0.0, %v3052
    %v3111 = vmul.f32 %v3110, %v3105
    %v3112 = vmul.f32 %v3092, %v3103
    %v3114 = vrot.slane %v3107, 1
    %v3116 = vmul.f32 %v3031, %v3114
    %v3117 = vadd.f32 %v3116, 0.0
    %v3119 = vrot.slane %v3111, 1
    %v3121 = vmul.f32 %v3038, %v3119
    %v3122 = vadd.f32 %v3117, %v3121
    %v3123 = vmul.f32 %v3031, %v3109
    %v3124 = vadd.f32 %v3123, 0.0
    %v3125 = vmul.f32 %v3038, %v3112
    %v3126 = vadd.f32 %v3124, %v3125
    %v3127 = vmul.f32 %v3052, %v3107
    %v3128 = vadd.f32 %v3127, 0.0
    %v3129 = vmul.f32 %v3057, %v3111
    %v3130 = vadd.f32 %v3128, %v3129
    %v3132 = vrot.slane %v3109, 7
    %v3134 = vmul.f32 %v3052, %v3132
    %v3135 = vadd.f32 %v3134, 0.0
    %v3137 = vrot.slane %v3112, 7
    %v3139 = vmul.f32 %v3057, %v3137
    %v3140 = vadd.f32 %v3135, %v3139
    %v3141 = vrot.slane %v3107, 7
    %v3143 = vmul.f32 %v3067, %v3141
    %v3144 = vadd.f32 %v3143, 0.0
    %v3145 = vrot.slane %v3111, 7
    %v3147 = vmul.f32 %v3071, %v3145
    %v3148 = vadd.f32 %v3144, %v3147
    %v3149 = vrot.slane %v3109, 6
    %v3151 = vmul.f32 %v3067, %v3149
    %v3152 = vadd.f32 %v3151, 0.0
    %v3153 = vrot.slane %v3112, 6
    %v3155 = vmul.f32 %v3071, %v3153
    %v3156 = vadd.f32 %v3152, %v3155
    %v3157 = vrot.slane %v3107, 6
    %v3159 = vmul.f32 %v3082, %v3157
    %v3160 = vadd.f32 %v3159, 0.0
    %v3161 = vrot.slane %v3111, 6
    %v3163 = vmul.f32 %v3086, %v3161
    %v3164 = vadd.f32 %v3160, %v3163
    %v3165 = vrot.slane %v3109, 5
    %v3167 = vmul.f32 %v3082, %v3165
    %v3168 = vadd.f32 %v3167, 0.0
    %v3169 = vrot.slane %v3112, 5
    %v3171 = vmul.f32 %v3086, %v3169
    %v3172 = vadd.f32 %v3168, %v3171
    %v3173 = vsub.f32 %v2727, %v2942
    %v3174 = vmul.f32 %v3122, %v3173
    %v3175 = vadd.f32 %v3174, 0.0
    %v3177 = vrot.slane %v3173, 1
    %v3179 = vmul.f32 %v3126, %v3177
    %v3180 = vadd.f32 %v3175, %v3179
    %v3181 = vadd.f32 %v2942, %v3180
    %v3182 = vrot.slane %v3173, 7
    %v3184 = vmul.f32 %v3130, %v3182
    %v3185 = vadd.f32 %v3184, 0.0
    %v3186 = vmul.f32 %v3140, %v3173
    %v3187 = vadd.f32 %v3185, %v3186
    %v3188 = vadd.f32 %v2942, %v3187
    %v3189 = vrot.slane %v3173, 6
    %v3191 = vmul.f32 %v3148, %v3189
    %v3192 = vadd.f32 %v3191, 0.0
    %v3193 = vmul.f32 %v3156, %v3182
    %v3194 = vadd.f32 %v3192, %v3193
    %v3195 = vadd.f32 %v2937, %v3194
    %v3196 = vrot.slane %v3173, 5
    %v3198 = vmul.f32 %v3164, %v3196
    %v3199 = vadd.f32 %v3198, 0.0
    %v3200 = vmul.f32 %v3172, %v3189
    %v3201 = vadd.f32 %v3199, %v3200
    %v3202 = vadd.f32 %v2937, %v3201
    %v3203 = vmul.f32 %v3122, %v3031
    %v3204 = vadd.f32 %v3203, 0.0
    %v3205 = vmul.f32 %v3126, %v3099
    %v3206 = vadd.f32 %v3204, %v3205
    %v3207 = vsub.f32 %v3031, %v3206
    %v3208 = vmul.f32 %v3122, %v3038
    %v3209 = vadd.f32 %v3208, 0.0
    %v3211 = vrot.slane %v3057, 1
    %v3213 = vmul.f32 %v3126, %v3211
    %v3214 = vadd.f32 %v3209, %v3213
    %v3215 = vsub.f32 %v3038, %v3214
    %v3216 = vmul.f32 %v3122, %v3042
    %v3217 = vadd.f32 %v3216, 0.0
    %v3219 = vrot.slane %v3059, 1
    %v3221 = vmul.f32 %v3126, %v3219
    %v3222 = vadd.f32 %v3217, %v3221
    %v3223 = vsub.f32 %v3042, %v3222
    %v3224 = vmul.f32 %v3122, %v3046
    %v3225 = vadd.f32 %v3224, 0.0
    %v3227 = vrot.slane %v3061, 1
    %v3229 = vmul.f32 %v3126, %v3227
    %v3230 = vadd.f32 %v3225, %v3229
    %v3231 = vsub.f32 %v3046, %v3230
    %v3233 = vrot.slane %v3031, 7
    %v3235 = vmul.f32 %v3130, %v3233
    %v3236 = vadd.f32 %v3235, 0.0
    %v3237 = vmul.f32 %v3140, %v3052
    %v3238 = vadd.f32 %v3236, %v3237
    %v3239 = vsub.f32 %v3052, %v3238
    %v3241 = vrot.slane %v3038, 7
    %v3243 = vmul.f32 %v3130, %v3241
    %v3244 = vadd.f32 %v3243, 0.0
    %v3245 = vmul.f32 %v3140, %v3057
    %v3246 = vadd.f32 %v3244, %v3245
    %v3247 = vsub.f32 %v3057, %v3246
    %v3249 = vrot.slane %v3042, 7
    %v3251 = vmul.f32 %v3130, %v3249
    %v3252 = vadd.f32 %v3251, 0.0
    %v3253 = vmul.f32 %v3140, %v3059
    %v3254 = vadd.f32 %v3252, %v3253
    %v3255 = vsub.f32 %v3059, %v3254
    %v3257 = vrot.slane %v3046, 7
    %v3259 = vmul.f32 %v3130, %v3257
    %v3260 = vadd.f32 %v3259, 0.0
    %v3261 = vmul.f32 %v3140, %v3061
    %v3262 = vadd.f32 %v3260, %v3261
    %v3263 = vsub.f32 %v3061, %v3262
    %v3264 = vrot.slane %v3031, 6
    %v3266 = vmul.f32 %v3148, %v3264
    %v3267 = vadd.f32 %v3266, 0.0
    %v3268 = vrot.slane %v3052, 7
    %v3270 = vmul.f32 %v3156, %v3268
    %v3271 = vadd.f32 %v3267, %v3270
    %v3272 = vsub.f32 %v3067, %v3271
    %v3273 = vrot.slane %v3038, 6
    %v3275 = vmul.f32 %v3148, %v3273
    %v3276 = vadd.f32 %v3275, 0.0
    %v3277 = vrot.slane %v3057, 7
    %v3279 = vmul.f32 %v3156, %v3277
    %v3280 = vadd.f32 %v3276, %v3279
    %v3281 = vsub.f32 %v3071, %v3280
    %v3282 = vrot.slane %v3042, 6
    %v3284 = vmul.f32 %v3148, %v3282
    %v3285 = vadd.f32 %v3284, 0.0
    %v3286 = vrot.slane %v3059, 7
    %v3288 = vmul.f32 %v3156, %v3286
    %v3289 = vadd.f32 %v3285, %v3288
    %v3290 = vsub.f32 %v3074, %v3289
    %v3291 = vrot.slane %v3046, 6
    %v3293 = vmul.f32 %v3148, %v3291
    %v3294 = vadd.f32 %v3293, 0.0
    %v3295 = vrot.slane %v3061, 7
    %v3297 = vmul.f32 %v3156, %v3295
    %v3298 = vadd.f32 %v3294, %v3297
    %v3299 = vsub.f32 %v3076, %v3298
    %v3300 = vrot.slane %v3031, 5
    %v3302 = vmul.f32 %v3164, %v3300
    %v3303 = vadd.f32 %v3302, 0.0
    %v3304 = vrot.slane %v3052, 6
    %v3306 = vmul.f32 %v3172, %v3304
    %v3307 = vadd.f32 %v3303, %v3306
    %v3308 = vsub.f32 %v3082, %v3307
    %v3309 = vrot.slane %v3038, 5
    %v3311 = vmul.f32 %v3164, %v3309
    %v3312 = vadd.f32 %v3311, 0.0
    %v3313 = vrot.slane %v3057, 6
    %v3315 = vmul.f32 %v3172, %v3313
    %v3316 = vadd.f32 %v3312, %v3315
    %v3317 = vsub.f32 %v3086, %v3316
    %v3318 = vrot.slane %v3042, 5
    %v3320 = vmul.f32 %v3164, %v3318
    %v3321 = vadd.f32 %v3320, 0.0
    %v3322 = vrot.slane %v3059, 6
    %v3324 = vmul.f32 %v3172, %v3322
    %v3325 = vadd.f32 %v3321, %v3324
    %v3326 = vsub.f32 %v3088, %v3325
    %v3327 = vrot.slane %v3046, 5
    %v3329 = vmul.f32 %v3164, %v3327
    %v3330 = vadd.f32 %v3329, 0.0
    %v3331 = vrot.slane %v3061, 6
    %v3333 = vmul.f32 %v3172, %v3331
    %v3334 = vadd.f32 %v3330, %v3333
    %v3335 = vsub.f32 %v3091, %v3334
    %v3336 = vsel %vm682, %v3181, %v3188
    %v3337 = vsel %vm684, %v3336, %v3195
    %v3338 = vsel %vm686, %v3337, %v3202
    %v3340 = vrot.slane %v3215, 7
    %v3343 = vrot.slane %v3223, 6
    %v3346 = vrot.slane %v3231, 5
    %v3348 = vsel %vm682, %v3207, %v3340
    %v3349 = vsel %vm684, %v3348, %v3343
    %v3350 = vsel %vm686, %v3349, %v3346
    %v3352 = vrot.slane %v3239, 1
    %v3355 = vrot.slane %v3255, 7
    %v3358 = vrot.slane %v3263, 6
    %v3360 = vsel %vm682, %v3352, %v3247
    %v3361 = vsel %vm684, %v3360, %v3355
    %v3362 = vsel %vm686, %v3361, %v3358
    %v3364 = vrot.slane %v3272, 2
    %v3367 = vrot.slane %v3281, 1
    %v3370 = vrot.slane %v3299, 7
    %v3372 = vsel %vm682, %v3364, %v3367
    %v3373 = vsel %vm684, %v3372, %v3290
    %v3374 = vsel %vm686, %v3373, %v3370
    %v3376 = vrot.slane %v3308, 3
    %v3379 = vrot.slane %v3317, 2
    %v3382 = vrot.slane %v3326, 1
    %v3384 = vsel %vm682, %v3376, %v3379
    %v3385 = vsel %vm684, %v3384, %v3382
    %v3386 = vsel %vm686, %v3385, %v3335
    %s3387 = scalar_lea.vmem [#allocation10], 16
    %3388 = vst [vmem:[%s3387] sm:$0xf] %v3338
    %s3389 = scalar_lea.vmem [#allocation4], 10
    %v3390 = vld [vmem:[%s3389] sm:$0x3]
    %v3391 = vand.u32 2147483647, %v3338
    %vm3392 = vcmp.le.f32.partialorder %v3391, 0.7853982
    %vm3393 = vcmp.lt.s32.totalorder %v3338, 0
    %v3394 = vand.u32 %v3338, 2139095040
    %v3395 = vshrl.u32 %v3394, 23
    %v3396 = vsub.s32 %v3395, 127
    %v3397 = vand.u32 2147483647, %v3338
    %v3398 = vand.u32 %v3397, 8388607
    %v3399 = vor.u32 %v3398, 8388608
    %v3400 = vsub.s32 0, %v3399
    %v3401 = vadd.s32 %v3396, 1
    %vm3402 = vcmp.gt.s32.totalorder %v3401, 0
    %v3403 = vsel %vm3402, %v3401, 0
    %v3404 = vshrl.u32 %v3403, 5
    %v3405 = vand.u32 %v3403, 31
    %v3406 = vsub.s32 32, %v3405
    %v3407 = vshrl.u32 683565275, %v3406
    %v3408 = vshll.u32 683565275, %v3405
    %v3409 = vshrl.u32 2475754826, %v3406
    %v3410 = vor.u32 %v3408, %v3409
    %v3411 = vshll.u32 2475754826, %v3405
    %v3412 = vshrl.u32 2131351028, %v3406
    %v3413 = vor.u32 %v3411, %v3412
    %v3414 = vshll.u32 2131351028, %v3405
    %v3415 = vshrl.u32 2102212464, %v3406
    %v3416 = vor.u32 %v3414, %v3415
    %v3417 = vshll.u32 2102212464, %v3405
    %v3418 = vshrl.u32 920167782, %v3406
    %v3419 = vor.u32 %v3417, %v3418
    %v3420 = vshll.u32 920167782, %v3405
    %v3421 = vshrl.u32 1326507024, %v3406
    %v3422 = vor.u32 %v3420, %v3421
    %vm3423 = vcmp.lt.s32.totalorder %v3404, 1
    %vm3424 = vcmp.lt.s32.totalorder %v3404, 2
    %vm3425 = vcmp.lt.s32.totalorder %v3404, 3
    %vm3426 = vcmp.lt.s32.totalorder %v3404, 4
    %v3427 = vsel %vm3423, %v3407, %v3410
    %v3428 = vsel %vm3426, %v3416, 2102212464
    %v3429 = vsel %vm3425, %v3413, %v3428
    %v3430 = vsel %vm3424, %v3427, %v3429
    %v3431 = vsel %vm3423, %v3410, %v3413
    %v3432 = vsel %vm3426, %v3419, 920167782
    %v3433 = vsel %vm3425, %v3416, %v3432
    %v3434 = vsel %vm3424, %v3431, %v3433
    %v3435 = vsel %vm3423, %v3413, %v3416
    %v3436 = vsel %vm3426, %v3422, 1326507024
    %v3437 = vsel %vm3425, %v3419, %v3436
    %v3438 = vsel %vm3424, %v3435, %v3437
    %v3439 = vshll.u32 %v3399, 8
    %v3440 = vmul.u32.u64.compose %v3439, %v3438
    %v3441 = vextract.low.u32 %v3440
    %v3442 = vextract.high.u32 %v3440
    %v3443 = vmul.u32.u64.compose %v3439, %v3434
    %v3444 = vextract.low.u32 %v3443
    %v3445 = vextract.high.u32 %v3443
    %v3446 = vmul.u32 %v3439, %v3430
    %v3447 = vadd.s32 %v3442, %v3444
    %vm3448 = vc.u32 %v3442, %v3444
    %v3449 = vadd.s32 %v3445, 1
    %v3450 = vsel %vm3448, %v3449, %v3445
    %v3451 = vadd.s32 %v3446, %v3450
    %v3452 = vadd.s32 %v3451, 536870912
    %v3453 = vshrl.u32 %v3452, 30
    %v3454 = vshll.u32 %v3453, 30
    %v3455 = vsub.s32 %v3451, %v3454
    %vm3456 = vcmp.lt.s32.totalorder %v3455, 0
    %v3457 = vsub.s32 0, %v3455
    %v3458 = vsel %vm3456, %v3457, %v3455
    %v3459 = vclz %v3458
    %v3460 = vsub.s32 %v3459, 2
    %vm3461 = vcmp.gt.s32.totalorder 0, %v3460
    %v3462 = vsel %vm3461, 0, %v3460
    %v3463 = vsub.s32 32, %v3462
    %v3464 = vshll.u32 %v3455, %v3462
    %v3465 = vshrl.u32 %v3447, %v3463
    %v3466 = vor.u32 %v3464, %v3465
    %v3467 = vsub.s32 4294967266, %v3462
    %v3468 = vadd.s32 %v3467, 127
    %v3469 = vshll.u32 %v3468, 23
    %v3470 = vor.u32 4788187, %v3469
    %v3471 = vand.u32 2147483647, %v3470
    %v3473 = vcvt.s32.f32 %v3466
    %v3474 = vmul.f32 %v3473, %v3471
    %v3475 = vxor.u32 %v3474, 2147483648
    %v3476 = vsel %vm3393, %v3475, %v3474
    %v3477 = vsub.s32 4, %v3453
    %v3478 = vsel %vm3393, %v3477, %v3453
    %v3479 = vsel %vm3392, %v3338, %v3476
    %v3480 = vsel %vm3392, 0, %v3478
    %v3481 = vcosq.f32.pop %v3479
    %v3482 = vsinq.f32.pop %v3479
    %vm3483 = vweird.f32 %v3338
    %v3484 = vand.u32 %v3480, 3
    %vm3485 = vcmp.lt.s32.totalorder %v3484, 2
    %vm3486 = vcmp.eq.s32.totalorder %v3484, 0
    %v3487 = vxor.u32 %v3482, 2147483648
    %v3488 = vsel %vm3486, %v3481, %v3487
    %vm3489 = vcmp.eq.s32.totalorder %v3484, 2
    %v3490 = vxor.u32 %v3481, 2147483648
    %v3491 = vsel %vm3489, %v3490, %v3482
    %v3492 = vsel %vm3485, %v3488, %v3491
    %v3493 = vsel %vm3483, nan, %v3492
    %v3494 = vmul.f32 %v3493, 0.1
    %v3495 = vand.u32 2147483647, %v3338
    %vm3496 = vcmp.le.f32.partialorder %v3495, 0.7853982
    %vm3497 = vcmp.lt.s32.totalorder %v3338, 0
    %v3498 = vand.u32 %v3338, 2139095040
    %v3499 = vshrl.u32 %v3498, 23
    %v3500 = vsub.s32 %v3499, 127
    %v3501 = vand.u32 2147483647, %v3338
    %v3502 = vand.u32 %v3501, 8388607
    %v3503 = vor.u32 %v3502, 8388608
    %v3504 = vsub.s32 0, %v3503
    %v3505 = vadd.s32 %v3500, 1
    %vm3506 = vcmp.gt.s32.totalorder %v3505, 0
    %v3507 = vsel %vm3506, %v3505, 0
    %v3508 = vshrl.u32 %v3507, 5
    %v3509 = vand.u32 %v3507, 31
    %v3510 = vsub.s32 32, %v3509
    %v3511 = vshrl.u32 683565275, %v3510
    %v3512 = vshll.u32 683565275, %v3509
    %v3513 = vshrl.u32 2475754826, %v3510
    %v3514 = vor.u32 %v3512, %v3513
    %v3515 = vshll.u32 2475754826, %v3509
    %v3516 = vshrl.u32 2131351028, %v3510
    %v3517 = vor.u32 %v3515, %v3516
    %v3518 = vshll.u32 2131351028, %v3509
    %v3519 = vshrl.u32 2102212464, %v3510
    %v3520 = vor.u32 %v3518, %v3519
    %v3521 = vshll.u32 2102212464, %v3509
    %v3522 = vshrl.u32 920167782, %v3510
    %v3523 = vor.u32 %v3521, %v3522
    %v3524 = vshll.u32 920167782, %v3509
    %v3525 = vshrl.u32 1326507024, %v3510
    %v3526 = vor.u32 %v3524, %v3525
    %vm3527 = vcmp.lt.s32.totalorder %v3508, 1
    %vm3528 = vcmp.lt.s32.totalorder %v3508, 2
    %vm3529 = vcmp.lt.s32.totalorder %v3508, 3
    %vm3530 = vcmp.lt.s32.totalorder %v3508, 4
    %v3531 = vsel %vm3527, %v3511, %v3514
    %v3532 = vsel %vm3530, %v3520, 2102212464
    %v3533 = vsel %vm3529, %v3517, %v3532
    %v3534 = vsel %vm3528, %v3531, %v3533
    %v3535 = vsel %vm3527, %v3514, %v3517
    %v3536 = vsel %vm3530, %v3523, 920167782
    %v3537 = vsel %vm3529, %v3520, %v3536
    %v3538 = vsel %vm3528, %v3535, %v3537
    %v3539 = vsel %vm3527, %v3517, %v3520
    %v3540 = vsel %vm3530, %v3526, 1326507024
    %v3541 = vsel %vm3529, %v3523, %v3540
    %v3542 = vsel %vm3528, %v3539, %v3541
    %v3543 = vshll.u32 %v3503, 8
    %v3544 = vmul.u32.u64.compose %v3543, %v3542
    %v3545 = vextract.low.u32 %v3544
    %v3546 = vextract.high.u32 %v3544
    %v3547 = vmul.u32.u64.compose %v3543, %v3538
    %v3548 = vextract.low.u32 %v3547
    %v3549 = vextract.high.u32 %v3547
    %v3550 = vmul.u32 %v3543, %v3534
    %v3551 = vadd.s32 %v3546, %v3548
    %vm3552 = vc.u32 %v3546, %v3548
    %v3553 = vadd.s32 %v3549, 1
    %v3554 = vsel %vm3552, %v3553, %v3549
    %v3555 = vadd.s32 %v3550, %v3554
    %v3556 = vadd.s32 %v3555, 536870912
    %v3557 = vshrl.u32 %v3556, 30
    %v3558 = vshll.u32 %v3557, 30
    %v3559 = vsub.s32 %v3555, %v3558
    %vm3560 = vcmp.lt.s32.totalorder %v3559, 0
    %v3561 = vsub.s32 0, %v3559
    %v3562 = vsel %vm3560, %v3561, %v3559
    %v3563 = vclz %v3562
    %v3564 = vsub.s32 %v3563, 2
    %vm3565 = vcmp.gt.s32.totalorder 0, %v3564
    %v3566 = vsel %vm3565, 0, %v3564
    %v3567 = vsub.s32 32, %v3566
    %v3568 = vshll.u32 %v3559, %v3566
    %v3569 = vshrl.u32 %v3551, %v3567
    %v3570 = vor.u32 %v3568, %v3569
    %v3571 = vsub.s32 4294967266, %v3566
    %v3572 = vadd.s32 %v3571, 127
    %v3573 = vshll.u32 %v3572, 23
    %v3574 = vor.u32 4788187, %v3573
    %v3575 = vand.u32 2147483647, %v3574
    %v3577 = vcvt.s32.f32 %v3570
    %v3578 = vmul.f32 %v3577, %v3575
    %v3579 = vxor.u32 %v3578, 2147483648
    %v3580 = vsel %vm3497, %v3579, %v3578
    %v3581 = vsub.s32 4, %v3557
    %v3582 = vsel %vm3497, %v3581, %v3557
    %v3583 = vsel %vm3496, %v3338, %v3580
    %v3584 = vsel %vm3496, 0, %v3582
    %v3585 = vcosq.f32.pop %v3583
    %v3586 = vsinq.f32.pop %v3583
    %vm3587 = vweird.f32 %v3338
    %v3588 = vadd.s32 %v3584, 3
    %v3589 = vand.u32 %v3588, 3
    %vm3590 = vcmp.lt.s32.totalorder %v3589, 2
    %vm3591 = vcmp.eq.s32.totalorder %v3589, 0
    %v3592 = vxor.u32 %v3586, 2147483648
    %v3593 = vsel %vm3591, %v3585, %v3592
    %vm3594 = vcmp.eq.s32.totalorder %v3589, 2
    %v3595 = vxor.u32 %v3585, 2147483648
    %v3596 = vsel %vm3594, %v3595, %v3586
    %v3597 = vsel %vm3590, %v3593, %v3596
    %v3598 = vsel %vm3587, nan, %v3597
    %v3599 = vmul.f32 %v3598, 0.1
    %v3600 = vadd.f32 %v3599, %v3338
    %v3601 = vmul.f32 %v3338, 0.1
    %v3603 = vrot.slane %v3601, 2
    %v3605 = vadd.f32 %v3600, %v3603
    %v3606 = vmul.f32 %v3494, %v3350
    %v3607 = vadd.f32 %v3606, %v3350
    %v3608 = vmul.f32 %v3374, 0.1
    %v3609 = vadd.f32 %v3607, %v3608
    %v3611 = vrot.slane %v3350, 1
    %v3613 = vmul.f32 %v3494, %v3611
    %v3614 = vadd.f32 %v3613, %v3611
    %v3616 = vrot.slane %v3608, 1
    %v3618 = vadd.f32 %v3614, %v3616
    %v3619 = vrot.slane %v3350, 2
    %v3621 = vmul.f32 %v3494, %v3619
    %v3622 = vadd.f32 %v3621, %v3619
    %v3623 = vrot.slane %v3608, 2
    %v3625 = vadd.f32 %v3622, %v3623
    %v3626 = vrot.slane %v3350, 3
    %v3628 = vmul.f32 %v3494, %v3626
    %v3629 = vadd.f32 %v3628, %v3626
    %v3630 = vrot.slane %v3608, 3
    %v3632 = vadd.f32 %v3629, %v3630
    %v3634 = vrot.slane %v3362, 7
    %v3636 = vmul.f32 %v3494, %v3634
    %v3637 = vadd.f32 %v3636, %v3634
    %v3638 = vmul.f32 %v3386, 0.1
    %v3640 = vrot.slane %v3638, 7
    %v3642 = vadd.f32 %v3637, %v3640
    %v3643 = vmul.f32 %v3494, %v3362
    %v3644 = vadd.f32 %v3643, %v3362
    %v3645 = vadd.f32 %v3644, %v3638
    %v3646 = vrot.slane %v3362, 1
    %v3648 = vmul.f32 %v3494, %v3646
    %v3649 = vadd.f32 %v3648, %v3646
    %v3650 = vrot.slane %v3638, 1
    %v3652 = vadd.f32 %v3649, %v3650
    %v3653 = vrot.slane %v3362, 2
    %v3655 = vmul.f32 %v3494, %v3653
    %v3656 = vadd.f32 %v3655, %v3653
    %v3657 = vrot.slane %v3638, 2
    %v3659 = vadd.f32 %v3656, %v3657
    %v3661 = vrot.slane %v3374, 6
    %v3663 = vmul.f32 %v3494, %v3661
    %v3664 = vadd.f32 %v3663, %v3661
    %v3665 = vrot.slane %v3374, 7
    %v3667 = vmul.f32 %v3494, %v3665
    %v3668 = vadd.f32 %v3667, %v3665
    %v3669 = vmul.f32 %v3494, %v3374
    %v3670 = vadd.f32 %v3669, %v3374
    %v3671 = vrot.slane %v3374, 1
    %v3673 = vmul.f32 %v3494, %v3671
    %v3674 = vadd.f32 %v3673, %v3671
    %v3676 = vrot.slane %v3386, 5
    %v3678 = vmul.f32 %v3494, %v3676
    %v3679 = vadd.f32 %v3678, %v3676
    %v3680 = vrot.slane %v3386, 6
    %v3682 = vmul.f32 %v3494, %v3680
    %v3683 = vadd.f32 %v3682, %v3680
    %v3684 = vrot.slane %v3386, 7
    %v3686 = vmul.f32 %v3494, %v3684
    %v3687 = vadd.f32 %v3686, %v3684
    %v3688 = vmul.f32 %v3494, %v3386
    %v3689 = vadd.f32 %v3688, %v3386
    %v3690 = vmul.f32 %v3609, %v3494
    %v3691 = vadd.f32 %v3690, %v3609
    %v3692 = vmul.f32 %v3625, 0.1
    %v3693 = vadd.f32 %v3691, %v3692
    %v3694 = vadd.f32 %v3693, 0.01
    %v3696 = vrot.slane %v3494, 1
    %v3698 = vmul.f32 %v3618, %v3696
    %v3699 = vadd.f32 %v3698, %v3618
    %v3700 = vmul.f32 %v3632, 0.1
    %v3701 = vadd.f32 %v3699, %v3700
    %v3702 = vrot.slane %v3494, 2
    %v3704 = vmul.f32 %v3625, %v3702
    %v3705 = vadd.f32 %v3704, %v3625
    %v3706 = vrot.slane %v3494, 3
    %v3708 = vmul.f32 %v3632, %v3706
    %v3709 = vadd.f32 %v3708, %v3632
    %v3710 = vrot.slane %v3494, 7
    %v3712 = vmul.f32 %v3642, %v3710
    %v3713 = vadd.f32 %v3712, %v3642
    %v3714 = vmul.f32 %v3652, 0.1
    %v3715 = vadd.f32 %v3713, %v3714
    %v3716 = vmul.f32 %v3645, %v3494
    %v3717 = vadd.f32 %v3716, %v3645
    %v3718 = vmul.f32 %v3659, 0.1
    %v3719 = vadd.f32 %v3717, %v3718
    %v3720 = vadd.f32 %v3719, 0.01
    %v3721 = vmul.f32 %v3652, %v3696
    %v3722 = vadd.f32 %v3721, %v3652
    %v3723 = vmul.f32 %v3659, %v3702
    %v3724 = vadd.f32 %v3723, %v3659
    %v3725 = vrot.slane %v3494, 6
    %v3727 = vmul.f32 %v3664, %v3725
    %v3728 = vadd.f32 %v3727, %v3664
    %v3729 = vmul.f32 %v3670, 0.1
    %v3730 = vadd.f32 %v3728, %v3729
    %v3731 = vmul.f32 %v3668, %v3710
    %v3732 = vadd.f32 %v3731, %v3668
    %v3733 = vmul.f32 %v3674, 0.1
    %v3734 = vadd.f32 %v3732, %v3733
    %v3735 = vmul.f32 %v3670, %v3494
    %v3736 = vadd.f32 %v3735, %v3670
    %v3737 = vadd.f32 %v3736, 0.01
    %v3738 = vmul.f32 %v3674, %v3696
    %v3739 = vadd.f32 %v3738, %v3674
    %v3740 = vrot.slane %v3494, 5
    %v3742 = vmul.f32 %v3679, %v3740
    %v3743 = vadd.f32 %v3742, %v3679
    %v3744 = vmul.f32 %v3687, 0.1
    %v3745 = vadd.f32 %v3743, %v3744
    %v3746 = vmul.f32 %v3683, %v3725
    %v3747 = vadd.f32 %v3746, %v3683
    %v3748 = vmul.f32 %v3689, 0.1
    %v3749 = vadd.f32 %v3747, %v3748
    %v3750 = vmul.f32 %v3687, %v3710
    %v3751 = vadd.f32 %v3750, %v3687
    %v3752 = vmul.f32 %v3689, %v3494
    %v3753 = vadd.f32 %v3752, %v3689
    %v3754 = vadd.f32 %v3753, 0.01
    %v3755 = vadd.f32 %v3694, 0.1
    %v3756 = vadd.f32 %v3720, 0.1
    %v3758 = vrot.slane %v3756, 1
    %v3760 = vmul.f32 %v3755, %v3758
    %v3762 = vrot.slane %v3715, 1
    %v3764 = vmul.f32 %v3701, %v3762
    %v3765 = vsub.f32 %v3760, %v3764
    %v3766 = vrcp.pop %v3765
    %v3768 = vrot.slane %v3766, 7
    %v3770 = vmul.f32 %v3756, %v3768
    %v3771 = vsub.f32 0.0, %v3701
    %v3772 = vmul.f32 %v3771, %v3766
    %v3773 = vsub.f32 0.0, %v3715
    %v3774 = vmul.f32 %v3773, %v3768
    %v3775 = vmul.f32 %v3755, %v3766
    %v3777 = vrot.slane %v3770, 1
    %v3779 = vmul.f32 %v3694, %v3777
    %v3780 = vadd.f32 %v3779, 0.0
    %v3782 = vrot.slane %v3774, 1
    %v3784 = vmul.f32 %v3701, %v3782
    %v3785 = vadd.f32 %v3780, %v3784
    %v3786 = vmul.f32 %v3694, %v3772
    %v3787 = vadd.f32 %v3786, 0.0
    %v3788 = vmul.f32 %v3701, %v3775
    %v3789 = vadd.f32 %v3787, %v3788
    %v3790 = vmul.f32 %v3715, %v3770
    %v3791 = vadd.f32 %v3790, 0.0
    %v3792 = vmul.f32 %v3720, %v3774
    %v3793 = vadd.f32 %v3791, %v3792
    %v3795 = vrot.slane %v3772, 7
    %v3797 = vmul.f32 %v3715, %v3795
    %v3798 = vadd.f32 %v3797, 0.0
    %v3800 = vrot.slane %v3775, 7
    %v3802 = vmul.f32 %v3720, %v3800
    %v3803 = vadd.f32 %v3798, %v3802
    %v3804 = vrot.slane %v3770, 7
    %v3806 = vmul.f32 %v3730, %v3804
    %v3807 = vadd.f32 %v3806, 0.0
    %v3808 = vrot.slane %v3774, 7
    %v3810 = vmul.f32 %v3734, %v3808
    %v3811 = vadd.f32 %v3807, %v3810
    %v3812 = vrot.slane %v3772, 6
    %v3814 = vmul.f32 %v3730, %v3812
    %v3815 = vadd.f32 %v3814, 0.0
    %v3816 = vrot.slane %v3775, 6
    %v3818 = vmul.f32 %v3734, %v3816
    %v3819 = vadd.f32 %v3815, %v3818
    %v3820 = vrot.slane %v3770, 6
    %v3822 = vmul.f32 %v3745, %v3820
    %v3823 = vadd.f32 %v3822, 0.0
    %v3824 = vrot.slane %v3774, 6
    %v3826 = vmul.f32 %v3749, %v3824
    %v3827 = vadd.f32 %v3823, %v3826
    %v3828 = vrot.slane %v3772, 5
    %v3830 = vmul.f32 %v3745, %v3828
    %v3831 = vadd.f32 %v3830, 0.0
    %v3832 = vrot.slane %v3775, 5
    %v3834 = vmul.f32 %v3749, %v3832
    %v3835 = vadd.f32 %v3831, %v3834
    %v3836 = vsub.f32 %v3390, %v3605
    %v3837 = vmul.f32 %v3785, %v3836
    %v3838 = vadd.f32 %v3837, 0.0
    %v3840 = vrot.slane %v3836, 1
    %v3842 = vmul.f32 %v3789, %v3840
    %v3843 = vadd.f32 %v3838, %v3842
    %v3844 = vadd.f32 %v3605, %v3843
    %v3845 = vrot.slane %v3836, 7
    %v3847 = vmul.f32 %v3793, %v3845
    %v3848 = vadd.f32 %v3847, 0.0
    %v3849 = vmul.f32 %v3803, %v3836
    %v3850 = vadd.f32 %v3848, %v3849
    %v3851 = vadd.f32 %v3605, %v3850
    %v3852 = vrot.slane %v3836, 6
    %v3854 = vmul.f32 %v3811, %v3852
    %v3855 = vadd.f32 %v3854, 0.0
    %v3856 = vmul.f32 %v3819, %v3845
    %v3857 = vadd.f32 %v3855, %v3856
    %v3858 = vadd.f32 %v3600, %v3857
    %v3859 = vrot.slane %v3836, 5
    %v3861 = vmul.f32 %v3827, %v3859
    %v3862 = vadd.f32 %v3861, 0.0
    %v3863 = vmul.f32 %v3835, %v3852
    %v3864 = vadd.f32 %v3862, %v3863
    %v3865 = vadd.f32 %v3600, %v3864
    %v3866 = vmul.f32 %v3785, %v3694
    %v3867 = vadd.f32 %v3866, 0.0
    %v3868 = vmul.f32 %v3789, %v3762
    %v3869 = vadd.f32 %v3867, %v3868
    %v3870 = vsub.f32 %v3694, %v3869
    %v3871 = vmul.f32 %v3785, %v3701
    %v3872 = vadd.f32 %v3871, 0.0
    %v3874 = vrot.slane %v3720, 1
    %v3876 = vmul.f32 %v3789, %v3874
    %v3877 = vadd.f32 %v3872, %v3876
    %v3878 = vsub.f32 %v3701, %v3877
    %v3879 = vmul.f32 %v3785, %v3705
    %v3880 = vadd.f32 %v3879, 0.0
    %v3882 = vrot.slane %v3722, 1
    %v3884 = vmul.f32 %v3789, %v3882
    %v3885 = vadd.f32 %v3880, %v3884
    %v3886 = vsub.f32 %v3705, %v3885
    %v3887 = vmul.f32 %v3785, %v3709
    %v3888 = vadd.f32 %v3887, 0.0
    %v3890 = vrot.slane %v3724, 1
    %v3892 = vmul.f32 %v3789, %v3890
    %v3893 = vadd.f32 %v3888, %v3892
    %v3894 = vsub.f32 %v3709, %v3893
    %v3896 = vrot.slane %v3694, 7
    %v3898 = vmul.f32 %v3793, %v3896
    %v3899 = vadd.f32 %v3898, 0.0
    %v3900 = vmul.f32 %v3803, %v3715
    %v3901 = vadd.f32 %v3899, %v3900
    %v3902 = vsub.f32 %v3715, %v3901
    %v3904 = vrot.slane %v3701, 7
    %v3906 = vmul.f32 %v3793, %v3904
    %v3907 = vadd.f32 %v3906, 0.0
    %v3908 = vmul.f32 %v3803, %v3720
    %v3909 = vadd.f32 %v3907, %v3908
    %v3910 = vsub.f32 %v3720, %v3909
    %v3912 = vrot.slane %v3705, 7
    %v3914 = vmul.f32 %v3793, %v3912
    %v3915 = vadd.f32 %v3914, 0.0
    %v3916 = vmul.f32 %v3803, %v3722
    %v3917 = vadd.f32 %v3915, %v3916
    %v3918 = vsub.f32 %v3722, %v3917
    %v3920 = vrot.slane %v3709, 7
    %v3922 = vmul.f32 %v3793, %v3920
    %v3923 = vadd.f32 %v3922, 0.0
    %v3924 = vmul.f32 %v3803, %v3724
    %v3925 = vadd.f32 %v3923, %v3924
    %v3926 = vsub.f32 %v3724, %v3925
    %v3927 = vrot.slane %v3694, 6
    %v3929 = vmul.f32 %v3811, %v3927
    %v3930 = vadd.f32 %v3929, 0.0
    %v3931 = vrot.slane %v3715, 7
    %v3933 = vmul.f32 %v3819, %v3931
    %v3934 = vadd.f32 %v3930, %v3933
    %v3935 = vsub.f32 %v3730, %v3934
    %v3936 = vrot.slane %v3701, 6
    %v3938 = vmul.f32 %v3811, %v3936
    %v3939 = vadd.f32 %v3938, 0.0
    %v3940 = vrot.slane %v3720, 7
    %v3942 = vmul.f32 %v3819, %v3940
    %v3943 = vadd.f32 %v3939, %v3942
    %v3944 = vsub.f32 %v3734, %v3943
    %v3945 = vrot.slane %v3705, 6
    %v3947 = vmul.f32 %v3811, %v3945
    %v3948 = vadd.f32 %v3947, 0.0
    %v3949 = vrot.slane %v3722, 7
    %v3951 = vmul.f32 %v3819, %v3949
    %v3952 = vadd.f32 %v3948, %v3951
    %v3953 = vsub.f32 %v3737, %v3952
    %v3954 = vrot.slane %v3709, 6
    %v3956 = vmul.f32 %v3811, %v3954
    %v3957 = vadd.f32 %v3956, 0.0
    %v3958 = vrot.slane %v3724, 7
    %v3960 = vmul.f32 %v3819, %v3958
    %v3961 = vadd.f32 %v3957, %v3960
    %v3962 = vsub.f32 %v3739, %v3961
    %v3963 = vrot.slane %v3694, 5
    %v3965 = vmul.f32 %v3827, %v3963
    %v3966 = vadd.f32 %v3965, 0.0
    %v3967 = vrot.slane %v3715, 6
    %v3969 = vmul.f32 %v3835, %v3967
    %v3970 = vadd.f32 %v3966, %v3969
    %v3971 = vsub.f32 %v3745, %v3970
    %v3972 = vrot.slane %v3701, 5
    %v3974 = vmul.f32 %v3827, %v3972
    %v3975 = vadd.f32 %v3974, 0.0
    %v3976 = vrot.slane %v3720, 6
    %v3978 = vmul.f32 %v3835, %v3976
    %v3979 = vadd.f32 %v3975, %v3978
    %v3980 = vsub.f32 %v3749, %v3979
    %v3981 = vrot.slane %v3705, 5
    %v3983 = vmul.f32 %v3827, %v3981
    %v3984 = vadd.f32 %v3983, 0.0
    %v3985 = vrot.slane %v3722, 6
    %v3987 = vmul.f32 %v3835, %v3985
    %v3988 = vadd.f32 %v3984, %v3987
    %v3989 = vsub.f32 %v3751, %v3988
    %v3990 = vrot.slane %v3709, 5
    %v3992 = vmul.f32 %v3827, %v3990
    %v3993 = vadd.f32 %v3992, 0.0
    %v3994 = vrot.slane %v3724, 6
    %v3996 = vmul.f32 %v3835, %v3994
    %v3997 = vadd.f32 %v3993, %v3996
    %v3998 = vsub.f32 %v3754, %v3997
    %v3999 = vsel %vm682, %v3844, %v3851
    %v4000 = vsel %vm684, %v3999, %v3858
    %v4001 = vsel %vm686, %v4000, %v3865
    %v4003 = vrot.slane %v3878, 7
    %v4006 = vrot.slane %v3886, 6
    %v4009 = vrot.slane %v3894, 5
    %v4011 = vsel %vm682, %v3870, %v4003
    %v4012 = vsel %vm684, %v4011, %v4006
    %v4013 = vsel %vm686, %v4012, %v4009
    %v4015 = vrot.slane %v3902, 1
    %v4018 = vrot.slane %v3918, 7
    %v4021 = vrot.slane %v3926, 6
    %v4023 = vsel %vm682, %v4015, %v3910
    %v4024 = vsel %vm684, %v4023, %v4018
    %v4025 = vsel %vm686, %v4024, %v4021
    %v4027 = vrot.slane %v3935, 2
    %v4030 = vrot.slane %v3944, 1
    %v4033 = vrot.slane %v3962, 7
    %v4035 = vsel %vm682, %v4027, %v4030
    %v4036 = vsel %vm684, %v4035, %v3953
    %v4037 = vsel %vm686, %v4036, %v4033
    %v4039 = vrot.slane %v3971, 3
    %v4042 = vrot.slane %v3980, 2
    %v4045 = vrot.slane %v3989, 1
    %v4047 = vsel %vm682, %v4039, %v4042
    %v4048 = vsel %vm684, %v4047, %v4045
    %v4049 = vsel %vm686, %v4048, %v3998
    %s4050 = scalar_lea.vmem [#allocation10], 20
    %4051 = vst [vmem:[%s4050] sm:$0xf] %v4001
    %s4052 = scalar_lea.vmem [#allocation4], 12
    %v4053 = vld [vmem:[%s4052] sm:$0x3]
    %v4054 = vand.u32 2147483647, %v4001
    %vm4055 = vcmp.le.f32.partialorder %v4054, 0.7853982
    %vm4056 = vcmp.lt.s32.totalorder %v4001, 0
    %v4057 = vand.u32 %v4001, 2139095040
    %v4058 = vshrl.u32 %v4057, 23
    %v4059 = vsub.s32 %v4058, 127
    %v4060 = vand.u32 2147483647, %v4001
    %v4061 = vand.u32 %v4060, 8388607
    %v4062 = vor.u32 %v4061, 8388608
    %v4063 = vsub.s32 0, %v4062
    %v4064 = vadd.s32 %v4059, 1
    %vm4065 = vcmp.gt.s32.totalorder %v4064, 0
    %v4066 = vsel %vm4065, %v4064, 0
    %v4067 = vshrl.u32 %v4066, 5
    %v4068 = vand.u32 %v4066, 31
    %v4069 = vsub.s32 32, %v4068
    %v4070 = vshrl.u32 683565275, %v4069
    %v4071 = vshll.u32 683565275, %v4068
    %v4072 = vshrl.u32 2475754826, %v4069
    %v4073 = vor.u32 %v4071, %v4072
    %v4074 = vshll.u32 2475754826, %v4068
    %v4075 = vshrl.u32 2131351028, %v4069
    %v4076 = vor.u32 %v4074, %v4075
    %v4077 = vshll.u32 2131351028, %v4068
    %v4078 = vshrl.u32 2102212464, %v4069
    %v4079 = vor.u32 %v4077, %v4078
    %v4080 = vshll.u32 2102212464, %v4068
    %v4081 = vshrl.u32 920167782, %v4069
    %v4082 = vor.u32 %v4080, %v4081
    %v4083 = vshll.u32 920167782, %v4068
    %v4084 = vshrl.u32 1326507024, %v4069
    %v4085 = vor.u32 %v4083, %v4084
    %vm4086 = vcmp.lt.s32.totalorder %v4067, 1
    %vm4087 = vcmp.lt.s32.totalorder %v4067, 2
    %vm4088 = vcmp.lt.s32.totalorder %v4067, 3
    %vm4089 = vcmp.lt.s32.totalorder %v4067, 4
    %v4090 = vsel %vm4086, %v4070, %v4073
    %v4091 = vsel %vm4089, %v4079, 2102212464
    %v4092 = vsel %vm4088, %v4076, %v4091
    %v4093 = vsel %vm4087, %v4090, %v4092
    %v4094 = vsel %vm4086, %v4073, %v4076
    %v4095 = vsel %vm4089, %v4082, 920167782
    %v4096 = vsel %vm4088, %v4079, %v4095
    %v4097 = vsel %vm4087, %v4094, %v4096
    %v4098 = vsel %vm4086, %v4076, %v4079
    %v4099 = vsel %vm4089, %v4085, 1326507024
    %v4100 = vsel %vm4088, %v4082, %v4099
    %v4101 = vsel %vm4087, %v4098, %v4100
    %v4102 = vshll.u32 %v4062, 8
    %v4103 = vmul.u32.u64.compose %v4102, %v4101
    %v4104 = vextract.low.u32 %v4103
    %v4105 = vextract.high.u32 %v4103
    %v4106 = vmul.u32.u64.compose %v4102, %v4097
    %v4107 = vextract.low.u32 %v4106
    %v4108 = vextract.high.u32 %v4106
    %v4109 = vmul.u32 %v4102, %v4093
    %v4110 = vadd.s32 %v4105, %v4107
    %vm4111 = vc.u32 %v4105, %v4107
    %v4112 = vadd.s32 %v4108, 1
    %v4113 = vsel %vm4111, %v4112, %v4108
    %v4114 = vadd.s32 %v4109, %v4113
    %v4115 = vadd.s32 %v4114, 536870912
    %v4116 = vshrl.u32 %v4115, 30
    %v4117 = vshll.u32 %v4116, 30
    %v4118 = vsub.s32 %v4114, %v4117
    %vm4119 = vcmp.lt.s32.totalorder %v4118, 0
    %v4120 = vsub.s32 0, %v4118
    %v4121 = vsel %vm4119, %v4120, %v4118
    %v4122 = vclz %v4121
    %v4123 = vsub.s32 %v4122, 2
    %vm4124 = vcmp.gt.s32.totalorder 0, %v4123
    %v4125 = vsel %vm4124, 0, %v4123
    %v4126 = vsub.s32 32, %v4125
    %v4127 = vshll.u32 %v4118, %v4125
    %v4128 = vshrl.u32 %v4110, %v4126
    %v4129 = vor.u32 %v4127, %v4128
    %v4130 = vsub.s32 4294967266, %v4125
    %v4131 = vadd.s32 %v4130, 127
    %v4132 = vshll.u32 %v4131, 23
    %v4133 = vor.u32 4788187, %v4132
    %v4134 = vand.u32 2147483647, %v4133
    %v4136 = vcvt.s32.f32 %v4129
    %v4137 = vmul.f32 %v4136, %v4134
    %v4138 = vxor.u32 %v4137, 2147483648
    %v4139 = vsel %vm4056, %v4138, %v4137
    %v4140 = vsub.s32 4, %v4116
    %v4141 = vsel %vm4056, %v4140, %v4116
    %v4142 = vsel %vm4055, %v4001, %v4139
    %v4143 = vsel %vm4055, 0, %v4141
    %v4144 = vcosq.f32.pop %v4142
    %v4145 = vsinq.f32.pop %v4142
    %vm4146 = vweird.f32 %v4001
    %v4147 = vand.u32 %v4143, 3
    %vm4148 = vcmp.lt.s32.totalorder %v4147, 2
    %vm4149 = vcmp.eq.s32.totalorder %v4147, 0
    %v4150 = vxor.u32 %v4145, 2147483648
    %v4151 = vsel %vm4149, %v4144, %v4150
    %vm4152 = vcmp.eq.s32.totalorder %v4147, 2
    %v4153 = vxor.u32 %v4144, 2147483648
    %v4154 = vsel %vm4152, %v4153, %v4145
    %v4155 = vsel %vm4148, %v4151, %v4154
    %v4156 = vsel %vm4146, nan, %v4155
    %v4157 = vmul.f32 %v4156, 0.1
    %v4158 = vand.u32 2147483647, %v4001
    %vm4159 = vcmp.le.f32.partialorder %v4158, 0.7853982
    %vm4160 = vcmp.lt.s32.totalorder %v4001, 0
    %v4161 = vand.u32 %v4001, 2139095040
    %v4162 = vshrl.u32 %v4161, 23
    %v4163 = vsub.s32 %v4162, 127
    %v4164 = vand.u32 2147483647, %v4001
    %v4165 = vand.u32 %v4164, 8388607
    %v4166 = vor.u32 %v4165, 8388608
    %v4167 = vsub.s32 0, %v4166
    %v4168 = vadd.s32 %v4163, 1
    %vm4169 = vcmp.gt.s32.totalorder %v4168, 0
    %v4170 = vsel %vm4169, %v4168, 0
    %v4171 = vshrl.u32 %v4170, 5
    %v4172 = vand.u32 %v4170, 31
    %v4173 = vsub.s32 32, %v4172
    %v4174 = vshrl.u32 683565275, %v4173
    %v4175 = vshll.u32 683565275, %v4172
    %v4176 = vshrl.u32 2475754826, %v4173
    %v4177 = vor.u32 %v4175, %v4176
    %v4178 = vshll.u32 2475754826, %v4172
    %v4179 = vshrl.u32 2131351028, %v4173
    %v4180 = vor.u32 %v4178, %v4179
    %v4181 = vshll.u32 2131351028, %v4172
    %v4182 = vshrl.u32 2102212464, %v4173
    %v4183 = vor.u32 %v4181, %v4182
    %v4184 = vshll.u32 2102212464, %v4172
    %v4185 = vshrl.u32 920167782, %v4173
    %v4186 = vor.u32 %v4184, %v4185
    %v4187 = vshll.u32 920167782, %v4172
    %v4188 = vshrl.u32 1326507024, %v4173
    %v4189 = vor.u32 %v4187, %v4188
    %vm4190 = vcmp.lt.s32.totalorder %v4171, 1
    %vm4191 = vcmp.lt.s32.totalorder %v4171, 2
    %vm4192 = vcmp.lt.s32.totalorder %v4171, 3
    %vm4193 = vcmp.lt.s32.totalorder %v4171, 4
    %v4194 = vsel %vm4190, %v4174, %v4177
    %v4195 = vsel %vm4193, %v4183, 2102212464
    %v4196 = vsel %vm4192, %v4180, %v4195
    %v4197 = vsel %vm4191, %v4194, %v4196
    %v4198 = vsel %vm4190, %v4177, %v4180
    %v4199 = vsel %vm4193, %v4186, 920167782
    %v4200 = vsel %vm4192, %v4183, %v4199
    %v4201 = vsel %vm4191, %v4198, %v4200
    %v4202 = vsel %vm4190, %v4180, %v4183
    %v4203 = vsel %vm4193, %v4189, 1326507024
    %v4204 = vsel %vm4192, %v4186, %v4203
    %v4205 = vsel %vm4191, %v4202, %v4204
    %v4206 = vshll.u32 %v4166, 8
    %v4207 = vmul.u32.u64.compose %v4206, %v4205
    %v4208 = vextract.low.u32 %v4207
    %v4209 = vextract.high.u32 %v4207
    %v4210 = vmul.u32.u64.compose %v4206, %v4201
    %v4211 = vextract.low.u32 %v4210
    %v4212 = vextract.high.u32 %v4210
    %v4213 = vmul.u32 %v4206, %v4197
    %v4214 = vadd.s32 %v4209, %v4211
    %vm4215 = vc.u32 %v4209, %v4211
    %v4216 = vadd.s32 %v4212, 1
    %v4217 = vsel %vm4215, %v4216, %v4212
    %v4218 = vadd.s32 %v4213, %v4217
    %v4219 = vadd.s32 %v4218, 536870912
    %v4220 = vshrl.u32 %v4219, 30
    %v4221 = vshll.u32 %v4220, 30
    %v4222 = vsub.s32 %v4218, %v4221
    %vm4223 = vcmp.lt.s32.totalorder %v4222, 0
    %v4224 = vsub.s32 0, %v4222
    %v4225 = vsel %vm4223, %v4224, %v4222
    %v4226 = vclz %v4225
    %v4227 = vsub.s32 %v4226, 2
    %vm4228 = vcmp.gt.s32.totalorder 0, %v4227
    %v4229 = vsel %vm4228, 0, %v4227
    %v4230 = vsub.s32 32, %v4229
    %v4231 = vshll.u32 %v4222, %v4229
    %v4232 = vshrl.u32 %v4214, %v4230
    %v4233 = vor.u32 %v4231, %v4232
    %v4234 = vsub.s32 4294967266, %v4229
    %v4235 = vadd.s32 %v4234, 127
    %v4236 = vshll.u32 %v4235, 23
    %v4237 = vor.u32 4788187, %v4236
    %v4238 = vand.u32 2147483647, %v4237
    %v4240 = vcvt.s32.f32 %v4233
    %v4241 = vmul.f32 %v4240, %v4238
    %v4242 = vxor.u32 %v4241, 2147483648
    %v4243 = vsel %vm4160, %v4242, %v4241
    %v4244 = vsub.s32 4, %v4220
    %v4245 = vsel %vm4160, %v4244, %v4220
    %v4246 = vsel %vm4159, %v4001, %v4243
    %v4247 = vsel %vm4159, 0, %v4245
    %v4248 = vcosq.f32.pop %v4246
    %v4249 = vsinq.f32.pop %v4246
    %vm4250 = vweird.f32 %v4001
    %v4251 = vadd.s32 %v4247, 3
    %v4252 = vand.u32 %v4251, 3
    %vm4253 = vcmp.lt.s32.totalorder %v4252, 2
    %vm4254 = vcmp.eq.s32.totalorder %v4252, 0
    %v4255 = vxor.u32 %v4249, 2147483648
    %v4256 = vsel %vm4254, %v4248, %v4255
    %vm4257 = vcmp.eq.s32.totalorder %v4252, 2
    %v4258 = vxor.u32 %v4248, 2147483648
    %v4259 = vsel %vm4257, %v4258, %v4249
    %v4260 = vsel %vm4253, %v4256, %v4259
    %v4261 = vsel %vm4250, nan, %v4260
    %v4262 = vmul.f32 %v4261, 0.1
    %v4263 = vadd.f32 %v4262, %v4001
    %v4264 = vmul.f32 %v4001, 0.1
    %v4266 = vrot.slane %v4264, 2
    %v4268 = vadd.f32 %v4263, %v4266
    %v4269 = vmul.f32 %v4157, %v4013
    %v4270 = vadd.f32 %v4269, %v4013
    %v4271 = vmul.f32 %v4037, 0.1
    %v4272 = vadd.f32 %v4270, %v4271
    %v4274 = vrot.slane %v4013, 1
    %v4276 = vmul.f32 %v4157, %v4274
    %v4277 = vadd.f32 %v4276, %v4274
    %v4279 = vrot.slane %v4271, 1
    %v4281 = vadd.f32 %v4277, %v4279
    %v4282 = vrot.slane %v4013, 2
    %v4284 = vmul.f32 %v4157, %v4282
    %v4285 = vadd.f32 %v4284, %v4282
    %v4286 = vrot.slane %v4271, 2
    %v4288 = vadd.f32 %v4285, %v4286
    %v4289 = vrot.slane %v4013, 3
    %v4291 = vmul.f32 %v4157, %v4289
    %v4292 = vadd.f32 %v4291, %v4289
    %v4293 = vrot.slane %v4271, 3
    %v4295 = vadd.f32 %v4292, %v4293
    %v4297 = vrot.slane %v4025, 7
    %v4299 = vmul.f32 %v4157, %v4297
    %v4300 = vadd.f32 %v4299, %v4297
    %v4301 = vmul.f32 %v4049, 0.1
    %v4303 = vrot.slane %v4301, 7
    %v4305 = vadd.f32 %v4300, %v4303
    %v4306 = vmul.f32 %v4157, %v4025
    %v4307 = vadd.f32 %v4306, %v4025
    %v4308 = vadd.f32 %v4307, %v4301
    %v4309 = vrot.slane %v4025, 1
    %v4311 = vmul.f32 %v4157, %v4309
    %v4312 = vadd.f32 %v4311, %v4309
    %v4313 = vrot.slane %v4301, 1
    %v4315 = vadd.f32 %v4312, %v4313
    %v4316 = vrot.slane %v4025, 2
    %v4318 = vmul.f32 %v4157, %v4316
    %v4319 = vadd.f32 %v4318, %v4316
    %v4320 = vrot.slane %v4301, 2
    %v4322 = vadd.f32 %v4319, %v4320
    %v4324 = vrot.slane %v4037, 6
    %v4326 = vmul.f32 %v4157, %v4324
    %v4327 = vadd.f32 %v4326, %v4324
    %v4328 = vrot.slane %v4037, 7
    %v4330 = vmul.f32 %v4157, %v4328
    %v4331 = vadd.f32 %v4330, %v4328
    %v4332 = vmul.f32 %v4157, %v4037
    %v4333 = vadd.f32 %v4332, %v4037
    %v4334 = vrot.slane %v4037, 1
    %v4336 = vmul.f32 %v4157, %v4334
    %v4337 = vadd.f32 %v4336, %v4334
    %v4339 = vrot.slane %v4049, 5
    %v4341 = vmul.f32 %v4157, %v4339
    %v4342 = vadd.f32 %v4341, %v4339
    %v4343 = vrot.slane %v4049, 6
    %v4345 = vmul.f32 %v4157, %v4343
    %v4346 = vadd.f32 %v4345, %v4343
    %v4347 = vrot.slane %v4049, 7
    %v4349 = vmul.f32 %v4157, %v4347
    %v4350 = vadd.f32 %v4349, %v4347
    %v4351 = vmul.f32 %v4157, %v4049
    %v4352 = vadd.f32 %v4351, %v4049
    %v4353 = vmul.f32 %v4272, %v4157
    %v4354 = vadd.f32 %v4353, %v4272
    %v4355 = vmul.f32 %v4288, 0.1
    %v4356 = vadd.f32 %v4354, %v4355
    %v4357 = vadd.f32 %v4356, 0.01
    %v4359 = vrot.slane %v4157, 1
    %v4361 = vmul.f32 %v4281, %v4359
    %v4362 = vadd.f32 %v4361, %v4281
    %v4363 = vmul.f32 %v4295, 0.1
    %v4364 = vadd.f32 %v4362, %v4363
    %v4365 = vrot.slane %v4157, 2
    %v4367 = vmul.f32 %v4288, %v4365
    %v4368 = vadd.f32 %v4367, %v4288
    %v4369 = vrot.slane %v4157, 3
    %v4371 = vmul.f32 %v4295, %v4369
    %v4372 = vadd.f32 %v4371, %v4295
    %v4373 = vrot.slane %v4157, 7
    %v4375 = vmul.f32 %v4305, %v4373
    %v4376 = vadd.f32 %v4375, %v4305
    %v4377 = vmul.f32 %v4315, 0.1
    %v4378 = vadd.f32 %v4376, %v4377
    %v4379 = vmul.f32 %v4308, %v4157
    %v4380 = vadd.f32 %v4379, %v4308
    %v4381 = vmul.f32 %v4322, 0.1
    %v4382 = vadd.f32 %v4380, %v4381
    %v4383 = vadd.f32 %v4382, 0.01
    %v4384 = vmul.f32 %v4315, %v4359
    %v4385 = vadd.f32 %v4384, %v4315
    %v4386 = vmul.f32 %v4322, %v4365
    %v4387 = vadd.f32 %v4386, %v4322
    %v4388 = vrot.slane %v4157, 6
    %v4390 = vmul.f32 %v4327, %v4388
    %v4391 = vadd.f32 %v4390, %v4327
    %v4392 = vmul.f32 %v4333, 0.1
    %v4393 = vadd.f32 %v4391, %v4392
    %v4394 = vmul.f32 %v4331, %v4373
    %v4395 = vadd.f32 %v4394, %v4331
    %v4396 = vmul.f32 %v4337, 0.1
    %v4397 = vadd.f32 %v4395, %v4396
    %v4398 = vmul.f32 %v4333, %v4157
    %v4399 = vadd.f32 %v4398, %v4333
    %v4400 = vadd.f32 %v4399, 0.01
    %v4401 = vmul.f32 %v4337, %v4359
    %v4402 = vadd.f32 %v4401, %v4337
    %v4403 = vrot.slane %v4157, 5
    %v4405 = vmul.f32 %v4342, %v4403
    %v4406 = vadd.f32 %v4405, %v4342
    %v4407 = vmul.f32 %v4350, 0.1
    %v4408 = vadd.f32 %v4406, %v4407
    %v4409 = vmul.f32 %v4346, %v4388
    %v4410 = vadd.f32 %v4409, %v4346
    %v4411 = vmul.f32 %v4352, 0.1
    %v4412 = vadd.f32 %v4410, %v4411
    %v4413 = vmul.f32 %v4350, %v4373
    %v4414 = vadd.f32 %v4413, %v4350
    %v4415 = vmul.f32 %v4352, %v4157
    %v4416 = vadd.f32 %v4415, %v4352
    %v4417 = vadd.f32 %v4416, 0.01
    %v4418 = vadd.f32 %v4357, 0.1
    %v4419 = vadd.f32 %v4383, 0.1
    %v4421 = vrot.slane %v4419, 1
    %v4423 = vmul.f32 %v4418, %v4421
    %v4425 = vrot.slane %v4378, 1
    %v4427 = vmul.f32 %v4364, %v4425
    %v4428 = vsub.f32 %v4423, %v4427
    %v4429 = vrcp.pop %v4428
    %v4431 = vrot.slane %v4429, 7
    %v4433 = vmul.f32 %v4419, %v4431
    %v4434 = vsub.f32 0.0, %v4364
    %v4435 = vmul.f32 %v4434, %v4429
    %v4436 = vsub.f32 0.0, %v4378
    %v4437 = vmul.f32 %v4436, %v4431
    %v4438 = vmul.f32 %v4418, %v4429
    %v4440 = vrot.slane %v4433, 1
    %v4442 = vmul.f32 %v4357, %v4440
    %v4443 = vadd.f32 %v4442, 0.0
    %v4445 = vrot.slane %v4437, 1
    %v4447 = vmul.f32 %v4364, %v4445
    %v4448 = vadd.f32 %v4443, %v4447
    %v4449 = vmul.f32 %v4357, %v4435
    %v4450 = vadd.f32 %v4449, 0.0
    %v4451 = vmul.f32 %v4364, %v4438
    %v4452 = vadd.f32 %v4450, %v4451
    %v4453 = vmul.f32 %v4378, %v4433
    %v4454 = vadd.f32 %v4453, 0.0
    %v4455 = vmul.f32 %v4383, %v4437
    %v4456 = vadd.f32 %v4454, %v4455
    %v4458 = vrot.slane %v4435, 7
    %v4460 = vmul.f32 %v4378, %v4458
    %v4461 = vadd.f32 %v4460, 0.0
    %v4463 = vrot.slane %v4438, 7
    %v4465 = vmul.f32 %v4383, %v4463
    %v4466 = vadd.f32 %v4461, %v4465
    %v4467 = vrot.slane %v4433, 7
    %v4469 = vmul.f32 %v4393, %v4467
    %v4470 = vadd.f32 %v4469, 0.0
    %v4471 = vrot.slane %v4437, 7
    %v4473 = vmul.f32 %v4397, %v4471
    %v4474 = vadd.f32 %v4470, %v4473
    %v4475 = vrot.slane %v4435, 6
    %v4477 = vmul.f32 %v4393, %v4475
    %v4478 = vadd.f32 %v4477, 0.0
    %v4479 = vrot.slane %v4438, 6
    %v4481 = vmul.f32 %v4397, %v4479
    %v4482 = vadd.f32 %v4478, %v4481
    %v4483 = vrot.slane %v4433, 6
    %v4485 = vmul.f32 %v4408, %v4483
    %v4486 = vadd.f32 %v4485, 0.0
    %v4487 = vrot.slane %v4437, 6
    %v4489 = vmul.f32 %v4412, %v4487
    %v4490 = vadd.f32 %v4486, %v4489
    %v4491 = vrot.slane %v4435, 5
    %v4493 = vmul.f32 %v4408, %v4491
    %v4494 = vadd.f32 %v4493, 0.0
    %v4495 = vrot.slane %v4438, 5
    %v4497 = vmul.f32 %v4412, %v4495
    %v4498 = vadd.f32 %v4494, %v4497
    %v4499 = vsub.f32 %v4053, %v4268
    %v4500 = vmul.f32 %v4448, %v4499
    %v4501 = vadd.f32 %v4500, 0.0
    %v4503 = vrot.slane %v4499, 1
    %v4505 = vmul.f32 %v4452, %v4503
    %v4506 = vadd.f32 %v4501, %v4505
    %v4507 = vadd.f32 %v4268, %v4506
    %v4508 = vrot.slane %v4499, 7
    %v4510 = vmul.f32 %v4456, %v4508
    %v4511 = vadd.f32 %v4510, 0.0
    %v4512 = vmul.f32 %v4466, %v4499
    %v4513 = vadd.f32 %v4511, %v4512
    %v4514 = vadd.f32 %v4268, %v4513
    %v4515 = vrot.slane %v4499, 6
    %v4517 = vmul.f32 %v4474, %v4515
    %v4518 = vadd.f32 %v4517, 0.0
    %v4519 = vmul.f32 %v4482, %v4508
    %v4520 = vadd.f32 %v4518, %v4519
    %v4521 = vadd.f32 %v4263, %v4520
    %v4522 = vrot.slane %v4499, 5
    %v4524 = vmul.f32 %v4490, %v4522
    %v4525 = vadd.f32 %v4524, 0.0
    %v4526 = vmul.f32 %v4498, %v4515
    %v4527 = vadd.f32 %v4525, %v4526
    %v4528 = vadd.f32 %v4263, %v4527
    %v4529 = vmul.f32 %v4448, %v4357
    %v4530 = vadd.f32 %v4529, 0.0
    %v4531 = vmul.f32 %v4452, %v4425
    %v4532 = vadd.f32 %v4530, %v4531
    %v4533 = vsub.f32 %v4357, %v4532
    %v4534 = vmul.f32 %v4448, %v4364
    %v4535 = vadd.f32 %v4534, 0.0
    %v4537 = vrot.slane %v4383, 1
    %v4539 = vmul.f32 %v4452, %v4537
    %v4540 = vadd.f32 %v4535, %v4539
    %v4541 = vsub.f32 %v4364, %v4540
    %v4542 = vmul.f32 %v4448, %v4368
    %v4543 = vadd.f32 %v4542, 0.0
    %v4545 = vrot.slane %v4385, 1
    %v4547 = vmul.f32 %v4452, %v4545
    %v4548 = vadd.f32 %v4543, %v4547
    %v4549 = vsub.f32 %v4368, %v4548
    %v4550 = vmul.f32 %v4448, %v4372
    %v4551 = vadd.f32 %v4550, 0.0
    %v4553 = vrot.slane %v4387, 1
    %v4555 = vmul.f32 %v4452, %v4553
    %v4556 = vadd.f32 %v4551, %v4555
    %v4557 = vsub.f32 %v4372, %v4556
    %v4559 = vrot.slane %v4357, 7
    %v4561 = vmul.f32 %v4456, %v4559
    %v4562 = vadd.f32 %v4561, 0.0
    %v4563 = vmul.f32 %v4466, %v4378
    %v4564 = vadd.f32 %v4562, %v4563
    %v4565 = vsub.f32 %v4378, %v4564
    %v4567 = vrot.slane %v4364, 7
    %v4569 = vmul.f32 %v4456, %v4567
    %v4570 = vadd.f32 %v4569, 0.0
    %v4571 = vmul.f32 %v4466, %v4383
    %v4572 = vadd.f32 %v4570, %v4571
    %v4573 = vsub.f32 %v4383, %v4572
    %v4575 = vrot.slane %v4368, 7
    %v4577 = vmul.f32 %v4456, %v4575
    %v4578 = vadd.f32 %v4577, 0.0
    %v4579 = vmul.f32 %v4466, %v4385
    %v4580 = vadd.f32 %v4578, %v4579
    %v4581 = vsub.f32 %v4385, %v4580
    %v4583 = vrot.slane %v4372, 7
    %v4585 = vmul.f32 %v4456, %v4583
    %v4586 = vadd.f32 %v4585, 0.0
    %v4587 = vmul.f32 %v4466, %v4387
    %v4588 = vadd.f32 %v4586, %v4587
    %v4589 = vsub.f32 %v4387, %v4588
    %v4590 = vrot.slane %v4357, 6
    %v4592 = vmul.f32 %v4474, %v4590
    %v4593 = vadd.f32 %v4592, 0.0
    %v4594 = vrot.slane %v4378, 7
    %v4596 = vmul.f32 %v4482, %v4594
    %v4597 = vadd.f32 %v4593, %v4596
    %v4598 = vsub.f32 %v4393, %v4597
    %v4599 = vrot.slane %v4364, 6
    %v4601 = vmul.f32 %v4474, %v4599
    %v4602 = vadd.f32 %v4601, 0.0
    %v4603 = vrot.slane %v4383, 7
    %v4605 = vmul.f32 %v4482, %v4603
    %v4606 = vadd.f32 %v4602, %v4605
    %v4607 = vsub.f32 %v4397, %v4606
    %v4608 = vrot.slane %v4368, 6
    %v4610 = vmul.f32 %v4474, %v4608
    %v4611 = vadd.f32 %v4610, 0.0
    %v4612 = vrot.slane %v4385, 7
    %v4614 = vmul.f32 %v4482, %v4612
    %v4615 = vadd.f32 %v4611, %v4614
    %v4616 = vsub.f32 %v4400, %v4615
    %v4617 = vrot.slane %v4372, 6
    %v4619 = vmul.f32 %v4474, %v4617
    %v4620 = vadd.f32 %v4619, 0.0
    %v4621 = vrot.slane %v4387, 7
    %v4623 = vmul.f32 %v4482, %v4621
    %v4624 = vadd.f32 %v4620, %v4623
    %v4625 = vsub.f32 %v4402, %v4624
    %v4626 = vrot.slane %v4357, 5
    %v4628 = vmul.f32 %v4490, %v4626
    %v4629 = vadd.f32 %v4628, 0.0
    %v4630 = vrot.slane %v4378, 6
    %v4632 = vmul.f32 %v4498, %v4630
    %v4633 = vadd.f32 %v4629, %v4632
    %v4634 = vsub.f32 %v4408, %v4633
    %v4635 = vrot.slane %v4364, 5
    %v4637 = vmul.f32 %v4490, %v4635
    %v4638 = vadd.f32 %v4637, 0.0
    %v4639 = vrot.slane %v4383, 6
    %v4641 = vmul.f32 %v4498, %v4639
    %v4642 = vadd.f32 %v4638, %v4641
    %v4643 = vsub.f32 %v4412, %v4642
    %v4644 = vrot.slane %v4368, 5
    %v4646 = vmul.f32 %v4490, %v4644
    %v4647 = vadd.f32 %v4646, 0.0
    %v4648 = vrot.slane %v4385, 6
    %v4650 = vmul.f32 %v4498, %v4648
    %v4651 = vadd.f32 %v4647, %v4650
    %v4652 = vsub.f32 %v4414, %v4651
    %v4653 = vrot.slane %v4372, 5
    %v4655 = vmul.f32 %v4490, %v4653
    %v4656 = vadd.f32 %v4655, 0.0
    %v4657 = vrot.slane %v4387, 6
    %v4659 = vmul.f32 %v4498, %v4657
    %v4660 = vadd.f32 %v4656, %v4659
    %v4661 = vsub.f32 %v4417, %v4660
    %v4662 = vsel %vm682, %v4507, %v4514
    %v4663 = vsel %vm684, %v4662, %v4521
    %v4664 = vsel %vm686, %v4663, %v4528
    %v4666 = vrot.slane %v4541, 7
    %v4669 = vrot.slane %v4549, 6
    %v4672 = vrot.slane %v4557, 5
    %v4674 = vsel %vm682, %v4533, %v4666
    %v4675 = vsel %vm684, %v4674, %v4669
    %v4676 = vsel %vm686, %v4675, %v4672
    %v4678 = vrot.slane %v4565, 1
    %v4681 = vrot.slane %v4581, 7
    %v4684 = vrot.slane %v4589, 6
    %v4686 = vsel %vm682, %v4678, %v4573
    %v4687 = vsel %vm684, %v4686, %v4681
    %v4688 = vsel %vm686, %v4687, %v4684
    %v4690 = vrot.slane %v4598, 2
    %v4693 = vrot.slane %v4607, 1
    %v4696 = vrot.slane %v4625, 7
    %v4698 = vsel %vm682, %v4690, %v4693
    %v4699 = vsel %vm684, %v4698, %v4616
    %v4700 = vsel %vm686, %v4699, %v4696
    %v4702 = vrot.slane %v4634, 3
    %v4705 = vrot.slane %v4643, 2
    %v4708 = vrot.slane %v4652, 1
    %v4710 = vsel %vm682, %v4702, %v4705
    %v4711 = vsel %vm684, %v4710, %v4708
    %v4712 = vsel %vm686, %v4711, %v4661
    %s4713 = scalar_lea.vmem [#allocation10], 24
    %4714 = vst [vmem:[%s4713] sm:$0xf] %v4664
    %s4715 = scalar_lea.vmem [#allocation4], 14
    %v4716 = vld [vmem:[%s4715] sm:$0x3]
    %v4717 = vand.u32 2147483647, %v4664
    %vm4718 = vcmp.le.f32.partialorder %v4717, 0.7853982
    %vm4719 = vcmp.lt.s32.totalorder %v4664, 0
    %v4720 = vand.u32 %v4664, 2139095040
    %v4721 = vshrl.u32 %v4720, 23
    %v4722 = vsub.s32 %v4721, 127
    %v4723 = vand.u32 2147483647, %v4664
    %v4724 = vand.u32 %v4723, 8388607
    %v4725 = vor.u32 %v4724, 8388608
    %v4726 = vsub.s32 0, %v4725
    %v4727 = vadd.s32 %v4722, 1
    %vm4728 = vcmp.gt.s32.totalorder %v4727, 0
    %v4729 = vsel %vm4728, %v4727, 0
    %v4730 = vshrl.u32 %v4729, 5
    %v4731 = vand.u32 %v4729, 31
    %v4732 = vsub.s32 32, %v4731
    %v4733 = vshrl.u32 683565275, %v4732
    %v4734 = vshll.u32 683565275, %v4731
    %v4735 = vshrl.u32 2475754826, %v4732
    %v4736 = vor.u32 %v4734, %v4735
    %v4737 = vshll.u32 2475754826, %v4731
    %v4738 = vshrl.u32 2131351028, %v4732
    %v4739 = vor.u32 %v4737, %v4738
    %v4740 = vshll.u32 2131351028, %v4731
    %v4741 = vshrl.u32 2102212464, %v4732
    %v4742 = vor.u32 %v4740, %v4741
    %v4743 = vshll.u32 2102212464, %v4731
    %v4744 = vshrl.u32 920167782, %v4732
    %v4745 = vor.u32 %v4743, %v4744
    %v4746 = vshll.u32 920167782, %v4731
    %v4747 = vshrl.u32 1326507024, %v4732
    %v4748 = vor.u32 %v4746, %v4747
    %vm4749 = vcmp.lt.s32.totalorder %v4730, 1
    %vm4750 = vcmp.lt.s32.totalorder %v4730, 2
    %vm4751 = vcmp.lt.s32.totalorder %v4730, 3
    %vm4752 = vcmp.lt.s32.totalorder %v4730, 4
    %v4753 = vsel %vm4749, %v4733, %v4736
    %v4754 = vsel %vm4752, %v4742, 2102212464
    %v4755 = vsel %vm4751, %v4739, %v4754
    %v4756 = vsel %vm4750, %v4753, %v4755
    %v4757 = vsel %vm4749, %v4736, %v4739
    %v4758 = vsel %vm4752, %v4745, 920167782
    %v4759 = vsel %vm4751, %v4742, %v4758
    %v4760 = vsel %vm4750, %v4757, %v4759
    %v4761 = vsel %vm4749, %v4739, %v4742
    %v4762 = vsel %vm4752, %v4748, 1326507024
    %v4763 = vsel %vm4751, %v4745, %v4762
    %v4764 = vsel %vm4750, %v4761, %v4763
    %v4765 = vshll.u32 %v4725, 8
    %v4766 = vmul.u32.u64.compose %v4765, %v4764
    %v4767 = vextract.low.u32 %v4766
    %v4768 = vextract.high.u32 %v4766
    %v4769 = vmul.u32.u64.compose %v4765, %v4760
    %v4770 = vextract.low.u32 %v4769
    %v4771 = vextract.high.u32 %v4769
    %v4772 = vmul.u32 %v4765, %v4756
    %v4773 = vadd.s32 %v4768, %v4770
    %vm4774 = vc.u32 %v4768, %v4770
    %v4775 = vadd.s32 %v4771, 1
    %v4776 = vsel %vm4774, %v4775, %v4771
    %v4777 = vadd.s32 %v4772, %v4776
    %v4778 = vadd.s32 %v4777, 536870912
    %v4779 = vshrl.u32 %v4778, 30
    %v4780 = vshll.u32 %v4779, 30
    %v4781 = vsub.s32 %v4777, %v4780
    %vm4782 = vcmp.lt.s32.totalorder %v4781, 0
    %v4783 = vsub.s32 0, %v4781
    %v4784 = vsel %vm4782, %v4783, %v4781
    %v4785 = vclz %v4784
    %v4786 = vsub.s32 %v4785, 2
    %vm4787 = vcmp.gt.s32.totalorder 0, %v4786
    %v4788 = vsel %vm4787, 0, %v4786
    %v4789 = vsub.s32 32, %v4788
    %v4790 = vshll.u32 %v4781, %v4788
    %v4791 = vshrl.u32 %v4773, %v4789
    %v4792 = vor.u32 %v4790, %v4791
    %v4793 = vsub.s32 4294967266, %v4788
    %v4794 = vadd.s32 %v4793, 127
    %v4795 = vshll.u32 %v4794, 23
    %v4796 = vor.u32 4788187, %v4795
    %v4797 = vand.u32 2147483647, %v4796
    %v4799 = vcvt.s32.f32 %v4792
    %v4800 = vmul.f32 %v4799, %v4797
    %v4801 = vxor.u32 %v4800, 2147483648
    %v4802 = vsel %vm4719, %v4801, %v4800
    %v4803 = vsub.s32 4, %v4779
    %v4804 = vsel %vm4719, %v4803, %v4779
    %v4805 = vsel %vm4718, %v4664, %v4802
    %v4806 = vsel %vm4718, 0, %v4804
    %v4807 = vcosq.f32.pop %v4805
    %v4808 = vsinq.f32.pop %v4805
    %vm4809 = vweird.f32 %v4664
    %v4810 = vand.u32 %v4806, 3
    %vm4811 = vcmp.lt.s32.totalorder %v4810, 2
    %vm4812 = vcmp.eq.s32.totalorder %v4810, 0
    %v4813 = vxor.u32 %v4808, 2147483648
    %v4814 = vsel %vm4812, %v4807, %v4813
    %vm4815 = vcmp.eq.s32.totalorder %v4810, 2
    %v4816 = vxor.u32 %v4807, 2147483648
    %v4817 = vsel %vm4815, %v4816, %v4808
    %v4818 = vsel %vm4811, %v4814, %v4817
    %v4819 = vsel %vm4809, nan, %v4818
    %v4820 = vmul.f32 %v4819, 0.1
    %v4821 = vand.u32 2147483647, %v4664
    %vm4822 = vcmp.le.f32.partialorder %v4821, 0.7853982
    %vm4823 = vcmp.lt.s32.totalorder %v4664, 0
    %v4824 = vand.u32 %v4664, 2139095040
    %v4825 = vshrl.u32 %v4824, 23
    %v4826 = vsub.s32 %v4825, 127
    %v4827 = vand.u32 2147483647, %v4664
    %v4828 = vand.u32 %v4827, 8388607
    %v4829 = vor.u32 %v4828, 8388608
    %v4830 = vsub.s32 0, %v4829
    %v4831 = vadd.s32 %v4826, 1
    %vm4832 = vcmp.gt.s32.totalorder %v4831, 0
    %v4833 = vsel %vm4832, %v4831, 0
    %v4834 = vshrl.u32 %v4833, 5
    %v4835 = vand.u32 %v4833, 31
    %v4836 = vsub.s32 32, %v4835
    %v4837 = vshrl.u32 683565275, %v4836
    %v4838 = vshll.u32 683565275, %v4835
    %v4839 = vshrl.u32 2475754826, %v4836
    %v4840 = vor.u32 %v4838, %v4839
    %v4841 = vshll.u32 2475754826, %v4835
    %v4842 = vshrl.u32 2131351028, %v4836
    %v4843 = vor.u32 %v4841, %v4842
    %v4844 = vshll.u32 2131351028, %v4835
    %v4845 = vshrl.u32 2102212464, %v4836
    %v4846 = vor.u32 %v4844, %v4845
    %v4847 = vshll.u32 2102212464, %v4835
    %v4848 = vshrl.u32 920167782, %v4836
    %v4849 = vor.u32 %v4847, %v4848
    %v4850 = vshll.u32 920167782, %v4835
    %v4851 = vshrl.u32 1326507024, %v4836
    %v4852 = vor.u32 %v4850, %v4851
    %vm4853 = vcmp.lt.s32.totalorder %v4834, 1
    %vm4854 = vcmp.lt.s32.totalorder %v4834, 2
    %vm4855 = vcmp.lt.s32.totalorder %v4834, 3
    %vm4856 = vcmp.lt.s32.totalorder %v4834, 4
    %v4857 = vsel %vm4853, %v4837, %v4840
    %v4858 = vsel %vm4856, %v4846, 2102212464
    %v4859 = vsel %vm4855, %v4843, %v4858
    %v4860 = vsel %vm4854, %v4857, %v4859
    %v4861 = vsel %vm4853, %v4840, %v4843
    %v4862 = vsel %vm4856, %v4849, 920167782
    %v4863 = vsel %vm4855, %v4846, %v4862
    %v4864 = vsel %vm4854, %v4861, %v4863
    %v4865 = vsel %vm4853, %v4843, %v4846
    %v4866 = vsel %vm4856, %v4852, 1326507024
    %v4867 = vsel %vm4855, %v4849, %v4866
    %v4868 = vsel %vm4854, %v4865, %v4867
    %v4869 = vshll.u32 %v4829, 8
    %v4870 = vmul.u32.u64.compose %v4869, %v4868
    %v4871 = vextract.low.u32 %v4870
    %v4872 = vextract.high.u32 %v4870
    %v4873 = vmul.u32.u64.compose %v4869, %v4864
    %v4874 = vextract.low.u32 %v4873
    %v4875 = vextract.high.u32 %v4873
    %v4876 = vmul.u32 %v4869, %v4860
    %v4877 = vadd.s32 %v4872, %v4874
    %vm4878 = vc.u32 %v4872, %v4874
    %v4879 = vadd.s32 %v4875, 1
    %v4880 = vsel %vm4878, %v4879, %v4875
    %v4881 = vadd.s32 %v4876, %v4880
    %v4882 = vadd.s32 %v4881, 536870912
    %v4883 = vshrl.u32 %v4882, 30
    %v4884 = vshll.u32 %v4883, 30
    %v4885 = vsub.s32 %v4881, %v4884
    %vm4886 = vcmp.lt.s32.totalorder %v4885, 0
    %v4887 = vsub.s32 0, %v4885
    %v4888 = vsel %vm4886, %v4887, %v4885
    %v4889 = vclz %v4888
    %v4890 = vsub.s32 %v4889, 2
    %vm4891 = vcmp.gt.s32.totalorder 0, %v4890
    %v4892 = vsel %vm4891, 0, %v4890
    %v4893 = vsub.s32 32, %v4892
    %v4894 = vshll.u32 %v4885, %v4892
    %v4895 = vshrl.u32 %v4877, %v4893
    %v4896 = vor.u32 %v4894, %v4895
    %v4897 = vsub.s32 4294967266, %v4892
    %v4898 = vadd.s32 %v4897, 127
    %v4899 = vshll.u32 %v4898, 23
    %v4900 = vor.u32 4788187, %v4899
    %v4901 = vand.u32 2147483647, %v4900
    %v4903 = vcvt.s32.f32 %v4896
    %v4904 = vmul.f32 %v4903, %v4901
    %v4905 = vxor.u32 %v4904, 2147483648
    %v4906 = vsel %vm4823, %v4905, %v4904
    %v4907 = vsub.s32 4, %v4883
    %v4908 = vsel %vm4823, %v4907, %v4883
    %v4909 = vsel %vm4822, %v4664, %v4906
    %v4910 = vsel %vm4822, 0, %v4908
    %v4911 = vcosq.f32.pop %v4909
    %v4912 = vsinq.f32.pop %v4909
    %vm4913 = vweird.f32 %v4664
    %v4914 = vadd.s32 %v4910, 3
    %v4915 = vand.u32 %v4914, 3
    %vm4916 = vcmp.lt.s32.totalorder %v4915, 2
    %vm4917 = vcmp.eq.s32.totalorder %v4915, 0
    %v4918 = vxor.u32 %v4912, 2147483648
    %v4919 = vsel %vm4917, %v4911, %v4918
    %vm4920 = vcmp.eq.s32.totalorder %v4915, 2
    %v4921 = vxor.u32 %v4911, 2147483648
    %v4922 = vsel %vm4920, %v4921, %v4912
    %v4923 = vsel %vm4916, %v4919, %v4922
    %v4924 = vsel %vm4913, nan, %v4923
    %v4925 = vmul.f32 %v4924, 0.1
    %v4926 = vadd.f32 %v4925, %v4664
    %v4927 = vmul.f32 %v4664, 0.1
    %v4929 = vrot.slane %v4927, 2
    %v4931 = vadd.f32 %v4926, %v4929
    %v4932 = vmul.f32 %v4820, %v4676
    %v4933 = vadd.f32 %v4932, %v4676
    %v4934 = vmul.f32 %v4700, 0.1
    %v4935 = vadd.f32 %v4933, %v4934
    %v4937 = vrot.slane %v4676, 1
    %v4939 = vmul.f32 %v4820, %v4937
    %v4940 = vadd.f32 %v4939, %v4937
    %v4942 = vrot.slane %v4934, 1
    %v4944 = vadd.f32 %v4940, %v4942
    %v4945 = vrot.slane %v4676, 2
    %v4947 = vmul.f32 %v4820, %v4945
    %v4948 = vadd.f32 %v4947, %v4945
    %v4949 = vrot.slane %v4934, 2
    %v4951 = vadd.f32 %v4948, %v4949
    %v4952 = vrot.slane %v4676, 3
    %v4954 = vmul.f32 %v4820, %v4952
    %v4955 = vadd.f32 %v4954, %v4952
    %v4956 = vrot.slane %v4934, 3
    %v4958 = vadd.f32 %v4955, %v4956
    %v4960 = vrot.slane %v4688, 7
    %v4962 = vmul.f32 %v4820, %v4960
    %v4963 = vadd.f32 %v4962, %v4960
    %v4964 = vmul.f32 %v4712, 0.1
    %v4966 = vrot.slane %v4964, 7
    %v4968 = vadd.f32 %v4963, %v4966
    %v4969 = vmul.f32 %v4820, %v4688
    %v4970 = vadd.f32 %v4969, %v4688
    %v4971 = vadd.f32 %v4970, %v4964
    %v4972 = vrot.slane %v4688, 1
    %v4974 = vmul.f32 %v4820, %v4972
    %v4975 = vadd.f32 %v4974, %v4972
    %v4976 = vrot.slane %v4964, 1
    %v4978 = vadd.f32 %v4975, %v4976
    %v4979 = vrot.slane %v4688, 2
    %v4981 = vmul.f32 %v4820, %v4979
    %v4982 = vadd.f32 %v4981, %v4979
    %v4983 = vrot.slane %v4964, 2
    %v4985 = vadd.f32 %v4982, %v4983
    %v4987 = vrot.slane %v4700, 6
    %v4989 = vmul.f32 %v4820, %v4987
    %v4990 = vadd.f32 %v4989, %v4987
    %v4991 = vrot.slane %v4700, 7
    %v4993 = vmul.f32 %v4820, %v4991
    %v4994 = vadd.f32 %v4993, %v4991
    %v4995 = vmul.f32 %v4820, %v4700
    %v4996 = vadd.f32 %v4995, %v4700
    %v4997 = vrot.slane %v4700, 1
    %v4999 = vmul.f32 %v4820, %v4997
    %v5000 = vadd.f32 %v4999, %v4997
    %v5002 = vrot.slane %v4712, 5
    %v5004 = vmul.f32 %v4820, %v5002
    %v5005 = vadd.f32 %v5004, %v5002
    %v5006 = vrot.slane %v4712, 6
    %v5008 = vmul.f32 %v4820, %v5006
    %v5009 = vadd.f32 %v5008, %v5006
    %v5010 = vrot.slane %v4712, 7
    %v5012 = vmul.f32 %v4820, %v5010
    %v5013 = vadd.f32 %v5012, %v5010
    %v5014 = vmul.f32 %v4820, %v4712
    %v5015 = vadd.f32 %v5014, %v4712
    %v5016 = vmul.f32 %v4935, %v4820
    %v5017 = vadd.f32 %v5016, %v4935
    %v5018 = vmul.f32 %v4951, 0.1
    %v5019 = vadd.f32 %v5017, %v5018
    %v5020 = vadd.f32 %v5019, 0.01
    %v5022 = vrot.slane %v4820, 1
    %v5024 = vmul.f32 %v4944, %v5022
    %v5025 = vadd.f32 %v5024, %v4944
    %v5026 = vmul.f32 %v4958, 0.1
    %v5027 = vadd.f32 %v5025, %v5026
    %v5028 = vrot.slane %v4820, 2
    %v5030 = vmul.f32 %v4951, %v5028
    %v5031 = vadd.f32 %v5030, %v4951
    %v5032 = vrot.slane %v4820, 3
    %v5034 = vmul.f32 %v4958, %v5032
    %v5035 = vadd.f32 %v5034, %v4958
    %v5036 = vrot.slane %v4820, 7
    %v5038 = vmul.f32 %v4968, %v5036
    %v5039 = vadd.f32 %v5038, %v4968
    %v5040 = vmul.f32 %v4978, 0.1
    %v5041 = vadd.f32 %v5039, %v5040
    %v5042 = vmul.f32 %v4971, %v4820
    %v5043 = vadd.f32 %v5042, %v4971
    %v5044 = vmul.f32 %v4985, 0.1
    %v5045 = vadd.f32 %v5043, %v5044
    %v5046 = vadd.f32 %v5045, 0.01
    %v5047 = vmul.f32 %v4978, %v5022
    %v5048 = vadd.f32 %v5047, %v4978
    %v5049 = vmul.f32 %v4985, %v5028
    %v5050 = vadd.f32 %v5049, %v4985
    %v5051 = vrot.slane %v4820, 6
    %v5053 = vmul.f32 %v4990, %v5051
    %v5054 = vadd.f32 %v5053, %v4990
    %v5055 = vmul.f32 %v4996, 0.1
    %v5056 = vadd.f32 %v5054, %v5055
    %v5057 = vmul.f32 %v4994, %v5036
    %v5058 = vadd.f32 %v5057, %v4994
    %v5059 = vmul.f32 %v5000, 0.1
    %v5060 = vadd.f32 %v5058, %v5059
    %v5061 = vmul.f32 %v4996, %v4820
    %v5062 = vadd.f32 %v5061, %v4996
    %v5063 = vadd.f32 %v5062, 0.01
    %v5064 = vmul.f32 %v5000, %v5022
    %v5065 = vadd.f32 %v5064, %v5000
    %v5066 = vrot.slane %v4820, 5
    %v5068 = vmul.f32 %v5005, %v5066
    %v5069 = vadd.f32 %v5068, %v5005
    %v5070 = vmul.f32 %v5013, 0.1
    %v5071 = vadd.f32 %v5069, %v5070
    %v5072 = vmul.f32 %v5009, %v5051
    %v5073 = vadd.f32 %v5072, %v5009
    %v5074 = vmul.f32 %v5015, 0.1
    %v5075 = vadd.f32 %v5073, %v5074
    %v5076 = vmul.f32 %v5013, %v5036
    %v5077 = vadd.f32 %v5076, %v5013
    %v5078 = vmul.f32 %v5015, %v4820
    %v5079 = vadd.f32 %v5078, %v5015
    %v5080 = vadd.f32 %v5079, 0.01
    %v5081 = vadd.f32 %v5020, 0.1
    %v5082 = vadd.f32 %v5046, 0.1
    %v5084 = vrot.slane %v5082, 1
    %v5086 = vmul.f32 %v5081, %v5084
    %v5088 = vrot.slane %v5041, 1
    %v5090 = vmul.f32 %v5027, %v5088
    %v5091 = vsub.f32 %v5086, %v5090
    %v5092 = vrcp.pop %v5091
    %v5094 = vrot.slane %v5092, 7
    %v5096 = vmul.f32 %v5082, %v5094
    %v5097 = vsub.f32 0.0, %v5027
    %v5098 = vmul.f32 %v5097, %v5092
    %v5099 = vsub.f32 0.0, %v5041
    %v5100 = vmul.f32 %v5099, %v5094
    %v5101 = vmul.f32 %v5081, %v5092
    %v5103 = vrot.slane %v5096, 1
    %v5105 = vmul.f32 %v5020, %v5103
    %v5106 = vadd.f32 %v5105, 0.0
    %v5108 = vrot.slane %v5100, 1
    %v5110 = vmul.f32 %v5027, %v5108
    %v5111 = vadd.f32 %v5106, %v5110
    %v5112 = vmul.f32 %v5020, %v5098
    %v5113 = vadd.f32 %v5112, 0.0
    %v5114 = vmul.f32 %v5027, %v5101
    %v5115 = vadd.f32 %v5113, %v5114
    %v5116 = vmul.f32 %v5041, %v5096
    %v5117 = vadd.f32 %v5116, 0.0
    %v5118 = vmul.f32 %v5046, %v5100
    %v5119 = vadd.f32 %v5117, %v5118
    %v5121 = vrot.slane %v5098, 7
    %v5123 = vmul.f32 %v5041, %v5121
    %v5124 = vadd.f32 %v5123, 0.0
    %v5126 = vrot.slane %v5101, 7
    %v5128 = vmul.f32 %v5046, %v5126
    %v5129 = vadd.f32 %v5124, %v5128
    %v5130 = vrot.slane %v5096, 7
    %v5132 = vmul.f32 %v5056, %v5130
    %v5133 = vadd.f32 %v5132, 0.0
    %v5134 = vrot.slane %v5100, 7
    %v5136 = vmul.f32 %v5060, %v5134
    %v5137 = vadd.f32 %v5133, %v5136
    %v5138 = vrot.slane %v5098, 6
    %v5140 = vmul.f32 %v5056, %v5138
    %v5141 = vadd.f32 %v5140, 0.0
    %v5142 = vrot.slane %v5101, 6
    %v5144 = vmul.f32 %v5060, %v5142
    %v5145 = vadd.f32 %v5141, %v5144
    %v5146 = vrot.slane %v5096, 6
    %v5148 = vmul.f32 %v5071, %v5146
    %v5149 = vadd.f32 %v5148, 0.0
    %v5150 = vrot.slane %v5100, 6
    %v5152 = vmul.f32 %v5075, %v5150
    %v5153 = vadd.f32 %v5149, %v5152
    %v5154 = vrot.slane %v5098, 5
    %v5156 = vmul.f32 %v5071, %v5154
    %v5157 = vadd.f32 %v5156, 0.0
    %v5158 = vrot.slane %v5101, 5
    %v5160 = vmul.f32 %v5075, %v5158
    %v5161 = vadd.f32 %v5157, %v5160
    %v5162 = vsub.f32 %v4716, %v4931
    %v5163 = vmul.f32 %v5111, %v5162
    %v5164 = vadd.f32 %v5163, 0.0
    %v5166 = vrot.slane %v5162, 1
    %v5168 = vmul.f32 %v5115, %v5166
    %v5169 = vadd.f32 %v5164, %v5168
    %v5170 = vadd.f32 %v4931, %v5169
    %v5171 = vrot.slane %v5162, 7
    %v5173 = vmul.f32 %v5119, %v5171
    %v5174 = vadd.f32 %v5173, 0.0
    %v5175 = vmul.f32 %v5129, %v5162
    %v5176 = vadd.f32 %v5174, %v5175
    %v5177 = vadd.f32 %v4931, %v5176
    %v5178 = vrot.slane %v5162, 6
    %v5180 = vmul.f32 %v5137, %v5178
    %v5181 = vadd.f32 %v5180, 0.0
    %v5182 = vmul.f32 %v5145, %v5171
    %v5183 = vadd.f32 %v5181, %v5182
    %v5184 = vadd.f32 %v4926, %v5183
    %v5185 = vrot.slane %v5162, 5
    %v5187 = vmul.f32 %v5153, %v5185
    %v5188 = vadd.f32 %v5187, 0.0
    %v5189 = vmul.f32 %v5161, %v5178
    %v5190 = vadd.f32 %v5188, %v5189
    %v5191 = vadd.f32 %v4926, %v5190
    %v5192 = vmul.f32 %v5111, %v5020
    %v5193 = vadd.f32 %v5192, 0.0
    %v5194 = vmul.f32 %v5115, %v5088
    %v5195 = vadd.f32 %v5193, %v5194
    %v5196 = vsub.f32 %v5020, %v5195
    %v5197 = vmul.f32 %v5111, %v5027
    %v5198 = vadd.f32 %v5197, 0.0
    %v5200 = vrot.slane %v5046, 1
    %v5202 = vmul.f32 %v5115, %v5200
    %v5203 = vadd.f32 %v5198, %v5202
    %v5204 = vsub.f32 %v5027, %v5203
    %v5205 = vmul.f32 %v5111, %v5031
    %v5206 = vadd.f32 %v5205, 0.0
    %v5208 = vrot.slane %v5048, 1
    %v5210 = vmul.f32 %v5115, %v5208
    %v5211 = vadd.f32 %v5206, %v5210
    %v5212 = vsub.f32 %v5031, %v5211
    %v5213 = vmul.f32 %v5111, %v5035
    %v5214 = vadd.f32 %v5213, 0.0
    %v5216 = vrot.slane %v5050, 1
    %v5218 = vmul.f32 %v5115, %v5216
    %v5219 = vadd.f32 %v5214, %v5218
    %v5220 = vsub.f32 %v5035, %v5219
    %v5222 = vrot.slane %v5020, 7
    %v5224 = vmul.f32 %v5119, %v5222
    %v5225 = vadd.f32 %v5224, 0.0
    %v5226 = vmul.f32 %v5129, %v5041
    %v5227 = vadd.f32 %v5225, %v5226
    %v5228 = vsub.f32 %v5041, %v5227
    %v5230 = vrot.slane %v5027, 7
    %v5232 = vmul.f32 %v5119, %v5230
    %v5233 = vadd.f32 %v5232, 0.0
    %v5234 = vmul.f32 %v5129, %v5046
    %v5235 = vadd.f32 %v5233, %v5234
    %v5236 = vsub.f32 %v5046, %v5235
    %v5238 = vrot.slane %v5031, 7
    %v5240 = vmul.f32 %v5119, %v5238
    %v5241 = vadd.f32 %v5240, 0.0
    %v5242 = vmul.f32 %v5129, %v5048
    %v5243 = vadd.f32 %v5241, %v5242
    %v5244 = vsub.f32 %v5048, %v5243
    %v5246 = vrot.slane %v5035, 7
    %v5248 = vmul.f32 %v5119, %v5246
    %v5249 = vadd.f32 %v5248, 0.0
    %v5250 = vmul.f32 %v5129, %v5050
    %v5251 = vadd.f32 %v5249, %v5250
    %v5252 = vsub.f32 %v5050, %v5251
    %v5253 = vrot.slane %v5020, 6
    %v5255 = vmul.f32 %v5137, %v5253
    %v5256 = vadd.f32 %v5255, 0.0
    %v5257 = vrot.slane %v5041, 7
    %v5259 = vmul.f32 %v5145, %v5257
    %v5260 = vadd.f32 %v5256, %v5259
    %v5261 = vsub.f32 %v5056, %v5260
    %v5262 = vrot.slane %v5027, 6
    %v5264 = vmul.f32 %v5137, %v5262
    %v5265 = vadd.f32 %v5264, 0.0
    %v5266 = vrot.slane %v5046, 7
    %v5268 = vmul.f32 %v5145, %v5266
    %v5269 = vadd.f32 %v5265, %v5268
    %v5270 = vsub.f32 %v5060, %v5269
    %v5271 = vrot.slane %v5031, 6
    %v5273 = vmul.f32 %v5137, %v5271
    %v5274 = vadd.f32 %v5273, 0.0
    %v5275 = vrot.slane %v5048, 7
    %v5277 = vmul.f32 %v5145, %v5275
    %v5278 = vadd.f32 %v5274, %v5277
    %v5279 = vsub.f32 %v5063, %v5278
    %v5280 = vrot.slane %v5035, 6
    %v5282 = vmul.f32 %v5137, %v5280
    %v5283 = vadd.f32 %v5282, 0.0
    %v5284 = vrot.slane %v5050, 7
    %v5286 = vmul.f32 %v5145, %v5284
    %v5287 = vadd.f32 %v5283, %v5286
    %v5288 = vsub.f32 %v5065, %v5287
    %v5289 = vrot.slane %v5020, 5
    %v5291 = vmul.f32 %v5153, %v5289
    %v5292 = vadd.f32 %v5291, 0.0
    %v5293 = vrot.slane %v5041, 6
    %v5295 = vmul.f32 %v5161, %v5293
    %v5296 = vadd.f32 %v5292, %v5295
    %v5297 = vsub.f32 %v5071, %v5296
    %v5298 = vrot.slane %v5027, 5
    %v5300 = vmul.f32 %v5153, %v5298
    %v5301 = vadd.f32 %v5300, 0.0
    %v5302 = vrot.slane %v5046, 6
    %v5304 = vmul.f32 %v5161, %v5302
    %v5305 = vadd.f32 %v5301, %v5304
    %v5306 = vsub.f32 %v5075, %v5305
    %v5307 = vrot.slane %v5031, 5
    %v5309 = vmul.f32 %v5153, %v5307
    %v5310 = vadd.f32 %v5309, 0.0
    %v5311 = vrot.slane %v5048, 6
    %v5313 = vmul.f32 %v5161, %v5311
    %v5314 = vadd.f32 %v5310, %v5313
    %v5315 = vsub.f32 %v5077, %v5314
    %v5316 = vrot.slane %v5035, 5
    %v5318 = vmul.f32 %v5153, %v5316
    %v5319 = vadd.f32 %v5318, 0.0
    %v5320 = vrot.slane %v5050, 6
    %v5322 = vmul.f32 %v5161, %v5320
    %v5323 = vadd.f32 %v5319, %v5322
    %v5324 = vsub.f32 %v5080, %v5323
    %v5325 = vsel %vm682, %v5170, %v5177
    %v5326 = vsel %vm684, %v5325, %v5184
    %v5327 = vsel %vm686, %v5326, %v5191
    %v5329 = vrot.slane %v5204, 7
    %v5332 = vrot.slane %v5212, 6
    %v5335 = vrot.slane %v5220, 5
    %v5337 = vsel %vm682, %v5196, %v5329
    %v5338 = vsel %vm684, %v5337, %v5332
    %v5339 = vsel %vm686, %v5338, %v5335
    %v5341 = vrot.slane %v5228, 1
    %v5344 = vrot.slane %v5244, 7
    %v5347 = vrot.slane %v5252, 6
    %v5349 = vsel %vm682, %v5341, %v5236
    %v5350 = vsel %vm684, %v5349, %v5344
    %v5351 = vsel %vm686, %v5350, %v5347
    %v5353 = vrot.slane %v5261, 2
    %v5356 = vrot.slane %v5270, 1
    %v5359 = vrot.slane %v5288, 7
    %v5361 = vsel %vm682, %v5353, %v5356
    %v5362 = vsel %vm684, %v5361, %v5279
    %v5363 = vsel %vm686, %v5362, %v5359
    %v5365 = vrot.slane %v5297, 3
    %v5368 = vrot.slane %v5306, 2
    %v5371 = vrot.slane %v5315, 1
    %v5373 = vsel %vm682, %v5365, %v5368
    %v5374 = vsel %vm684, %v5373, %v5371
    %v5375 = vsel %vm686, %v5374, %v5324
    %s5376 = scalar_lea.vmem [#allocation10], 28
    %5377 = vst [vmem:[%s5376] sm:$0xf] %v5327
    %5378 = vst [vmem:[#allocation2] sm:$0xf] %v5327
    %5379 = vst [vmem:[#allocation3] sm:$0xf] %v5339
    %5380 = vst [vmem:[#allocation3 + $0x4] sm:$0xf] %v5351
    %5381 = vst [vmem:[#allocation3 + $0x8] sm:$0xf] %v5363
    %5382 = vst [vmem:[#allocation3 + $0xc] sm:$0xf] %v5375
    // Predicated region
    $region30: #{tpu_custom_call.1} parent=1 // pred_check
      _
    $region31: #{tpu_custom_call.1} parent=1 // pred_check_branch
      %5384 = sbr.rel (0) target = $region33
    $region32: #{tpu_custom_call.1} parent=1 // pred_region
      %s5386 = ssub.s32 512, 512
      %5387 = vsyncadd [#allocation6], %s5386
      %s5388 = sshll.u32 [#allocation10], 4
      %s5389 = int_to_ptr.vmem [resolvable:$true] %s5388
      %5394 = dma.vmem_to_hbm [thread:$0]  %s5389, 512, %s3, [#allocation6], 64, 64, 4
    $region33: #{tpu_custom_call.1} parent=1 // pred_fallthru
      _
    // Predicated region
    $region34: #{tpu_custom_call.1} parent=1 // pred_check
      _
    $region35: #{tpu_custom_call.1} parent=1 // pred_check_branch
      %5396 = sbr.rel (0) target = $region37
    $region36: #{tpu_custom_call.1} parent=1 // pred_region
      %5397 = dma.done [#allocation6], 512
    $region37: #{tpu_custom_call.1} parent=1 // pred_fallthru
      _
    %5398 = vsyncpa [#allocation5], 1
    %5399 = vsyncpa [#allocation8], 1
    %5400 = vsyncpa [#allocation6], 1

</llo_original>
